<compile_context>
chip_gen: v7x
topology: tpu7x:2x2x1
jax: 0.10.0
libtpu: 0.0.40
codegen_flags: <defaults>
</compile_context>

<pallas_src>
import jax
import jax.numpy as jnp
from jax import lax
from jax.experimental import pallas as pl
from jax.experimental.pallas import tpu as pltpu


_LAYER_DIMS = ((4, 8), (8, 8), (8, 16), (16, 16))   # (Cin, Cout) per conv layer
_POOL_AFTER = (False, True, False, True)            # VGG block structure, scaled down


# ----------------------------- Pallas kernels -----------------------------

def _make_conv_kernel(H, W, Cin, Cout, pool):
    """Fused 3x3 'same' conv + bias + ReLU (+ optional fused 2x2/2 max-pool).

    Per grid step (one image of the batch):
      x_ref : (1, H+2, W+2, Cin)  zero-padded NHWC tile, f32
      w_ref : (9, Cin, Cout)      bf16 weights, tap-major (ky*3+kx)  -- VMEM resident
      b_ref : (1, Cout)           f32 bias                           -- VMEM resident
      o_ref : (1, Ho*Wo, Cout)    f32 output, row-major over (Ho, Wo)
      scr   : (Ho*W, Cout)        f32 VMEM scratch (pool layers only)
    """
    Ho = H // 2 if pool else H
    Wo = W // 2 if pool else W

    def _conv_bias_relu(x_ref, w_ref, b_ref):
        # im2col fused in VMEM: 9 shifted taps read straight from the padded tile,
        # accumulated as bf16 MXU matmuls with f32 accumulation.
        acc = jnp.zeros((H * W, Cout), jnp.float32)
        for t in range(9):
            ky, kx = divmod(t, 3)
            patch = x_ref[0, ky:ky + H, kx:kx + W, :]              # (H, W, Cin)
            lhs = patch.reshape(H * W, Cin).astype(jnp.bfloat16)
            acc = acc + jnp.dot(lhs, w_ref[t],
                                preferred_element_type=jnp.float32)
        return jnp.maximum(acc + b_ref[...], 0.0)                   # (H*W, Cout) f32

    if pool:
        def kernel(x_ref, w_ref, b_ref, o_ref, scr_ref):
            act = _conv_bias_relu(x_ref, w_ref, b_ref)              # (H*W, Cout)
            # pool along H: leading-dim split (W is a multiple of 8 -> no relayout)
            a4 = act.reshape(Ho, 2, W, Cout)
            hmax = jnp.maximum(a4[:, 0], a4[:, 1])                  # (Ho, W, Cout)
            # pool along W: strided sublane reads from VMEM scratch (pure VPU/loads,
            # no MXU selection matrices).
            scr_ref[...] = hmax.reshape(Ho * W, Cout)
            even = scr_ref[pl.ds(0, Ho * Wo, stride=2), :]
            odd = scr_ref[pl.ds(1, Ho * Wo, stride=2), :]
            o_ref[...] = jnp.maximum(even, odd).reshape(1, Ho * Wo, Cout)
    else:
        def kernel(x_ref, w_ref, b_ref, o_ref):
            act = _conv_bias_relu(x_ref, w_ref, b_ref)
            o_ref[...] = act.reshape(1, H * W, Cout)

    return kernel


def _make_mse_kernel(inv_count):
    """Tiled MSE reduction: SMEM scalar accumulator, init at step 0, scale at last."""
    def kernel(p_ref, t_ref, o_ref):
        i = pl.program_id(0)

        @pl.when(i == 0)
        def _():
            o_ref[0, 0] = jnp.float32(0.0)

        d = p_ref[...] - t_ref[...]
        o_ref[0, 0] += jnp.sum(d * d)

        @pl.when(i == pl.num_programs(0) - 1)
        def _():
            o_ref[0, 0] = o_ref[0, 0] * jnp.float32(inv_count)

    return kernel


# ----------------------------- wrappers -----------------------------

def conv3x3_relu_pool(x, w, b, pool):
    """x: (B,H,W,Cin) f32 NHWC; w: (3,3,Cin,Cout) f32 HWIO; b: (Cout,) f32."""
    B, H, W, Cin = x.shape
    Cout = w.shape[-1]
    assert W % 8 == 0, "W must be a multiple of 8 (sublane-aligned in-kernel reshapes)"
    if pool:
        assert H % 2 == 0 and W % 2 == 0, "2x2/2 max-pool requires even H and W"
    Ho = H // 2 if pool else H
    Wo = W // 2 if pool else W

    xp = jnp.pad(x, ((0, 0), (1, 1), (1, 1), (0, 0)))               # 'same' halo
    wk = w.reshape(9, Cin, Cout).astype(jnp.bfloat16)               # tap-major, bf16 MXU
    bk = b.reshape(1, Cout).astype(jnp.float32)

    scratch = [pltpu.VMEM((Ho * W, Cout), jnp.float32)] if pool else []
    out = pl.pallas_call(
        _make_conv_kernel(H, W, Cin, Cout, pool),
        out_shape=jax.ShapeDtypeStruct((B, Ho * Wo, Cout), jnp.float32),
        grid=(B,),
        in_specs=[
            pl.BlockSpec((1, H + 2, W + 2, Cin), lambda n: (n, 0, 0, 0)),
            # constant block index -> weights/bias stay VMEM-resident across grid steps
            pl.BlockSpec((9, Cin, Cout), lambda n: (0, 0, 0)),
            pl.BlockSpec((1, Cout), lambda n: (0, 0)),
        ],
        out_specs=pl.BlockSpec((1, Ho * Wo, Cout), lambda n: (n, 0, 0)),
        scratch_shapes=scratch,
        compiler_params=pltpu.CompilerParams(
            dimension_semantics=("parallel",)),
    )(xp, wk, bk)
    # TODO(synk): at the synthetic Cout of 8/16 the output stores are lane-masked; real
    # VGG19 channel counts (64-512) fill the 128-lane axis without any repacking.
    return out.reshape(B, Ho, Wo, Cout)


def mse_pallas(p, t):
    """Mean squared error over all elements (nn.MSELoss default reduction='mean')."""
    count = p.size
    lanes = 128
    pf = p.reshape(-1).astype(jnp.float32)
    tf = t.reshape(-1).astype(jnp.float32)

    rows = pl.cdiv(count, lanes)
    tr = min(rows, 512)
    if rows > tr:
        tr = max(8, (tr // 8) * 8)              # multiple of 8 when actually tiling
    padded_rows = pl.cdiv(rows, tr) * tr
    pad = padded_rows * lanes - count           # zero padding contributes 0 to the sum
    pf = jnp.pad(pf, (0, pad)).reshape(padded_rows, lanes)
    tf = jnp.pad(tf, (0, pad)).reshape(padded_rows, lanes)

    out = pl.pallas_call(
        _make_mse_kernel(1.0 / count),
        out_shape=jax.ShapeDtypeStruct((1, 1), jnp.float32),
        grid=(padded_rows // tr,),
        in_specs=[pl.BlockSpec((tr, lanes), lambda i: (i, 0)),
                  pl.BlockSpec((tr, lanes), lambda i: (i, 0))],
        out_specs=pl.BlockSpec((1, 1), lambda i: (0, 0),
                               memory_space=pltpu.MemorySpace.SMEM),
        compiler_params=pltpu.CompilerParams(
            dimension_semantics=("arbitrary",)),
    )(pf, tf)
    return out[0, 0]


def backbone_pallas(x_nchw, params):
    x = jnp.transpose(x_nchw, (0, 2, 3, 1))     # NCHW -> NHWC once
    for (w, b), pool in zip(params, _POOL_AFTER):
        x = conv3x3_relu_pool(x, w, b, pool)
    return x


def perceptual_loss(predict_nchw, target_nchw, params):
    # Run predict & target through the backbone as ONE batched pass:
    # half the kernel launches, each layer's weights DMA'd once.
    both = jnp.concatenate([predict_nchw, target_nchw], axis=0)
    feats = backbone_pallas(both, params)
    n = predict_nchw.shape[0]
    return mse_pallas(feats[:n], feats[n:])


# ----------------------------- pure-JAX reference -----------------------------

def _reference_loss(predict_nchw, target_nchw, params):
    def backbone(x):
        x = jnp.transpose(x, (0, 2, 3, 1))
        for (w, b), pool in zip(params, _POOL_AFTER):
            x = lax.conv_general_dilated(
                x, w, (1, 1), 'SAME',
                dimension_numbers=('NHWC', 'HWIO', 'NHWC'))
            x = jnp.maximum(x + b, 0.0)
            if pool:
                x = lax.reduce_window(x, -jnp.inf, lax.max,
                                      (1, 2, 2, 1), (1, 2, 2, 1), 'VALID')
        return x

    fp = backbone(predict_nchw)
    ft = backbone(target_nchw)
    return jnp.mean((fp - ft) ** 2)


# ----------------------------- main -----------------------------

def _init_params(key):
    """Deterministic synthetic backbone weights (frozen, eval-mode semantics)."""
    params = []
    for i, (cin, cout) in enumerate(_LAYER_DIMS):
        kw, kb = jax.random.split(jax.random.fold_in(key, i))
        w = jax.random.normal(kw, (3, 3, cin, cout), jnp.float32) / jnp.sqrt(9.0 * cin)
        b = 0.01 * jax.random.normal(kb, (cout,), jnp.float32)
        params.append((w, b))
    return params


if __name__ == "__main__":
    key = jax.random.PRNGKey(0)
    k_pred, k_targ, k_params = jax.random.split(key, 3)

    N, C, H, W = 2, 4, 16, 16   # small NCHW inputs (PyTorch convention)
    predict = jax.random.normal(k_pred, (N, C, H, W), jnp.float32)
    target = jax.random.normal(k_targ, (N, C, H, W), jnp.float32)
    params = _init_params(k_params)

    loss = jax.jit(perceptual_loss)(predict, target, params)
    loss = jax.block_until_ready(loss)

    ref = _reference_loss(predict, target, params)
    assert jnp.isfinite(loss), "loss is not finite"
    # bf16 MXU inputs with f32 accumulation (per perf guidance) -> slightly relaxed rtol.
    assert jnp.allclose(loss, ref, rtol=3e-2, atol=1e-6), (loss, ref)

    print("KERNEL_OK")
</pallas_src>

<mosaic_0001>
module attributes {stable_mosaic.version = 11 : i64} {
  func.func @kernel(%arg0: i32, %arg1: memref<1x18x18x4xf32, #tpu.memory_space<vmem>>, %arg2: memref<9x4x8xbf16, #tpu.memory_space<vmem>>, %arg3: memref<1x8xf32, #tpu.memory_space<vmem>>, %arg4: memref<1x256x8xf32, #tpu.memory_space<vmem>>) attributes {dimension_semantics = [#tpu.dimension_semantics<parallel>], iteration_bounds = array<i64: 4>, scalar_prefetch = 0 : i64, scratch_operands = 0 : i64, tpu.core_type = #tpu.core_type<tc>, window_params = [{transform_indices = @transform_0, window_bounds = array<i64: 1, 18, 18, 4>}, {pipeline_mode = #tpu.pipeline_mode<synchronous>, transform_indices = @transform_1, window_bounds = array<i64: 9, 4, 8>}, {pipeline_mode = #tpu.pipeline_mode<synchronous>, transform_indices = @transform_2, window_bounds = array<i64: 1, 8>}, {transform_indices = @transform_3, window_bounds = array<i64: 1, 256, 8>}]} {
    %cst = arith.constant 0.000000e+00 : f32
    %0 = vector.broadcast %cst : f32 to vector<256x8xf32>
    %c0 = arith.constant 0 : index
    %c0_0 = arith.constant 0 : index
    %c0_1 = arith.constant 0 : index
    %c0_2 = arith.constant 0 : index
    %1 = vector.load %arg1[%c0, %c0_0, %c0_1, %c0_2] : memref<1x18x18x4xf32, #tpu.memory_space<vmem>>, vector<1x16x16x4xf32>
    %2 = vector.shape_cast %1 : vector<1x16x16x4xf32> to vector<16x16x4xf32>
    %3 = vector.shape_cast %2 : vector<16x16x4xf32> to vector<256x4xf32>
    %4 = arith.truncf %3 : vector<256x4xf32> to vector<256x4xbf16>
    %c0_3 = arith.constant 0 : index
    %c0_4 = arith.constant 0 : index
    %c0_5 = arith.constant 0 : index
    %5 = vector.load %arg2[%c0_3, %c0_4, %c0_5] : memref<9x4x8xbf16, #tpu.memory_space<vmem>>, vector<1x4x8xbf16>
    %6 = vector.shape_cast %5 : vector<1x4x8xbf16> to vector<4x8xbf16>
    %cst_6 = arith.constant dense<0.000000e+00> : vector<256x8xf32>
    %7 = tpu.matmul %4, %6, %cst_6 {dimension_numbers = #tpu.dot_dimension_numbers<[1], [0], [0], [1], [0, 0, 1, 1], [], []>} : vector<256x4xbf16>, vector<4x8xbf16>, vector<256x8xf32> -> vector<256x8xf32>
    %8 = arith.addf %0, %7 : vector<256x8xf32>
    %c0_7 = arith.constant 0 : index
    %c0_8 = arith.constant 0 : index
    %c1 = arith.constant 1 : index
    %c0_9 = arith.constant 0 : index
    %9 = vector.load %arg1[%c0_7, %c0_8, %c1, %c0_9] : memref<1x18x18x4xf32, #tpu.memory_space<vmem>>, vector<1x16x16x4xf32>
    %10 = vector.shape_cast %9 : vector<1x16x16x4xf32> to vector<16x16x4xf32>
    %11 = vector.shape_cast %10 : vector<16x16x4xf32> to vector<256x4xf32>
    %12 = arith.truncf %11 : vector<256x4xf32> to vector<256x4xbf16>
    %c1_10 = arith.constant 1 : index
    %c0_11 = arith.constant 0 : index
    %c0_12 = arith.constant 0 : index
    %13 = vector.load %arg2[%c1_10, %c0_11, %c0_12] : memref<9x4x8xbf16, #tpu.memory_space<vmem>>, vector<1x4x8xbf16>
    %14 = vector.shape_cast %13 : vector<1x4x8xbf16> to vector<4x8xbf16>
    %cst_13 = arith.constant dense<0.000000e+00> : vector<256x8xf32>
    %15 = tpu.matmul %12, %14, %cst_13 {dimension_numbers = #tpu.dot_dimension_numbers<[1], [0], [0], [1], [0, 0, 1, 1], [], []>} : vector<256x4xbf16>, vector<4x8xbf16>, vector<256x8xf32> -> vector<256x8xf32>
    %16 = arith.addf %8, %15 : vector<256x8xf32>
    %c0_14 = arith.constant 0 : index
    %c0_15 = arith.constant 0 : index
    %c2 = arith.constant 2 : index
    %c0_16 = arith.constant 0 : index
    %17 = vector.load %arg1[%c0_14, %c0_15, %c2, %c0_16] : memref<1x18x18x4xf32, #tpu.memory_space<vmem>>, vector<1x16x16x4xf32>
    %18 = vector.shape_cast %17 : vector<1x16x16x4xf32> to vector<16x16x4xf32>
    %19 = vector.shape_cast %18 : vector<16x16x4xf32> to vector<256x4xf32>
    %20 = arith.truncf %19 : vector<256x4xf32> to vector<256x4xbf16>
    %c2_17 = arith.constant 2 : index
    %c0_18 = arith.constant 0 : index
    %c0_19 = arith.constant 0 : index
    %21 = vector.load %arg2[%c2_17, %c0_18, %c0_19] : memref<9x4x8xbf16, #tpu.memory_space<vmem>>, vector<1x4x8xbf16>
    %22 = vector.shape_cast %21 : vector<1x4x8xbf16> to vector<4x8xbf16>
    %cst_20 = arith.constant dense<0.000000e+00> : vector<256x8xf32>
    %23 = tpu.matmul %20, %22, %cst_20 {dimension_numbers = #tpu.dot_dimension_numbers<[1], [0], [0], [1], [0, 0, 1, 1], [], []>} : vector<256x4xbf16>, vector<4x8xbf16>, vector<256x8xf32> -> vector<256x8xf32>
    %24 = arith.addf %16, %23 : vector<256x8xf32>
    %c0_21 = arith.constant 0 : index
    %c1_22 = arith.constant 1 : index
    %c0_23 = arith.constant 0 : index
    %c0_24 = arith.constant 0 : index
    %25 = vector.load %arg1[%c0_21, %c1_22, %c0_23, %c0_24] : memref<1x18x18x4xf32, #tpu.memory_space<vmem>>, vector<1x16x16x4xf32>
    %26 = vector.shape_cast %25 : vector<1x16x16x4xf32> to vector<16x16x4xf32>
    %27 = vector.shape_cast %26 : vector<16x16x4xf32> to vector<256x4xf32>
    %28 = arith.truncf %27 : vector<256x4xf32> to vector<256x4xbf16>
    %c3 = arith.constant 3 : index
    %c0_25 = arith.constant 0 : index
    %c0_26 = arith.constant 0 : index
    %29 = vector.load %arg2[%c3, %c0_25, %c0_26] : memref<9x4x8xbf16, #tpu.memory_space<vmem>>, vector<1x4x8xbf16>
    %30 = vector.shape_cast %29 : vector<1x4x8xbf16> to vector<4x8xbf16>
    %cst_27 = arith.constant dense<0.000000e+00> : vector<256x8xf32>
    %31 = tpu.matmul %28, %30, %cst_27 {dimension_numbers = #tpu.dot_dimension_numbers<[1], [0], [0], [1], [0, 0, 1, 1], [], []>} : vector<256x4xbf16>, vector<4x8xbf16>, vector<256x8xf32> -> vector<256x8xf32>
    %32 = arith.addf %24, %31 : vector<256x8xf32>
    %c0_28 = arith.constant 0 : index
    %c1_29 = arith.constant 1 : index
    %c1_30 = arith.constant 1 : index
    %c0_31 = arith.constant 0 : index
    %33 = vector.load %arg1[%c0_28, %c1_29, %c1_30, %c0_31] : memref<1x18x18x4xf32, #tpu.memory_space<vmem>>, vector<1x16x16x4xf32>
    %34 = vector.shape_cast %33 : vector<1x16x16x4xf32> to vector<16x16x4xf32>
    %35 = vector.shape_cast %34 : vector<16x16x4xf32> to vector<256x4xf32>
    %36 = arith.truncf %35 : vector<256x4xf32> to vector<256x4xbf16>
    %c4 = arith.constant 4 : index
    %c0_32 = arith.constant 0 : index
    %c0_33 = arith.constant 0 : index
    %37 = vector.load %arg2[%c4, %c0_32, %c0_33] : memref<9x4x8xbf16, #tpu.memory_space<vmem>>, vector<1x4x8xbf16>
    %38 = vector.shape_cast %37 : vector<1x4x8xbf16> to vector<4x8xbf16>
    %cst_34 = arith.constant dense<0.000000e+00> : vector<256x8xf32>
    %39 = tpu.matmul %36, %38, %cst_34 {dimension_numbers = #tpu.dot_dimension_numbers<[1], [0], [0], [1], [0, 0, 1, 1], [], []>} : vector<256x4xbf16>, vector<4x8xbf16>, vector<256x8xf32> -> vector<256x8xf32>
    %40 = arith.addf %32, %39 : vector<256x8xf32>
    %c0_35 = arith.constant 0 : index
    %c1_36 = arith.constant 1 : index
    %c2_37 = arith.constant 2 : index
    %c0_38 = arith.constant 0 : index
    %41 = vector.load %arg1[%c0_35, %c1_36, %c2_37, %c0_38] : memref<1x18x18x4xf32, #tpu.memory_space<vmem>>, vector<1x16x16x4xf32>
    %42 = vector.shape_cast %41 : vector<1x16x16x4xf32> to vector<16x16x4xf32>
    %43 = vector.shape_cast %42 : vector<16x16x4xf32> to vector<256x4xf32>
    %44 = arith.truncf %43 : vector<256x4xf32> to vector<256x4xbf16>
    %c5 = arith.constant 5 : index
    %c0_39 = arith.constant 0 : index
    %c0_40 = arith.constant 0 : index
    %45 = vector.load %arg2[%c5, %c0_39, %c0_40] : memref<9x4x8xbf16, #tpu.memory_space<vmem>>, vector<1x4x8xbf16>
    %46 = vector.shape_cast %45 : vector<1x4x8xbf16> to vector<4x8xbf16>
    %cst_41 = arith.constant dense<0.000000e+00> : vector<256x8xf32>
    %47 = tpu.matmul %44, %46, %cst_41 {dimension_numbers = #tpu.dot_dimension_numbers<[1], [0], [0], [1], [0, 0, 1, 1], [], []>} : vector<256x4xbf16>, vector<4x8xbf16>, vector<256x8xf32> -> vector<256x8xf32>
    %48 = arith.addf %40, %47 : vector<256x8xf32>
    %c0_42 = arith.constant 0 : index
    %c2_43 = arith.constant 2 : index
    %c0_44 = arith.constant 0 : index
    %c0_45 = arith.constant 0 : index
    %49 = vector.load %arg1[%c0_42, %c2_43, %c0_44, %c0_45] : memref<1x18x18x4xf32, #tpu.memory_space<vmem>>, vector<1x16x16x4xf32>
    %50 = vector.shape_cast %49 : vector<1x16x16x4xf32> to vector<16x16x4xf32>
    %51 = vector.shape_cast %50 : vector<16x16x4xf32> to vector<256x4xf32>
    %52 = arith.truncf %51 : vector<256x4xf32> to vector<256x4xbf16>
    %c6 = arith.constant 6 : index
    %c0_46 = arith.constant 0 : index
    %c0_47 = arith.constant 0 : index
    %53 = vector.load %arg2[%c6, %c0_46, %c0_47] : memref<9x4x8xbf16, #tpu.memory_space<vmem>>, vector<1x4x8xbf16>
    %54 = vector.shape_cast %53 : vector<1x4x8xbf16> to vector<4x8xbf16>
    %cst_48 = arith.constant dense<0.000000e+00> : vector<256x8xf32>
    %55 = tpu.matmul %52, %54, %cst_48 {dimension_numbers = #tpu.dot_dimension_numbers<[1], [0], [0], [1], [0, 0, 1, 1], [], []>} : vector<256x4xbf16>, vector<4x8xbf16>, vector<256x8xf32> -> vector<256x8xf32>
    %56 = arith.addf %48, %55 : vector<256x8xf32>
    %c0_49 = arith.constant 0 : index
    %c2_50 = arith.constant 2 : index
    %c1_51 = arith.constant 1 : index
    %c0_52 = arith.constant 0 : index
    %57 = vector.load %arg1[%c0_49, %c2_50, %c1_51, %c0_52] : memref<1x18x18x4xf32, #tpu.memory_space<vmem>>, vector<1x16x16x4xf32>
    %58 = vector.shape_cast %57 : vector<1x16x16x4xf32> to vector<16x16x4xf32>
    %59 = vector.shape_cast %58 : vector<16x16x4xf32> to vector<256x4xf32>
    %60 = arith.truncf %59 : vector<256x4xf32> to vector<256x4xbf16>
    %c7 = arith.constant 7 : index
    %c0_53 = arith.constant 0 : index
    %c0_54 = arith.constant 0 : index
    %61 = vector.load %arg2[%c7, %c0_53, %c0_54] : memref<9x4x8xbf16, #tpu.memory_space<vmem>>, vector<1x4x8xbf16>
    %62 = vector.shape_cast %61 : vector<1x4x8xbf16> to vector<4x8xbf16>
    %cst_55 = arith.constant dense<0.000000e+00> : vector<256x8xf32>
    %63 = tpu.matmul %60, %62, %cst_55 {dimension_numbers = #tpu.dot_dimension_numbers<[1], [0], [0], [1], [0, 0, 1, 1], [], []>} : vector<256x4xbf16>, vector<4x8xbf16>, vector<256x8xf32> -> vector<256x8xf32>
    %64 = arith.addf %56, %63 : vector<256x8xf32>
    %c0_56 = arith.constant 0 : index
    %c2_57 = arith.constant 2 : index
    %c2_58 = arith.constant 2 : index
    %c0_59 = arith.constant 0 : index
    %65 = vector.load %arg1[%c0_56, %c2_57, %c2_58, %c0_59] : memref<1x18x18x4xf32, #tpu.memory_space<vmem>>, vector<1x16x16x4xf32>
    %66 = vector.shape_cast %65 : vector<1x16x16x4xf32> to vector<16x16x4xf32>
    %67 = vector.shape_cast %66 : vector<16x16x4xf32> to vector<256x4xf32>
    %68 = arith.truncf %67 : vector<256x4xf32> to vector<256x4xbf16>
    %c8 = arith.constant 8 : index
    %c0_60 = arith.constant 0 : index
    %c0_61 = arith.constant 0 : index
    %69 = vector.load %arg2[%c8, %c0_60, %c0_61] : memref<9x4x8xbf16, #tpu.memory_space<vmem>>, vector<1x4x8xbf16>
    %70 = vector.shape_cast %69 : vector<1x4x8xbf16> to vector<4x8xbf16>
    %cst_62 = arith.constant dense<0.000000e+00> : vector<256x8xf32>
    %71 = tpu.matmul %68, %70, %cst_62 {dimension_numbers = #tpu.dot_dimension_numbers<[1], [0], [0], [1], [0, 0, 1, 1], [], []>} : vector<256x4xbf16>, vector<4x8xbf16>, vector<256x8xf32> -> vector<256x8xf32>
    %72 = arith.addf %64, %71 : vector<256x8xf32>
    %c0_63 = arith.constant 0 : index
    %c0_64 = arith.constant 0 : index
    %73 = vector.load %arg3[%c0_63, %c0_64] : memref<1x8xf32, #tpu.memory_space<vmem>>, vector<1x8xf32>
    %74 = vector.broadcast %73 : vector<1x8xf32> to vector<256x8xf32>
    %75 = arith.addf %72, %74 : vector<256x8xf32>
    %cst_65 = arith.constant 0.000000e+00 : f32
    %76 = vector.broadcast %cst_65 : f32 to vector<256x8xf32>
    %77 = arith.maximumf %75, %76 : vector<256x8xf32>
    %78 = vector.shape_cast %77 : vector<256x8xf32> to vector<1x256x8xf32>
    %c0_66 = arith.constant 0 : index
    %c0_67 = arith.constant 0 : index
    %c0_68 = arith.constant 0 : index
    %79 = vector.load %arg4[%c0_66, %c0_67, %c0_68] : memref<1x256x8xf32, #tpu.memory_space<vmem>>, vector<1x256x8xf32>
    tpu.vector_store %arg4[%c0_66, %c0_67, %c0_68], %78 {strides = array<i32>} : memref<1x256x8xf32, #tpu.memory_space<vmem>>, vector<1x256x8xf32>,
    return
  }
  func.func @transform_0(%arg0: i32) -> (i32, i32, i32, i32) {
    %c0_i32 = arith.constant 0 : i32
    %c0_i32_0 = arith.constant 0 : i32
    %c0_i32_1 = arith.constant 0 : i32
    %c0_i32_2 = arith.constant 0 : i32
    return %arg0, %c0_i32, %c0_i32_0, %c0_i32_1 : i32, i32, i32, i32
  }
  func.func @transform_1(%arg0: i32) -> (i32, i32, i32) {
    %c0_i32 = arith.constant 0 : i32
    %c0_i32_0 = arith.constant 0 : i32
    %c0_i32_1 = arith.constant 0 : i32
    %c0_i32_2 = arith.constant 0 : i32
    return %c0_i32, %c0_i32_0, %c0_i32_1 : i32, i32, i32
  }
  func.func @transform_2(%arg0: i32) -> (i32, i32) {
    %c0_i32 = arith.constant 0 : i32
    %c0_i32_0 = arith.constant 0 : i32
    %c0_i32_1 = arith.constant 0 : i32
    return %c0_i32, %c0_i32_0 : i32, i32
  }
  func.func @transform_3(%arg0: i32) -> (i32, i32, i32) {
    %c0_i32 = arith.constant 0 : i32
    %c0_i32_0 = arith.constant 0 : i32
    %c0_i32_1 = arith.constant 0 : i32
    return %arg0, %c0_i32, %c0_i32_0 : i32, i32, i32
  }
}

module attributes {stable_mosaic.version = 11 : i64} {
  func.func @kernel(%arg0: i32, %arg1: memref<1x18x18x8xf32, #tpu.memory_space<vmem>>, %arg2: memref<9x8x8xbf16, #tpu.memory_space<vmem>>, %arg3: memref<1x8xf32, #tpu.memory_space<vmem>>, %arg4: memref<1x64x8xf32, #tpu.memory_space<vmem>>, %arg5: memref<128x8xf32, #tpu.memory_space<vmem>>) attributes {dimension_semantics = [#tpu.dimension_semantics<parallel>], iteration_bounds = array<i64: 4>, scalar_prefetch = 0 : i64, scratch_operands = 1 : i64, tpu.core_type = #tpu.core_type<tc>, window_params = [{transform_indices = @transform_0, window_bounds = array<i64: 1, 18, 18, 8>}, {pipeline_mode = #tpu.pipeline_mode<synchronous>, transform_indices = @transform_1, window_bounds = array<i64: 9, 8, 8>}, {pipeline_mode = #tpu.pipeline_mode<synchronous>, transform_indices = @transform_2, window_bounds = array<i64: 1, 8>}, {transform_indices = @transform_3, window_bounds = array<i64: 1, 64, 8>}]} {
    %cst = arith.constant 0.000000e+00 : f32
    %0 = vector.broadcast %cst : f32 to vector<256x8xf32>
    %c0 = arith.constant 0 : index
    %c0_0 = arith.constant 0 : index
    %c0_1 = arith.constant 0 : index
    %c0_2 = arith.constant 0 : index
    %1 = vector.load %arg1[%c0, %c0_0, %c0_1, %c0_2] : memref<1x18x18x8xf32, #tpu.memory_space<vmem>>, vector<1x16x16x8xf32>
    %2 = vector.shape_cast %1 : vector<1x16x16x8xf32> to vector<16x16x8xf32>
    %3 = vector.shape_cast %2 : vector<16x16x8xf32> to vector<256x8xf32>
    %4 = arith.truncf %3 : vector<256x8xf32> to vector<256x8xbf16>
    %c0_3 = arith.constant 0 : index
    %c0_4 = arith.constant 0 : index
    %c0_5 = arith.constant 0 : index
    %5 = vector.load %arg2[%c0_3, %c0_4, %c0_5] : memref<9x8x8xbf16, #tpu.memory_space<vmem>>, vector<1x8x8xbf16>
    %6 = vector.shape_cast %5 : vector<1x8x8xbf16> to vector<8x8xbf16>
    %cst_6 = arith.constant dense<0.000000e+00> : vector<256x8xf32>
    %7 = tpu.matmul %4, %6, %cst_6 {dimension_numbers = #tpu.dot_dimension_numbers<[1], [0], [0], [1], [0, 0, 1, 1], [], []>} : vector<256x8xbf16>, vector<8x8xbf16>, vector<256x8xf32> -> vector<256x8xf32>
    %8 = arith.addf %0, %7 : vector<256x8xf32>
    %c0_7 = arith.constant 0 : index
    %c0_8 = arith.constant 0 : index
    %c1 = arith.constant 1 : index
    %c0_9 = arith.constant 0 : index
    %9 = vector.load %arg1[%c0_7, %c0_8, %c1, %c0_9] : memref<1x18x18x8xf32, #tpu.memory_space<vmem>>, vector<1x16x16x8xf32>
    %10 = vector.shape_cast %9 : vector<1x16x16x8xf32> to vector<16x16x8xf32>
    %11 = vector.shape_cast %10 : vector<16x16x8xf32> to vector<256x8xf32>
    %12 = arith.truncf %11 : vector<256x8xf32> to vector<256x8xbf16>
    %c1_10 = arith.constant 1 : index
    %c0_11 = arith.constant 0 : index
    %c0_12 = arith.constant 0 : index
    %13 = vector.load %arg2[%c1_10, %c0_11, %c0_12] : memref<9x8x8xbf16, #tpu.memory_space<vmem>>, vector<1x8x8xbf16>
    %14 = vector.shape_cast %13 : vector<1x8x8xbf16> to vector<8x8xbf16>
    %cst_13 = arith.constant dense<0.000000e+00> : vector<256x8xf32>
    %15 = tpu.matmul %12, %14, %cst_13 {dimension_numbers = #tpu.dot_dimension_numbers<[1], [0], [0], [1], [0, 0, 1, 1], [], []>} : vector<256x8xbf16>, vector<8x8xbf16>, vector<256x8xf32> -> vector<256x8xf32>
    %16 = arith.addf %8, %15 : vector<256x8xf32>
    %c0_14 = arith.constant 0 : index
    %c0_15 = arith.constant 0 : index
    %c2 = arith.constant 2 : index
    %c0_16 = arith.constant 0 : index
    %17 = vector.load %arg1[%c0_14, %c0_15, %c2, %c0_16] : memref<1x18x18x8xf32, #tpu.memory_space<vmem>>, vector<1x16x16x8xf32>
    %18 = vector.shape_cast %17 : vector<1x16x16x8xf32> to vector<16x16x8xf32>
    %19 = vector.shape_cast %18 : vector<16x16x8xf32> to vector<256x8xf32>
    %20 = arith.truncf %19 : vector<256x8xf32> to vector<256x8xbf16>
    %c2_17 = arith.constant 2 : index
    %c0_18 = arith.constant 0 : index
    %c0_19 = arith.constant 0 : index
    %21 = vector.load %arg2[%c2_17, %c0_18, %c0_19] : memref<9x8x8xbf16, #tpu.memory_space<vmem>>, vector<1x8x8xbf16>
    %22 = vector.shape_cast %21 : vector<1x8x8xbf16> to vector<8x8xbf16>
    %cst_20 = arith.constant dense<0.000000e+00> : vector<256x8xf32>
    %23 = tpu.matmul %20, %22, %cst_20 {dimension_numbers = #tpu.dot_dimension_numbers<[1], [0], [0], [1], [0, 0, 1, 1], [], []>} : vector<256x8xbf16>, vector<8x8xbf16>, vector<256x8xf32> -> vector<256x8xf32>
    %24 = arith.addf %16, %23 : vector<256x8xf32>
    %c0_21 = arith.constant 0 : index
    %c1_22 = arith.constant 1 : index
    %c0_23 = arith.constant 0 : index
    %c0_24 = arith.constant 0 : index
    %25 = vector.load %arg1[%c0_21, %c1_22, %c0_23, %c0_24] : memref<1x18x18x8xf32, #tpu.memory_space<vmem>>, vector<1x16x16x8xf32>
    %26 = vector.shape_cast %25 : vector<1x16x16x8xf32> to vector<16x16x8xf32>
    %27 = vector.shape_cast %26 : vector<16x16x8xf32> to vector<256x8xf32>
    %28 = arith.truncf %27 : vector<256x8xf32> to vector<256x8xbf16>
    %c3 = arith.constant 3 : index
    %c0_25 = arith.constant 0 : index
    %c0_26 = arith.constant 0 : index
    %29 = vector.load %arg2[%c3, %c0_25, %c0_26] : memref<9x8x8xbf16, #tpu.memory_space<vmem>>, vector<1x8x8xbf16>
    %30 = vector.shape_cast %29 : vector<1x8x8xbf16> to vector<8x8xbf16>
    %cst_27 = arith.constant dense<0.000000e+00> : vector<256x8xf32>
    %31 = tpu.matmul %28, %30, %cst_27 {dimension_numbers = #tpu.dot_dimension_numbers<[1], [0], [0], [1], [0, 0, 1, 1], [], []>} : vector<256x8xbf16>, vector<8x8xbf16>, vector<256x8xf32> -> vector<256x8xf32>
    %32 = arith.addf %24, %31 : vector<256x8xf32>
    %c0_28 = arith.constant 0 : index
    %c1_29 = arith.constant 1 : index
    %c1_30 = arith.constant 1 : index
    %c0_31 = arith.constant 0 : index
    %33 = vector.load %arg1[%c0_28, %c1_29, %c1_30, %c0_31] : memref<1x18x18x8xf32, #tpu.memory_space<vmem>>, vector<1x16x16x8xf32>
    %34 = vector.shape_cast %33 : vector<1x16x16x8xf32> to vector<16x16x8xf32>
    %35 = vector.shape_cast %34 : vector<16x16x8xf32> to vector<256x8xf32>
    %36 = arith.truncf %35 : vector<256x8xf32> to vector<256x8xbf16>
    %c4 = arith.constant 4 : index
    %c0_32 = arith.constant 0 : index
    %c0_33 = arith.constant 0 : index
    %37 = vector.load %arg2[%c4, %c0_32, %c0_33] : memref<9x8x8xbf16, #tpu.memory_space<vmem>>, vector<1x8x8xbf16>
    %38 = vector.shape_cast %37 : vector<1x8x8xbf16> to vector<8x8xbf16>
    %cst_34 = arith.constant dense<0.000000e+00> : vector<256x8xf32>
    %39 = tpu.matmul %36, %38, %cst_34 {dimension_numbers = #tpu.dot_dimension_numbers<[1], [0], [0], [1], [0, 0, 1, 1], [], []>} : vector<256x8xbf16>, vector<8x8xbf16>, vector<256x8xf32> -> vector<256x8xf32>
    %40 = arith.addf %32, %39 : vector<256x8xf32>
    %c0_35 = arith.constant 0 : index
    %c1_36 = arith.constant 1 : index
    %c2_37 = arith.constant 2 : index
    %c0_38 = arith.constant 0 : index
    %41 = vector.load %arg1[%c0_35, %c1_36, %c2_37, %c0_38] : memref<1x18x18x8xf32, #tpu.memory_space<vmem>>, vector<1x16x16x8xf32>
    %42 = vector.shape_cast %41 : vector<1x16x16x8xf32> to vector<16x16x8xf32>
    %43 = vector.shape_cast %42 : vector<16x16x8xf32> to vector<256x8xf32>
    %44 = arith.truncf %43 : vector<256x8xf32> to vector<256x8xbf16>
    %c5 = arith.constant 5 : index
    %c0_39 = arith.constant 0 : index
    %c0_40 = arith.constant 0 : index
    %45 = vector.load %arg2[%c5, %c0_39, %c0_40] : memref<9x8x8xbf16, #tpu.memory_space<vmem>>, vector<1x8x8xbf16>
    %46 = vector.shape_cast %45 : vector<1x8x8xbf16> to vector<8x8xbf16>
    %cst_41 = arith.constant dense<0.000000e+00> : vector<256x8xf32>
    %47 = tpu.matmul %44, %46, %cst_41 {dimension_numbers = #tpu.dot_dimension_numbers<[1], [0], [0], [1], [0, 0, 1, 1], [], []>} : vector<256x8xbf16>, vector<8x8xbf16>, vector<256x8xf32> -> vector<256x8xf32>
    %48 = arith.addf %40, %47 : vector<256x8xf32>
    %c0_42 = arith.constant 0 : index
    %c2_43 = arith.constant 2 : index
    %c0_44 = arith.constant 0 : index
    %c0_45 = arith.constant 0 : index
    %49 = vector.load %arg1[%c0_42, %c2_43, %c0_44, %c0_45] : memref<1x18x18x8xf32, #tpu.memory_space<vmem>>, vector<1x16x16x8xf32>
    %50 = vector.shape_cast %49 : vector<1x16x16x8xf32> to vector<16x16x8xf32>
    %51 = vector.shape_cast %50 : vector<16x16x8xf32> to vector<256x8xf32>
    %52 = arith.truncf %51 : vector<256x8xf32> to vector<256x8xbf16>
    %c6 = arith.constant 6 : index
    %c0_46 = arith.constant 0 : index
    %c0_47 = arith.constant 0 : index
    %53 = vector.load %arg2[%c6, %c0_46, %c0_47] : memref<9x8x8xbf16, #tpu.memory_space<vmem>>, vector<1x8x8xbf16>
    %54 = vector.shape_cast %53 : vector<1x8x8xbf16> to vector<8x8xbf16>
    %cst_48 = arith.constant dense<0.000000e+00> : vector<256x8xf32>
    %55 = tpu.matmul %52, %54, %cst_48 {dimension_numbers = #tpu.dot_dimension_numbers<[1], [0], [0], [1], [0, 0, 1, 1], [], []>} : vector<256x8xbf16>, vector<8x8xbf16>, vector<256x8xf32> -> vector<256x8xf32>
    %56 = arith.addf %48, %55 : vector<256x8xf32>
    %c0_49 = arith.constant 0 : index
    %c2_50 = arith.constant 2 : index
    %c1_51 = arith.constant 1 : index
    %c0_52 = arith.constant 0 : index
    %57 = vector.load %arg1[%c0_49, %c2_50, %c1_51, %c0_52] : memref<1x18x18x8xf32, #tpu.memory_space<vmem>>, vector<1x16x16x8xf32>
    %58 = vector.shape_cast %57 : vector<1x16x16x8xf32> to vector<16x16x8xf32>
    %59 = vector.shape_cast %58 : vector<16x16x8xf32> to vector<256x8xf32>
    %60 = arith.truncf %59 : vector<256x8xf32> to vector<256x8xbf16>
    %c7 = arith.constant 7 : index
    %c0_53 = arith.constant 0 : index
    %c0_54 = arith.constant 0 : index
    %61 = vector.load %arg2[%c7, %c0_53, %c0_54] : memref<9x8x8xbf16, #tpu.memory_space<vmem>>, vector<1x8x8xbf16>
    %62 = vector.shape_cast %61 : vector<1x8x8xbf16> to vector<8x8xbf16>
    %cst_55 = arith.constant dense<0.000000e+00> : vector<256x8xf32>
    %63 = tpu.matmul %60, %62, %cst_55 {dimension_numbers = #tpu.dot_dimension_numbers<[1], [0], [0], [1], [0, 0, 1, 1], [], []>} : vector<256x8xbf16>, vector<8x8xbf16>, vector<256x8xf32> -> vector<256x8xf32>
    %64 = arith.addf %56, %63 : vector<256x8xf32>
    %c0_56 = arith.constant 0 : index
    %c2_57 = arith.constant 2 : index
    %c2_58 = arith.constant 2 : index
    %c0_59 = arith.constant 0 : index
    %65 = vector.load %arg1[%c0_56, %c2_57, %c2_58, %c0_59] : memref<1x18x18x8xf32, #tpu.memory_space<vmem>>, vector<1x16x16x8xf32>
    %66 = vector.shape_cast %65 : vector<1x16x16x8xf32> to vector<16x16x8xf32>
    %67 = vector.shape_cast %66 : vector<16x16x8xf32> to vector<256x8xf32>
    %68 = arith.truncf %67 : vector<256x8xf32> to vector<256x8xbf16>
    %c8 = arith.constant 8 : index
    %c0_60 = arith.constant 0 : index
    %c0_61 = arith.constant 0 : index
    %69 = vector.load %arg2[%c8, %c0_60, %c0_61] : memref<9x8x8xbf16, #tpu.memory_space<vmem>>, vector<1x8x8xbf16>
    %70 = vector.shape_cast %69 : vector<1x8x8xbf16> to vector<8x8xbf16>
    %cst_62 = arith.constant dense<0.000000e+00> : vector<256x8xf32>
    %71 = tpu.matmul %68, %70, %cst_62 {dimension_numbers = #tpu.dot_dimension_numbers<[1], [0], [0], [1], [0, 0, 1, 1], [], []>} : vector<256x8xbf16>, vector<8x8xbf16>, vector<256x8xf32> -> vector<256x8xf32>
    %72 = arith.addf %64, %71 : vector<256x8xf32>
    %c0_63 = arith.constant 0 : index
    %c0_64 = arith.constant 0 : index
    %73 = vector.load %arg3[%c0_63, %c0_64] : memref<1x8xf32, #tpu.memory_space<vmem>>, vector<1x8xf32>
    %74 = vector.broadcast %73 : vector<1x8xf32> to vector<256x8xf32>
    %75 = arith.addf %72, %74 : vector<256x8xf32>
    %cst_65 = arith.constant 0.000000e+00 : f32
    %76 = vector.broadcast %cst_65 : f32 to vector<256x8xf32>
    %77 = arith.maximumf %75, %76 : vector<256x8xf32>
    %78 = vector.shape_cast %77 : vector<256x8xf32> to vector<8x2x16x8xf32>
    %79 = vector.extract_strided_slice %78 {offsets = [0, 0, 0, 0], sizes = [8, 1, 16, 8], strides = [1, 1, 1, 1]} : vector<8x2x16x8xf32> to vector<8x1x16x8xf32>
    %80 = vector.shape_cast %79 : vector<8x1x16x8xf32> to vector<8x16x8xf32>
    %81 = vector.extract_strided_slice %78 {offsets = [0, 1, 0, 0], sizes = [8, 1, 16, 8], strides = [1, 1, 1, 1]} : vector<8x2x16x8xf32> to vector<8x1x16x8xf32>
    %82 = vector.shape_cast %81 : vector<8x1x16x8xf32> to vector<8x16x8xf32>
    %83 = arith.maximumf %80, %82 : vector<8x16x8xf32>
    %84 = vector.shape_cast %83 : vector<8x16x8xf32> to vector<128x8xf32>
    %c0_66 = arith.constant 0 : index
    %c0_67 = arith.constant 0 : index
    %85 = vector.load %arg5[%c0_66, %c0_67] : memref<128x8xf32, #tpu.memory_space<vmem>>, vector<128x8xf32>
    tpu.vector_store %arg5[%c0_66, %c0_67], %84 {strides = array<i32>} : memref<128x8xf32, #tpu.memory_space<vmem>>, vector<128x8xf32>,
    %c0_68 = arith.constant 0 : index
    %c0_69 = arith.constant 0 : index
    %86 = tpu.strided_load %arg5[%c0_68, %c0_69] {strides = array<i32: 2, 1>} : memref<128x8xf32, #tpu.memory_space<vmem>>, vector<64x8xf32>
    %c1_70 = arith.constant 1 : index
    %c0_71 = arith.constant 0 : index
    %87 = tpu.strided_load %arg5[%c1_70, %c0_71] {strides = array<i32: 2, 1>} : memref<128x8xf32, #tpu.memory_space<vmem>>, vector<64x8xf32>
    %88 = arith.maximumf %86, %87 : vector<64x8xf32>
    %89 = vector.shape_cast %88 : vector<64x8xf32> to vector<1x64x8xf32>
    %c0_72 = arith.constant 0 : index
    %c0_73 = arith.constant 0 : index
    %c0_74 = arith.constant 0 : index
    %90 = vector.load %arg4[%c0_72, %c0_73, %c0_74] : memref<1x64x8xf32, #tpu.memory_space<vmem>>, vector<1x64x8xf32>
    tpu.vector_store %arg4[%c0_72, %c0_73, %c0_74], %89 {strides = array<i32>} : memref<1x64x8xf32, #tpu.memory_space<vmem>>, vector<1x64x8xf32>,
    return
  }
  func.func @transform_0(%arg0: i32) -> (i32, i32, i32, i32) {
    %c0_i32 = arith.constant 0 : i32
    %c0_i32_0 = arith.constant 0 : i32
    %c0_i32_1 = arith.constant 0 : i32
    %c0_i32_2 = arith.constant 0 : i32
    return %arg0, %c0_i32, %c0_i32_0, %c0_i32_1 : i32, i32, i32, i32
  }
  func.func @transform_1(%arg0: i32) -> (i32, i32, i32) {
    %c0_i32 = arith.constant 0 : i32
    %c0_i32_0 = arith.constant 0 : i32
    %c0_i32_1 = arith.constant 0 : i32
    %c0_i32_2 = arith.constant 0 : i32
    return %c0_i32, %c0_i32_0, %c0_i32_1 : i32, i32, i32
  }
  func.func @transform_2(%arg0: i32) -> (i32, i32) {
    %c0_i32 = arith.constant 0 : i32
    %c0_i32_0 = arith.constant 0 : i32
    %c0_i32_1 = arith.constant 0 : i32
    return %c0_i32, %c0_i32_0 : i32, i32
  }
  func.func @transform_3(%arg0: i32) -> (i32, i32, i32) {
    %c0_i32 = arith.constant 0 : i32
    %c0_i32_0 = arith.constant 0 : i32
    %c0_i32_1 = arith.constant 0 : i32
    return %arg0, %c0_i32, %c0_i32_0 : i32, i32, i32
  }
}

module attributes {stable_mosaic.version = 11 : i64} {
  func.func @kernel(%arg0: i32, %arg1: memref<1x10x10x8xf32, #tpu.memory_space<vmem>>, %arg2: memref<9x8x16xbf16, #tpu.memory_space<vmem>>, %arg3: memref<1x16xf32, #tpu.memory_space<vmem>>, %arg4: memref<1x64x16xf32, #tpu.memory_space<vmem>>) attributes {dimension_semantics = [#tpu.dimension_semantics<parallel>], iteration_bounds = array<i64: 4>, scalar_prefetch = 0 : i64, scratch_operands = 0 : i64, tpu.core_type = #tpu.core_type<tc>, window_params = [{transform_indices = @transform_0, window_bounds = array<i64: 1, 10, 10, 8>}, {pipeline_mode = #tpu.pipeline_mode<synchronous>, transform_indices = @transform_1, window_bounds = array<i64: 9, 8, 16>}, {pipeline_mode = #tpu.pipeline_mode<synchronous>, transform_indices = @transform_2, window_bounds = array<i64: 1, 16>}, {transform_indices = @transform_3, window_bounds = array<i64: 1, 64, 16>}]} {
    %cst = arith.constant 0.000000e+00 : f32
    %0 = vector.broadcast %cst : f32 to vector<64x16xf32>
    %c0 = arith.constant 0 : index
    %c0_0 = arith.constant 0 : index
    %c0_1 = arith.constant 0 : index
    %c0_2 = arith.constant 0 : index
    %1 = vector.load %arg1[%c0, %c0_0, %c0_1, %c0_2] : memref<1x10x10x8xf32, #tpu.memory_space<vmem>>, vector<1x8x8x8xf32>
    %2 = vector.shape_cast %1 : vector<1x8x8x8xf32> to vector<8x8x8xf32>
    %3 = vector.shape_cast %2 : vector<8x8x8xf32> to vector<64x8xf32>
    %4 = arith.truncf %3 : vector<64x8xf32> to vector<64x8xbf16>
    %c0_3 = arith.constant 0 : index
    %c0_4 = arith.constant 0 : index
    %c0_5 = arith.constant 0 : index
    %5 = vector.load %arg2[%c0_3, %c0_4, %c0_5] : memref<9x8x16xbf16, #tpu.memory_space<vmem>>, vector<1x8x16xbf16>
    %6 = vector.shape_cast %5 : vector<1x8x16xbf16> to vector<8x16xbf16>
    %cst_6 = arith.constant dense<0.000000e+00> : vector<64x16xf32>
    %7 = tpu.matmul %4, %6, %cst_6 {dimension_numbers = #tpu.dot_dimension_numbers<[1], [0], [0], [1], [0, 0, 1, 1], [], []>} : vector<64x8xbf16>, vector<8x16xbf16>, vector<64x16xf32> -> vector<64x16xf32>
    %8 = arith.addf %0, %7 : vector<64x16xf32>
    %c0_7 = arith.constant 0 : index
    %c0_8 = arith.constant 0 : index
    %c1 = arith.constant 1 : index
    %c0_9 = arith.constant 0 : index
    %9 = vector.load %arg1[%c0_7, %c0_8, %c1, %c0_9] : memref<1x10x10x8xf32, #tpu.memory_space<vmem>>, vector<1x8x8x8xf32>
    %10 = vector.shape_cast %9 : vector<1x8x8x8xf32> to vector<8x8x8xf32>
    %11 = vector.shape_cast %10 : vector<8x8x8xf32> to vector<64x8xf32>
    %12 = arith.truncf %11 : vector<64x8xf32> to vector<64x8xbf16>
    %c1_10 = arith.constant 1 : index
    %c0_11 = arith.constant 0 : index
    %c0_12 = arith.constant 0 : index
    %13 = vector.load %arg2[%c1_10, %c0_11, %c0_12] : memref<9x8x16xbf16, #tpu.memory_space<vmem>>, vector<1x8x16xbf16>
    %14 = vector.shape_cast %13 : vector<1x8x16xbf16> to vector<8x16xbf16>
    %cst_13 = arith.constant dense<0.000000e+00> : vector<64x16xf32>
    %15 = tpu.matmul %12, %14, %cst_13 {dimension_numbers = #tpu.dot_dimension_numbers<[1], [0], [0], [1], [0, 0, 1, 1], [], []>} : vector<64x8xbf16>, vector<8x16xbf16>, vector<64x16xf32> -> vector<64x16xf32>
    %16 = arith.addf %8, %15 : vector<64x16xf32>
    %c0_14 = arith.constant 0 : index
    %c0_15 = arith.constant 0 : index
    %c2 = arith.constant 2 : index
    %c0_16 = arith.constant 0 : index
    %17 = vector.load %arg1[%c0_14, %c0_15, %c2, %c0_16] : memref<1x10x10x8xf32, #tpu.memory_space<vmem>>, vector<1x8x8x8xf32>
    %18 = vector.shape_cast %17 : vector<1x8x8x8xf32> to vector<8x8x8xf32>
    %19 = vector.shape_cast %18 : vector<8x8x8xf32> to vector<64x8xf32>
    %20 = arith.truncf %19 : vector<64x8xf32> to vector<64x8xbf16>
    %c2_17 = arith.constant 2 : index
    %c0_18 = arith.constant 0 : index
    %c0_19 = arith.constant 0 : index
    %21 = vector.load %arg2[%c2_17, %c0_18, %c0_19] : memref<9x8x16xbf16, #tpu.memory_space<vmem>>, vector<1x8x16xbf16>
    %22 = vector.shape_cast %21 : vector<1x8x16xbf16> to vector<8x16xbf16>
    %cst_20 = arith.constant dense<0.000000e+00> : vector<64x16xf32>
    %23 = tpu.matmul %20, %22, %cst_20 {dimension_numbers = #tpu.dot_dimension_numbers<[1], [0], [0], [1], [0, 0, 1, 1], [], []>} : vector<64x8xbf16>, vector<8x16xbf16>, vector<64x16xf32> -> vector<64x16xf32>
    %24 = arith.addf %16, %23 : vector<64x16xf32>
    %c0_21 = arith.constant 0 : index
    %c1_22 = arith.constant 1 : index
    %c0_23 = arith.constant 0 : index
    %c0_24 = arith.constant 0 : index
    %25 = vector.load %arg1[%c0_21, %c1_22, %c0_23, %c0_24] : memref<1x10x10x8xf32, #tpu.memory_space<vmem>>, vector<1x8x8x8xf32>
    %26 = vector.shape_cast %25 : vector<1x8x8x8xf32> to vector<8x8x8xf32>
    %27 = vector.shape_cast %26 : vector<8x8x8xf32> to vector<64x8xf32>
    %28 = arith.truncf %27 : vector<64x8xf32> to vector<64x8xbf16>
    %c3 = arith.constant 3 : index
    %c0_25 = arith.constant 0 : index
    %c0_26 = arith.constant 0 : index
    %29 = vector.load %arg2[%c3, %c0_25, %c0_26] : memref<9x8x16xbf16, #tpu.memory_space<vmem>>, vector<1x8x16xbf16>
    %30 = vector.shape_cast %29 : vector<1x8x16xbf16> to vector<8x16xbf16>
    %cst_27 = arith.constant dense<0.000000e+00> : vector<64x16xf32>
    %31 = tpu.matmul %28, %30, %cst_27 {dimension_numbers = #tpu.dot_dimension_numbers<[1], [0], [0], [1], [0, 0, 1, 1], [], []>} : vector<64x8xbf16>, vector<8x16xbf16>, vector<64x16xf32> -> vector<64x16xf32>
    %32 = arith.addf %24, %31 : vector<64x16xf32>
    %c0_28 = arith.constant 0 : index
    %c1_29 = arith.constant 1 : index
    %c1_30 = arith.constant 1 : index
    %c0_31 = arith.constant 0 : index
    %33 = vector.load %arg1[%c0_28, %c1_29, %c1_30, %c0_31] : memref<1x10x10x8xf32, #tpu.memory_space<vmem>>, vector<1x8x8x8xf32>
    %34 = vector.shape_cast %33 : vector<1x8x8x8xf32> to vector<8x8x8xf32>
    %35 = vector.shape_cast %34 : vector<8x8x8xf32> to vector<64x8xf32>
    %36 = arith.truncf %35 : vector<64x8xf32> to vector<64x8xbf16>
    %c4 = arith.constant 4 : index
    %c0_32 = arith.constant 0 : index
    %c0_33 = arith.constant 0 : index
    %37 = vector.load %arg2[%c4, %c0_32, %c0_33] : memref<9x8x16xbf16, #tpu.memory_space<vmem>>, vector<1x8x16xbf16>
    %38 = vector.shape_cast %37 : vector<1x8x16xbf16> to vector<8x16xbf16>
    %cst_34 = arith.constant dense<0.000000e+00> : vector<64x16xf32>
    %39 = tpu.matmul %36, %38, %cst_34 {dimension_numbers = #tpu.dot_dimension_numbers<[1], [0], [0], [1], [0, 0, 1, 1], [], []>} : vector<64x8xbf16>, vector<8x16xbf16>, vector<64x16xf32> -> vector<64x16xf32>
    %40 = arith.addf %32, %39 : vector<64x16xf32>
    %c0_35 = arith.constant 0 : index
    %c1_36 = arith.constant 1 : index
    %c2_37 = arith.constant 2 : index
    %c0_38 = arith.constant 0 : index
    %41 = vector.load %arg1[%c0_35, %c1_36, %c2_37, %c0_38] : memref<1x10x10x8xf32, #tpu.memory_space<vmem>>, vector<1x8x8x8xf32>
    %42 = vector.shape_cast %41 : vector<1x8x8x8xf32> to vector<8x8x8xf32>
    %43 = vector.shape_cast %42 : vector<8x8x8xf32> to vector<64x8xf32>
    %44 = arith.truncf %43 : vector<64x8xf32> to vector<64x8xbf16>
    %c5 = arith.constant 5 : index
    %c0_39 = arith.constant 0 : index
    %c0_40 = arith.constant 0 : index
    %45 = vector.load %arg2[%c5, %c0_39, %c0_40] : memref<9x8x16xbf16, #tpu.memory_space<vmem>>, vector<1x8x16xbf16>
    %46 = vector.shape_cast %45 : vector<1x8x16xbf16> to vector<8x16xbf16>
    %cst_41 = arith.constant dense<0.000000e+00> : vector<64x16xf32>
    %47 = tpu.matmul %44, %46, %cst_41 {dimension_numbers = #tpu.dot_dimension_numbers<[1], [0], [0], [1], [0, 0, 1, 1], [], []>} : vector<64x8xbf16>, vector<8x16xbf16>, vector<64x16xf32> -> vector<64x16xf32>
    %48 = arith.addf %40, %47 : vector<64x16xf32>
    %c0_42 = arith.constant 0 : index
    %c2_43 = arith.constant 2 : index
    %c0_44 = arith.constant 0 : index
    %c0_45 = arith.constant 0 : index
    %49 = vector.load %arg1[%c0_42, %c2_43, %c0_44, %c0_45] : memref<1x10x10x8xf32, #tpu.memory_space<vmem>>, vector<1x8x8x8xf32>
    %50 = vector.shape_cast %49 : vector<1x8x8x8xf32> to vector<8x8x8xf32>
    %51 = vector.shape_cast %50 : vector<8x8x8xf32> to vector<64x8xf32>
    %52 = arith.truncf %51 : vector<64x8xf32> to vector<64x8xbf16>
    %c6 = arith.constant 6 : index
    %c0_46 = arith.constant 0 : index
    %c0_47 = arith.constant 0 : index
    %53 = vector.load %arg2[%c6, %c0_46, %c0_47] : memref<9x8x16xbf16, #tpu.memory_space<vmem>>, vector<1x8x16xbf16>
    %54 = vector.shape_cast %53 : vector<1x8x16xbf16> to vector<8x16xbf16>
    %cst_48 = arith.constant dense<0.000000e+00> : vector<64x16xf32>
    %55 = tpu.matmul %52, %54, %cst_48 {dimension_numbers = #tpu.dot_dimension_numbers<[1], [0], [0], [1], [0, 0, 1, 1], [], []>} : vector<64x8xbf16>, vector<8x16xbf16>, vector<64x16xf32> -> vector<64x16xf32>
    %56 = arith.addf %48, %55 : vector<64x16xf32>
    %c0_49 = arith.constant 0 : index
    %c2_50 = arith.constant 2 : index
    %c1_51 = arith.constant 1 : index
    %c0_52 = arith.constant 0 : index
    %57 = vector.load %arg1[%c0_49, %c2_50, %c1_51, %c0_52] : memref<1x10x10x8xf32, #tpu.memory_space<vmem>>, vector<1x8x8x8xf32>
    %58 = vector.shape_cast %57 : vector<1x8x8x8xf32> to vector<8x8x8xf32>
    %59 = vector.shape_cast %58 : vector<8x8x8xf32> to vector<64x8xf32>
    %60 = arith.truncf %59 : vector<64x8xf32> to vector<64x8xbf16>
    %c7 = arith.constant 7 : index
    %c0_53 = arith.constant 0 : index
    %c0_54 = arith.constant 0 : index
    %61 = vector.load %arg2[%c7, %c0_53, %c0_54] : memref<9x8x16xbf16, #tpu.memory_space<vmem>>, vector<1x8x16xbf16>
    %62 = vector.shape_cast %61 : vector<1x8x16xbf16> to vector<8x16xbf16>
    %cst_55 = arith.constant dense<0.000000e+00> : vector<64x16xf32>
    %63 = tpu.matmul %60, %62, %cst_55 {dimension_numbers = #tpu.dot_dimension_numbers<[1], [0], [0], [1], [0, 0, 1, 1], [], []>} : vector<64x8xbf16>, vector<8x16xbf16>, vector<64x16xf32> -> vector<64x16xf32>
    %64 = arith.addf %56, %63 : vector<64x16xf32>
    %c0_56 = arith.constant 0 : index
    %c2_57 = arith.constant 2 : index
    %c2_58 = arith.constant 2 : index
    %c0_59 = arith.constant 0 : index
    %65 = vector.load %arg1[%c0_56, %c2_57, %c2_58, %c0_59] : memref<1x10x10x8xf32, #tpu.memory_space<vmem>>, vector<1x8x8x8xf32>
    %66 = vector.shape_cast %65 : vector<1x8x8x8xf32> to vector<8x8x8xf32>
    %67 = vector.shape_cast %66 : vector<8x8x8xf32> to vector<64x8xf32>
    %68 = arith.truncf %67 : vector<64x8xf32> to vector<64x8xbf16>
    %c8 = arith.constant 8 : index
    %c0_60 = arith.constant 0 : index
    %c0_61 = arith.constant 0 : index
    %69 = vector.load %arg2[%c8, %c0_60, %c0_61] : memref<9x8x16xbf16, #tpu.memory_space<vmem>>, vector<1x8x16xbf16>
    %70 = vector.shape_cast %69 : vector<1x8x16xbf16> to vector<8x16xbf16>
    %cst_62 = arith.constant dense<0.000000e+00> : vector<64x16xf32>
    %71 = tpu.matmul %68, %70, %cst_62 {dimension_numbers = #tpu.dot_dimension_numbers<[1], [0], [0], [1], [0, 0, 1, 1], [], []>} : vector<64x8xbf16>, vector<8x16xbf16>, vector<64x16xf32> -> vector<64x16xf32>
    %72 = arith.addf %64, %71 : vector<64x16xf32>
    %c0_63 = arith.constant 0 : index
    %c0_64 = arith.constant 0 : index
    %73 = vector.load %arg3[%c0_63, %c0_64] : memref<1x16xf32, #tpu.memory_space<vmem>>, vector<1x16xf32>
    %74 = vector.broadcast %73 : vector<1x16xf32> to vector<64x16xf32>
    %75 = arith.addf %72, %74 : vector<64x16xf32>
    %cst_65 = arith.constant 0.000000e+00 : f32
    %76 = vector.broadcast %cst_65 : f32 to vector<64x16xf32>
    %77 = arith.maximumf %75, %76 : vector<64x16xf32>
    %78 = vector.shape_cast %77 : vector<64x16xf32> to vector<1x64x16xf32>
    %c0_66 = arith.constant 0 : index
    %c0_67 = arith.constant 0 : index
    %c0_68 = arith.constant 0 : index
    %79 = vector.load %arg4[%c0_66, %c0_67, %c0_68] : memref<1x64x16xf32, #tpu.memory_space<vmem>>, vector<1x64x16xf32>
    tpu.vector_store %arg4[%c0_66, %c0_67, %c0_68], %78 {strides = array<i32>} : memref<1x64x16xf32, #tpu.memory_space<vmem>>, vector<1x64x16xf32>,
    return
  }
  func.func @transform_0(%arg0: i32) -> (i32, i32, i32, i32) {
    %c0_i32 = arith.constant 0 : i32
    %c0_i32_0 = arith.constant 0 : i32
    %c0_i32_1 = arith.constant 0 : i32
    %c0_i32_2 = arith.constant 0 : i32
    return %arg0, %c0_i32, %c0_i32_0, %c0_i32_1 : i32, i32, i32, i32
  }
  func.func @transform_1(%arg0: i32) -> (i32, i32, i32) {
    %c0_i32 = arith.constant 0 : i32
    %c0_i32_0 = arith.constant 0 : i32
    %c0_i32_1 = arith.constant 0 : i32
    %c0_i32_2 = arith.constant 0 : i32
    return %c0_i32, %c0_i32_0, %c0_i32_1 : i32, i32, i32
  }
  func.func @transform_2(%arg0: i32) -> (i32, i32) {
    %c0_i32 = arith.constant 0 : i32
    %c0_i32_0 = arith.constant 0 : i32
    %c0_i32_1 = arith.constant 0 : i32
    return %c0_i32, %c0_i32_0 : i32, i32
  }
  func.func @transform_3(%arg0: i32) -> (i32, i32, i32) {
    %c0_i32 = arith.constant 0 : i32
    %c0_i32_0 = arith.constant 0 : i32
    %c0_i32_1 = arith.constant 0 : i32
    return %arg0, %c0_i32, %c0_i32_0 : i32, i32, i32
  }
}

module attributes {stable_mosaic.version = 11 : i64} {
  func.func @kernel(%arg0: i32, %arg1: memref<1x10x10x16xf32, #tpu.memory_space<vmem>>, %arg2: memref<9x16x16xbf16, #tpu.memory_space<vmem>>, %arg3: memref<1x16xf32, #tpu.memory_space<vmem>>, %arg4: memref<1x16x16xf32, #tpu.memory_space<vmem>>, %arg5: memref<32x16xf32, #tpu.memory_space<vmem>>) attributes {dimension_semantics = [#tpu.dimension_semantics<parallel>], iteration_bounds = array<i64: 4>, scalar_prefetch = 0 : i64, scratch_operands = 1 : i64, tpu.core_type = #tpu.core_type<tc>, window_params = [{transform_indices = @transform_0, window_bounds = array<i64: 1, 10, 10, 16>}, {pipeline_mode = #tpu.pipeline_mode<synchronous>, transform_indices = @transform_1, window_bounds = array<i64: 9, 16, 16>}, {pipeline_mode = #tpu.pipeline_mode<synchronous>, transform_indices = @transform_2, window_bounds = array<i64: 1, 16>}, {transform_indices = @transform_3, window_bounds = array<i64: 1, 16, 16>}]} {
    %cst = arith.constant 0.000000e+00 : f32
    %0 = vector.broadcast %cst : f32 to vector<64x16xf32>
    %c0 = arith.constant 0 : index
    %c0_0 = arith.constant 0 : index
    %c0_1 = arith.constant 0 : index
    %c0_2 = arith.constant 0 : index
    %1 = vector.load %arg1[%c0, %c0_0, %c0_1, %c0_2] : memref<1x10x10x16xf32, #tpu.memory_space<vmem>>, vector<1x8x8x16xf32>
    %2 = vector.shape_cast %1 : vector<1x8x8x16xf32> to vector<8x8x16xf32>
    %3 = vector.shape_cast %2 : vector<8x8x16xf32> to vector<64x16xf32>
    %4 = arith.truncf %3 : vector<64x16xf32> to vector<64x16xbf16>
    %c0_3 = arith.constant 0 : index
    %c0_4 = arith.constant 0 : index
    %c0_5 = arith.constant 0 : index
    %5 = vector.load %arg2[%c0_3, %c0_4, %c0_5] : memref<9x16x16xbf16, #tpu.memory_space<vmem>>, vector<1x16x16xbf16>
    %6 = vector.shape_cast %5 : vector<1x16x16xbf16> to vector<16x16xbf16>
    %cst_6 = arith.constant dense<0.000000e+00> : vector<64x16xf32>
    %7 = tpu.matmul %4, %6, %cst_6 {dimension_numbers = #tpu.dot_dimension_numbers<[1], [0], [0], [1], [0, 0, 1, 1], [], []>} : vector<64x16xbf16>, vector<16x16xbf16>, vector<64x16xf32> -> vector<64x16xf32>
    %8 = arith.addf %0, %7 : vector<64x16xf32>
    %c0_7 = arith.constant 0 : index
    %c0_8 = arith.constant 0 : index
    %c1 = arith.constant 1 : index
    %c0_9 = arith.constant 0 : index
    %9 = vector.load %arg1[%c0_7, %c0_8, %c1, %c0_9] : memref<1x10x10x16xf32, #tpu.memory_space<vmem>>, vector<1x8x8x16xf32>
    %10 = vector.shape_cast %9 : vector<1x8x8x16xf32> to vector<8x8x16xf32>
    %11 = vector.shape_cast %10 : vector<8x8x16xf32> to vector<64x16xf32>
    %12 = arith.truncf %11 : vector<64x16xf32> to vector<64x16xbf16>
    %c1_10 = arith.constant 1 : index
    %c0_11 = arith.constant 0 : index
    %c0_12 = arith.constant 0 : index
    %13 = vector.load %arg2[%c1_10, %c0_11, %c0_12] : memref<9x16x16xbf16, #tpu.memory_space<vmem>>, vector<1x16x16xbf16>
    %14 = vector.shape_cast %13 : vector<1x16x16xbf16> to vector<16x16xbf16>
    %cst_13 = arith.constant dense<0.000000e+00> : vector<64x16xf32>
    %15 = tpu.matmul %12, %14, %cst_13 {dimension_numbers = #tpu.dot_dimension_numbers<[1], [0], [0], [1], [0, 0, 1, 1], [], []>} : vector<64x16xbf16>, vector<16x16xbf16>, vector<64x16xf32> -> vector<64x16xf32>
    %16 = arith.addf %8, %15 : vector<64x16xf32>
    %c0_14 = arith.constant 0 : index
    %c0_15 = arith.constant 0 : index
    %c2 = arith.constant 2 : index
    %c0_16 = arith.constant 0 : index
    %17 = vector.load %arg1[%c0_14, %c0_15, %c2, %c0_16] : memref<1x10x10x16xf32, #tpu.memory_space<vmem>>, vector<1x8x8x16xf32>
    %18 = vector.shape_cast %17 : vector<1x8x8x16xf32> to vector<8x8x16xf32>
    %19 = vector.shape_cast %18 : vector<8x8x16xf32> to vector<64x16xf32>
    %20 = arith.truncf %19 : vector<64x16xf32> to vector<64x16xbf16>
    %c2_17 = arith.constant 2 : index
    %c0_18 = arith.constant 0 : index
    %c0_19 = arith.constant 0 : index
    %21 = vector.load %arg2[%c2_17, %c0_18, %c0_19] : memref<9x16x16xbf16, #tpu.memory_space<vmem>>, vector<1x16x16xbf16>
    %22 = vector.shape_cast %21 : vector<1x16x16xbf16> to vector<16x16xbf16>
    %cst_20 = arith.constant dense<0.000000e+00> : vector<64x16xf32>
    %23 = tpu.matmul %20, %22, %cst_20 {dimension_numbers = #tpu.dot_dimension_numbers<[1], [0], [0], [1], [0, 0, 1, 1], [], []>} : vector<64x16xbf16>, vector<16x16xbf16>, vector<64x16xf32> -> vector<64x16xf32>
    %24 = arith.addf %16, %23 : vector<64x16xf32>
    %c0_21 = arith.constant 0 : index
    %c1_22 = arith.constant 1 : index
    %c0_23 = arith.constant 0 : index
    %c0_24 = arith.constant 0 : index
    %25 = vector.load %arg1[%c0_21, %c1_22, %c0_23, %c0_24] : memref<1x10x10x16xf32, #tpu.memory_space<vmem>>, vector<1x8x8x16xf32>
    %26 = vector.shape_cast %25 : vector<1x8x8x16xf32> to vector<8x8x16xf32>
    %27 = vector.shape_cast %26 : vector<8x8x16xf32> to vector<64x16xf32>
    %28 = arith.truncf %27 : vector<64x16xf32> to vector<64x16xbf16>
    %c3 = arith.constant 3 : index
    %c0_25 = arith.constant 0 : index
    %c0_26 = arith.constant 0 : index
    %29 = vector.load %arg2[%c3, %c0_25, %c0_26] : memref<9x16x16xbf16, #tpu.memory_space<vmem>>, vector<1x16x16xbf16>
    %30 = vector.shape_cast %29 : vector<1x16x16xbf16> to vector<16x16xbf16>
    %cst_27 = arith.constant dense<0.000000e+00> : vector<64x16xf32>
    %31 = tpu.matmul %28, %30, %cst_27 {dimension_numbers = #tpu.dot_dimension_numbers<[1], [0], [0], [1], [0, 0, 1, 1], [], []>} : vector<64x16xbf16>, vector<16x16xbf16>, vector<64x16xf32> -> vector<64x16xf32>
    %32 = arith.addf %24, %31 : vector<64x16xf32>
    %c0_28 = arith.constant 0 : index
    %c1_29 = arith.constant 1 : index
    %c1_30 = arith.constant 1 : index
    %c0_31 = arith.constant 0 : index
    %33 = vector.load %arg1[%c0_28, %c1_29, %c1_30, %c0_31] : memref<1x10x10x16xf32, #tpu.memory_space<vmem>>, vector<1x8x8x16xf32>
    %34 = vector.shape_cast %33 : vector<1x8x8x16xf32> to vector<8x8x16xf32>
    %35 = vector.shape_cast %34 : vector<8x8x16xf32> to vector<64x16xf32>
    %36 = arith.truncf %35 : vector<64x16xf32> to vector<64x16xbf16>
    %c4 = arith.constant 4 : index
    %c0_32 = arith.constant 0 : index
    %c0_33 = arith.constant 0 : index
    %37 = vector.load %arg2[%c4, %c0_32, %c0_33] : memref<9x16x16xbf16, #tpu.memory_space<vmem>>, vector<1x16x16xbf16>
    %38 = vector.shape_cast %37 : vector<1x16x16xbf16> to vector<16x16xbf16>
    %cst_34 = arith.constant dense<0.000000e+00> : vector<64x16xf32>
    %39 = tpu.matmul %36, %38, %cst_34 {dimension_numbers = #tpu.dot_dimension_numbers<[1], [0], [0], [1], [0, 0, 1, 1], [], []>} : vector<64x16xbf16>, vector<16x16xbf16>, vector<64x16xf32> -> vector<64x16xf32>
    %40 = arith.addf %32, %39 : vector<64x16xf32>
    %c0_35 = arith.constant 0 : index
    %c1_36 = arith.constant 1 : index
    %c2_37 = arith.constant 2 : index
    %c0_38 = arith.constant 0 : index
    %41 = vector.load %arg1[%c0_35, %c1_36, %c2_37, %c0_38] : memref<1x10x10x16xf32, #tpu.memory_space<vmem>>, vector<1x8x8x16xf32>
    %42 = vector.shape_cast %41 : vector<1x8x8x16xf32> to vector<8x8x16xf32>
    %43 = vector.shape_cast %42 : vector<8x8x16xf32> to vector<64x16xf32>
    %44 = arith.truncf %43 : vector<64x16xf32> to vector<64x16xbf16>
    %c5 = arith.constant 5 : index
    %c0_39 = arith.constant 0 : index
    %c0_40 = arith.constant 0 : index
    %45 = vector.load %arg2[%c5, %c0_39, %c0_40] : memref<9x16x16xbf16, #tpu.memory_space<vmem>>, vector<1x16x16xbf16>
    %46 = vector.shape_cast %45 : vector<1x16x16xbf16> to vector<16x16xbf16>
    %cst_41 = arith.constant dense<0.000000e+00> : vector<64x16xf32>
    %47 = tpu.matmul %44, %46, %cst_41 {dimension_numbers = #tpu.dot_dimension_numbers<[1], [0], [0], [1], [0, 0, 1, 1], [], []>} : vector<64x16xbf16>, vector<16x16xbf16>, vector<64x16xf32> -> vector<64x16xf32>
    %48 = arith.addf %40, %47 : vector<64x16xf32>
    %c0_42 = arith.constant 0 : index
    %c2_43 = arith.constant 2 : index
    %c0_44 = arith.constant 0 : index
    %c0_45 = arith.constant 0 : index
    %49 = vector.load %arg1[%c0_42, %c2_43, %c0_44, %c0_45] : memref<1x10x10x16xf32, #tpu.memory_space<vmem>>, vector<1x8x8x16xf32>
    %50 = vector.shape_cast %49 : vector<1x8x8x16xf32> to vector<8x8x16xf32>
    %51 = vector.shape_cast %50 : vector<8x8x16xf32> to vector<64x16xf32>
    %52 = arith.truncf %51 : vector<64x16xf32> to vector<64x16xbf16>
    %c6 = arith.constant 6 : index
    %c0_46 = arith.constant 0 : index
    %c0_47 = arith.constant 0 : index
    %53 = vector.load %arg2[%c6, %c0_46, %c0_47] : memref<9x16x16xbf16, #tpu.memory_space<vmem>>, vector<1x16x16xbf16>
    %54 = vector.shape_cast %53 : vector<1x16x16xbf16> to vector<16x16xbf16>
    %cst_48 = arith.constant dense<0.000000e+00> : vector<64x16xf32>
    %55 = tpu.matmul %52, %54, %cst_48 {dimension_numbers = #tpu.dot_dimension_numbers<[1], [0], [0], [1], [0, 0, 1, 1], [], []>} : vector<64x16xbf16>, vector<16x16xbf16>, vector<64x16xf32> -> vector<64x16xf32>
    %56 = arith.addf %48, %55 : vector<64x16xf32>
    %c0_49 = arith.constant 0 : index
    %c2_50 = arith.constant 2 : index
    %c1_51 = arith.constant 1 : index
    %c0_52 = arith.constant 0 : index
    %57 = vector.load %arg1[%c0_49, %c2_50, %c1_51, %c0_52] : memref<1x10x10x16xf32, #tpu.memory_space<vmem>>, vector<1x8x8x16xf32>
    %58 = vector.shape_cast %57 : vector<1x8x8x16xf32> to vector<8x8x16xf32>
    %59 = vector.shape_cast %58 : vector<8x8x16xf32> to vector<64x16xf32>
    %60 = arith.truncf %59 : vector<64x16xf32> to vector<64x16xbf16>
    %c7 = arith.constant 7 : index
    %c0_53 = arith.constant 0 : index
    %c0_54 = arith.constant 0 : index
    %61 = vector.load %arg2[%c7, %c0_53, %c0_54] : memref<9x16x16xbf16, #tpu.memory_space<vmem>>, vector<1x16x16xbf16>
    %62 = vector.shape_cast %61 : vector<1x16x16xbf16> to vector<16x16xbf16>
    %cst_55 = arith.constant dense<0.000000e+00> : vector<64x16xf32>
    %63 = tpu.matmul %60, %62, %cst_55 {dimension_numbers = #tpu.dot_dimension_numbers<[1], [0], [0], [1], [0, 0, 1, 1], [], []>} : vector<64x16xbf16>, vector<16x16xbf16>, vector<64x16xf32> -> vector<64x16xf32>
    %64 = arith.addf %56, %63 : vector<64x16xf32>
    %c0_56 = arith.constant 0 : index
    %c2_57 = arith.constant 2 : index
    %c2_58 = arith.constant 2 : index
    %c0_59 = arith.constant 0 : index
    %65 = vector.load %arg1[%c0_56, %c2_57, %c2_58, %c0_59] : memref<1x10x10x16xf32, #tpu.memory_space<vmem>>, vector<1x8x8x16xf32>
    %66 = vector.shape_cast %65 : vector<1x8x8x16xf32> to vector<8x8x16xf32>
    %67 = vector.shape_cast %66 : vector<8x8x16xf32> to vector<64x16xf32>
    %68 = arith.truncf %67 : vector<64x16xf32> to vector<64x16xbf16>
    %c8 = arith.constant 8 : index
    %c0_60 = arith.constant 0 : index
    %c0_61 = arith.constant 0 : index
    %69 = vector.load %arg2[%c8, %c0_60, %c0_61] : memref<9x16x16xbf16, #tpu.memory_space<vmem>>, vector<1x16x16xbf16>
    %70 = vector.shape_cast %69 : vector<1x16x16xbf16> to vector<16x16xbf16>
    %cst_62 = arith.constant dense<0.000000e+00> : vector<64x16xf32>
    %71 = tpu.matmul %68, %70, %cst_62 {dimension_numbers = #tpu.dot_dimension_numbers<[1], [0], [0], [1], [0, 0, 1, 1], [], []>} : vector<64x16xbf16>, vector<16x16xbf16>, vector<64x16xf32> -> vector<64x16xf32>
    %72 = arith.addf %64, %71 : vector<64x16xf32>
    %c0_63 = arith.constant 0 : index
    %c0_64 = arith.constant 0 : index
    %73 = vector.load %arg3[%c0_63, %c0_64] : memref<1x16xf32, #tpu.memory_space<vmem>>, vector<1x16xf32>
    %74 = vector.broadcast %73 : vector<1x16xf32> to vector<64x16xf32>
    %75 = arith.addf %72, %74 : vector<64x16xf32>
    %cst_65 = arith.constant 0.000000e+00 : f32
    %76 = vector.broadcast %cst_65 : f32 to vector<64x16xf32>
    %77 = arith.maximumf %75, %76 : vector<64x16xf32>
    %78 = vector.shape_cast %77 : vector<64x16xf32> to vector<4x2x8x16xf32>
    %79 = vector.extract_strided_slice %78 {offsets = [0, 0, 0, 0], sizes = [4, 1, 8, 16], strides = [1, 1, 1, 1]} : vector<4x2x8x16xf32> to vector<4x1x8x16xf32>
    %80 = vector.shape_cast %79 : vector<4x1x8x16xf32> to vector<4x8x16xf32>
    %81 = vector.extract_strided_slice %78 {offsets = [0, 1, 0, 0], sizes = [4, 1, 8, 16], strides = [1, 1, 1, 1]} : vector<4x2x8x16xf32> to vector<4x1x8x16xf32>
    %82 = vector.shape_cast %81 : vector<4x1x8x16xf32> to vector<4x8x16xf32>
    %83 = arith.maximumf %80, %82 : vector<4x8x16xf32>
    %84 = vector.shape_cast %83 : vector<4x8x16xf32> to vector<32x16xf32>
    %c0_66 = arith.constant 0 : index
    %c0_67 = arith.constant 0 : index
    %85 = vector.load %arg5[%c0_66, %c0_67] : memref<32x16xf32, #tpu.memory_space<vmem>>, vector<32x16xf32>
    tpu.vector_store %arg5[%c0_66, %c0_67], %84 {strides = array<i32>} : memref<32x16xf32, #tpu.memory_space<vmem>>, vector<32x16xf32>,
    %c0_68 = arith.constant 0 : index
    %c0_69 = arith.constant 0 : index
    %86 = tpu.strided_load %arg5[%c0_68, %c0_69] {strides = array<i32: 2, 1>} : memref<32x16xf32, #tpu.memory_space<vmem>>, vector<16x16xf32>
    %c1_70 = arith.constant 1 : index
    %c0_71 = arith.constant 0 : index
    %87 = tpu.strided_load %arg5[%c1_70, %c0_71] {strides = array<i32: 2, 1>} : memref<32x16xf32, #tpu.memory_space<vmem>>, vector<16x16xf32>
    %88 = arith.maximumf %86, %87 : vector<16x16xf32>
    %89 = vector.shape_cast %88 : vector<16x16xf32> to vector<1x16x16xf32>
    %c0_72 = arith.constant 0 : index
    %c0_73 = arith.constant 0 : index
    %c0_74 = arith.constant 0 : index
    %90 = vector.load %arg4[%c0_72, %c0_73, %c0_74] : memref<1x16x16xf32, #tpu.memory_space<vmem>>, vector<1x16x16xf32>
    tpu.vector_store %arg4[%c0_72, %c0_73, %c0_74], %89 {strides = array<i32>} : memref<1x16x16xf32, #tpu.memory_space<vmem>>, vector<1x16x16xf32>,
    return
  }
  func.func @transform_0(%arg0: i32) -> (i32, i32, i32, i32) {
    %c0_i32 = arith.constant 0 : i32
    %c0_i32_0 = arith.constant 0 : i32
    %c0_i32_1 = arith.constant 0 : i32
    %c0_i32_2 = arith.constant 0 : i32
    return %arg0, %c0_i32, %c0_i32_0, %c0_i32_1 : i32, i32, i32, i32
  }
  func.func @transform_1(%arg0: i32) -> (i32, i32, i32) {
    %c0_i32 = arith.constant 0 : i32
    %c0_i32_0 = arith.constant 0 : i32
    %c0_i32_1 = arith.constant 0 : i32
    %c0_i32_2 = arith.constant 0 : i32
    return %c0_i32, %c0_i32_0, %c0_i32_1 : i32, i32, i32
  }
  func.func @transform_2(%arg0: i32) -> (i32, i32) {
    %c0_i32 = arith.constant 0 : i32
    %c0_i32_0 = arith.constant 0 : i32
    %c0_i32_1 = arith.constant 0 : i32
    return %c0_i32, %c0_i32_0 : i32, i32
  }
  func.func @transform_3(%arg0: i32) -> (i32, i32, i32) {
    %c0_i32 = arith.constant 0 : i32
    %c0_i32_0 = arith.constant 0 : i32
    %c0_i32_1 = arith.constant 0 : i32
    return %arg0, %c0_i32, %c0_i32_0 : i32, i32, i32
  }
}

module attributes {stable_mosaic.version = 11 : i64} {
  func.func @kernel(%arg0: i32, %arg1: memref<4x128xf32, #tpu.memory_space<vmem>>, %arg2: memref<4x128xf32, #tpu.memory_space<vmem>>, %arg3: memref<1x1xf32, #tpu.memory_space<smem>>) attributes {dimension_semantics = [#tpu.dimension_semantics<arbitrary>], iteration_bounds = array<i64: 1>, scalar_prefetch = 0 : i64, scratch_operands = 0 : i64, tpu.core_type = #tpu.core_type<tc>, window_params = [{transform_indices = @transform_0, window_bounds = array<i64: 4, 128>}, {transform_indices = @transform_1, window_bounds = array<i64: 4, 128>}, {transform_indices = @transform_2, window_bounds = array<i64: 1, 1>}]} {
    %c0_i32 = arith.constant 0 : i32
    %0 = arith.cmpi eq, %arg0, %c0_i32 : i32
    %1 = arith.extui %0 : i1 to i32
    %c0_i32_0 = arith.constant 0 : i32
    %2 = arith.cmpi ne, %1, %c0_i32_0 : i32
    scf.if %2 {
      %cst_10 = arith.constant 0.000000e+00 : f32
      %c0_11 = arith.constant 0 : index
      %c0_12 = arith.constant 0 : index
      %17 = memref.load %arg3[%c0_11, %c0_12] : memref<1x1xf32, #tpu.memory_space<smem>>
      memref.store %cst_10, %arg3[%c0_11, %c0_12] : memref<1x1xf32, #tpu.memory_space<smem>>
    } else {
    }
    %c0 = arith.constant 0 : index
    %c0_1 = arith.constant 0 : index
    %3 = vector.load %arg1[%c0, %c0_1] : memref<4x128xf32, #tpu.memory_space<vmem>>, vector<4x128xf32>
    %c0_2 = arith.constant 0 : index
    %c0_3 = arith.constant 0 : index
    %4 = vector.load %arg2[%c0_2, %c0_3] : memref<4x128xf32, #tpu.memory_space<vmem>>, vector<4x128xf32>
    %5 = arith.subf %3, %4 : vector<4x128xf32>
    %c0_4 = arith.constant 0 : index
    %c0_5 = arith.constant 0 : index
    %6 = memref.load %arg3[%c0_4, %c0_5] : memref<1x1xf32, #tpu.memory_space<smem>>
    %7 = arith.mulf %5, %5 : vector<4x128xf32>
    %8 = vector.shape_cast %7 : vector<4x128xf32> to vector<1x4x128xf32>
    %cst = arith.constant dense<0.000000e+00> : vector<1xf32>
    %9 = vector.multi_reduction <add>, %8, %cst [1, 2] : vector<1x4x128xf32> to vector<1xf32>
    %10 = vector.shape_cast %9 : vector<1xf32> to vector<1x1x1xf32>
    %11 = vector.extract %10[0, 0, 0] : f32 from vector<1x1x1xf32>
    %12 = arith.addf %6, %11 : f32
    %c0_6 = arith.constant 0 : index
    %c0_7 = arith.constant 0 : index
    %13 = memref.load %arg3[%c0_6, %c0_7] : memref<1x1xf32, #tpu.memory_space<smem>>
    memref.store %12, %arg3[%c0_6, %c0_7] : memref<1x1xf32, #tpu.memory_space<smem>>
    %c0_i32_8 = arith.constant 0 : i32
    %14 = arith.cmpi eq, %arg0, %c0_i32_8 : i32
    %15 = arith.extui %14 : i1 to i32
    %c0_i32_9 = arith.constant 0 : i32
    %16 = arith.cmpi ne, %15, %c0_i32_9 : i32
    scf.if %16 {
      %c0_10 = arith.constant 0 : index
      %c0_11 = arith.constant 0 : index
      %17 = memref.load %arg3[%c0_10, %c0_11] : memref<1x1xf32, #tpu.memory_space<smem>>
      %cst_12 = arith.constant 0.001953125 : f32
      %18 = arith.mulf %17, %cst_12 : f32
      %c0_13 = arith.constant 0 : index
      %c0_14 = arith.constant 0 : index
      %19 = memref.load %arg3[%c0_13, %c0_14] : memref<1x1xf32, #tpu.memory_space<smem>>
      memref.store %18, %arg3[%c0_13, %c0_14] : memref<1x1xf32, #tpu.memory_space<smem>>
    } else {
    }
    return
  }
  func.func @transform_0(%arg0: i32) -> (i32, i32) {
    %c0_i32 = arith.constant 0 : i32
    %c0_i32_0 = arith.constant 0 : i32
    return %arg0, %c0_i32 : i32, i32
  }
  func.func @transform_1(%arg0: i32) -> (i32, i32) {
    %c0_i32 = arith.constant 0 : i32
    %c0_i32_0 = arith.constant 0 : i32
    return %arg0, %c0_i32 : i32, i32
  }
  func.func @transform_2(%arg0: i32) -> (i32, i32) {
    %c0_i32 = arith.constant 0 : i32
    %c0_i32_0 = arith.constant 0 : i32
    %c0_i32_1 = arith.constant 0 : i32
    return %c0_i32, %c0_i32_0 : i32, i32
  }
}

</mosaic_0001>

<llo_original>
// kernel: perceptual_loss.7
$region0: #{perceptual_loss.7}
  #allocation0 [shape = 'u32[]', space=smem, size = 0x4, offset = 0x4, fixed_abs, tag = 'smem constant byte address 0x4 - core index']
  #allocation1 [shape = 'u32[144,128]{1,0:T(1,128)}', space=vmem, size = 0x12000, scoped, tag = 'internal scratch']
  %s0 = inlined_call_operand.vmem [shape: f32[4,10,10,8], index: 0, kind: input, shape index: {}]
  %s1 = inlined_call_operand.vmem [shape: bf16[9,8,16], index: 1, kind: input, shape index: {}]
  %s2 = inlined_call_operand.vmem [shape: f32[1,16], index: 2, kind: input, shape index: {}]
  %s3 = inlined_call_operand.vmem [shape: f32[4,64,16], index: 3, kind: output, shape index: {}]
  %s4 = sld [smem:[#allocation0]]
  $region45: #{perceptual_loss.7} parent=0
    _
  %s6 = ssub.s32 1, %s4
  %s7 = scalar_select 0, %s6, %s4
  loop: start=0, step=1, limit=6
  $region2: #{perceptual_loss.7} parent=0 // loop_pre_header
    _
  $region3: #{perceptual_loss.7} parent=0 // loop_header
    %s9 = sphi 0, %s13
    %p10 = scmp.ge.s32.totalorder %s9, 6
    %s19 = sphi 0, %s21
    %s22 = sphi 0, %s19
    %s23 = sphi 0, %s22
    %s39 = sphi 0, %s23
    %s43 = sphi 0, %s43
    %s45 = sphi 0, %s43
    %s46 = sphi 0, %s45
    %s60 = sphi 0, %s46
    %s64 = sphi 0, %s64
    %s66 = sphi 0, %s64
    %s67 = sphi 0, %s66
    %s81 = sphi 0, %s67
    %s87 = sphi 0, %s89
    %s90 = sphi 0, %s87
    %s91 = sphi 0, %s90
    %s107 = sphi 0, %s91
  $region4: #{perceptual_loss.7} parent=0 // loop_header_branch
    %12 = sbr.rel (%p10) target = $region8
  $region5: #{perceptual_loss.7} parent=0 // loop_body
    %s14 = ssub.s32 %s9, 1
    %s15 = ssub.s32 %s9, 2
    %s16 = sadd.s32 %s9, 1
    %s17 = ssub.s32 %s9, %s16
    %p18 = scmp.eq.s32.totalorder %s17, 0
    %s20 = sadd.s32 %s19, 1
    %s21 = scalar_select %p18, %s19, %s20
    %p24 = pneg %p18
    %p25 = scmp.eq.s32.totalorder %s9, 3
    %p26 = por %p24, %p25
    %p27 = scmp.ne.s32.totalorder %s19, %s22
    %p28 = scmp.eq.s32.totalorder %s9, 0
    %p29 = por %p27, %p28
    %p30 = scmp.ne.s32.totalorder %s19, %s22
    %p31 = scmp.eq.s32.totalorder %s14, 3
    %p32 = por %p30, %p31
    %p33 = scmp.ne.s32.totalorder %s22, %s23
    %p34 = scmp.eq.s32.totalorder %s14, 0
    %p35 = por %p33, %p34
    %p36 = scmp.ne.s32.totalorder %s22, %s23
    %p37 = scmp.eq.s32.totalorder %s15, 3
    %p38 = por %p36, %p37
    %p40 = scmp.ne.s32.totalorder %s23, %s39
    %p41 = scmp.eq.s32.totalorder %s15, 0
    %p42 = por %p40, %p41
    %s44 = sadd.s32 %s43, 1
    %p47 = scmp.eq.s32.totalorder %s9, 3
    %p48 = scmp.ne.s32.totalorder %s43, %s45
    %p49 = scmp.eq.s32.totalorder %s9, 0
    %p50 = por %p48, %p49
    %p51 = scmp.ne.s32.totalorder %s43, %s45
    %p52 = scmp.eq.s32.totalorder %s14, 3
    %p53 = por %p51, %p52
    %p54 = scmp.ne.s32.totalorder %s45, %s46
    %p55 = scmp.eq.s32.totalorder %s14, 0
    %p56 = por %p54, %p55
    %p57 = scmp.ne.s32.totalorder %s45, %s46
    %p58 = scmp.eq.s32.totalorder %s15, 3
    %p59 = por %p57, %p58
    %p61 = scmp.ne.s32.totalorder %s46, %s60
    %p62 = scmp.eq.s32.totalorder %s15, 0
    %p63 = por %p61, %p62
    %s65 = sadd.s32 %s64, 1
    %p68 = scmp.eq.s32.totalorder %s9, 3
    %p69 = scmp.ne.s32.totalorder %s64, %s66
    %p70 = scmp.eq.s32.totalorder %s9, 0
    %p71 = por %p69, %p70
    %p72 = scmp.ne.s32.totalorder %s64, %s66
    %p73 = scmp.eq.s32.totalorder %s14, 3
    %p74 = por %p72, %p73
    %p75 = scmp.ne.s32.totalorder %s66, %s67
    %p76 = scmp.eq.s32.totalorder %s14, 0
    %p77 = por %p75, %p76
    %p78 = scmp.ne.s32.totalorder %s66, %s67
    %p79 = scmp.eq.s32.totalorder %s15, 3
    %p80 = por %p78, %p79
    %p82 = scmp.ne.s32.totalorder %s67, %s81
    %p83 = scmp.eq.s32.totalorder %s15, 0
    %p84 = por %p82, %p83
    %s85 = ssub.s32 %s9, %s16
    %p86 = scmp.eq.s32.totalorder %s85, 0
    %s88 = sadd.s32 %s87, 1
    %s89 = scalar_select %p86, %s87, %s88
    %p92 = pneg %p86
    %p93 = scmp.eq.s32.totalorder %s9, 3
    %p94 = por %p92, %p93
    %p95 = scmp.ne.s32.totalorder %s87, %s90
    %p96 = scmp.eq.s32.totalorder %s9, 0
    %p97 = por %p95, %p96
    %p98 = scmp.ne.s32.totalorder %s87, %s90
    %p99 = scmp.eq.s32.totalorder %s14, 3
    %p100 = por %p98, %p99
    %p101 = scmp.ne.s32.totalorder %s90, %s91
    %p102 = scmp.eq.s32.totalorder %s14, 0
    %p103 = por %p101, %p102
    %p104 = scmp.ne.s32.totalorder %s90, %s91
    %p105 = scmp.eq.s32.totalorder %s15, 3
    %p106 = por %p104, %p105
    %p108 = scmp.ne.s32.totalorder %s91, %s107
    %p109 = scmp.eq.s32.totalorder %s15, 0
    %p110 = por %p108, %p109
    %p111 = scmp.le.s32.totalorder 1, %s9
    %p112 = scmp.lt.s32.totalorder %s9, 5
    %p113 = pnand %p111, %p112
    %p114 = pneg %p113
    // Predicated region
    $region9: #{perceptual_loss.7} parent=5 // pred_check
      _
    $region10: #{perceptual_loss.7} parent=5 // pred_check_branch
      %116 = sbr.rel (%p113) target = $region12
    $region11: #{perceptual_loss.7} parent=5 // pred_region
      %s117 = ssub.s32 %s9, 1
      // Predicated region
      $region13: #{perceptual_loss.7} parent=11 // pred_check
        %p118 = pneg %p56
      $region14: #{perceptual_loss.7} parent=11 // pred_check_branch
        %120 = sbr.rel (%p118) target = $region16
      $region15: #{perceptual_loss.7} parent=11 // pred_region
        _
      $region16: #{perceptual_loss.7} parent=11 // pred_fallthru
        _
      // Predicated region
      $region17: #{perceptual_loss.7} parent=11 // pred_check
        %p121 = pneg %p77
      $region18: #{perceptual_loss.7} parent=11 // pred_check_branch
        %123 = sbr.rel (%p121) target = $region20
      $region19: #{perceptual_loss.7} parent=11 // pred_region
        _
      $region20: #{perceptual_loss.7} parent=11 // pred_fallthru
        _
    $region12: #{perceptual_loss.7} parent=5 // pred_fallthru
      _
    %p124 = scmp.lt.s32.totalorder %s9, 4
    // Predicated region
    $region21: #{perceptual_loss.7} parent=5 // pred_check
      %p125 = pneg %p124
    $region22: #{perceptual_loss.7} parent=5 // pred_check_branch
      %127 = sbr.rel (%p125) target = $region24
    $region23: #{perceptual_loss.7} parent=5 // pred_region
      // Predicated region
      $region25: #{perceptual_loss.7} parent=23 // pred_check
        %p128 = pneg %p29
      $region26: #{perceptual_loss.7} parent=23 // pred_check_branch
        %130 = sbr.rel (%p128) target = $region28
      $region27: #{perceptual_loss.7} parent=23 // pred_region
        %p131 = scmp.lt.s32.totalorder %s9, 3
        %s132 = scalar_select %p131, %s9, 3
        %s133 = smul.addr %s132, 20
        %s134 = smul.addr %s133, 8
        %s135 = scalar_lea.vmem %s0, %s134
      $region28: #{perceptual_loss.7} parent=23 // pred_fallthru
        _
    $region24: #{perceptual_loss.7} parent=5 // pred_fallthru
      _
    %p136 = scmp.le.s32.totalorder 1, %s9
    %p137 = scmp.lt.s32.totalorder %s9, 5
    %p138 = pnand %p136, %p137
    %p139 = pneg %p138
    // Predicated region
    $region29: #{perceptual_loss.7} parent=5 // pred_check
      _
    $region30: #{perceptual_loss.7} parent=5 // pred_check_branch
      %141 = sbr.rel (%p138) target = $region32
    $region31: #{perceptual_loss.7} parent=5 // pred_region
      %s142 = ssub.s32 %s9, 1
      %p143 = scmp.lt.s32.totalorder %s14, 3
      %s144 = scalar_select %p143, %s14, 3
      %s145 = smul.addr %s144, 20
      %s146 = smul.addr %s145, 8
      %s147 = scalar_lea.vmem %s0, %s146
      %p148 = pneg %p35
      %p149 = pneg %p32
      %p150 = pneg %p56
      %p151 = pneg %p53
      %p152 = pneg %p77
      %p153 = pneg %p74
      %p154 = pneg %p103
      %p155 = pneg %p100
      %p156 = scmp.lt.s32.totalorder %s14, 3
      %s157 = scalar_select %p156, %s14, 3
      %s158 = smul.addr %s157, 8
      %s159 = smul.addr %s158, 8
      %s160 = scalar_lea.vmem %s3, %s159
      %p161 = scmp.lt.s32.totalorder %s14, 3
      %s162 = scalar_select %p161, %s14, 3
      %s163 = smul.addr %s162, 20
      %s164 = smul.addr %s163, 8
      %s165 = scalar_lea.vmem %s0, %s164
      %p166 = scmp.lt.s32.totalorder %s14, 3
      %s167 = scalar_select %p166, %s14, 3
      %s168 = smul.addr %s167, 8
      %s169 = smul.addr %s168, 8
      %s170 = scalar_lea.vmem %s3, %s169
      %v172 = vld [vmem:[%s165] sm:$0xff]
      %v173 = vld [vmem:[%s165 + $0x10] sm:$0xff]
      %v174 = vld [vmem:[%s165 + $0x20] sm:$0xff]
      %v175 = vld [vmem:[%s165 + $0x30] sm:$0xff]
      %v176 = vld [vmem:[%s165 + $0x40] sm:$0xff]
      %v177 = vld [vmem:[%s165 + $0x50] sm:$0xff]
      %v178 = vld [vmem:[%s165 + $0x60] sm:$0xff]
      %v179 = vld [vmem:[%s165 + $0x70] sm:$0xff]
      %v180 = vpack.c.bf16 %v173, %v172
      %v181 = vpack.c.bf16 %v175, %v174
      %v182 = vpack.c.bf16 %v177, %v176
      %v183 = vpack.c.bf16 %v179, %v178
      %v184 = vld [vmem:[%s1] sm:$0xf]
      %v185 = vld [vmem:[%s165 + $0x1] sm:$0xff]
      %v186 = vld [vmem:[%s165 + $0x11] sm:$0xff]
      %v187 = vld [vmem:[%s165 + $0x21] sm:$0xff]
      %v188 = vld [vmem:[%s165 + $0x31] sm:$0xff]
      %v189 = vld [vmem:[%s165 + $0x41] sm:$0xff]
      %v190 = vld [vmem:[%s165 + $0x51] sm:$0xff]
      %v191 = vld [vmem:[%s165 + $0x61] sm:$0xff]
      %v192 = vld [vmem:[%s165 + $0x71] sm:$0xff]
      %v193 = vpack.c.bf16 %v186, %v185
      %v194 = vpack.c.bf16 %v188, %v187
      %v195 = vpack.c.bf16 %v190, %v189
      %v196 = vpack.c.bf16 %v192, %v191
      %s197 = scalar_lea.vmem %s1, 4
      %v198 = vld [vmem:[%s197] sm:$0xf]
      %vm199 = vcmask 64512
      %v201 = vsel %vm199, %v193, 0
      %v204 = vsel %vm199, %v194, 0
      %v207 = vsel %vm199, %v195, 0
      %v210 = vsel %vm199, %v196, 0
      %vm212 = vcmask 1043456
      %v214 = vsel %vm212, %v198, 0
      %216 = vmatprep.subr.bf16.mxu0 0
      %217 = vmatpush1.bf16.msra.mxu0 %v214
      %218 = vmatprep.subr.bf16.mxu0 0
      %219 = vmatpush1.bf16.msra.mxu0 0
      %220 = vmatprep.subr.bf16.mxu0 0
      %221 = vmatpush1.bf16.msra.mxu0 0
      %222 = vmatprep.subr.bf16.mxu0 0
      %223 = vmatpush1.bf16.msra.mxu0 0
      %224 = vmatprep.subr.bf16.mxu0 0
      %225 = vmatpush1.bf16.msra.mxu0 0
      %226 = vmatprep.subr.bf16.mxu0 0
      %227 = vmatpush1.bf16.msra.mxu0 0
      %228 = vmatprep.subr.bf16.mxu0 0
      %229 = vmatpush1.bf16.msra.mxu0 0
      %230 = vmatprep.subr.bf16.mxu0 0
      %231 = vmatpush1.bf16.msra.mxu0 0
      %232 = vmatprep.subr.bf16.mxu0 0
      %233 = vmatpush1.bf16.msra.mxu0 0
      %234 = vmatprep.subr.bf16.mxu0 0
      %235 = vmatpush1.bf16.msra.mxu0 0
      %236 = vmatprep.subr.bf16.mxu0 0
      %237 = vmatpush1.bf16.msra.mxu0 0
      %238 = vmatprep.subr.bf16.mxu0 0
      %239 = vmatpush1.bf16.msra.mxu0 0
      %240 = vmatprep.subr.bf16.mxu0 0
      %241 = vmatpush1.bf16.msra.mxu0 0
      %242 = vmatprep.subr.bf16.mxu0 0
      %243 = vmatpush1.bf16.msra.mxu0 0
      %244 = vmatprep.subr.bf16.mxu0 0
      %245 = vmatpush1.bf16.msra.mxu0 0
      %246 = vmatprep.subr.bf16.mxu0 0
      %247 = vmatpush1.bf16.msra.mxu0 0
      %248 = vmatprep.mubr.bf16.mxu0 0
      %249 = vmatmul.mubr.bf16.gmra.mrb[0].mxu0 %v201
      %v250 = vpop.f32.mrb[0].mxu0
      %v251 = vadd.f32 0.0, %v250
      %v252 = vpop.f32.mrb[0].mxu0
      %v253 = vpop.f32.mrb[0].mxu0
      %v254 = vadd.f32 0.0, %v253
      %v255 = vpop.f32.mrb[0].mxu0
      %256 = vmatprep.mubr.bf16.mxu0 0
      %257 = vmatmul.mubr.bf16.gmra.mrb[0].mxu0 %v204
      %v258 = vpop.f32.mrb[0].mxu0
      %v259 = vadd.f32 0.0, %v258
      %v260 = vpop.f32.mrb[0].mxu0
      %v261 = vpop.f32.mrb[0].mxu0
      %v262 = vadd.f32 0.0, %v261
      %v263 = vpop.f32.mrb[0].mxu0
      %264 = vmatprep.mubr.bf16.mxu0 0
      %265 = vmatmul.mubr.bf16.gmra.mrb[0].mxu0 %v207
      %v266 = vpop.f32.mrb[0].mxu0
      %v267 = vadd.f32 0.0, %v266
      %v268 = vpop.f32.mrb[0].mxu0
      %v269 = vpop.f32.mrb[0].mxu0
      %v270 = vadd.f32 0.0, %v269
      %v271 = vpop.f32.mrb[0].mxu0
      %272 = vmatprep.mubr.bf16.mxu0 0
      %273 = vmatmul.mubr.bf16.gmra.mrb[0].mxu0 %v210
      %v274 = vpop.f32.mrb[0].mxu0
      %v275 = vadd.f32 0.0, %v274
      %v276 = vpop.f32.mrb[0].mxu0
      %v277 = vpop.f32.mrb[0].mxu0
      %v278 = vadd.f32 0.0, %v277
      %v279 = vpop.f32.mrb[0].mxu0
      %280 = vdwg.mxu0
      %v282 = vsel %vm199, %v180, 0
      %v285 = vsel %vm199, %v181, 0
      %v288 = vsel %vm199, %v182, 0
      %v291 = vsel %vm199, %v183, 0
      %v294 = vsel %vm212, %v184, 0
      %296 = vmatprep.subr.bf16.mxu0 0
      %297 = vmatpush1.bf16.msra.mxu0 %v294
      %298 = vmatprep.subr.bf16.mxu0 0
      %299 = vmatpush1.bf16.msra.mxu0 0
      %300 = vmatprep.subr.bf16.mxu0 0
      %301 = vmatpush1.bf16.msra.mxu0 0
      %302 = vmatprep.subr.bf16.mxu0 0
      %303 = vmatpush1.bf16.msra.mxu0 0
      %304 = vmatprep.subr.bf16.mxu0 0
      %305 = vmatpush1.bf16.msra.mxu0 0
      %306 = vmatprep.subr.bf16.mxu0 0
      %307 = vmatpush1.bf16.msra.mxu0 0
      %308 = vmatprep.subr.bf16.mxu0 0
      %309 = vmatpush1.bf16.msra.mxu0 0
      %310 = vmatprep.subr.bf16.mxu0 0
      %311 = vmatpush1.bf16.msra.mxu0 0
      %312 = vmatprep.subr.bf16.mxu0 0
      %313 = vmatpush1.bf16.msra.mxu0 0
      %314 = vmatprep.subr.bf16.mxu0 0
      %315 = vmatpush1.bf16.msra.mxu0 0
      %316 = vmatprep.subr.bf16.mxu0 0
      %317 = vmatpush1.bf16.msra.mxu0 0
      %318 = vmatprep.subr.bf16.mxu0 0
      %319 = vmatpush1.bf16.msra.mxu0 0
      %320 = vmatprep.subr.bf16.mxu0 0
      %321 = vmatpush1.bf16.msra.mxu0 0
      %322 = vmatprep.subr.bf16.mxu0 0
      %323 = vmatpush1.bf16.msra.mxu0 0
      %324 = vmatprep.subr.bf16.mxu0 0
      %325 = vmatpush1.bf16.msra.mxu0 0
      %326 = vmatprep.subr.bf16.mxu0 0
      %327 = vmatpush1.bf16.msra.mxu0 0
      %328 = vmatprep.mubr.bf16.mxu0 0
      %329 = vmatmul.mubr.bf16.gmra.mrb[0].mxu0 %v282
      %v330 = vpop.f32.mrb[0].mxu0
      %v331 = vadd.f32 %v251, %v330
      %v332 = vpop.f32.mrb[0].mxu0
      %v333 = vpop.f32.mrb[0].mxu0
      %v334 = vadd.f32 %v254, %v333
      %v335 = vpop.f32.mrb[0].mxu0
      %336 = vmatprep.mubr.bf16.mxu0 0
      %337 = vmatmul.mubr.bf16.gmra.mrb[0].mxu0 %v285
      %v338 = vpop.f32.mrb[0].mxu0
      %v339 = vadd.f32 %v259, %v338
      %v340 = vpop.f32.mrb[0].mxu0
      %v341 = vpop.f32.mrb[0].mxu0
      %v342 = vadd.f32 %v262, %v341
      %v343 = vpop.f32.mrb[0].mxu0
      %344 = vmatprep.mubr.bf16.mxu0 0
      %345 = vmatmul.mubr.bf16.gmra.mrb[0].mxu0 %v288
      %v346 = vpop.f32.mrb[0].mxu0
      %v347 = vadd.f32 %v267, %v346
      %v348 = vpop.f32.mrb[0].mxu0
      %v349 = vpop.f32.mrb[0].mxu0
      %v350 = vadd.f32 %v270, %v349
      %v351 = vpop.f32.mrb[0].mxu0
      %352 = vmatprep.mubr.bf16.mxu0 0
      %353 = vmatmul.mubr.bf16.gmra.mrb[0].mxu0 %v291
      %v354 = vpop.f32.mrb[0].mxu0
      %v355 = vadd.f32 %v275, %v354
      %v356 = vpop.f32.mrb[0].mxu0
      %v357 = vpop.f32.mrb[0].mxu0
      %v358 = vadd.f32 %v278, %v357
      %v359 = vpop.f32.mrb[0].mxu0
      %360 = vdwg.mxu0
      %v361 = vld [vmem:[%s165 + $0x2] sm:$0xff]
      %v362 = vld [vmem:[%s165 + $0x12] sm:$0xff]
      %v363 = vld [vmem:[%s165 + $0x22] sm:$0xff]
      %v364 = vld [vmem:[%s165 + $0x32] sm:$0xff]
      %v365 = vld [vmem:[%s165 + $0x42] sm:$0xff]
      %v366 = vld [vmem:[%s165 + $0x52] sm:$0xff]
      %v367 = vld [vmem:[%s165 + $0x62] sm:$0xff]
      %v368 = vld [vmem:[%s165 + $0x72] sm:$0xff]
      %v369 = vpack.c.bf16 %v362, %v361
      %v370 = vpack.c.bf16 %v364, %v363
      %v371 = vpack.c.bf16 %v366, %v365
      %v372 = vpack.c.bf16 %v368, %v367
      %s373 = scalar_lea.vmem %s1, 8
      %v374 = vld [vmem:[%s373] sm:$0xf]
      %v376 = vsel %vm199, %v369, 0
      %v379 = vsel %vm199, %v370, 0
      %v382 = vsel %vm199, %v371, 0
      %v385 = vsel %vm199, %v372, 0
      %v388 = vsel %vm212, %v374, 0
      %390 = vmatprep.subr.bf16.mxu0 0
      %391 = vmatpush1.bf16.msra.mxu0 %v388
      %392 = vmatprep.subr.bf16.mxu0 0
      %393 = vmatpush1.bf16.msra.mxu0 0
      %394 = vmatprep.subr.bf16.mxu0 0
      %395 = vmatpush1.bf16.msra.mxu0 0
      %396 = vmatprep.subr.bf16.mxu0 0
      %397 = vmatpush1.bf16.msra.mxu0 0
      %398 = vmatprep.subr.bf16.mxu0 0
      %399 = vmatpush1.bf16.msra.mxu0 0
      %400 = vmatprep.subr.bf16.mxu0 0
      %401 = vmatpush1.bf16.msra.mxu0 0
      %402 = vmatprep.subr.bf16.mxu0 0
      %403 = vmatpush1.bf16.msra.mxu0 0
      %404 = vmatprep.subr.bf16.mxu0 0
      %405 = vmatpush1.bf16.msra.mxu0 0
      %406 = vmatprep.subr.bf16.mxu0 0
      %407 = vmatpush1.bf16.msra.mxu0 0
      %408 = vmatprep.subr.bf16.mxu0 0
      %409 = vmatpush1.bf16.msra.mxu0 0
      %410 = vmatprep.subr.bf16.mxu0 0
      %411 = vmatpush1.bf16.msra.mxu0 0
      %412 = vmatprep.subr.bf16.mxu0 0
      %413 = vmatpush1.bf16.msra.mxu0 0
      %414 = vmatprep.subr.bf16.mxu0 0
      %415 = vmatpush1.bf16.msra.mxu0 0
      %416 = vmatprep.subr.bf16.mxu0 0
      %417 = vmatpush1.bf16.msra.mxu0 0
      %418 = vmatprep.subr.bf16.mxu0 0
      %419 = vmatpush1.bf16.msra.mxu0 0
      %420 = vmatprep.subr.bf16.mxu0 0
      %421 = vmatpush1.bf16.msra.mxu0 0
      %422 = vmatprep.mubr.bf16.mxu0 0
      %423 = vmatmul.mubr.bf16.gmra.mrb[0].mxu0 %v376
      %v424 = vpop.f32.mrb[0].mxu0
      %v425 = vadd.f32 0.0, %v424
      %v426 = vpop.f32.mrb[0].mxu0
      %v427 = vpop.f32.mrb[0].mxu0
      %v428 = vadd.f32 0.0, %v427
      %v429 = vpop.f32.mrb[0].mxu0
      %430 = vmatprep.mubr.bf16.mxu0 0
      %431 = vmatmul.mubr.bf16.gmra.mrb[0].mxu0 %v379
      %v432 = vpop.f32.mrb[0].mxu0
      %v433 = vadd.f32 0.0, %v432
      %v434 = vpop.f32.mrb[0].mxu0
      %v435 = vpop.f32.mrb[0].mxu0
      %v436 = vadd.f32 0.0, %v435
      %v437 = vpop.f32.mrb[0].mxu0
      %438 = vmatprep.mubr.bf16.mxu0 0
      %439 = vmatmul.mubr.bf16.gmra.mrb[0].mxu0 %v382
      %v440 = vpop.f32.mrb[0].mxu0
      %v441 = vadd.f32 0.0, %v440
      %v442 = vpop.f32.mrb[0].mxu0
      %v443 = vpop.f32.mrb[0].mxu0
      %v444 = vadd.f32 0.0, %v443
      %v445 = vpop.f32.mrb[0].mxu0
      %446 = vmatprep.mubr.bf16.mxu0 0
      %447 = vmatmul.mubr.bf16.gmra.mrb[0].mxu0 %v385
      %v448 = vpop.f32.mrb[0].mxu0
      %v449 = vadd.f32 0.0, %v448
      %v450 = vpop.f32.mrb[0].mxu0
      %v451 = vpop.f32.mrb[0].mxu0
      %v452 = vadd.f32 0.0, %v451
      %v453 = vpop.f32.mrb[0].mxu0
      %454 = vdwg.mxu0
      %v455 = vadd.f32 %v331, %v425
      %v456 = vadd.f32 %v334, %v428
      %v457 = vadd.f32 %v339, %v433
      %v458 = vadd.f32 %v342, %v436
      %v459 = vadd.f32 %v347, %v441
      %v460 = vadd.f32 %v350, %v444
      %v461 = vadd.f32 %v355, %v449
      %v462 = vadd.f32 %v358, %v452
      %s463 = scalar_lea.vmem %s165, 16
      %v464 = vld [vmem:[%s463] sm:$0xff]
      %v465 = vld [vmem:[%s463 + $0x10] sm:$0xff]
      %v466 = vld [vmem:[%s463 + $0x20] sm:$0xff]
      %v467 = vld [vmem:[%s463 + $0x30] sm:$0xff]
      %v468 = vld [vmem:[%s463 + $0x40] sm:$0xff]
      %v469 = vld [vmem:[%s463 + $0x50] sm:$0xff]
      %v470 = vld [vmem:[%s463 + $0x60] sm:$0xff]
      %v471 = vld [vmem:[%s463 + $0x70] sm:$0xff]
      %v472 = vpack.c.bf16 %v465, %v464
      %v473 = vpack.c.bf16 %v467, %v466
      %v474 = vpack.c.bf16 %v469, %v468
      %v475 = vpack.c.bf16 %v471, %v470
      %s476 = scalar_lea.vmem %s1, 12
      %v477 = vld [vmem:[%s476] sm:$0xf]
      %v479 = vsel %vm199, %v472, 0
      %v482 = vsel %vm199, %v473, 0
      %v485 = vsel %vm199, %v474, 0
      %v488 = vsel %vm199, %v475, 0
      %v491 = vsel %vm212, %v477, 0
      %493 = vmatprep.subr.bf16.mxu0 0
      %494 = vmatpush1.bf16.msra.mxu0 %v491
      %495 = vmatprep.subr.bf16.mxu0 0
      %496 = vmatpush1.bf16.msra.mxu0 0
      %497 = vmatprep.subr.bf16.mxu0 0
      %498 = vmatpush1.bf16.msra.mxu0 0
      %499 = vmatprep.subr.bf16.mxu0 0
      %500 = vmatpush1.bf16.msra.mxu0 0
      %501 = vmatprep.subr.bf16.mxu0 0
      %502 = vmatpush1.bf16.msra.mxu0 0
      %503 = vmatprep.subr.bf16.mxu0 0
      %504 = vmatpush1.bf16.msra.mxu0 0
      %505 = vmatprep.subr.bf16.mxu0 0
      %506 = vmatpush1.bf16.msra.mxu0 0
      %507 = vmatprep.subr.bf16.mxu0 0
      %508 = vmatpush1.bf16.msra.mxu0 0
      %509 = vmatprep.subr.bf16.mxu0 0
      %510 = vmatpush1.bf16.msra.mxu0 0
      %511 = vmatprep.subr.bf16.mxu0 0
      %512 = vmatpush1.bf16.msra.mxu0 0
      %513 = vmatprep.subr.bf16.mxu0 0
      %514 = vmatpush1.bf16.msra.mxu0 0
      %515 = vmatprep.subr.bf16.mxu0 0
      %516 = vmatpush1.bf16.msra.mxu0 0
      %517 = vmatprep.subr.bf16.mxu0 0
      %518 = vmatpush1.bf16.msra.mxu0 0
      %519 = vmatprep.subr.bf16.mxu0 0
      %520 = vmatpush1.bf16.msra.mxu0 0
      %521 = vmatprep.subr.bf16.mxu0 0
      %522 = vmatpush1.bf16.msra.mxu0 0
      %523 = vmatprep.subr.bf16.mxu0 0
      %524 = vmatpush1.bf16.msra.mxu0 0
      %525 = vmatprep.mubr.bf16.mxu0 0
      %526 = vmatmul.mubr.bf16.gmra.mrb[0].mxu0 %v479
      %v527 = vpop.f32.mrb[0].mxu0
      %v528 = vadd.f32 0.0, %v527
      %v529 = vpop.f32.mrb[0].mxu0
      %v530 = vpop.f32.mrb[0].mxu0
      %v531 = vadd.f32 0.0, %v530
      %v532 = vpop.f32.mrb[0].mxu0
      %533 = vmatprep.mubr.bf16.mxu0 0
      %534 = vmatmul.mubr.bf16.gmra.mrb[0].mxu0 %v482
      %v535 = vpop.f32.mrb[0].mxu0
      %v536 = vadd.f32 0.0, %v535
      %v537 = vpop.f32.mrb[0].mxu0
      %v538 = vpop.f32.mrb[0].mxu0
      %v539 = vadd.f32 0.0, %v538
      %v540 = vpop.f32.mrb[0].mxu0
      %541 = vmatprep.mubr.bf16.mxu0 0
      %542 = vmatmul.mubr.bf16.gmra.mrb[0].mxu0 %v485
      %v543 = vpop.f32.mrb[0].mxu0
      %v544 = vadd.f32 0.0, %v543
      %v545 = vpop.f32.mrb[0].mxu0
      %v546 = vpop.f32.mrb[0].mxu0
      %v547 = vadd.f32 0.0, %v546
      %v548 = vpop.f32.mrb[0].mxu0
      %549 = vmatprep.mubr.bf16.mxu0 0
      %550 = vmatmul.mubr.bf16.gmra.mrb[0].mxu0 %v488
      %v551 = vpop.f32.mrb[0].mxu0
      %v552 = vadd.f32 0.0, %v551
      %v553 = vpop.f32.mrb[0].mxu0
      %v554 = vpop.f32.mrb[0].mxu0
      %v555 = vadd.f32 0.0, %v554
      %v556 = vpop.f32.mrb[0].mxu0
      %557 = vdwg.mxu0
      %v558 = vadd.f32 %v455, %v528
      %v559 = vadd.f32 %v456, %v531
      %v560 = vadd.f32 %v457, %v536
      %v561 = vadd.f32 %v458, %v539
      %v562 = vadd.f32 %v459, %v544
      %v563 = vadd.f32 %v460, %v547
      %v564 = vadd.f32 %v461, %v552
      %v565 = vadd.f32 %v462, %v555
      %v566 = vld [vmem:[%s463 + $0x1] sm:$0xff]
      %v567 = vld [vmem:[%s463 + $0x11] sm:$0xff]
      %v568 = vld [vmem:[%s463 + $0x21] sm:$0xff]
      %v569 = vld [vmem:[%s463 + $0x31] sm:$0xff]
      %v570 = vld [vmem:[%s463 + $0x41] sm:$0xff]
      %v571 = vld [vmem:[%s463 + $0x51] sm:$0xff]
      %v572 = vld [vmem:[%s463 + $0x61] sm:$0xff]
      %v573 = vld [vmem:[%s463 + $0x71] sm:$0xff]
      %v574 = vpack.c.bf16 %v567, %v566
      %v575 = vpack.c.bf16 %v569, %v568
      %v576 = vpack.c.bf16 %v571, %v570
      %v577 = vpack.c.bf16 %v573, %v572
      %s578 = scalar_lea.vmem %s1, 16
      %v579 = vld [vmem:[%s578] sm:$0xf]
      %v581 = vsel %vm199, %v574, 0
      %v584 = vsel %vm199, %v575, 0
      %v587 = vsel %vm199, %v576, 0
      %v590 = vsel %vm199, %v577, 0
      %v593 = vsel %vm212, %v579, 0
      %595 = vmatprep.subr.bf16.mxu0 0
      %596 = vmatpush1.bf16.msra.mxu0 %v593
      %597 = vmatprep.subr.bf16.mxu0 0
      %598 = vmatpush1.bf16.msra.mxu0 0
      %599 = vmatprep.subr.bf16.mxu0 0
      %600 = vmatpush1.bf16.msra.mxu0 0
      %601 = vmatprep.subr.bf16.mxu0 0
      %602 = vmatpush1.bf16.msra.mxu0 0
      %603 = vmatprep.subr.bf16.mxu0 0
      %604 = vmatpush1.bf16.msra.mxu0 0
      %605 = vmatprep.subr.bf16.mxu0 0
      %606 = vmatpush1.bf16.msra.mxu0 0
      %607 = vmatprep.subr.bf16.mxu0 0
      %608 = vmatpush1.bf16.msra.mxu0 0
      %609 = vmatprep.subr.bf16.mxu0 0
      %610 = vmatpush1.bf16.msra.mxu0 0
      %611 = vmatprep.subr.bf16.mxu0 0
      %612 = vmatpush1.bf16.msra.mxu0 0
      %613 = vmatprep.subr.bf16.mxu0 0
      %614 = vmatpush1.bf16.msra.mxu0 0
      %615 = vmatprep.subr.bf16.mxu0 0
      %616 = vmatpush1.bf16.msra.mxu0 0
      %617 = vmatprep.subr.bf16.mxu0 0
      %618 = vmatpush1.bf16.msra.mxu0 0
      %619 = vmatprep.subr.bf16.mxu0 0
      %620 = vmatpush1.bf16.msra.mxu0 0
      %621 = vmatprep.subr.bf16.mxu0 0
      %622 = vmatpush1.bf16.msra.mxu0 0
      %623 = vmatprep.subr.bf16.mxu0 0
      %624 = vmatpush1.bf16.msra.mxu0 0
      %625 = vmatprep.subr.bf16.mxu0 0
      %626 = vmatpush1.bf16.msra.mxu0 0
      %627 = vmatprep.mubr.bf16.mxu0 0
      %628 = vmatmul.mubr.bf16.gmra.mrb[0].mxu0 %v581
      %v629 = vpop.f32.mrb[0].mxu0
      %v630 = vadd.f32 0.0, %v629
      %v631 = vpop.f32.mrb[0].mxu0
      %v632 = vpop.f32.mrb[0].mxu0
      %v633 = vadd.f32 0.0, %v632
      %v634 = vpop.f32.mrb[0].mxu0
      %635 = vmatprep.mubr.bf16.mxu0 0
      %636 = vmatmul.mubr.bf16.gmra.mrb[0].mxu0 %v584
      %v637 = vpop.f32.mrb[0].mxu0
      %v638 = vadd.f32 0.0, %v637
      %v639 = vpop.f32.mrb[0].mxu0
      %v640 = vpop.f32.mrb[0].mxu0
      %v641 = vadd.f32 0.0, %v640
      %v642 = vpop.f32.mrb[0].mxu0
      %643 = vmatprep.mubr.bf16.mxu0 0
      %644 = vmatmul.mubr.bf16.gmra.mrb[0].mxu0 %v587
      %v645 = vpop.f32.mrb[0].mxu0
      %v646 = vadd.f32 0.0, %v645
      %v647 = vpop.f32.mrb[0].mxu0
      %v648 = vpop.f32.mrb[0].mxu0
      %v649 = vadd.f32 0.0, %v648
      %v650 = vpop.f32.mrb[0].mxu0
      %651 = vmatprep.mubr.bf16.mxu0 0
      %652 = vmatmul.mubr.bf16.gmra.mrb[0].mxu0 %v590
      %v653 = vpop.f32.mrb[0].mxu0
      %v654 = vadd.f32 0.0, %v653
      %v655 = vpop.f32.mrb[0].mxu0
      %v656 = vpop.f32.mrb[0].mxu0
      %v657 = vadd.f32 0.0, %v656
      %v658 = vpop.f32.mrb[0].mxu0
      %659 = vdwg.mxu0
      %v660 = vadd.f32 %v558, %v630
      %v661 = vadd.f32 %v559, %v633
      %v662 = vadd.f32 %v560, %v638
      %v663 = vadd.f32 %v561, %v641
      %v664 = vadd.f32 %v562, %v646
      %v665 = vadd.f32 %v563, %v649
      %v666 = vadd.f32 %v564, %v654
      %v667 = vadd.f32 %v565, %v657
      %v668 = vld [vmem:[%s463 + $0x2] sm:$0xff]
      %v669 = vld [vmem:[%s463 + $0x12] sm:$0xff]
      %v670 = vld [vmem:[%s463 + $0x22] sm:$0xff]
      %v671 = vld [vmem:[%s463 + $0x32] sm:$0xff]
      %v672 = vld [vmem:[%s463 + $0x42] sm:$0xff]
      %v673 = vld [vmem:[%s463 + $0x52] sm:$0xff]
      %v674 = vld [vmem:[%s463 + $0x62] sm:$0xff]
      %v675 = vld [vmem:[%s463 + $0x72] sm:$0xff]
      %v676 = vpack.c.bf16 %v669, %v668
      %v677 = vpack.c.bf16 %v671, %v670
      %v678 = vpack.c.bf16 %v673, %v672
      %v679 = vpack.c.bf16 %v675, %v674
      %s680 = scalar_lea.vmem %s1, 20
      %v681 = vld [vmem:[%s680] sm:$0xf]
      %v683 = vsel %vm199, %v676, 0
      %v686 = vsel %vm199, %v677, 0
      %v689 = vsel %vm199, %v678, 0
      %v692 = vsel %vm199, %v679, 0
      %v695 = vsel %vm212, %v681, 0
      %697 = vmatprep.subr.bf16.mxu0 0
      %698 = vmatpush1.bf16.msra.mxu0 %v695
      %699 = vmatprep.subr.bf16.mxu0 0
      %700 = vmatpush1.bf16.msra.mxu0 0
      %701 = vmatprep.subr.bf16.mxu0 0
      %702 = vmatpush1.bf16.msra.mxu0 0
      %703 = vmatprep.subr.bf16.mxu0 0
      %704 = vmatpush1.bf16.msra.mxu0 0
      %705 = vmatprep.subr.bf16.mxu0 0
      %706 = vmatpush1.bf16.msra.mxu0 0
      %707 = vmatprep.subr.bf16.mxu0 0
      %708 = vmatpush1.bf16.msra.mxu0 0
      %709 = vmatprep.subr.bf16.mxu0 0
      %710 = vmatpush1.bf16.msra.mxu0 0
      %711 = vmatprep.subr.bf16.mxu0 0
      %712 = vmatpush1.bf16.msra.mxu0 0
      %713 = vmatprep.subr.bf16.mxu0 0
      %714 = vmatpush1.bf16.msra.mxu0 0
      %715 = vmatprep.subr.bf16.mxu0 0
      %716 = vmatpush1.bf16.msra.mxu0 0
      %717 = vmatprep.subr.bf16.mxu0 0
      %718 = vmatpush1.bf16.msra.mxu0 0
      %719 = vmatprep.subr.bf16.mxu0 0
      %720 = vmatpush1.bf16.msra.mxu0 0
      %721 = vmatprep.subr.bf16.mxu0 0
      %722 = vmatpush1.bf16.msra.mxu0 0
      %723 = vmatprep.subr.bf16.mxu0 0
      %724 = vmatpush1.bf16.msra.mxu0 0
      %725 = vmatprep.subr.bf16.mxu0 0
      %726 = vmatpush1.bf16.msra.mxu0 0
      %727 = vmatprep.subr.bf16.mxu0 0
      %728 = vmatpush1.bf16.msra.mxu0 0
      %729 = vmatprep.mubr.bf16.mxu0 0
      %730 = vmatmul.mubr.bf16.gmra.mrb[0].mxu0 %v683
      %v731 = vpop.f32.mrb[0].mxu0
      %v732 = vadd.f32 0.0, %v731
      %v733 = vpop.f32.mrb[0].mxu0
      %v734 = vpop.f32.mrb[0].mxu0
      %v735 = vadd.f32 0.0, %v734
      %v736 = vpop.f32.mrb[0].mxu0
      %737 = vmatprep.mubr.bf16.mxu0 0
      %738 = vmatmul.mubr.bf16.gmra.mrb[0].mxu0 %v686
      %v739 = vpop.f32.mrb[0].mxu0
      %v740 = vadd.f32 0.0, %v739
      %v741 = vpop.f32.mrb[0].mxu0
      %v742 = vpop.f32.mrb[0].mxu0
      %v743 = vadd.f32 0.0, %v742
      %v744 = vpop.f32.mrb[0].mxu0
      %745 = vmatprep.mubr.bf16.mxu0 0
      %746 = vmatmul.mubr.bf16.gmra.mrb[0].mxu0 %v689
      %v747 = vpop.f32.mrb[0].mxu0
      %v748 = vadd.f32 0.0, %v747
      %v749 = vpop.f32.mrb[0].mxu0
      %v750 = vpop.f32.mrb[0].mxu0
      %v751 = vadd.f32 0.0, %v750
      %v752 = vpop.f32.mrb[0].mxu0
      %753 = vmatprep.mubr.bf16.mxu0 0
      %754 = vmatmul.mubr.bf16.gmra.mrb[0].mxu0 %v692
      %v755 = vpop.f32.mrb[0].mxu0
      %v756 = vadd.f32 0.0, %v755
      %v757 = vpop.f32.mrb[0].mxu0
      %v758 = vpop.f32.mrb[0].mxu0
      %v759 = vadd.f32 0.0, %v758
      %v760 = vpop.f32.mrb[0].mxu0
      %761 = vdwg.mxu0
      %v762 = vadd.f32 %v660, %v732
      %v763 = vadd.f32 %v661, %v735
      %v764 = vadd.f32 %v662, %v740
      %v765 = vadd.f32 %v663, %v743
      %v766 = vadd.f32 %v664, %v748
      %v767 = vadd.f32 %v665, %v751
      %v768 = vadd.f32 %v666, %v756
      %v769 = vadd.f32 %v667, %v759
      %s770 = scalar_lea.vmem %s165, 32
      %v771 = vld [vmem:[%s770] sm:$0xff]
      %v772 = vld [vmem:[%s770 + $0x10] sm:$0xff]
      %v773 = vld [vmem:[%s770 + $0x20] sm:$0xff]
      %v774 = vld [vmem:[%s770 + $0x30] sm:$0xff]
      %v775 = vld [vmem:[%s770 + $0x40] sm:$0xff]
      %v776 = vld [vmem:[%s770 + $0x50] sm:$0xff]
      %v777 = vld [vmem:[%s770 + $0x60] sm:$0xff]
      %v778 = vld [vmem:[%s770 + $0x70] sm:$0xff]
      %v779 = vpack.c.bf16 %v772, %v771
      %v780 = vpack.c.bf16 %v774, %v773
      %v781 = vpack.c.bf16 %v776, %v775
      %v782 = vpack.c.bf16 %v778, %v777
      %s783 = scalar_lea.vmem %s1, 24
      %v784 = vld [vmem:[%s783] sm:$0xf]
      %v786 = vsel %vm199, %v779, 0
      %v789 = vsel %vm199, %v780, 0
      %v792 = vsel %vm199, %v781, 0
      %v795 = vsel %vm199, %v782, 0
      %v798 = vsel %vm212, %v784, 0
      %800 = vmatprep.subr.bf16.mxu0 0
      %801 = vmatpush1.bf16.msra.mxu0 %v798
      %802 = vmatprep.subr.bf16.mxu0 0
      %803 = vmatpush1.bf16.msra.mxu0 0
      %804 = vmatprep.subr.bf16.mxu0 0
      %805 = vmatpush1.bf16.msra.mxu0 0
      %806 = vmatprep.subr.bf16.mxu0 0
      %807 = vmatpush1.bf16.msra.mxu0 0
      %808 = vmatprep.subr.bf16.mxu0 0
      %809 = vmatpush1.bf16.msra.mxu0 0
      %810 = vmatprep.subr.bf16.mxu0 0
      %811 = vmatpush1.bf16.msra.mxu0 0
      %812 = vmatprep.subr.bf16.mxu0 0
      %813 = vmatpush1.bf16.msra.mxu0 0
      %814 = vmatprep.subr.bf16.mxu0 0
      %815 = vmatpush1.bf16.msra.mxu0 0
      %816 = vmatprep.subr.bf16.mxu0 0
      %817 = vmatpush1.bf16.msra.mxu0 0
      %818 = vmatprep.subr.bf16.mxu0 0
      %819 = vmatpush1.bf16.msra.mxu0 0
      %820 = vmatprep.subr.bf16.mxu0 0
      %821 = vmatpush1.bf16.msra.mxu0 0
      %822 = vmatprep.subr.bf16.mxu0 0
      %823 = vmatpush1.bf16.msra.mxu0 0
      %824 = vmatprep.subr.bf16.mxu0 0
      %825 = vmatpush1.bf16.msra.mxu0 0
      %826 = vmatprep.subr.bf16.mxu0 0
      %827 = vmatpush1.bf16.msra.mxu0 0
      %828 = vmatprep.subr.bf16.mxu0 0
      %829 = vmatpush1.bf16.msra.mxu0 0
      %830 = vmatprep.subr.bf16.mxu0 0
      %831 = vmatpush1.bf16.msra.mxu0 0
      %832 = vmatprep.mubr.bf16.mxu0 0
      %833 = vmatmul.mubr.bf16.gmra.mrb[0].mxu0 %v786
      %v834 = vpop.f32.mrb[0].mxu0
      %v835 = vadd.f32 0.0, %v834
      %v836 = vpop.f32.mrb[0].mxu0
      %v837 = vpop.f32.mrb[0].mxu0
      %v838 = vadd.f32 0.0, %v837
      %v839 = vpop.f32.mrb[0].mxu0
      %840 = vmatprep.mubr.bf16.mxu0 0
      %841 = vmatmul.mubr.bf16.gmra.mrb[0].mxu0 %v789
      %v842 = vpop.f32.mrb[0].mxu0
      %v843 = vadd.f32 0.0, %v842
      %v844 = vpop.f32.mrb[0].mxu0
      %v845 = vpop.f32.mrb[0].mxu0
      %v846 = vadd.f32 0.0, %v845
      %v847 = vpop.f32.mrb[0].mxu0
      %848 = vmatprep.mubr.bf16.mxu0 0
      %849 = vmatmul.mubr.bf16.gmra.mrb[0].mxu0 %v792
      %v850 = vpop.f32.mrb[0].mxu0
      %v851 = vadd.f32 0.0, %v850
      %v852 = vpop.f32.mrb[0].mxu0
      %v853 = vpop.f32.mrb[0].mxu0
      %v854 = vadd.f32 0.0, %v853
      %v855 = vpop.f32.mrb[0].mxu0
      %856 = vmatprep.mubr.bf16.mxu0 0
      %857 = vmatmul.mubr.bf16.gmra.mrb[0].mxu0 %v795
      %v858 = vpop.f32.mrb[0].mxu0
      %v859 = vadd.f32 0.0, %v858
      %v860 = vpop.f32.mrb[0].mxu0
      %v861 = vpop.f32.mrb[0].mxu0
      %v862 = vadd.f32 0.0, %v861
      %v863 = vpop.f32.mrb[0].mxu0
      %864 = vdwg.mxu0
      %v865 = vadd.f32 %v762, %v835
      %v866 = vadd.f32 %v763, %v838
      %v867 = vadd.f32 %v764, %v843
      %v868 = vadd.f32 %v765, %v846
      %v869 = vadd.f32 %v766, %v851
      %v870 = vadd.f32 %v767, %v854
      %v871 = vadd.f32 %v768, %v859
      %v872 = vadd.f32 %v769, %v862
      %v873 = vld [vmem:[%s770 + $0x1] sm:$0xff]
      %v874 = vld [vmem:[%s770 + $0x11] sm:$0xff]
      %v875 = vld [vmem:[%s770 + $0x21] sm:$0xff]
      %v876 = vld [vmem:[%s770 + $0x31] sm:$0xff]
      %v877 = vld [vmem:[%s770 + $0x41] sm:$0xff]
      %v878 = vld [vmem:[%s770 + $0x51] sm:$0xff]
      %v879 = vld [vmem:[%s770 + $0x61] sm:$0xff]
      %v880 = vld [vmem:[%s770 + $0x71] sm:$0xff]
      %v881 = vpack.c.bf16 %v874, %v873
      %v882 = vpack.c.bf16 %v876, %v875
      %v883 = vpack.c.bf16 %v878, %v877
      %v884 = vpack.c.bf16 %v880, %v879
      %s885 = scalar_lea.vmem %s1, 28
      %v886 = vld [vmem:[%s885] sm:$0xf]
      %v888 = vsel %vm199, %v881, 0
      %v891 = vsel %vm199, %v882, 0
      %v894 = vsel %vm199, %v883, 0
      %v897 = vsel %vm199, %v884, 0
      %v900 = vsel %vm212, %v886, 0
      %902 = vmatprep.subr.bf16.mxu0 0
      %903 = vmatpush1.bf16.msra.mxu0 %v900
      %904 = vmatprep.subr.bf16.mxu0 0
      %905 = vmatpush1.bf16.msra.mxu0 0
      %906 = vmatprep.subr.bf16.mxu0 0
      %907 = vmatpush1.bf16.msra.mxu0 0
      %908 = vmatprep.subr.bf16.mxu0 0
      %909 = vmatpush1.bf16.msra.mxu0 0
      %910 = vmatprep.subr.bf16.mxu0 0
      %911 = vmatpush1.bf16.msra.mxu0 0
      %912 = vmatprep.subr.bf16.mxu0 0
      %913 = vmatpush1.bf16.msra.mxu0 0
      %914 = vmatprep.subr.bf16.mxu0 0
      %915 = vmatpush1.bf16.msra.mxu0 0
      %916 = vmatprep.subr.bf16.mxu0 0
      %917 = vmatpush1.bf16.msra.mxu0 0
      %918 = vmatprep.subr.bf16.mxu0 0
      %919 = vmatpush1.bf16.msra.mxu0 0
      %920 = vmatprep.subr.bf16.mxu0 0
      %921 = vmatpush1.bf16.msra.mxu0 0
      %922 = vmatprep.subr.bf16.mxu0 0
      %923 = vmatpush1.bf16.msra.mxu0 0
      %924 = vmatprep.subr.bf16.mxu0 0
      %925 = vmatpush1.bf16.msra.mxu0 0
      %926 = vmatprep.subr.bf16.mxu0 0
      %927 = vmatpush1.bf16.msra.mxu0 0
      %928 = vmatprep.subr.bf16.mxu0 0
      %929 = vmatpush1.bf16.msra.mxu0 0
      %930 = vmatprep.subr.bf16.mxu0 0
      %931 = vmatpush1.bf16.msra.mxu0 0
      %932 = vmatprep.subr.bf16.mxu0 0
      %933 = vmatpush1.bf16.msra.mxu0 0
      %934 = vmatprep.mubr.bf16.mxu0 0
      %935 = vmatmul.mubr.bf16.gmra.mrb[0].mxu0 %v888
      %v936 = vpop.f32.mrb[0].mxu0
      %v937 = vadd.f32 0.0, %v936
      %v938 = vpop.f32.mrb[0].mxu0
      %v939 = vpop.f32.mrb[0].mxu0
      %v940 = vadd.f32 0.0, %v939
      %v941 = vpop.f32.mrb[0].mxu0
      %942 = vmatprep.mubr.bf16.mxu0 0
      %943 = vmatmul.mubr.bf16.gmra.mrb[0].mxu0 %v891
      %v944 = vpop.f32.mrb[0].mxu0
      %v945 = vadd.f32 0.0, %v944
      %v946 = vpop.f32.mrb[0].mxu0
      %v947 = vpop.f32.mrb[0].mxu0
      %v948 = vadd.f32 0.0, %v947
      %v949 = vpop.f32.mrb[0].mxu0
      %950 = vmatprep.mubr.bf16.mxu0 0
      %951 = vmatmul.mubr.bf16.gmra.mrb[0].mxu0 %v894
      %v952 = vpop.f32.mrb[0].mxu0
      %v953 = vadd.f32 0.0, %v952
      %v954 = vpop.f32.mrb[0].mxu0
      %v955 = vpop.f32.mrb[0].mxu0
      %v956 = vadd.f32 0.0, %v955
      %v957 = vpop.f32.mrb[0].mxu0
      %958 = vmatprep.mubr.bf16.mxu0 0
      %959 = vmatmul.mubr.bf16.gmra.mrb[0].mxu0 %v897
      %v960 = vpop.f32.mrb[0].mxu0
      %v961 = vadd.f32 0.0, %v960
      %v962 = vpop.f32.mrb[0].mxu0
      %v963 = vpop.f32.mrb[0].mxu0
      %v964 = vadd.f32 0.0, %v963
      %v965 = vpop.f32.mrb[0].mxu0
      %966 = vdwg.mxu0
      %v967 = vadd.f32 %v865, %v937
      %v968 = vadd.f32 %v866, %v940
      %v969 = vadd.f32 %v867, %v945
      %v970 = vadd.f32 %v868, %v948
      %v971 = vadd.f32 %v869, %v953
      %v972 = vadd.f32 %v870, %v956
      %v973 = vadd.f32 %v871, %v961
      %v974 = vadd.f32 %v872, %v964
      %v975 = vld [vmem:[%s770 + $0x2] sm:$0xff]
      %v976 = vld [vmem:[%s770 + $0x12] sm:$0xff]
      %v977 = vld [vmem:[%s770 + $0x22] sm:$0xff]
      %v978 = vld [vmem:[%s770 + $0x32] sm:$0xff]
      %v979 = vld [vmem:[%s770 + $0x42] sm:$0xff]
      %v980 = vld [vmem:[%s770 + $0x52] sm:$0xff]
      %v981 = vld [vmem:[%s770 + $0x62] sm:$0xff]
      %v982 = vld [vmem:[%s770 + $0x72] sm:$0xff]
      %v983 = vpack.c.bf16 %v976, %v975
      %v984 = vpack.c.bf16 %v978, %v977
      %v985 = vpack.c.bf16 %v980, %v979
      %v986 = vpack.c.bf16 %v982, %v981
      %s987 = scalar_lea.vmem %s1, 32
      %v988 = vld [vmem:[%s987] sm:$0xf]
      %v990 = vsel %vm199, %v983, 0
      %v993 = vsel %vm199, %v984, 0
      %v996 = vsel %vm199, %v985, 0
      %v999 = vsel %vm199, %v986, 0
      %v1002 = vsel %vm212, %v988, 0
      %1004 = vmatprep.subr.bf16.mxu0 0
      %1005 = vmatpush1.bf16.msra.mxu0 %v1002
      %1006 = vmatprep.subr.bf16.mxu0 0
      %1007 = vmatpush1.bf16.msra.mxu0 0
      %1008 = vmatprep.subr.bf16.mxu0 0
      %1009 = vmatpush1.bf16.msra.mxu0 0
      %1010 = vmatprep.subr.bf16.mxu0 0
      %1011 = vmatpush1.bf16.msra.mxu0 0
      %1012 = vmatprep.subr.bf16.mxu0 0
      %1013 = vmatpush1.bf16.msra.mxu0 0
      %1014 = vmatprep.subr.bf16.mxu0 0
      %1015 = vmatpush1.bf16.msra.mxu0 0
      %1016 = vmatprep.subr.bf16.mxu0 0
      %1017 = vmatpush1.bf16.msra.mxu0 0
      %1018 = vmatprep.subr.bf16.mxu0 0
      %1019 = vmatpush1.bf16.msra.mxu0 0
      %1020 = vmatprep.subr.bf16.mxu0 0
      %1021 = vmatpush1.bf16.msra.mxu0 0
      %1022 = vmatprep.subr.bf16.mxu0 0
      %1023 = vmatpush1.bf16.msra.mxu0 0
      %1024 = vmatprep.subr.bf16.mxu0 0
      %1025 = vmatpush1.bf16.msra.mxu0 0
      %1026 = vmatprep.subr.bf16.mxu0 0
      %1027 = vmatpush1.bf16.msra.mxu0 0
      %1028 = vmatprep.subr.bf16.mxu0 0
      %1029 = vmatpush1.bf16.msra.mxu0 0
      %1030 = vmatprep.subr.bf16.mxu0 0
      %1031 = vmatpush1.bf16.msra.mxu0 0
      %1032 = vmatprep.subr.bf16.mxu0 0
      %1033 = vmatpush1.bf16.msra.mxu0 0
      %1034 = vmatprep.subr.bf16.mxu0 0
      %1035 = vmatpush1.bf16.msra.mxu0 0
      %1036 = vmatprep.mubr.bf16.mxu0 0
      %1037 = vmatmul.mubr.bf16.gmra.mrb[0].mxu0 %v990
      %v1038 = vpop.f32.mrb[0].mxu0
      %v1039 = vadd.f32 0.0, %v1038
      %v1040 = vpop.f32.mrb[0].mxu0
      %v1041 = vpop.f32.mrb[0].mxu0
      %v1042 = vadd.f32 0.0, %v1041
      %v1043 = vpop.f32.mrb[0].mxu0
      %1044 = vmatprep.mubr.bf16.mxu0 0
      %1045 = vmatmul.mubr.bf16.gmra.mrb[0].mxu0 %v993
      %v1046 = vpop.f32.mrb[0].mxu0
      %v1047 = vadd.f32 0.0, %v1046
      %v1048 = vpop.f32.mrb[0].mxu0
      %v1049 = vpop.f32.mrb[0].mxu0
      %v1050 = vadd.f32 0.0, %v1049
      %v1051 = vpop.f32.mrb[0].mxu0
      %1052 = vmatprep.mubr.bf16.mxu0 0
      %1053 = vmatmul.mubr.bf16.gmra.mrb[0].mxu0 %v996
      %v1054 = vpop.f32.mrb[0].mxu0
      %v1055 = vadd.f32 0.0, %v1054
      %v1056 = vpop.f32.mrb[0].mxu0
      %v1057 = vpop.f32.mrb[0].mxu0
      %v1058 = vadd.f32 0.0, %v1057
      %v1059 = vpop.f32.mrb[0].mxu0
      %1060 = vmatprep.mubr.bf16.mxu0 0
      %1061 = vmatmul.mubr.bf16.gmra.mrb[0].mxu0 %v999
      %v1062 = vpop.f32.mrb[0].mxu0
      %v1063 = vadd.f32 0.0, %v1062
      %v1064 = vpop.f32.mrb[0].mxu0
      %v1065 = vpop.f32.mrb[0].mxu0
      %v1066 = vadd.f32 0.0, %v1065
      %v1067 = vpop.f32.mrb[0].mxu0
      %1068 = vdwg.mxu0
      %v1069 = vadd.f32 %v967, %v1039
      %v1070 = vadd.f32 %v968, %v1042
      %v1071 = vadd.f32 %v969, %v1047
      %v1072 = vadd.f32 %v970, %v1050
      %v1073 = vadd.f32 %v971, %v1055
      %v1074 = vadd.f32 %v972, %v1058
      %v1075 = vadd.f32 %v973, %v1063
      %v1076 = vadd.f32 %v974, %v1066
      %v1077 = vld [vmem:[%s2] sm:$0x1]
      %v1079 = vlaneseq
      %v1080 = vshrl.u32 %v1079, 7
      %v1081 = vsub.s32 0, %v1080
      %v1082 = vrot.slane %v1077, %v1081
      %v1084 = vadd.f32 %v1069, %v1082
      %v1085 = vadd.f32 %v1070, %v1082
      %v1086 = vadd.f32 %v1071, %v1082
      %v1087 = vadd.f32 %v1072, %v1082
      %v1088 = vadd.f32 %v1073, %v1082
      %v1089 = vadd.f32 %v1074, %v1082
      %v1090 = vadd.f32 %v1075, %v1082
      %v1091 = vadd.f32 %v1076, %v1082
      %v1092 = vmax.f32 %v1084, 0.0
      %v1093 = vmax.f32 %v1085, 0.0
      %v1094 = vmax.f32 %v1086, 0.0
      %v1095 = vmax.f32 %v1087, 0.0
      %v1096 = vmax.f32 %v1088, 0.0
      %v1097 = vmax.f32 %v1089, 0.0
      %v1098 = vmax.f32 %v1090, 0.0
      %v1099 = vmax.f32 %v1091, 0.0
      %vm1100 = vcmask 130048
      %1101 = vst.msk [vmem:[%s170] sm:$0xff] %vm1100, %v1092
      %1102 = vst.msk [vmem:[%s170 + $0x8] sm:$0xff] %vm1100, %v1093
      %1103 = vst.msk [vmem:[%s170 + $0x10] sm:$0xff] %vm1100, %v1094
      %1104 = vst.msk [vmem:[%s170 + $0x18] sm:$0xff] %vm1100, %v1095
      %1105 = vst.msk [vmem:[%s170 + $0x20] sm:$0xff] %vm1100, %v1096
      %1106 = vst.msk [vmem:[%s170 + $0x28] sm:$0xff] %vm1100, %v1097
      %1107 = vst.msk [vmem:[%s170 + $0x30] sm:$0xff] %vm1100, %v1098
      %1108 = vst.msk [vmem:[%s170 + $0x38] sm:$0xff] %vm1100, %v1099
      %p1109 = scmp.lt.s32.totalorder %s14, 3
      %s1110 = scalar_select %p1109, %s14, 3
      %s1111 = smul.addr %s1110, 8
      %s1112 = smul.addr %s1111, 8
      %s1113 = scalar_lea.vmem %s3, %s1112
      // Predicated region
      $region33: #{perceptual_loss.7} parent=31 // pred_check
        %p1114 = pneg %p100
      $region34: #{perceptual_loss.7} parent=31 // pred_check_branch
        %1116 = sbr.rel (%p1114) target = $region36
      $region35: #{perceptual_loss.7} parent=31 // pred_region
        _
      $region36: #{perceptual_loss.7} parent=31 // pred_fallthru
        _
    $region32: #{perceptual_loss.7} parent=5 // pred_fallthru
      _
    %p1117 = scmp.le.s32.totalorder 2, %s9
    // Predicated region
    $region37: #{perceptual_loss.7} parent=5 // pred_check
      %p1118 = pneg %p1117
    $region38: #{perceptual_loss.7} parent=5 // pred_check_branch
      %1120 = sbr.rel (%p1118) target = $region40
    $region39: #{perceptual_loss.7} parent=5 // pred_region
      %s1121 = ssub.s32 %s9, 2
      // Predicated region
      $region41: #{perceptual_loss.7} parent=39 // pred_check
        %p1122 = pneg %p106
      $region42: #{perceptual_loss.7} parent=39 // pred_check_branch
        %1124 = sbr.rel (%p1122) target = $region44
      $region43: #{perceptual_loss.7} parent=39 // pred_region
        %p1125 = scmp.lt.s32.totalorder %s15, 3
        %s1126 = scalar_select %p1125, %s15, 3
        %s1127 = smul.addr %s1126, 8
        %s1128 = smul.addr %s1127, 8
        %s1129 = scalar_lea.vmem %s3, %s1128
      $region44: #{perceptual_loss.7} parent=39 // pred_fallthru
        _
    $region40: #{perceptual_loss.7} parent=5 // pred_fallthru
      _
  $region6: #{perceptual_loss.7} parent=0 // loop_footer
    %s13 = sadd.s32 1, %s9
  $region7: #{perceptual_loss.7} parent=0 // loop_footer_branch
    %8 = sbr.rel target = $region3
  $region8: #{perceptual_loss.7} parent=0 // loop_exit
    _

// kernel: perceptual_loss.8
$region0: #{perceptual_loss.8}
  #allocation0 [shape = 'u32[]', space=smem, size = 0x4, offset = 0x4, fixed_abs, tag = 'smem constant byte address 0x4 - core index']
  #allocation1 [shape = 'u32[144,128]{1,0:T(1,128)}', space=vmem, size = 0x12000, scoped, tag = 'internal scratch']
  #allocation2 [shape = 'f32[32,16]{1,0:T(8,128)}', space=vmem, size = 0x4000, scoped, tag = 'scratch operand']
  %s0 = inlined_call_operand.vmem [shape: f32[4,10,10,16], index: 0, kind: input, shape index: {}]
  %s1 = inlined_call_operand.vmem [shape: bf16[9,16,16], index: 1, kind: input, shape index: {}]
  %s2 = inlined_call_operand.vmem [shape: f32[1,16], index: 2, kind: input, shape index: {}]
  %s3 = inlined_call_operand.vmem [shape: f32[4,16,16], index: 3, kind: output, shape index: {}]
  %s4 = sld [smem:[#allocation0]]
  $region45: #{perceptual_loss.8} parent=0
    _
  %s6 = ssub.s32 1, %s4
  %s7 = scalar_select 0, %s6, %s4
  loop: start=0, step=1, limit=6
  $region2: #{perceptual_loss.8} parent=0 // loop_pre_header
    _
  $region3: #{perceptual_loss.8} parent=0 // loop_header
    %s9 = sphi 0, %s13
    %p10 = scmp.ge.s32.totalorder %s9, 6
    %s19 = sphi 0, %s21
    %s22 = sphi 0, %s19
    %s23 = sphi 0, %s22
    %s39 = sphi 0, %s23
    %s43 = sphi 0, %s43
    %s45 = sphi 0, %s43
    %s46 = sphi 0, %s45
    %s60 = sphi 0, %s46
    %s64 = sphi 0, %s64
    %s66 = sphi 0, %s64
    %s67 = sphi 0, %s66
    %s81 = sphi 0, %s67
    %s87 = sphi 0, %s89
    %s90 = sphi 0, %s87
    %s91 = sphi 0, %s90
    %s107 = sphi 0, %s91
  $region4: #{perceptual_loss.8} parent=0 // loop_header_branch
    %12 = sbr.rel (%p10) target = $region8
  $region5: #{perceptual_loss.8} parent=0 // loop_body
    %s14 = ssub.s32 %s9, 1
    %s15 = ssub.s32 %s9, 2
    %s16 = sadd.s32 %s9, 1
    %s17 = ssub.s32 %s9, %s16
    %p18 = scmp.eq.s32.totalorder %s17, 0
    %s20 = sadd.s32 %s19, 1
    %s21 = scalar_select %p18, %s19, %s20
    %p24 = pneg %p18
    %p25 = scmp.eq.s32.totalorder %s9, 3
    %p26 = por %p24, %p25
    %p27 = scmp.ne.s32.totalorder %s19, %s22
    %p28 = scmp.eq.s32.totalorder %s9, 0
    %p29 = por %p27, %p28
    %p30 = scmp.ne.s32.totalorder %s19, %s22
    %p31 = scmp.eq.s32.totalorder %s14, 3
    %p32 = por %p30, %p31
    %p33 = scmp.ne.s32.totalorder %s22, %s23
    %p34 = scmp.eq.s32.totalorder %s14, 0
    %p35 = por %p33, %p34
    %p36 = scmp.ne.s32.totalorder %s22, %s23
    %p37 = scmp.eq.s32.totalorder %s15, 3
    %p38 = por %p36, %p37
    %p40 = scmp.ne.s32.totalorder %s23, %s39
    %p41 = scmp.eq.s32.totalorder %s15, 0
    %p42 = por %p40, %p41
    %s44 = sadd.s32 %s43, 1
    %p47 = scmp.eq.s32.totalorder %s9, 3
    %p48 = scmp.ne.s32.totalorder %s43, %s45
    %p49 = scmp.eq.s32.totalorder %s9, 0
    %p50 = por %p48, %p49
    %p51 = scmp.ne.s32.totalorder %s43, %s45
    %p52 = scmp.eq.s32.totalorder %s14, 3
    %p53 = por %p51, %p52
    %p54 = scmp.ne.s32.totalorder %s45, %s46
    %p55 = scmp.eq.s32.totalorder %s14, 0
    %p56 = por %p54, %p55
    %p57 = scmp.ne.s32.totalorder %s45, %s46
    %p58 = scmp.eq.s32.totalorder %s15, 3
    %p59 = por %p57, %p58
    %p61 = scmp.ne.s32.totalorder %s46, %s60
    %p62 = scmp.eq.s32.totalorder %s15, 0
    %p63 = por %p61, %p62
    %s65 = sadd.s32 %s64, 1
    %p68 = scmp.eq.s32.totalorder %s9, 3
    %p69 = scmp.ne.s32.totalorder %s64, %s66
    %p70 = scmp.eq.s32.totalorder %s9, 0
    %p71 = por %p69, %p70
    %p72 = scmp.ne.s32.totalorder %s64, %s66
    %p73 = scmp.eq.s32.totalorder %s14, 3
    %p74 = por %p72, %p73
    %p75 = scmp.ne.s32.totalorder %s66, %s67
    %p76 = scmp.eq.s32.totalorder %s14, 0
    %p77 = por %p75, %p76
    %p78 = scmp.ne.s32.totalorder %s66, %s67
    %p79 = scmp.eq.s32.totalorder %s15, 3
    %p80 = por %p78, %p79
    %p82 = scmp.ne.s32.totalorder %s67, %s81
    %p83 = scmp.eq.s32.totalorder %s15, 0
    %p84 = por %p82, %p83
    %s85 = ssub.s32 %s9, %s16
    %p86 = scmp.eq.s32.totalorder %s85, 0
    %s88 = sadd.s32 %s87, 1
    %s89 = scalar_select %p86, %s87, %s88
    %p92 = pneg %p86
    %p93 = scmp.eq.s32.totalorder %s9, 3
    %p94 = por %p92, %p93
    %p95 = scmp.ne.s32.totalorder %s87, %s90
    %p96 = scmp.eq.s32.totalorder %s9, 0
    %p97 = por %p95, %p96
    %p98 = scmp.ne.s32.totalorder %s87, %s90
    %p99 = scmp.eq.s32.totalorder %s14, 3
    %p100 = por %p98, %p99
    %p101 = scmp.ne.s32.totalorder %s90, %s91
    %p102 = scmp.eq.s32.totalorder %s14, 0
    %p103 = por %p101, %p102
    %p104 = scmp.ne.s32.totalorder %s90, %s91
    %p105 = scmp.eq.s32.totalorder %s15, 3
    %p106 = por %p104, %p105
    %p108 = scmp.ne.s32.totalorder %s91, %s107
    %p109 = scmp.eq.s32.totalorder %s15, 0
    %p110 = por %p108, %p109
    %p111 = scmp.le.s32.totalorder 1, %s9
    %p112 = scmp.lt.s32.totalorder %s9, 5
    %p113 = pnand %p111, %p112
    %p114 = pneg %p113
    // Predicated region
    $region9: #{perceptual_loss.8} parent=5 // pred_check
      _
    $region10: #{perceptual_loss.8} parent=5 // pred_check_branch
      %116 = sbr.rel (%p113) target = $region12
    $region11: #{perceptual_loss.8} parent=5 // pred_region
      %s117 = ssub.s32 %s9, 1
      // Predicated region
      $region13: #{perceptual_loss.8} parent=11 // pred_check
        %p118 = pneg %p56
      $region14: #{perceptual_loss.8} parent=11 // pred_check_branch
        %120 = sbr.rel (%p118) target = $region16
      $region15: #{perceptual_loss.8} parent=11 // pred_region
        _
      $region16: #{perceptual_loss.8} parent=11 // pred_fallthru
        _
      // Predicated region
      $region17: #{perceptual_loss.8} parent=11 // pred_check
        %p121 = pneg %p77
      $region18: #{perceptual_loss.8} parent=11 // pred_check_branch
        %123 = sbr.rel (%p121) target = $region20
      $region19: #{perceptual_loss.8} parent=11 // pred_region
        _
      $region20: #{perceptual_loss.8} parent=11 // pred_fallthru
        _
    $region12: #{perceptual_loss.8} parent=5 // pred_fallthru
      _
    %p124 = scmp.lt.s32.totalorder %s9, 4
    // Predicated region
    $region21: #{perceptual_loss.8} parent=5 // pred_check
      %p125 = pneg %p124
    $region22: #{perceptual_loss.8} parent=5 // pred_check_branch
      %127 = sbr.rel (%p125) target = $region24
    $region23: #{perceptual_loss.8} parent=5 // pred_region
      // Predicated region
      $region25: #{perceptual_loss.8} parent=23 // pred_check
        %p128 = pneg %p29
      $region26: #{perceptual_loss.8} parent=23 // pred_check_branch
        %130 = sbr.rel (%p128) target = $region28
      $region27: #{perceptual_loss.8} parent=23 // pred_region
        %p131 = scmp.lt.s32.totalorder %s9, 3
        %s132 = scalar_select %p131, %s9, 3
        %s133 = smul.addr %s132, 20
        %s134 = smul.addr %s133, 8
        %s135 = scalar_lea.vmem %s0, %s134
      $region28: #{perceptual_loss.8} parent=23 // pred_fallthru
        _
    $region24: #{perceptual_loss.8} parent=5 // pred_fallthru
      _
    %p136 = scmp.le.s32.totalorder 1, %s9
    %p137 = scmp.lt.s32.totalorder %s9, 5
    %p138 = pnand %p136, %p137
    %p139 = pneg %p138
    // Predicated region
    $region29: #{perceptual_loss.8} parent=5 // pred_check
      _
    $region30: #{perceptual_loss.8} parent=5 // pred_check_branch
      %141 = sbr.rel (%p138) target = $region32
    $region31: #{perceptual_loss.8} parent=5 // pred_region
      %s142 = ssub.s32 %s9, 1
      %p143 = scmp.lt.s32.totalorder %s14, 3
      %s144 = scalar_select %p143, %s14, 3
      %s145 = smul.addr %s144, 20
      %s146 = smul.addr %s145, 8
      %s147 = scalar_lea.vmem %s0, %s146
      %p148 = pneg %p35
      %p149 = pneg %p32
      %p150 = pneg %p56
      %p151 = pneg %p53
      %p152 = pneg %p77
      %p153 = pneg %p74
      %p154 = pneg %p103
      %p155 = pneg %p100
      %p156 = scmp.lt.s32.totalorder %s14, 3
      %s157 = scalar_select %p156, %s14, 3
      %s158 = smul.addr %s157, 2
      %s159 = smul.addr %s158, 8
      %s160 = scalar_lea.vmem %s3, %s159
      %p161 = scmp.lt.s32.totalorder %s14, 3
      %s162 = scalar_select %p161, %s14, 3
      %s163 = smul.addr %s162, 20
      %s164 = smul.addr %s163, 8
      %s165 = scalar_lea.vmem %s0, %s164
      %p166 = scmp.lt.s32.totalorder %s14, 3
      %s167 = scalar_select %p166, %s14, 3
      %s168 = smul.addr %s167, 2
      %s169 = smul.addr %s168, 8
      %s170 = scalar_lea.vmem %s3, %s169
      %v172 = vld [vmem:[%s165] sm:$0xff]
      %v173 = vld [vmem:[%s165 + $0x10] sm:$0xff]
      %v174 = vld [vmem:[%s165 + $0x20] sm:$0xff]
      %v175 = vld [vmem:[%s165 + $0x30] sm:$0xff]
      %v176 = vld [vmem:[%s165 + $0x40] sm:$0xff]
      %v177 = vld [vmem:[%s165 + $0x50] sm:$0xff]
      %v178 = vld [vmem:[%s165 + $0x60] sm:$0xff]
      %v179 = vld [vmem:[%s165 + $0x70] sm:$0xff]
      %v180 = vpack.c.bf16 %v173, %v172
      %v181 = vpack.c.bf16 %v175, %v174
      %v182 = vpack.c.bf16 %v177, %v176
      %v183 = vpack.c.bf16 %v179, %v178
      %v184 = vld [vmem:[%s1] sm:$0xf]
      %v185 = vld [vmem:[%s1 + $0x4] sm:$0xf]
      %v186 = vld [vmem:[%s165 + $0x1] sm:$0xff]
      %v187 = vld [vmem:[%s165 + $0x11] sm:$0xff]
      %v188 = vld [vmem:[%s165 + $0x21] sm:$0xff]
      %v189 = vld [vmem:[%s165 + $0x31] sm:$0xff]
      %v190 = vld [vmem:[%s165 + $0x41] sm:$0xff]
      %v191 = vld [vmem:[%s165 + $0x51] sm:$0xff]
      %v192 = vld [vmem:[%s165 + $0x61] sm:$0xff]
      %v193 = vld [vmem:[%s165 + $0x71] sm:$0xff]
      %v194 = vpack.c.bf16 %v187, %v186
      %v195 = vpack.c.bf16 %v189, %v188
      %v196 = vpack.c.bf16 %v191, %v190
      %v197 = vpack.c.bf16 %v193, %v192
      %s198 = scalar_lea.vmem %s1, 8
      %v199 = vld [vmem:[%s198] sm:$0xf]
      %v200 = vld [vmem:[%s198 + $0x4] sm:$0xf]
      %v203 = vunpack.c.l.b16 %v199
      %v204 = vunpack.c.l.b16 %v200
      %v205 = vpack.c.b16 %v204, %v203
      %vm207 = vcmask 130048
      %v209 = vsel %vm207, %v194, 0
      %v212 = vsel %vm207, %v195, 0
      %v215 = vsel %vm207, %v196, 0
      %v218 = vsel %vm207, %v197, 0
      %220 = vmatprep.subr.bf16.mxu0 0
      %221 = vmatpush1.bf16.msra.mxu0 %v205
      %222 = vmatprep.subr.bf16.mxu0 0
      %223 = vmatpush1.bf16.msra.mxu0 0
      %224 = vmatprep.subr.bf16.mxu0 0
      %225 = vmatpush1.bf16.msra.mxu0 0
      %226 = vmatprep.subr.bf16.mxu0 0
      %227 = vmatpush1.bf16.msra.mxu0 0
      %228 = vmatprep.subr.bf16.mxu0 0
      %229 = vmatpush1.bf16.msra.mxu0 0
      %230 = vmatprep.subr.bf16.mxu0 0
      %231 = vmatpush1.bf16.msra.mxu0 0
      %232 = vmatprep.subr.bf16.mxu0 0
      %233 = vmatpush1.bf16.msra.mxu0 0
      %234 = vmatprep.subr.bf16.mxu0 0
      %235 = vmatpush1.bf16.msra.mxu0 0
      %236 = vmatprep.subr.bf16.mxu0 0
      %237 = vmatpush1.bf16.msra.mxu0 0
      %238 = vmatprep.subr.bf16.mxu0 0
      %239 = vmatpush1.bf16.msra.mxu0 0
      %240 = vmatprep.subr.bf16.mxu0 0
      %241 = vmatpush1.bf16.msra.mxu0 0
      %242 = vmatprep.subr.bf16.mxu0 0
      %243 = vmatpush1.bf16.msra.mxu0 0
      %244 = vmatprep.subr.bf16.mxu0 0
      %245 = vmatpush1.bf16.msra.mxu0 0
      %246 = vmatprep.subr.bf16.mxu0 0
      %247 = vmatpush1.bf16.msra.mxu0 0
      %248 = vmatprep.subr.bf16.mxu0 0
      %249 = vmatpush1.bf16.msra.mxu0 0
      %250 = vmatprep.subr.bf16.mxu0 0
      %251 = vmatpush1.bf16.msra.mxu0 0
      %252 = vmatprep.mubr.bf16.mxu0 0
      %253 = vmatmul.mubr.bf16.gmra.mrb[0].mxu0 %v209
      %v254 = vpop.f32.mrb[0].mxu0
      %v255 = vadd.f32 0.0, %v254
      %v256 = vpop.f32.mrb[0].mxu0
      %v257 = vpop.f32.mrb[0].mxu0
      %v258 = vadd.f32 0.0, %v257
      %v259 = vpop.f32.mrb[0].mxu0
      %260 = vmatprep.mubr.bf16.mxu0 0
      %261 = vmatmul.mubr.bf16.gmra.mrb[0].mxu0 %v212
      %v262 = vpop.f32.mrb[0].mxu0
      %v263 = vadd.f32 0.0, %v262
      %v264 = vpop.f32.mrb[0].mxu0
      %v265 = vpop.f32.mrb[0].mxu0
      %v266 = vadd.f32 0.0, %v265
      %v267 = vpop.f32.mrb[0].mxu0
      %268 = vmatprep.mubr.bf16.mxu0 0
      %269 = vmatmul.mubr.bf16.gmra.mrb[0].mxu0 %v215
      %v270 = vpop.f32.mrb[0].mxu0
      %v271 = vadd.f32 0.0, %v270
      %v272 = vpop.f32.mrb[0].mxu0
      %v273 = vpop.f32.mrb[0].mxu0
      %v274 = vadd.f32 0.0, %v273
      %v275 = vpop.f32.mrb[0].mxu0
      %276 = vmatprep.mubr.bf16.mxu0 0
      %277 = vmatmul.mubr.bf16.gmra.mrb[0].mxu0 %v218
      %v278 = vpop.f32.mrb[0].mxu0
      %v279 = vadd.f32 0.0, %v278
      %v280 = vpop.f32.mrb[0].mxu0
      %v281 = vpop.f32.mrb[0].mxu0
      %v282 = vadd.f32 0.0, %v281
      %v283 = vpop.f32.mrb[0].mxu0
      %284 = vdwg.mxu0
      %v287 = vunpack.c.l.b16 %v184
      %v288 = vunpack.c.l.b16 %v185
      %v289 = vpack.c.b16 %v288, %v287
      %v292 = vsel %vm207, %v180, 0
      %v295 = vsel %vm207, %v181, 0
      %v298 = vsel %vm207, %v182, 0
      %v301 = vsel %vm207, %v183, 0
      %303 = vmatprep.subr.bf16.mxu0 0
      %304 = vmatpush1.bf16.msra.mxu0 %v289
      %305 = vmatprep.subr.bf16.mxu0 0
      %306 = vmatpush1.bf16.msra.mxu0 0
      %307 = vmatprep.subr.bf16.mxu0 0
      %308 = vmatpush1.bf16.msra.mxu0 0
      %309 = vmatprep.subr.bf16.mxu0 0
      %310 = vmatpush1.bf16.msra.mxu0 0
      %311 = vmatprep.subr.bf16.mxu0 0
      %312 = vmatpush1.bf16.msra.mxu0 0
      %313 = vmatprep.subr.bf16.mxu0 0
      %314 = vmatpush1.bf16.msra.mxu0 0
      %315 = vmatprep.subr.bf16.mxu0 0
      %316 = vmatpush1.bf16.msra.mxu0 0
      %317 = vmatprep.subr.bf16.mxu0 0
      %318 = vmatpush1.bf16.msra.mxu0 0
      %319 = vmatprep.subr.bf16.mxu0 0
      %320 = vmatpush1.bf16.msra.mxu0 0
      %321 = vmatprep.subr.bf16.mxu0 0
      %322 = vmatpush1.bf16.msra.mxu0 0
      %323 = vmatprep.subr.bf16.mxu0 0
      %324 = vmatpush1.bf16.msra.mxu0 0
      %325 = vmatprep.subr.bf16.mxu0 0
      %326 = vmatpush1.bf16.msra.mxu0 0
      %327 = vmatprep.subr.bf16.mxu0 0
      %328 = vmatpush1.bf16.msra.mxu0 0
      %329 = vmatprep.subr.bf16.mxu0 0
      %330 = vmatpush1.bf16.msra.mxu0 0
      %331 = vmatprep.subr.bf16.mxu0 0
      %332 = vmatpush1.bf16.msra.mxu0 0
      %333 = vmatprep.subr.bf16.mxu0 0
      %334 = vmatpush1.bf16.msra.mxu0 0
      %335 = vmatprep.mubr.bf16.mxu0 0
      %336 = vmatmul.mubr.bf16.gmra.mrb[0].mxu0 %v292
      %v337 = vpop.f32.mrb[0].mxu0
      %v338 = vadd.f32 %v255, %v337
      %v339 = vpop.f32.mrb[0].mxu0
      %v340 = vpop.f32.mrb[0].mxu0
      %v341 = vadd.f32 %v258, %v340
      %v342 = vpop.f32.mrb[0].mxu0
      %343 = vmatprep.mubr.bf16.mxu0 0
      %344 = vmatmul.mubr.bf16.gmra.mrb[0].mxu0 %v295
      %v345 = vpop.f32.mrb[0].mxu0
      %v346 = vadd.f32 %v263, %v345
      %v347 = vpop.f32.mrb[0].mxu0
      %v348 = vpop.f32.mrb[0].mxu0
      %v349 = vadd.f32 %v266, %v348
      %v350 = vpop.f32.mrb[0].mxu0
      %351 = vmatprep.mubr.bf16.mxu0 0
      %352 = vmatmul.mubr.bf16.gmra.mrb[0].mxu0 %v298
      %v353 = vpop.f32.mrb[0].mxu0
      %v354 = vadd.f32 %v271, %v353
      %v355 = vpop.f32.mrb[0].mxu0
      %v356 = vpop.f32.mrb[0].mxu0
      %v357 = vadd.f32 %v274, %v356
      %v358 = vpop.f32.mrb[0].mxu0
      %359 = vmatprep.mubr.bf16.mxu0 0
      %360 = vmatmul.mubr.bf16.gmra.mrb[0].mxu0 %v301
      %v361 = vpop.f32.mrb[0].mxu0
      %v362 = vadd.f32 %v279, %v361
      %v363 = vpop.f32.mrb[0].mxu0
      %v364 = vpop.f32.mrb[0].mxu0
      %v365 = vadd.f32 %v282, %v364
      %v366 = vpop.f32.mrb[0].mxu0
      %367 = vdwg.mxu0
      %v368 = vld [vmem:[%s165 + $0x2] sm:$0xff]
      %v369 = vld [vmem:[%s165 + $0x12] sm:$0xff]
      %v370 = vld [vmem:[%s165 + $0x22] sm:$0xff]
      %v371 = vld [vmem:[%s165 + $0x32] sm:$0xff]
      %v372 = vld [vmem:[%s165 + $0x42] sm:$0xff]
      %v373 = vld [vmem:[%s165 + $0x52] sm:$0xff]
      %v374 = vld [vmem:[%s165 + $0x62] sm:$0xff]
      %v375 = vld [vmem:[%s165 + $0x72] sm:$0xff]
      %v376 = vpack.c.bf16 %v369, %v368
      %v377 = vpack.c.bf16 %v371, %v370
      %v378 = vpack.c.bf16 %v373, %v372
      %v379 = vpack.c.bf16 %v375, %v374
      %s380 = scalar_lea.vmem %s1, 16
      %v381 = vld [vmem:[%s380] sm:$0xf]
      %v382 = vld [vmem:[%s380 + $0x4] sm:$0xf]
      %v385 = vunpack.c.l.b16 %v381
      %v386 = vunpack.c.l.b16 %v382
      %v387 = vpack.c.b16 %v386, %v385
      %v390 = vsel %vm207, %v376, 0
      %v393 = vsel %vm207, %v377, 0
      %v396 = vsel %vm207, %v378, 0
      %v399 = vsel %vm207, %v379, 0
      %401 = vmatprep.subr.bf16.mxu0 0
      %402 = vmatpush1.bf16.msra.mxu0 %v387
      %403 = vmatprep.subr.bf16.mxu0 0
      %404 = vmatpush1.bf16.msra.mxu0 0
      %405 = vmatprep.subr.bf16.mxu0 0
      %406 = vmatpush1.bf16.msra.mxu0 0
      %407 = vmatprep.subr.bf16.mxu0 0
      %408 = vmatpush1.bf16.msra.mxu0 0
      %409 = vmatprep.subr.bf16.mxu0 0
      %410 = vmatpush1.bf16.msra.mxu0 0
      %411 = vmatprep.subr.bf16.mxu0 0
      %412 = vmatpush1.bf16.msra.mxu0 0
      %413 = vmatprep.subr.bf16.mxu0 0
      %414 = vmatpush1.bf16.msra.mxu0 0
      %415 = vmatprep.subr.bf16.mxu0 0
      %416 = vmatpush1.bf16.msra.mxu0 0
      %417 = vmatprep.subr.bf16.mxu0 0
      %418 = vmatpush1.bf16.msra.mxu0 0
      %419 = vmatprep.subr.bf16.mxu0 0
      %420 = vmatpush1.bf16.msra.mxu0 0
      %421 = vmatprep.subr.bf16.mxu0 0
      %422 = vmatpush1.bf16.msra.mxu0 0
      %423 = vmatprep.subr.bf16.mxu0 0
      %424 = vmatpush1.bf16.msra.mxu0 0
      %425 = vmatprep.subr.bf16.mxu0 0
      %426 = vmatpush1.bf16.msra.mxu0 0
      %427 = vmatprep.subr.bf16.mxu0 0
      %428 = vmatpush1.bf16.msra.mxu0 0
      %429 = vmatprep.subr.bf16.mxu0 0
      %430 = vmatpush1.bf16.msra.mxu0 0
      %431 = vmatprep.subr.bf16.mxu0 0
      %432 = vmatpush1.bf16.msra.mxu0 0
      %433 = vmatprep.mubr.bf16.mxu0 0
      %434 = vmatmul.mubr.bf16.gmra.mrb[0].mxu0 %v390
      %v435 = vpop.f32.mrb[0].mxu0
      %v436 = vadd.f32 0.0, %v435
      %v437 = vpop.f32.mrb[0].mxu0
      %v438 = vpop.f32.mrb[0].mxu0
      %v439 = vadd.f32 0.0, %v438
      %v440 = vpop.f32.mrb[0].mxu0
      %441 = vmatprep.mubr.bf16.mxu0 0
      %442 = vmatmul.mubr.bf16.gmra.mrb[0].mxu0 %v393
      %v443 = vpop.f32.mrb[0].mxu0
      %v444 = vadd.f32 0.0, %v443
      %v445 = vpop.f32.mrb[0].mxu0
      %v446 = vpop.f32.mrb[0].mxu0
      %v447 = vadd.f32 0.0, %v446
      %v448 = vpop.f32.mrb[0].mxu0
      %449 = vmatprep.mubr.bf16.mxu0 0
      %450 = vmatmul.mubr.bf16.gmra.mrb[0].mxu0 %v396
      %v451 = vpop.f32.mrb[0].mxu0
      %v452 = vadd.f32 0.0, %v451
      %v453 = vpop.f32.mrb[0].mxu0
      %v454 = vpop.f32.mrb[0].mxu0
      %v455 = vadd.f32 0.0, %v454
      %v456 = vpop.f32.mrb[0].mxu0
      %457 = vmatprep.mubr.bf16.mxu0 0
      %458 = vmatmul.mubr.bf16.gmra.mrb[0].mxu0 %v399
      %v459 = vpop.f32.mrb[0].mxu0
      %v460 = vadd.f32 0.0, %v459
      %v461 = vpop.f32.mrb[0].mxu0
      %v462 = vpop.f32.mrb[0].mxu0
      %v463 = vadd.f32 0.0, %v462
      %v464 = vpop.f32.mrb[0].mxu0
      %465 = vdwg.mxu0
      %v466 = vadd.f32 %v338, %v436
      %v467 = vadd.f32 %v341, %v439
      %v468 = vadd.f32 %v346, %v444
      %v469 = vadd.f32 %v349, %v447
      %v470 = vadd.f32 %v354, %v452
      %v471 = vadd.f32 %v357, %v455
      %v472 = vadd.f32 %v362, %v460
      %v473 = vadd.f32 %v365, %v463
      %s474 = scalar_lea.vmem %s165, 16
      %v475 = vld [vmem:[%s474] sm:$0xff]
      %v476 = vld [vmem:[%s474 + $0x10] sm:$0xff]
      %v477 = vld [vmem:[%s474 + $0x20] sm:$0xff]
      %v478 = vld [vmem:[%s474 + $0x30] sm:$0xff]
      %v479 = vld [vmem:[%s474 + $0x40] sm:$0xff]
      %v480 = vld [vmem:[%s474 + $0x50] sm:$0xff]
      %v481 = vld [vmem:[%s474 + $0x60] sm:$0xff]
      %v482 = vld [vmem:[%s474 + $0x70] sm:$0xff]
      %v483 = vpack.c.bf16 %v476, %v475
      %v484 = vpack.c.bf16 %v478, %v477
      %v485 = vpack.c.bf16 %v480, %v479
      %v486 = vpack.c.bf16 %v482, %v481
      %s487 = scalar_lea.vmem %s1, 24
      %v488 = vld [vmem:[%s487] sm:$0xf]
      %v489 = vld [vmem:[%s487 + $0x4] sm:$0xf]
      %v492 = vunpack.c.l.b16 %v488
      %v493 = vunpack.c.l.b16 %v489
      %v494 = vpack.c.b16 %v493, %v492
      %v497 = vsel %vm207, %v483, 0
      %v500 = vsel %vm207, %v484, 0
      %v503 = vsel %vm207, %v485, 0
      %v506 = vsel %vm207, %v486, 0
      %508 = vmatprep.subr.bf16.mxu0 0
      %509 = vmatpush1.bf16.msra.mxu0 %v494
      %510 = vmatprep.subr.bf16.mxu0 0
      %511 = vmatpush1.bf16.msra.mxu0 0
      %512 = vmatprep.subr.bf16.mxu0 0
      %513 = vmatpush1.bf16.msra.mxu0 0
      %514 = vmatprep.subr.bf16.mxu0 0
      %515 = vmatpush1.bf16.msra.mxu0 0
      %516 = vmatprep.subr.bf16.mxu0 0
      %517 = vmatpush1.bf16.msra.mxu0 0
      %518 = vmatprep.subr.bf16.mxu0 0
      %519 = vmatpush1.bf16.msra.mxu0 0
      %520 = vmatprep.subr.bf16.mxu0 0
      %521 = vmatpush1.bf16.msra.mxu0 0
      %522 = vmatprep.subr.bf16.mxu0 0
      %523 = vmatpush1.bf16.msra.mxu0 0
      %524 = vmatprep.subr.bf16.mxu0 0
      %525 = vmatpush1.bf16.msra.mxu0 0
      %526 = vmatprep.subr.bf16.mxu0 0
      %527 = vmatpush1.bf16.msra.mxu0 0
      %528 = vmatprep.subr.bf16.mxu0 0
      %529 = vmatpush1.bf16.msra.mxu0 0
      %530 = vmatprep.subr.bf16.mxu0 0
      %531 = vmatpush1.bf16.msra.mxu0 0
      %532 = vmatprep.subr.bf16.mxu0 0
      %533 = vmatpush1.bf16.msra.mxu0 0
      %534 = vmatprep.subr.bf16.mxu0 0
      %535 = vmatpush1.bf16.msra.mxu0 0
      %536 = vmatprep.subr.bf16.mxu0 0
      %537 = vmatpush1.bf16.msra.mxu0 0
      %538 = vmatprep.subr.bf16.mxu0 0
      %539 = vmatpush1.bf16.msra.mxu0 0
      %540 = vmatprep.mubr.bf16.mxu0 0
      %541 = vmatmul.mubr.bf16.gmra.mrb[0].mxu0 %v497
      %v542 = vpop.f32.mrb[0].mxu0
      %v543 = vadd.f32 0.0, %v542
      %v544 = vpop.f32.mrb[0].mxu0
      %v545 = vpop.f32.mrb[0].mxu0
      %v546 = vadd.f32 0.0, %v545
      %v547 = vpop.f32.mrb[0].mxu0
      %548 = vmatprep.mubr.bf16.mxu0 0
      %549 = vmatmul.mubr.bf16.gmra.mrb[0].mxu0 %v500
      %v550 = vpop.f32.mrb[0].mxu0
      %v551 = vadd.f32 0.0, %v550
      %v552 = vpop.f32.mrb[0].mxu0
      %v553 = vpop.f32.mrb[0].mxu0
      %v554 = vadd.f32 0.0, %v553
      %v555 = vpop.f32.mrb[0].mxu0
      %556 = vmatprep.mubr.bf16.mxu0 0
      %557 = vmatmul.mubr.bf16.gmra.mrb[0].mxu0 %v503
      %v558 = vpop.f32.mrb[0].mxu0
      %v559 = vadd.f32 0.0, %v558
      %v560 = vpop.f32.mrb[0].mxu0
      %v561 = vpop.f32.mrb[0].mxu0
      %v562 = vadd.f32 0.0, %v561
      %v563 = vpop.f32.mrb[0].mxu0
      %564 = vmatprep.mubr.bf16.mxu0 0
      %565 = vmatmul.mubr.bf16.gmra.mrb[0].mxu0 %v506
      %v566 = vpop.f32.mrb[0].mxu0
      %v567 = vadd.f32 0.0, %v566
      %v568 = vpop.f32.mrb[0].mxu0
      %v569 = vpop.f32.mrb[0].mxu0
      %v570 = vadd.f32 0.0, %v569
      %v571 = vpop.f32.mrb[0].mxu0
      %572 = vdwg.mxu0
      %v573 = vadd.f32 %v466, %v543
      %v574 = vadd.f32 %v467, %v546
      %v575 = vadd.f32 %v468, %v551
      %v576 = vadd.f32 %v469, %v554
      %v577 = vadd.f32 %v470, %v559
      %v578 = vadd.f32 %v471, %v562
      %v579 = vadd.f32 %v472, %v567
      %v580 = vadd.f32 %v473, %v570
      %v581 = vld [vmem:[%s474 + $0x1] sm:$0xff]
      %v582 = vld [vmem:[%s474 + $0x11] sm:$0xff]
      %v583 = vld [vmem:[%s474 + $0x21] sm:$0xff]
      %v584 = vld [vmem:[%s474 + $0x31] sm:$0xff]
      %v585 = vld [vmem:[%s474 + $0x41] sm:$0xff]
      %v586 = vld [vmem:[%s474 + $0x51] sm:$0xff]
      %v587 = vld [vmem:[%s474 + $0x61] sm:$0xff]
      %v588 = vld [vmem:[%s474 + $0x71] sm:$0xff]
      %v589 = vpack.c.bf16 %v582, %v581
      %v590 = vpack.c.bf16 %v584, %v583
      %v591 = vpack.c.bf16 %v586, %v585
      %v592 = vpack.c.bf16 %v588, %v587
      %s593 = scalar_lea.vmem %s1, 32
      %v594 = vld [vmem:[%s593] sm:$0xf]
      %v595 = vld [vmem:[%s593 + $0x4] sm:$0xf]
      %v598 = vunpack.c.l.b16 %v594
      %v599 = vunpack.c.l.b16 %v595
      %v600 = vpack.c.b16 %v599, %v598
      %v603 = vsel %vm207, %v589, 0
      %v606 = vsel %vm207, %v590, 0
      %v609 = vsel %vm207, %v591, 0
      %v612 = vsel %vm207, %v592, 0
      %614 = vmatprep.subr.bf16.mxu0 0
      %615 = vmatpush1.bf16.msra.mxu0 %v600
      %616 = vmatprep.subr.bf16.mxu0 0
      %617 = vmatpush1.bf16.msra.mxu0 0
      %618 = vmatprep.subr.bf16.mxu0 0
      %619 = vmatpush1.bf16.msra.mxu0 0
      %620 = vmatprep.subr.bf16.mxu0 0
      %621 = vmatpush1.bf16.msra.mxu0 0
      %622 = vmatprep.subr.bf16.mxu0 0
      %623 = vmatpush1.bf16.msra.mxu0 0
      %624 = vmatprep.subr.bf16.mxu0 0
      %625 = vmatpush1.bf16.msra.mxu0 0
      %626 = vmatprep.subr.bf16.mxu0 0
      %627 = vmatpush1.bf16.msra.mxu0 0
      %628 = vmatprep.subr.bf16.mxu0 0
      %629 = vmatpush1.bf16.msra.mxu0 0
      %630 = vmatprep.subr.bf16.mxu0 0
      %631 = vmatpush1.bf16.msra.mxu0 0
      %632 = vmatprep.subr.bf16.mxu0 0
      %633 = vmatpush1.bf16.msra.mxu0 0
      %634 = vmatprep.subr.bf16.mxu0 0
      %635 = vmatpush1.bf16.msra.mxu0 0
      %636 = vmatprep.subr.bf16.mxu0 0
      %637 = vmatpush1.bf16.msra.mxu0 0
      %638 = vmatprep.subr.bf16.mxu0 0
      %639 = vmatpush1.bf16.msra.mxu0 0
      %640 = vmatprep.subr.bf16.mxu0 0
      %641 = vmatpush1.bf16.msra.mxu0 0
      %642 = vmatprep.subr.bf16.mxu0 0
      %643 = vmatpush1.bf16.msra.mxu0 0
      %644 = vmatprep.subr.bf16.mxu0 0
      %645 = vmatpush1.bf16.msra.mxu0 0
      %646 = vmatprep.mubr.bf16.mxu0 0
      %647 = vmatmul.mubr.bf16.gmra.mrb[0].mxu0 %v603
      %v648 = vpop.f32.mrb[0].mxu0
      %v649 = vadd.f32 0.0, %v648
      %v650 = vpop.f32.mrb[0].mxu0
      %v651 = vpop.f32.mrb[0].mxu0
      %v652 = vadd.f32 0.0, %v651
      %v653 = vpop.f32.mrb[0].mxu0
      %654 = vmatprep.mubr.bf16.mxu0 0
      %655 = vmatmul.mubr.bf16.gmra.mrb[0].mxu0 %v606
      %v656 = vpop.f32.mrb[0].mxu0
      %v657 = vadd.f32 0.0, %v656
      %v658 = vpop.f32.mrb[0].mxu0
      %v659 = vpop.f32.mrb[0].mxu0
      %v660 = vadd.f32 0.0, %v659
      %v661 = vpop.f32.mrb[0].mxu0
      %662 = vmatprep.mubr.bf16.mxu0 0
      %663 = vmatmul.mubr.bf16.gmra.mrb[0].mxu0 %v609
      %v664 = vpop.f32.mrb[0].mxu0
      %v665 = vadd.f32 0.0, %v664
      %v666 = vpop.f32.mrb[0].mxu0
      %v667 = vpop.f32.mrb[0].mxu0
      %v668 = vadd.f32 0.0, %v667
      %v669 = vpop.f32.mrb[0].mxu0
      %670 = vmatprep.mubr.bf16.mxu0 0
      %671 = vmatmul.mubr.bf16.gmra.mrb[0].mxu0 %v612
      %v672 = vpop.f32.mrb[0].mxu0
      %v673 = vadd.f32 0.0, %v672
      %v674 = vpop.f32.mrb[0].mxu0
      %v675 = vpop.f32.mrb[0].mxu0
      %v676 = vadd.f32 0.0, %v675
      %v677 = vpop.f32.mrb[0].mxu0
      %678 = vdwg.mxu0
      %v679 = vadd.f32 %v573, %v649
      %v680 = vadd.f32 %v574, %v652
      %v681 = vadd.f32 %v575, %v657
      %v682 = vadd.f32 %v576, %v660
      %v683 = vadd.f32 %v577, %v665
      %v684 = vadd.f32 %v578, %v668
      %v685 = vadd.f32 %v579, %v673
      %v686 = vadd.f32 %v580, %v676
      %v687 = vld [vmem:[%s474 + $0x2] sm:$0xff]
      %v688 = vld [vmem:[%s474 + $0x12] sm:$0xff]
      %v689 = vld [vmem:[%s474 + $0x22] sm:$0xff]
      %v690 = vld [vmem:[%s474 + $0x32] sm:$0xff]
      %v691 = vld [vmem:[%s474 + $0x42] sm:$0xff]
      %v692 = vld [vmem:[%s474 + $0x52] sm:$0xff]
      %v693 = vld [vmem:[%s474 + $0x62] sm:$0xff]
      %v694 = vld [vmem:[%s474 + $0x72] sm:$0xff]
      %v695 = vpack.c.bf16 %v688, %v687
      %v696 = vpack.c.bf16 %v690, %v689
      %v697 = vpack.c.bf16 %v692, %v691
      %v698 = vpack.c.bf16 %v694, %v693
      %s699 = scalar_lea.vmem %s1, 40
      %v700 = vld [vmem:[%s699] sm:$0xf]
      %v701 = vld [vmem:[%s699 + $0x4] sm:$0xf]
      %v704 = vunpack.c.l.b16 %v700
      %v705 = vunpack.c.l.b16 %v701
      %v706 = vpack.c.b16 %v705, %v704
      %v709 = vsel %vm207, %v695, 0
      %v712 = vsel %vm207, %v696, 0
      %v715 = vsel %vm207, %v697, 0
      %v718 = vsel %vm207, %v698, 0
      %720 = vmatprep.subr.bf16.mxu0 0
      %721 = vmatpush1.bf16.msra.mxu0 %v706
      %722 = vmatprep.subr.bf16.mxu0 0
      %723 = vmatpush1.bf16.msra.mxu0 0
      %724 = vmatprep.subr.bf16.mxu0 0
      %725 = vmatpush1.bf16.msra.mxu0 0
      %726 = vmatprep.subr.bf16.mxu0 0
      %727 = vmatpush1.bf16.msra.mxu0 0
      %728 = vmatprep.subr.bf16.mxu0 0
      %729 = vmatpush1.bf16.msra.mxu0 0
      %730 = vmatprep.subr.bf16.mxu0 0
      %731 = vmatpush1.bf16.msra.mxu0 0
      %732 = vmatprep.subr.bf16.mxu0 0
      %733 = vmatpush1.bf16.msra.mxu0 0
      %734 = vmatprep.subr.bf16.mxu0 0
      %735 = vmatpush1.bf16.msra.mxu0 0
      %736 = vmatprep.subr.bf16.mxu0 0
      %737 = vmatpush1.bf16.msra.mxu0 0
      %738 = vmatprep.subr.bf16.mxu0 0
      %739 = vmatpush1.bf16.msra.mxu0 0
      %740 = vmatprep.subr.bf16.mxu0 0
      %741 = vmatpush1.bf16.msra.mxu0 0
      %742 = vmatprep.subr.bf16.mxu0 0
      %743 = vmatpush1.bf16.msra.mxu0 0
      %744 = vmatprep.subr.bf16.mxu0 0
      %745 = vmatpush1.bf16.msra.mxu0 0
      %746 = vmatprep.subr.bf16.mxu0 0
      %747 = vmatpush1.bf16.msra.mxu0 0
      %748 = vmatprep.subr.bf16.mxu0 0
      %749 = vmatpush1.bf16.msra.mxu0 0
      %750 = vmatprep.subr.bf16.mxu0 0
      %751 = vmatpush1.bf16.msra.mxu0 0
      %752 = vmatprep.mubr.bf16.mxu0 0
      %753 = vmatmul.mubr.bf16.gmra.mrb[0].mxu0 %v709
      %v754 = vpop.f32.mrb[0].mxu0
      %v755 = vadd.f32 0.0, %v754
      %v756 = vpop.f32.mrb[0].mxu0
      %v757 = vpop.f32.mrb[0].mxu0
      %v758 = vadd.f32 0.0, %v757
      %v759 = vpop.f32.mrb[0].mxu0
      %760 = vmatprep.mubr.bf16.mxu0 0
      %761 = vmatmul.mubr.bf16.gmra.mrb[0].mxu0 %v712
      %v762 = vpop.f32.mrb[0].mxu0
      %v763 = vadd.f32 0.0, %v762
      %v764 = vpop.f32.mrb[0].mxu0
      %v765 = vpop.f32.mrb[0].mxu0
      %v766 = vadd.f32 0.0, %v765
      %v767 = vpop.f32.mrb[0].mxu0
      %768 = vmatprep.mubr.bf16.mxu0 0
      %769 = vmatmul.mubr.bf16.gmra.mrb[0].mxu0 %v715
      %v770 = vpop.f32.mrb[0].mxu0
      %v771 = vadd.f32 0.0, %v770
      %v772 = vpop.f32.mrb[0].mxu0
      %v773 = vpop.f32.mrb[0].mxu0
      %v774 = vadd.f32 0.0, %v773
      %v775 = vpop.f32.mrb[0].mxu0
      %776 = vmatprep.mubr.bf16.mxu0 0
      %777 = vmatmul.mubr.bf16.gmra.mrb[0].mxu0 %v718
      %v778 = vpop.f32.mrb[0].mxu0
      %v779 = vadd.f32 0.0, %v778
      %v780 = vpop.f32.mrb[0].mxu0
      %v781 = vpop.f32.mrb[0].mxu0
      %v782 = vadd.f32 0.0, %v781
      %v783 = vpop.f32.mrb[0].mxu0
      %784 = vdwg.mxu0
      %v785 = vadd.f32 %v679, %v755
      %v786 = vadd.f32 %v680, %v758
      %v787 = vadd.f32 %v681, %v763
      %v788 = vadd.f32 %v682, %v766
      %v789 = vadd.f32 %v683, %v771
      %v790 = vadd.f32 %v684, %v774
      %v791 = vadd.f32 %v685, %v779
      %v792 = vadd.f32 %v686, %v782
      %s793 = scalar_lea.vmem %s165, 32
      %v794 = vld [vmem:[%s793] sm:$0xff]
      %v795 = vld [vmem:[%s793 + $0x10] sm:$0xff]
      %v796 = vld [vmem:[%s793 + $0x20] sm:$0xff]
      %v797 = vld [vmem:[%s793 + $0x30] sm:$0xff]
      %v798 = vld [vmem:[%s793 + $0x40] sm:$0xff]
      %v799 = vld [vmem:[%s793 + $0x50] sm:$0xff]
      %v800 = vld [vmem:[%s793 + $0x60] sm:$0xff]
      %v801 = vld [vmem:[%s793 + $0x70] sm:$0xff]
      %v802 = vpack.c.bf16 %v795, %v794
      %v803 = vpack.c.bf16 %v797, %v796
      %v804 = vpack.c.bf16 %v799, %v798
      %v805 = vpack.c.bf16 %v801, %v800
      %s806 = scalar_lea.vmem %s1, 48
      %v807 = vld [vmem:[%s806] sm:$0xf]
      %v808 = vld [vmem:[%s806 + $0x4] sm:$0xf]
      %v811 = vunpack.c.l.b16 %v807
      %v812 = vunpack.c.l.b16 %v808
      %v813 = vpack.c.b16 %v812, %v811
      %v816 = vsel %vm207, %v802, 0
      %v819 = vsel %vm207, %v803, 0
      %v822 = vsel %vm207, %v804, 0
      %v825 = vsel %vm207, %v805, 0
      %827 = vmatprep.subr.bf16.mxu0 0
      %828 = vmatpush1.bf16.msra.mxu0 %v813
      %829 = vmatprep.subr.bf16.mxu0 0
      %830 = vmatpush1.bf16.msra.mxu0 0
      %831 = vmatprep.subr.bf16.mxu0 0
      %832 = vmatpush1.bf16.msra.mxu0 0
      %833 = vmatprep.subr.bf16.mxu0 0
      %834 = vmatpush1.bf16.msra.mxu0 0
      %835 = vmatprep.subr.bf16.mxu0 0
      %836 = vmatpush1.bf16.msra.mxu0 0
      %837 = vmatprep.subr.bf16.mxu0 0
      %838 = vmatpush1.bf16.msra.mxu0 0
      %839 = vmatprep.subr.bf16.mxu0 0
      %840 = vmatpush1.bf16.msra.mxu0 0
      %841 = vmatprep.subr.bf16.mxu0 0
      %842 = vmatpush1.bf16.msra.mxu0 0
      %843 = vmatprep.subr.bf16.mxu0 0
      %844 = vmatpush1.bf16.msra.mxu0 0
      %845 = vmatprep.subr.bf16.mxu0 0
      %846 = vmatpush1.bf16.msra.mxu0 0
      %847 = vmatprep.subr.bf16.mxu0 0
      %848 = vmatpush1.bf16.msra.mxu0 0
      %849 = vmatprep.subr.bf16.mxu0 0
      %850 = vmatpush1.bf16.msra.mxu0 0
      %851 = vmatprep.subr.bf16.mxu0 0
      %852 = vmatpush1.bf16.msra.mxu0 0
      %853 = vmatprep.subr.bf16.mxu0 0
      %854 = vmatpush1.bf16.msra.mxu0 0
      %855 = vmatprep.subr.bf16.mxu0 0
      %856 = vmatpush1.bf16.msra.mxu0 0
      %857 = vmatprep.subr.bf16.mxu0 0
      %858 = vmatpush1.bf16.msra.mxu0 0
      %859 = vmatprep.mubr.bf16.mxu0 0
      %860 = vmatmul.mubr.bf16.gmra.mrb[0].mxu0 %v816
      %v861 = vpop.f32.mrb[0].mxu0
      %v862 = vadd.f32 0.0, %v861
      %v863 = vpop.f32.mrb[0].mxu0
      %v864 = vpop.f32.mrb[0].mxu0
      %v865 = vadd.f32 0.0, %v864
      %v866 = vpop.f32.mrb[0].mxu0
      %867 = vmatprep.mubr.bf16.mxu0 0
      %868 = vmatmul.mubr.bf16.gmra.mrb[0].mxu0 %v819
      %v869 = vpop.f32.mrb[0].mxu0
      %v870 = vadd.f32 0.0, %v869
      %v871 = vpop.f32.mrb[0].mxu0
      %v872 = vpop.f32.mrb[0].mxu0
      %v873 = vadd.f32 0.0, %v872
      %v874 = vpop.f32.mrb[0].mxu0
      %875 = vmatprep.mubr.bf16.mxu0 0
      %876 = vmatmul.mubr.bf16.gmra.mrb[0].mxu0 %v822
      %v877 = vpop.f32.mrb[0].mxu0
      %v878 = vadd.f32 0.0, %v877
      %v879 = vpop.f32.mrb[0].mxu0
      %v880 = vpop.f32.mrb[0].mxu0
      %v881 = vadd.f32 0.0, %v880
      %v882 = vpop.f32.mrb[0].mxu0
      %883 = vmatprep.mubr.bf16.mxu0 0
      %884 = vmatmul.mubr.bf16.gmra.mrb[0].mxu0 %v825
      %v885 = vpop.f32.mrb[0].mxu0
      %v886 = vadd.f32 0.0, %v885
      %v887 = vpop.f32.mrb[0].mxu0
      %v888 = vpop.f32.mrb[0].mxu0
      %v889 = vadd.f32 0.0, %v888
      %v890 = vpop.f32.mrb[0].mxu0
      %891 = vdwg.mxu0
      %v892 = vadd.f32 %v785, %v862
      %v893 = vadd.f32 %v786, %v865
      %v894 = vadd.f32 %v787, %v870
      %v895 = vadd.f32 %v788, %v873
      %v896 = vadd.f32 %v789, %v878
      %v897 = vadd.f32 %v790, %v881
      %v898 = vadd.f32 %v791, %v886
      %v899 = vadd.f32 %v792, %v889
      %v900 = vld [vmem:[%s793 + $0x1] sm:$0xff]
      %v901 = vld [vmem:[%s793 + $0x11] sm:$0xff]
      %v902 = vld [vmem:[%s793 + $0x21] sm:$0xff]
      %v903 = vld [vmem:[%s793 + $0x31] sm:$0xff]
      %v904 = vld [vmem:[%s793 + $0x41] sm:$0xff]
      %v905 = vld [vmem:[%s793 + $0x51] sm:$0xff]
      %v906 = vld [vmem:[%s793 + $0x61] sm:$0xff]
      %v907 = vld [vmem:[%s793 + $0x71] sm:$0xff]
      %v908 = vpack.c.bf16 %v901, %v900
      %v909 = vpack.c.bf16 %v903, %v902
      %v910 = vpack.c.bf16 %v905, %v904
      %v911 = vpack.c.bf16 %v907, %v906
      %s912 = scalar_lea.vmem %s1, 56
      %v913 = vld [vmem:[%s912] sm:$0xf]
      %v914 = vld [vmem:[%s912 + $0x4] sm:$0xf]
      %v917 = vunpack.c.l.b16 %v913
      %v918 = vunpack.c.l.b16 %v914
      %v919 = vpack.c.b16 %v918, %v917
      %v922 = vsel %vm207, %v908, 0
      %v925 = vsel %vm207, %v909, 0
      %v928 = vsel %vm207, %v910, 0
      %v931 = vsel %vm207, %v911, 0
      %933 = vmatprep.subr.bf16.mxu0 0
      %934 = vmatpush1.bf16.msra.mxu0 %v919
      %935 = vmatprep.subr.bf16.mxu0 0
      %936 = vmatpush1.bf16.msra.mxu0 0
      %937 = vmatprep.subr.bf16.mxu0 0
      %938 = vmatpush1.bf16.msra.mxu0 0
      %939 = vmatprep.subr.bf16.mxu0 0
      %940 = vmatpush1.bf16.msra.mxu0 0
      %941 = vmatprep.subr.bf16.mxu0 0
      %942 = vmatpush1.bf16.msra.mxu0 0
      %943 = vmatprep.subr.bf16.mxu0 0
      %944 = vmatpush1.bf16.msra.mxu0 0
      %945 = vmatprep.subr.bf16.mxu0 0
      %946 = vmatpush1.bf16.msra.mxu0 0
      %947 = vmatprep.subr.bf16.mxu0 0
      %948 = vmatpush1.bf16.msra.mxu0 0
      %949 = vmatprep.subr.bf16.mxu0 0
      %950 = vmatpush1.bf16.msra.mxu0 0
      %951 = vmatprep.subr.bf16.mxu0 0
      %952 = vmatpush1.bf16.msra.mxu0 0
      %953 = vmatprep.subr.bf16.mxu0 0
      %954 = vmatpush1.bf16.msra.mxu0 0
      %955 = vmatprep.subr.bf16.mxu0 0
      %956 = vmatpush1.bf16.msra.mxu0 0
      %957 = vmatprep.subr.bf16.mxu0 0
      %958 = vmatpush1.bf16.msra.mxu0 0
      %959 = vmatprep.subr.bf16.mxu0 0
      %960 = vmatpush1.bf16.msra.mxu0 0
      %961 = vmatprep.subr.bf16.mxu0 0
      %962 = vmatpush1.bf16.msra.mxu0 0
      %963 = vmatprep.subr.bf16.mxu0 0
      %964 = vmatpush1.bf16.msra.mxu0 0
      %965 = vmatprep.mubr.bf16.mxu0 0
      %966 = vmatmul.mubr.bf16.gmra.mrb[0].mxu0 %v922
      %v967 = vpop.f32.mrb[0].mxu0
      %v968 = vadd.f32 0.0, %v967
      %v969 = vpop.f32.mrb[0].mxu0
      %v970 = vpop.f32.mrb[0].mxu0
      %v971 = vadd.f32 0.0, %v970
      %v972 = vpop.f32.mrb[0].mxu0
      %973 = vmatprep.mubr.bf16.mxu0 0
      %974 = vmatmul.mubr.bf16.gmra.mrb[0].mxu0 %v925
      %v975 = vpop.f32.mrb[0].mxu0
      %v976 = vadd.f32 0.0, %v975
      %v977 = vpop.f32.mrb[0].mxu0
      %v978 = vpop.f32.mrb[0].mxu0
      %v979 = vadd.f32 0.0, %v978
      %v980 = vpop.f32.mrb[0].mxu0
      %981 = vmatprep.mubr.bf16.mxu0 0
      %982 = vmatmul.mubr.bf16.gmra.mrb[0].mxu0 %v928
      %v983 = vpop.f32.mrb[0].mxu0
      %v984 = vadd.f32 0.0, %v983
      %v985 = vpop.f32.mrb[0].mxu0
      %v986 = vpop.f32.mrb[0].mxu0
      %v987 = vadd.f32 0.0, %v986
      %v988 = vpop.f32.mrb[0].mxu0
      %989 = vmatprep.mubr.bf16.mxu0 0
      %990 = vmatmul.mubr.bf16.gmra.mrb[0].mxu0 %v931
      %v991 = vpop.f32.mrb[0].mxu0
      %v992 = vadd.f32 0.0, %v991
      %v993 = vpop.f32.mrb[0].mxu0
      %v994 = vpop.f32.mrb[0].mxu0
      %v995 = vadd.f32 0.0, %v994
      %v996 = vpop.f32.mrb[0].mxu0
      %997 = vdwg.mxu0
      %v998 = vadd.f32 %v892, %v968
      %v999 = vadd.f32 %v893, %v971
      %v1000 = vadd.f32 %v894, %v976
      %v1001 = vadd.f32 %v895, %v979
      %v1002 = vadd.f32 %v896, %v984
      %v1003 = vadd.f32 %v897, %v987
      %v1004 = vadd.f32 %v898, %v992
      %v1005 = vadd.f32 %v899, %v995
      %v1006 = vld [vmem:[%s793 + $0x2] sm:$0xff]
      %v1007 = vld [vmem:[%s793 + $0x12] sm:$0xff]
      %v1008 = vld [vmem:[%s793 + $0x22] sm:$0xff]
      %v1009 = vld [vmem:[%s793 + $0x32] sm:$0xff]
      %v1010 = vld [vmem:[%s793 + $0x42] sm:$0xff]
      %v1011 = vld [vmem:[%s793 + $0x52] sm:$0xff]
      %v1012 = vld [vmem:[%s793 + $0x62] sm:$0xff]
      %v1013 = vld [vmem:[%s793 + $0x72] sm:$0xff]
      %v1014 = vpack.c.bf16 %v1007, %v1006
      %v1015 = vpack.c.bf16 %v1009, %v1008
      %v1016 = vpack.c.bf16 %v1011, %v1010
      %v1017 = vpack.c.bf16 %v1013, %v1012
      %s1018 = scalar_lea.vmem %s1, 64
      %v1019 = vld [vmem:[%s1018] sm:$0xf]
      %v1020 = vld [vmem:[%s1018 + $0x4] sm:$0xf]
      %v1023 = vunpack.c.l.b16 %v1019
      %v1024 = vunpack.c.l.b16 %v1020
      %v1025 = vpack.c.b16 %v1024, %v1023
      %v1028 = vsel %vm207, %v1014, 0
      %v1031 = vsel %vm207, %v1015, 0
      %v1034 = vsel %vm207, %v1016, 0
      %v1037 = vsel %vm207, %v1017, 0
      %1039 = vmatprep.subr.bf16.mxu0 0
      %1040 = vmatpush1.bf16.msra.mxu0 %v1025
      %1041 = vmatprep.subr.bf16.mxu0 0
      %1042 = vmatpush1.bf16.msra.mxu0 0
      %1043 = vmatprep.subr.bf16.mxu0 0
      %1044 = vmatpush1.bf16.msra.mxu0 0
      %1045 = vmatprep.subr.bf16.mxu0 0
      %1046 = vmatpush1.bf16.msra.mxu0 0
      %1047 = vmatprep.subr.bf16.mxu0 0
      %1048 = vmatpush1.bf16.msra.mxu0 0
      %1049 = vmatprep.subr.bf16.mxu0 0
      %1050 = vmatpush1.bf16.msra.mxu0 0
      %1051 = vmatprep.subr.bf16.mxu0 0
      %1052 = vmatpush1.bf16.msra.mxu0 0
      %1053 = vmatprep.subr.bf16.mxu0 0
      %1054 = vmatpush1.bf16.msra.mxu0 0
      %1055 = vmatprep.subr.bf16.mxu0 0
      %1056 = vmatpush1.bf16.msra.mxu0 0
      %1057 = vmatprep.subr.bf16.mxu0 0
      %1058 = vmatpush1.bf16.msra.mxu0 0
      %1059 = vmatprep.subr.bf16.mxu0 0
      %1060 = vmatpush1.bf16.msra.mxu0 0
      %1061 = vmatprep.subr.bf16.mxu0 0
      %1062 = vmatpush1.bf16.msra.mxu0 0
      %1063 = vmatprep.subr.bf16.mxu0 0
      %1064 = vmatpush1.bf16.msra.mxu0 0
      %1065 = vmatprep.subr.bf16.mxu0 0
      %1066 = vmatpush1.bf16.msra.mxu0 0
      %1067 = vmatprep.subr.bf16.mxu0 0
      %1068 = vmatpush1.bf16.msra.mxu0 0
      %1069 = vmatprep.subr.bf16.mxu0 0
      %1070 = vmatpush1.bf16.msra.mxu0 0
      %1071 = vmatprep.mubr.bf16.mxu0 0
      %1072 = vmatmul.mubr.bf16.gmra.mrb[0].mxu0 %v1028
      %v1073 = vpop.f32.mrb[0].mxu0
      %v1074 = vadd.f32 0.0, %v1073
      %v1075 = vpop.f32.mrb[0].mxu0
      %v1076 = vpop.f32.mrb[0].mxu0
      %v1077 = vadd.f32 0.0, %v1076
      %v1078 = vpop.f32.mrb[0].mxu0
      %1079 = vmatprep.mubr.bf16.mxu0 0
      %1080 = vmatmul.mubr.bf16.gmra.mrb[0].mxu0 %v1031
      %v1081 = vpop.f32.mrb[0].mxu0
      %v1082 = vadd.f32 0.0, %v1081
      %v1083 = vpop.f32.mrb[0].mxu0
      %v1084 = vpop.f32.mrb[0].mxu0
      %v1085 = vadd.f32 0.0, %v1084
      %v1086 = vpop.f32.mrb[0].mxu0
      %1087 = vmatprep.mubr.bf16.mxu0 0
      %1088 = vmatmul.mubr.bf16.gmra.mrb[0].mxu0 %v1034
      %v1089 = vpop.f32.mrb[0].mxu0
      %v1090 = vadd.f32 0.0, %v1089
      %v1091 = vpop.f32.mrb[0].mxu0
      %v1092 = vpop.f32.mrb[0].mxu0
      %v1093 = vadd.f32 0.0, %v1092
      %v1094 = vpop.f32.mrb[0].mxu0
      %1095 = vmatprep.mubr.bf16.mxu0 0
      %1096 = vmatmul.mubr.bf16.gmra.mrb[0].mxu0 %v1037
      %v1097 = vpop.f32.mrb[0].mxu0
      %v1098 = vadd.f32 0.0, %v1097
      %v1099 = vpop.f32.mrb[0].mxu0
      %v1100 = vpop.f32.mrb[0].mxu0
      %v1101 = vadd.f32 0.0, %v1100
      %v1102 = vpop.f32.mrb[0].mxu0
      %1103 = vdwg.mxu0
      %v1104 = vadd.f32 %v998, %v1074
      %v1105 = vadd.f32 %v999, %v1077
      %v1106 = vadd.f32 %v1000, %v1082
      %v1107 = vadd.f32 %v1001, %v1085
      %v1108 = vadd.f32 %v1002, %v1090
      %v1109 = vadd.f32 %v1003, %v1093
      %v1110 = vadd.f32 %v1004, %v1098
      %v1111 = vadd.f32 %v1005, %v1101
      %v1112 = vld [vmem:[%s2] sm:$0x1]
      %v1114 = vlaneseq
      %v1115 = vshrl.u32 %v1114, 7
      %v1116 = vsub.s32 0, %v1115
      %v1117 = vrot.slane %v1112, %v1116
      %v1119 = vadd.f32 %v1104, %v1117
      %v1120 = vadd.f32 %v1105, %v1117
      %v1121 = vadd.f32 %v1106, %v1117
      %v1122 = vadd.f32 %v1107, %v1117
      %v1123 = vadd.f32 %v1108, %v1117
      %v1124 = vadd.f32 %v1109, %v1117
      %v1125 = vadd.f32 %v1110, %v1117
      %v1126 = vadd.f32 %v1111, %v1117
      %v1127 = vmax.f32 %v1119, 0.0
      %v1128 = vmax.f32 %v1120, 0.0
      %v1129 = vmax.f32 %v1121, 0.0
      %v1130 = vmax.f32 %v1122, 0.0
      %v1131 = vmax.f32 %v1123, 0.0
      %v1132 = vmax.f32 %v1124, 0.0
      %v1133 = vmax.f32 %v1125, 0.0
      %v1134 = vmax.f32 %v1126, 0.0
      %v1135 = vmax.f32 %v1127, %v1128
      %v1136 = vmax.f32 %v1129, %v1130
      %v1137 = vmax.f32 %v1131, %v1132
      %v1138 = vmax.f32 %v1133, %v1134
      %1139 = vst.msk [vmem:[#allocation2] sm:$0xff] %vm207, %v1135
      %1140 = vst.msk [vmem:[#allocation2 + $0x8] sm:$0xff] %vm207, %v1136
      %1141 = vst.msk [vmem:[#allocation2 + $0x10] sm:$0xff] %vm207, %v1137
      %1142 = vst.msk [vmem:[#allocation2 + $0x18] sm:$0xff] %vm207, %v1138
      %v1143 = vld [vmem:[#allocation2] ss:$2 sm:$0xff]
      %s1144 = scalar_lea.vmem [#allocation2], 16
      %v1145 = vld [vmem:[%s1144] ss:$2 sm:$0xff]
      %s1146 = scalar_lea.vmem [#allocation2], 1
      %v1147 = vld [vmem:[%s1146] ss:$2 sm:$0xff]
      %s1148 = scalar_lea.vmem [#allocation2], 17
      %v1149 = vld [vmem:[%s1148] ss:$2 sm:$0xff]
      %v1150 = vmax.f32 %v1143, %v1147
      %v1151 = vmax.f32 %v1145, %v1149
      %1152 = vst.msk [vmem:[%s170] sm:$0xff] %vm207, %v1150
      %1153 = vst.msk [vmem:[%s170 + $0x8] sm:$0xff] %vm207, %v1151
      %p1154 = scmp.lt.s32.totalorder %s14, 3
      %s1155 = scalar_select %p1154, %s14, 3
      %s1156 = smul.addr %s1155, 2
      %s1157 = smul.addr %s1156, 8
      %s1158 = scalar_lea.vmem %s3, %s1157
      // Predicated region
      $region33: #{perceptual_loss.8} parent=31 // pred_check
        %p1159 = pneg %p100
      $region34: #{perceptual_loss.8} parent=31 // pred_check_branch
        %1161 = sbr.rel (%p1159) target = $region36
      $region35: #{perceptual_loss.8} parent=31 // pred_region
        _
      $region36: #{perceptual_loss.8} parent=31 // pred_fallthru
        _
    $region32: #{perceptual_loss.8} parent=5 // pred_fallthru
      _
    %p1162 = scmp.le.s32.totalorder 2, %s9
    // Predicated region
    $region37: #{perceptual_loss.8} parent=5 // pred_check
      %p1163 = pneg %p1162
    $region38: #{perceptual_loss.8} parent=5 // pred_check_branch
      %1165 = sbr.rel (%p1163) target = $region40
    $region39: #{perceptual_loss.8} parent=5 // pred_region
      %s1166 = ssub.s32 %s9, 2
      // Predicated region
      $region41: #{perceptual_loss.8} parent=39 // pred_check
        %p1167 = pneg %p106
      $region42: #{perceptual_loss.8} parent=39 // pred_check_branch
        %1169 = sbr.rel (%p1167) target = $region44
      $region43: #{perceptual_loss.8} parent=39 // pred_region
        %p1170 = scmp.lt.s32.totalorder %s15, 3
        %s1171 = scalar_select %p1170, %s15, 3
        %s1172 = smul.addr %s1171, 2
        %s1173 = smul.addr %s1172, 8
        %s1174 = scalar_lea.vmem %s3, %s1173
      $region44: #{perceptual_loss.8} parent=39 // pred_fallthru
        _
    $region40: #{perceptual_loss.8} parent=5 // pred_fallthru
      _
  $region6: #{perceptual_loss.8} parent=0 // loop_footer
    %s13 = sadd.s32 1, %s9
  $region7: #{perceptual_loss.8} parent=0 // loop_footer_branch
    %8 = sbr.rel target = $region3
  $region8: #{perceptual_loss.8} parent=0 // loop_exit
    _

// kernel: perceptual_loss.6
$region0: #{perceptual_loss.6}
  #allocation0 [shape = 'u32[]', space=smem, size = 0x4, offset = 0x4, fixed_abs, tag = 'smem constant byte address 0x4 - core index']
  #allocation1 [shape = 'u32[144,128]{1,0:T(1,128)}', space=vmem, size = 0x12000, scoped, tag = 'internal scratch']
  #allocation2 [shape = 'f32[128,8]{1,0:T(8,128)}', space=vmem, size = 0x10000, scoped, tag = 'scratch operand']
  %s0 = inlined_call_operand.vmem [shape: f32[4,18,18,8], index: 0, kind: input, shape index: {}]
  %s1 = inlined_call_operand.vmem [shape: bf16[9,8,8], index: 1, kind: input, shape index: {}]
  %s2 = inlined_call_operand.vmem [shape: f32[1,8], index: 2, kind: input, shape index: {}]
  %s3 = inlined_call_operand.vmem [shape: f32[4,64,8], index: 3, kind: output, shape index: {}]
  %s4 = sld [smem:[#allocation0]]
  $region45: #{perceptual_loss.6} parent=0
    _
  %s6 = ssub.s32 1, %s4
  %s7 = scalar_select 0, %s6, %s4
  loop: start=0, step=1, limit=6
  $region2: #{perceptual_loss.6} parent=0 // loop_pre_header
    _
  $region3: #{perceptual_loss.6} parent=0 // loop_header
    %s9 = sphi 0, %s13
    %p10 = scmp.ge.s32.totalorder %s9, 6
    %s19 = sphi 0, %s21
    %s22 = sphi 0, %s19
    %s23 = sphi 0, %s22
    %s39 = sphi 0, %s23
    %s43 = sphi 0, %s43
    %s45 = sphi 0, %s43
    %s46 = sphi 0, %s45
    %s60 = sphi 0, %s46
    %s64 = sphi 0, %s64
    %s66 = sphi 0, %s64
    %s67 = sphi 0, %s66
    %s81 = sphi 0, %s67
    %s87 = sphi 0, %s89
    %s90 = sphi 0, %s87
    %s91 = sphi 0, %s90
    %s107 = sphi 0, %s91
  $region4: #{perceptual_loss.6} parent=0 // loop_header_branch
    %12 = sbr.rel (%p10) target = $region8
  $region5: #{perceptual_loss.6} parent=0 // loop_body
    %s14 = ssub.s32 %s9, 1
    %s15 = ssub.s32 %s9, 2
    %s16 = sadd.s32 %s9, 1
    %s17 = ssub.s32 %s9, %s16
    %p18 = scmp.eq.s32.totalorder %s17, 0
    %s20 = sadd.s32 %s19, 1
    %s21 = scalar_select %p18, %s19, %s20
    %p24 = pneg %p18
    %p25 = scmp.eq.s32.totalorder %s9, 3
    %p26 = por %p24, %p25
    %p27 = scmp.ne.s32.totalorder %s19, %s22
    %p28 = scmp.eq.s32.totalorder %s9, 0
    %p29 = por %p27, %p28
    %p30 = scmp.ne.s32.totalorder %s19, %s22
    %p31 = scmp.eq.s32.totalorder %s14, 3
    %p32 = por %p30, %p31
    %p33 = scmp.ne.s32.totalorder %s22, %s23
    %p34 = scmp.eq.s32.totalorder %s14, 0
    %p35 = por %p33, %p34
    %p36 = scmp.ne.s32.totalorder %s22, %s23
    %p37 = scmp.eq.s32.totalorder %s15, 3
    %p38 = por %p36, %p37
    %p40 = scmp.ne.s32.totalorder %s23, %s39
    %p41 = scmp.eq.s32.totalorder %s15, 0
    %p42 = por %p40, %p41
    %s44 = sadd.s32 %s43, 1
    %p47 = scmp.eq.s32.totalorder %s9, 3
    %p48 = scmp.ne.s32.totalorder %s43, %s45
    %p49 = scmp.eq.s32.totalorder %s9, 0
    %p50 = por %p48, %p49
    %p51 = scmp.ne.s32.totalorder %s43, %s45
    %p52 = scmp.eq.s32.totalorder %s14, 3
    %p53 = por %p51, %p52
    %p54 = scmp.ne.s32.totalorder %s45, %s46
    %p55 = scmp.eq.s32.totalorder %s14, 0
    %p56 = por %p54, %p55
    %p57 = scmp.ne.s32.totalorder %s45, %s46
    %p58 = scmp.eq.s32.totalorder %s15, 3
    %p59 = por %p57, %p58
    %p61 = scmp.ne.s32.totalorder %s46, %s60
    %p62 = scmp.eq.s32.totalorder %s15, 0
    %p63 = por %p61, %p62
    %s65 = sadd.s32 %s64, 1
    %p68 = scmp.eq.s32.totalorder %s9, 3
    %p69 = scmp.ne.s32.totalorder %s64, %s66
    %p70 = scmp.eq.s32.totalorder %s9, 0
    %p71 = por %p69, %p70
    %p72 = scmp.ne.s32.totalorder %s64, %s66
    %p73 = scmp.eq.s32.totalorder %s14, 3
    %p74 = por %p72, %p73
    %p75 = scmp.ne.s32.totalorder %s66, %s67
    %p76 = scmp.eq.s32.totalorder %s14, 0
    %p77 = por %p75, %p76
    %p78 = scmp.ne.s32.totalorder %s66, %s67
    %p79 = scmp.eq.s32.totalorder %s15, 3
    %p80 = por %p78, %p79
    %p82 = scmp.ne.s32.totalorder %s67, %s81
    %p83 = scmp.eq.s32.totalorder %s15, 0
    %p84 = por %p82, %p83
    %s85 = ssub.s32 %s9, %s16
    %p86 = scmp.eq.s32.totalorder %s85, 0
    %s88 = sadd.s32 %s87, 1
    %s89 = scalar_select %p86, %s87, %s88
    %p92 = pneg %p86
    %p93 = scmp.eq.s32.totalorder %s9, 3
    %p94 = por %p92, %p93
    %p95 = scmp.ne.s32.totalorder %s87, %s90
    %p96 = scmp.eq.s32.totalorder %s9, 0
    %p97 = por %p95, %p96
    %p98 = scmp.ne.s32.totalorder %s87, %s90
    %p99 = scmp.eq.s32.totalorder %s14, 3
    %p100 = por %p98, %p99
    %p101 = scmp.ne.s32.totalorder %s90, %s91
    %p102 = scmp.eq.s32.totalorder %s14, 0
    %p103 = por %p101, %p102
    %p104 = scmp.ne.s32.totalorder %s90, %s91
    %p105 = scmp.eq.s32.totalorder %s15, 3
    %p106 = por %p104, %p105
    %p108 = scmp.ne.s32.totalorder %s91, %s107
    %p109 = scmp.eq.s32.totalorder %s15, 0
    %p110 = por %p108, %p109
    %p111 = scmp.le.s32.totalorder 1, %s9
    %p112 = scmp.lt.s32.totalorder %s9, 5
    %p113 = pnand %p111, %p112
    %p114 = pneg %p113
    // Predicated region
    $region9: #{perceptual_loss.6} parent=5 // pred_check
      _
    $region10: #{perceptual_loss.6} parent=5 // pred_check_branch
      %116 = sbr.rel (%p113) target = $region12
    $region11: #{perceptual_loss.6} parent=5 // pred_region
      %s117 = ssub.s32 %s9, 1
      // Predicated region
      $region13: #{perceptual_loss.6} parent=11 // pred_check
        %p118 = pneg %p56
      $region14: #{perceptual_loss.6} parent=11 // pred_check_branch
        %120 = sbr.rel (%p118) target = $region16
      $region15: #{perceptual_loss.6} parent=11 // pred_region
        _
      $region16: #{perceptual_loss.6} parent=11 // pred_fallthru
        _
      // Predicated region
      $region17: #{perceptual_loss.6} parent=11 // pred_check
        %p121 = pneg %p77
      $region18: #{perceptual_loss.6} parent=11 // pred_check_branch
        %123 = sbr.rel (%p121) target = $region20
      $region19: #{perceptual_loss.6} parent=11 // pred_region
        _
      $region20: #{perceptual_loss.6} parent=11 // pred_fallthru
        _
    $region12: #{perceptual_loss.6} parent=5 // pred_fallthru
      _
    %p124 = scmp.lt.s32.totalorder %s9, 4
    // Predicated region
    $region21: #{perceptual_loss.6} parent=5 // pred_check
      %p125 = pneg %p124
    $region22: #{perceptual_loss.6} parent=5 // pred_check_branch
      %127 = sbr.rel (%p125) target = $region24
    $region23: #{perceptual_loss.6} parent=5 // pred_region
      // Predicated region
      $region25: #{perceptual_loss.6} parent=23 // pred_check
        %p128 = pneg %p29
      $region26: #{perceptual_loss.6} parent=23 // pred_check_branch
        %130 = sbr.rel (%p128) target = $region28
      $region27: #{perceptual_loss.6} parent=23 // pred_region
        %p131 = scmp.lt.s32.totalorder %s9, 3
        %s132 = scalar_select %p131, %s9, 3
        %s133 = smul.addr %s132, 54
        %s134 = smul.addr %s133, 8
        %s135 = scalar_lea.vmem %s0, %s134
      $region28: #{perceptual_loss.6} parent=23 // pred_fallthru
        _
    $region24: #{perceptual_loss.6} parent=5 // pred_fallthru
      _
    %p136 = scmp.le.s32.totalorder 1, %s9
    %p137 = scmp.lt.s32.totalorder %s9, 5
    %p138 = pnand %p136, %p137
    %p139 = pneg %p138
    // Predicated region
    $region29: #{perceptual_loss.6} parent=5 // pred_check
      _
    $region30: #{perceptual_loss.6} parent=5 // pred_check_branch
      %141 = sbr.rel (%p138) target = $region32
    $region31: #{perceptual_loss.6} parent=5 // pred_region
      %s142 = ssub.s32 %s9, 1
      %p143 = scmp.lt.s32.totalorder %s14, 3
      %s144 = scalar_select %p143, %s14, 3
      %s145 = smul.addr %s144, 54
      %s146 = smul.addr %s145, 8
      %s147 = scalar_lea.vmem %s0, %s146
      %p148 = pneg %p35
      %p149 = pneg %p32
      %p150 = pneg %p56
      %p151 = pneg %p53
      %p152 = pneg %p77
      %p153 = pneg %p74
      %p154 = pneg %p103
      %p155 = pneg %p100
      %p156 = scmp.lt.s32.totalorder %s14, 3
      %s157 = scalar_select %p156, %s14, 3
      %s158 = smul.addr %s157, 8
      %s159 = smul.addr %s158, 8
      %s160 = scalar_lea.vmem %s3, %s159
      %p161 = scmp.lt.s32.totalorder %s14, 3
      %s162 = scalar_select %p161, %s14, 3
      %s163 = smul.addr %s162, 54
      %s164 = smul.addr %s163, 8
      %s165 = scalar_lea.vmem %s0, %s164
      %p166 = scmp.lt.s32.totalorder %s14, 3
      %s167 = scalar_select %p166, %s14, 3
      %s168 = smul.addr %s167, 8
      %s169 = smul.addr %s168, 8
      %s170 = scalar_lea.vmem %s3, %s169
      %v172 = vld [vmem:[%s165] sm:$0xff]
      %v173 = vld [vmem:[%s165 + $0x8] sm:$0xff]
      %v174 = vld [vmem:[%s165 + $0x18] sm:$0xff]
      %v175 = vld [vmem:[%s165 + $0x20] sm:$0xff]
      %v176 = vld [vmem:[%s165 + $0x30] sm:$0xff]
      %v177 = vld [vmem:[%s165 + $0x38] sm:$0xff]
      %v178 = vld [vmem:[%s165 + $0x48] sm:$0xff]
      %v179 = vld [vmem:[%s165 + $0x50] sm:$0xff]
      %v180 = vld [vmem:[%s165 + $0x60] sm:$0xff]
      %v181 = vld [vmem:[%s165 + $0x68] sm:$0xff]
      %v182 = vld [vmem:[%s165 + $0x78] sm:$0xff]
      %v183 = vld [vmem:[%s165 + $0x80] sm:$0xff]
      %v184 = vld [vmem:[%s165 + $0x90] sm:$0xff]
      %v185 = vld [vmem:[%s165 + $0x98] sm:$0xff]
      %v186 = vld [vmem:[%s165 + $0xa8] sm:$0xff]
      %v187 = vld [vmem:[%s165 + $0xb0] sm:$0xff]
      %v188 = vld [vmem:[%s165 + $0xc0] sm:$0xff]
      %v189 = vld [vmem:[%s165 + $0xc8] sm:$0xff]
      %v190 = vld [vmem:[%s165 + $0xd8] sm:$0xff]
      %v191 = vld [vmem:[%s165 + $0xe0] sm:$0xff]
      %v192 = vld [vmem:[%s165 + $0xf0] sm:$0xff]
      %v193 = vld [vmem:[%s165 + $0xf8] sm:$0xff]
      %v194 = vld [vmem:[%s165 + $0x108] sm:$0xff]
      %v195 = vld [vmem:[%s165 + $0x110] sm:$0xff]
      %v196 = vld [vmem:[%s165 + $0x120] sm:$0xff]
      %v197 = vld [vmem:[%s165 + $0x128] sm:$0xff]
      %v198 = vld [vmem:[%s165 + $0x138] sm:$0xff]
      %v199 = vld [vmem:[%s165 + $0x140] sm:$0xff]
      %v200 = vld [vmem:[%s165 + $0x150] sm:$0xff]
      %v201 = vld [vmem:[%s165 + $0x158] sm:$0xff]
      %v202 = vld [vmem:[%s165 + $0x168] sm:$0xff]
      %v203 = vld [vmem:[%s165 + $0x170] sm:$0xff]
      %v204 = vpack.c.bf16 %v173, %v172
      %v205 = vpack.c.bf16 %v175, %v174
      %v206 = vpack.c.bf16 %v177, %v176
      %v207 = vpack.c.bf16 %v179, %v178
      %v208 = vpack.c.bf16 %v181, %v180
      %v209 = vpack.c.bf16 %v183, %v182
      %v210 = vpack.c.bf16 %v185, %v184
      %v211 = vpack.c.bf16 %v187, %v186
      %v212 = vpack.c.bf16 %v189, %v188
      %v213 = vpack.c.bf16 %v191, %v190
      %v214 = vpack.c.bf16 %v193, %v192
      %v215 = vpack.c.bf16 %v195, %v194
      %v216 = vpack.c.bf16 %v197, %v196
      %v217 = vpack.c.bf16 %v199, %v198
      %v218 = vpack.c.bf16 %v201, %v200
      %v219 = vpack.c.bf16 %v203, %v202
      %v220 = vld [vmem:[%s1] sm:$0xf]
      %v221 = vld [vmem:[%s165 + $0x1] sm:$0xff]
      %v222 = vld [vmem:[%s165 + $0x9] sm:$0xff]
      %v223 = vld [vmem:[%s165 + $0x19] sm:$0xff]
      %v224 = vld [vmem:[%s165 + $0x21] sm:$0xff]
      %v225 = vld [vmem:[%s165 + $0x31] sm:$0xff]
      %v226 = vld [vmem:[%s165 + $0x39] sm:$0xff]
      %v227 = vld [vmem:[%s165 + $0x49] sm:$0xff]
      %v228 = vld [vmem:[%s165 + $0x51] sm:$0xff]
      %v229 = vld [vmem:[%s165 + $0x61] sm:$0xff]
      %v230 = vld [vmem:[%s165 + $0x69] sm:$0xff]
      %v231 = vld [vmem:[%s165 + $0x79] sm:$0xff]
      %v232 = vld [vmem:[%s165 + $0x81] sm:$0xff]
      %v233 = vld [vmem:[%s165 + $0x91] sm:$0xff]
      %v234 = vld [vmem:[%s165 + $0x99] sm:$0xff]
      %v235 = vld [vmem:[%s165 + $0xa9] sm:$0xff]
      %v236 = vld [vmem:[%s165 + $0xb1] sm:$0xff]
      %v237 = vld [vmem:[%s165 + $0xc1] sm:$0xff]
      %v238 = vld [vmem:[%s165 + $0xc9] sm:$0xff]
      %v239 = vld [vmem:[%s165 + $0xd9] sm:$0xff]
      %v240 = vld [vmem:[%s165 + $0xe1] sm:$0xff]
      %v241 = vld [vmem:[%s165 + $0xf1] sm:$0xff]
      %v242 = vld [vmem:[%s165 + $0xf9] sm:$0xff]
      %v243 = vld [vmem:[%s165 + $0x109] sm:$0xff]
      %v244 = vld [vmem:[%s165 + $0x111] sm:$0xff]
      %v245 = vld [vmem:[%s165 + $0x121] sm:$0xff]
      %v246 = vld [vmem:[%s165 + $0x129] sm:$0xff]
      %v247 = vld [vmem:[%s165 + $0x139] sm:$0xff]
      %v248 = vld [vmem:[%s165 + $0x141] sm:$0xff]
      %v249 = vld [vmem:[%s165 + $0x151] sm:$0xff]
      %v250 = vld [vmem:[%s165 + $0x159] sm:$0xff]
      %v251 = vld [vmem:[%s165 + $0x169] sm:$0xff]
      %v252 = vld [vmem:[%s165 + $0x171] sm:$0xff]
      %v253 = vpack.c.bf16 %v222, %v221
      %v254 = vpack.c.bf16 %v224, %v223
      %v255 = vpack.c.bf16 %v226, %v225
      %v256 = vpack.c.bf16 %v228, %v227
      %v257 = vpack.c.bf16 %v230, %v229
      %v258 = vpack.c.bf16 %v232, %v231
      %v259 = vpack.c.bf16 %v234, %v233
      %v260 = vpack.c.bf16 %v236, %v235
      %v261 = vpack.c.bf16 %v238, %v237
      %v262 = vpack.c.bf16 %v240, %v239
      %v263 = vpack.c.bf16 %v242, %v241
      %v264 = vpack.c.bf16 %v244, %v243
      %v265 = vpack.c.bf16 %v246, %v245
      %v266 = vpack.c.bf16 %v248, %v247
      %v267 = vpack.c.bf16 %v250, %v249
      %v268 = vpack.c.bf16 %v252, %v251
      %s269 = scalar_lea.vmem %s1, 4
      %v270 = vld [vmem:[%s269] sm:$0xf]
      %vm271 = vcmask 64512
      %v273 = vsel %vm271, %v253, 0
      %v276 = vsel %vm271, %v254, 0
      %v279 = vsel %vm271, %v255, 0
      %v282 = vsel %vm271, %v256, 0
      %v285 = vsel %vm271, %v257, 0
      %v288 = vsel %vm271, %v258, 0
      %v291 = vsel %vm271, %v259, 0
      %v294 = vsel %vm271, %v260, 0
      %v297 = vsel %vm271, %v261, 0
      %v300 = vsel %vm271, %v262, 0
      %v303 = vsel %vm271, %v263, 0
      %v306 = vsel %vm271, %v264, 0
      %v309 = vsel %vm271, %v265, 0
      %v312 = vsel %vm271, %v266, 0
      %v315 = vsel %vm271, %v267, 0
      %v318 = vsel %vm271, %v268, 0
      %vm320 = vcmask 1043456
      %v322 = vsel %vm320, %v270, 0
      %324 = vmatprep.subr.bf16.mxu0 0
      %325 = vmatpush1.bf16.msra.mxu0 %v322
      %326 = vmatprep.subr.bf16.mxu0 0
      %327 = vmatpush1.bf16.msra.mxu0 0
      %328 = vmatprep.subr.bf16.mxu0 0
      %329 = vmatpush1.bf16.msra.mxu0 0
      %330 = vmatprep.subr.bf16.mxu0 0
      %331 = vmatpush1.bf16.msra.mxu0 0
      %332 = vmatprep.subr.bf16.mxu0 0
      %333 = vmatpush1.bf16.msra.mxu0 0
      %334 = vmatprep.subr.bf16.mxu0 0
      %335 = vmatpush1.bf16.msra.mxu0 0
      %336 = vmatprep.subr.bf16.mxu0 0
      %337 = vmatpush1.bf16.msra.mxu0 0
      %338 = vmatprep.subr.bf16.mxu0 0
      %339 = vmatpush1.bf16.msra.mxu0 0
      %340 = vmatprep.subr.bf16.mxu0 0
      %341 = vmatpush1.bf16.msra.mxu0 0
      %342 = vmatprep.subr.bf16.mxu0 0
      %343 = vmatpush1.bf16.msra.mxu0 0
      %344 = vmatprep.subr.bf16.mxu0 0
      %345 = vmatpush1.bf16.msra.mxu0 0
      %346 = vmatprep.subr.bf16.mxu0 0
      %347 = vmatpush1.bf16.msra.mxu0 0
      %348 = vmatprep.subr.bf16.mxu0 0
      %349 = vmatpush1.bf16.msra.mxu0 0
      %350 = vmatprep.subr.bf16.mxu0 0
      %351 = vmatpush1.bf16.msra.mxu0 0
      %352 = vmatprep.subr.bf16.mxu0 0
      %353 = vmatpush1.bf16.msra.mxu0 0
      %354 = vmatprep.subr.bf16.mxu0 0
      %355 = vmatpush1.bf16.msra.mxu0 0
      %356 = vmatprep.mubr.bf16.mxu0 0
      %357 = vmatmul.mubr.bf16.gmra.mrb[0].mxu0 %v273
      %v358 = vpop.f32.mrb[0].mxu0
      %v359 = vadd.f32 0.0, %v358
      %v360 = vpop.f32.mrb[0].mxu0
      %v361 = vpop.f32.mrb[0].mxu0
      %v362 = vadd.f32 0.0, %v361
      %v363 = vpop.f32.mrb[0].mxu0
      %364 = vmatprep.mubr.bf16.mxu0 0
      %365 = vmatmul.mubr.bf16.gmra.mrb[0].mxu0 %v276
      %v366 = vpop.f32.mrb[0].mxu0
      %v367 = vadd.f32 0.0, %v366
      %v368 = vpop.f32.mrb[0].mxu0
      %v369 = vpop.f32.mrb[0].mxu0
      %v370 = vadd.f32 0.0, %v369
      %v371 = vpop.f32.mrb[0].mxu0
      %372 = vmatprep.mubr.bf16.mxu0 0
      %373 = vmatmul.mubr.bf16.gmra.mrb[0].mxu0 %v279
      %v374 = vpop.f32.mrb[0].mxu0
      %v375 = vadd.f32 0.0, %v374
      %v376 = vpop.f32.mrb[0].mxu0
      %v377 = vpop.f32.mrb[0].mxu0
      %v378 = vadd.f32 0.0, %v377
      %v379 = vpop.f32.mrb[0].mxu0
      %380 = vmatprep.mubr.bf16.mxu0 0
      %381 = vmatmul.mubr.bf16.gmra.mrb[0].mxu0 %v282
      %v382 = vpop.f32.mrb[0].mxu0
      %v383 = vadd.f32 0.0, %v382
      %v384 = vpop.f32.mrb[0].mxu0
      %v385 = vpop.f32.mrb[0].mxu0
      %v386 = vadd.f32 0.0, %v385
      %v387 = vpop.f32.mrb[0].mxu0
      %388 = vmatprep.mubr.bf16.mxu0 0
      %389 = vmatmul.mubr.bf16.gmra.mrb[0].mxu0 %v285
      %v390 = vpop.f32.mrb[0].mxu0
      %v391 = vadd.f32 0.0, %v390
      %v392 = vpop.f32.mrb[0].mxu0
      %v393 = vpop.f32.mrb[0].mxu0
      %v394 = vadd.f32 0.0, %v393
      %v395 = vpop.f32.mrb[0].mxu0
      %396 = vmatprep.mubr.bf16.mxu0 0
      %397 = vmatmul.mubr.bf16.gmra.mrb[0].mxu0 %v288
      %v398 = vpop.f32.mrb[0].mxu0
      %v399 = vadd.f32 0.0, %v398
      %v400 = vpop.f32.mrb[0].mxu0
      %v401 = vpop.f32.mrb[0].mxu0
      %v402 = vadd.f32 0.0, %v401
      %v403 = vpop.f32.mrb[0].mxu0
      %404 = vmatprep.mubr.bf16.mxu0 0
      %405 = vmatmul.mubr.bf16.gmra.mrb[0].mxu0 %v291
      %v406 = vpop.f32.mrb[0].mxu0
      %v407 = vadd.f32 0.0, %v406
      %v408 = vpop.f32.mrb[0].mxu0
      %v409 = vpop.f32.mrb[0].mxu0
      %v410 = vadd.f32 0.0, %v409
      %v411 = vpop.f32.mrb[0].mxu0
      %412 = vmatprep.mubr.bf16.mxu0 0
      %413 = vmatmul.mubr.bf16.gmra.mrb[0].mxu0 %v294
      %v414 = vpop.f32.mrb[0].mxu0
      %v415 = vadd.f32 0.0, %v414
      %v416 = vpop.f32.mrb[0].mxu0
      %v417 = vpop.f32.mrb[0].mxu0
      %v418 = vadd.f32 0.0, %v417
      %v419 = vpop.f32.mrb[0].mxu0
      %420 = vmatprep.mubr.bf16.mxu0 0
      %421 = vmatmul.mubr.bf16.gmra.mrb[0].mxu0 %v297
      %v422 = vpop.f32.mrb[0].mxu0
      %v423 = vadd.f32 0.0, %v422
      %v424 = vpop.f32.mrb[0].mxu0
      %v425 = vpop.f32.mrb[0].mxu0
      %v426 = vadd.f32 0.0, %v425
      %v427 = vpop.f32.mrb[0].mxu0
      %428 = vmatprep.mubr.bf16.mxu0 0
      %429 = vmatmul.mubr.bf16.gmra.mrb[0].mxu0 %v300
      %v430 = vpop.f32.mrb[0].mxu0
      %v431 = vadd.f32 0.0, %v430
      %v432 = vpop.f32.mrb[0].mxu0
      %v433 = vpop.f32.mrb[0].mxu0
      %v434 = vadd.f32 0.0, %v433
      %v435 = vpop.f32.mrb[0].mxu0
      %436 = vmatprep.mubr.bf16.mxu0 0
      %437 = vmatmul.mubr.bf16.gmra.mrb[0].mxu0 %v303
      %v438 = vpop.f32.mrb[0].mxu0
      %v439 = vadd.f32 0.0, %v438
      %v440 = vpop.f32.mrb[0].mxu0
      %v441 = vpop.f32.mrb[0].mxu0
      %v442 = vadd.f32 0.0, %v441
      %v443 = vpop.f32.mrb[0].mxu0
      %444 = vmatprep.mubr.bf16.mxu0 0
      %445 = vmatmul.mubr.bf16.gmra.mrb[0].mxu0 %v306
      %v446 = vpop.f32.mrb[0].mxu0
      %v447 = vadd.f32 0.0, %v446
      %v448 = vpop.f32.mrb[0].mxu0
      %v449 = vpop.f32.mrb[0].mxu0
      %v450 = vadd.f32 0.0, %v449
      %v451 = vpop.f32.mrb[0].mxu0
      %452 = vmatprep.mubr.bf16.mxu0 0
      %453 = vmatmul.mubr.bf16.gmra.mrb[0].mxu0 %v309
      %v454 = vpop.f32.mrb[0].mxu0
      %v455 = vadd.f32 0.0, %v454
      %v456 = vpop.f32.mrb[0].mxu0
      %v457 = vpop.f32.mrb[0].mxu0
      %v458 = vadd.f32 0.0, %v457
      %v459 = vpop.f32.mrb[0].mxu0
      %460 = vmatprep.mubr.bf16.mxu0 0
      %461 = vmatmul.mubr.bf16.gmra.mrb[0].mxu0 %v312
      %v462 = vpop.f32.mrb[0].mxu0
      %v463 = vadd.f32 0.0, %v462
      %v464 = vpop.f32.mrb[0].mxu0
      %v465 = vpop.f32.mrb[0].mxu0
      %v466 = vadd.f32 0.0, %v465
      %v467 = vpop.f32.mrb[0].mxu0
      %468 = vmatprep.mubr.bf16.mxu0 0
      %469 = vmatmul.mubr.bf16.gmra.mrb[0].mxu0 %v315
      %v470 = vpop.f32.mrb[0].mxu0
      %v471 = vadd.f32 0.0, %v470
      %v472 = vpop.f32.mrb[0].mxu0
      %v473 = vpop.f32.mrb[0].mxu0
      %v474 = vadd.f32 0.0, %v473
      %v475 = vpop.f32.mrb[0].mxu0
      %476 = vmatprep.mubr.bf16.mxu0 0
      %477 = vmatmul.mubr.bf16.gmra.mrb[0].mxu0 %v318
      %v478 = vpop.f32.mrb[0].mxu0
      %v479 = vadd.f32 0.0, %v478
      %v480 = vpop.f32.mrb[0].mxu0
      %v481 = vpop.f32.mrb[0].mxu0
      %v482 = vadd.f32 0.0, %v481
      %v483 = vpop.f32.mrb[0].mxu0
      %484 = vdwg.mxu0
      %v486 = vsel %vm271, %v204, 0
      %v489 = vsel %vm271, %v205, 0
      %v492 = vsel %vm271, %v206, 0
      %v495 = vsel %vm271, %v207, 0
      %v498 = vsel %vm271, %v208, 0
      %v501 = vsel %vm271, %v209, 0
      %v504 = vsel %vm271, %v210, 0
      %v507 = vsel %vm271, %v211, 0
      %v510 = vsel %vm271, %v212, 0
      %v513 = vsel %vm271, %v213, 0
      %v516 = vsel %vm271, %v214, 0
      %v519 = vsel %vm271, %v215, 0
      %v522 = vsel %vm271, %v216, 0
      %v525 = vsel %vm271, %v217, 0
      %v528 = vsel %vm271, %v218, 0
      %v531 = vsel %vm271, %v219, 0
      %v534 = vsel %vm320, %v220, 0
      %536 = vmatprep.subr.bf16.mxu0 0
      %537 = vmatpush1.bf16.msra.mxu0 %v534
      %538 = vmatprep.subr.bf16.mxu0 0
      %539 = vmatpush1.bf16.msra.mxu0 0
      %540 = vmatprep.subr.bf16.mxu0 0
      %541 = vmatpush1.bf16.msra.mxu0 0
      %542 = vmatprep.subr.bf16.mxu0 0
      %543 = vmatpush1.bf16.msra.mxu0 0
      %544 = vmatprep.subr.bf16.mxu0 0
      %545 = vmatpush1.bf16.msra.mxu0 0
      %546 = vmatprep.subr.bf16.mxu0 0
      %547 = vmatpush1.bf16.msra.mxu0 0
      %548 = vmatprep.subr.bf16.mxu0 0
      %549 = vmatpush1.bf16.msra.mxu0 0
      %550 = vmatprep.subr.bf16.mxu0 0
      %551 = vmatpush1.bf16.msra.mxu0 0
      %552 = vmatprep.subr.bf16.mxu0 0
      %553 = vmatpush1.bf16.msra.mxu0 0
      %554 = vmatprep.subr.bf16.mxu0 0
      %555 = vmatpush1.bf16.msra.mxu0 0
      %556 = vmatprep.subr.bf16.mxu0 0
      %557 = vmatpush1.bf16.msra.mxu0 0
      %558 = vmatprep.subr.bf16.mxu0 0
      %559 = vmatpush1.bf16.msra.mxu0 0
      %560 = vmatprep.subr.bf16.mxu0 0
      %561 = vmatpush1.bf16.msra.mxu0 0
      %562 = vmatprep.subr.bf16.mxu0 0
      %563 = vmatpush1.bf16.msra.mxu0 0
      %564 = vmatprep.subr.bf16.mxu0 0
      %565 = vmatpush1.bf16.msra.mxu0 0
      %566 = vmatprep.subr.bf16.mxu0 0
      %567 = vmatpush1.bf16.msra.mxu0 0
      %568 = vmatprep.mubr.bf16.mxu0 0
      %569 = vmatmul.mubr.bf16.gmra.mrb[0].mxu0 %v486
      %v570 = vpop.f32.mrb[0].mxu0
      %v571 = vadd.f32 %v359, %v570
      %v572 = vpop.f32.mrb[0].mxu0
      %v573 = vpop.f32.mrb[0].mxu0
      %v574 = vadd.f32 %v362, %v573
      %v575 = vpop.f32.mrb[0].mxu0
      %576 = vmatprep.mubr.bf16.mxu0 0
      %577 = vmatmul.mubr.bf16.gmra.mrb[0].mxu0 %v489
      %v578 = vpop.f32.mrb[0].mxu0
      %v579 = vadd.f32 %v367, %v578
      %v580 = vpop.f32.mrb[0].mxu0
      %v581 = vpop.f32.mrb[0].mxu0
      %v582 = vadd.f32 %v370, %v581
      %v583 = vpop.f32.mrb[0].mxu0
      %584 = vmatprep.mubr.bf16.mxu0 0
      %585 = vmatmul.mubr.bf16.gmra.mrb[0].mxu0 %v492
      %v586 = vpop.f32.mrb[0].mxu0
      %v587 = vadd.f32 %v375, %v586
      %v588 = vpop.f32.mrb[0].mxu0
      %v589 = vpop.f32.mrb[0].mxu0
      %v590 = vadd.f32 %v378, %v589
      %v591 = vpop.f32.mrb[0].mxu0
      %592 = vmatprep.mubr.bf16.mxu0 0
      %593 = vmatmul.mubr.bf16.gmra.mrb[0].mxu0 %v495
      %v594 = vpop.f32.mrb[0].mxu0
      %v595 = vadd.f32 %v383, %v594
      %v596 = vpop.f32.mrb[0].mxu0
      %v597 = vpop.f32.mrb[0].mxu0
      %v598 = vadd.f32 %v386, %v597
      %v599 = vpop.f32.mrb[0].mxu0
      %600 = vmatprep.mubr.bf16.mxu0 0
      %601 = vmatmul.mubr.bf16.gmra.mrb[0].mxu0 %v498
      %v602 = vpop.f32.mrb[0].mxu0
      %v603 = vadd.f32 %v391, %v602
      %v604 = vpop.f32.mrb[0].mxu0
      %v605 = vpop.f32.mrb[0].mxu0
      %v606 = vadd.f32 %v394, %v605
      %v607 = vpop.f32.mrb[0].mxu0
      %608 = vmatprep.mubr.bf16.mxu0 0
      %609 = vmatmul.mubr.bf16.gmra.mrb[0].mxu0 %v501
      %v610 = vpop.f32.mrb[0].mxu0
      %v611 = vadd.f32 %v399, %v610
      %v612 = vpop.f32.mrb[0].mxu0
      %v613 = vpop.f32.mrb[0].mxu0
      %v614 = vadd.f32 %v402, %v613
      %v615 = vpop.f32.mrb[0].mxu0
      %616 = vmatprep.mubr.bf16.mxu0 0
      %617 = vmatmul.mubr.bf16.gmra.mrb[0].mxu0 %v504
      %v618 = vpop.f32.mrb[0].mxu0
      %v619 = vadd.f32 %v407, %v618
      %v620 = vpop.f32.mrb[0].mxu0
      %v621 = vpop.f32.mrb[0].mxu0
      %v622 = vadd.f32 %v410, %v621
      %v623 = vpop.f32.mrb[0].mxu0
      %624 = vmatprep.mubr.bf16.mxu0 0
      %625 = vmatmul.mubr.bf16.gmra.mrb[0].mxu0 %v507
      %v626 = vpop.f32.mrb[0].mxu0
      %v627 = vadd.f32 %v415, %v626
      %v628 = vpop.f32.mrb[0].mxu0
      %v629 = vpop.f32.mrb[0].mxu0
      %v630 = vadd.f32 %v418, %v629
      %v631 = vpop.f32.mrb[0].mxu0
      %632 = vmatprep.mubr.bf16.mxu0 0
      %633 = vmatmul.mubr.bf16.gmra.mrb[0].mxu0 %v510
      %v634 = vpop.f32.mrb[0].mxu0
      %v635 = vadd.f32 %v423, %v634
      %v636 = vpop.f32.mrb[0].mxu0
      %v637 = vpop.f32.mrb[0].mxu0
      %v638 = vadd.f32 %v426, %v637
      %v639 = vpop.f32.mrb[0].mxu0
      %640 = vmatprep.mubr.bf16.mxu0 0
      %641 = vmatmul.mubr.bf16.gmra.mrb[0].mxu0 %v513
      %v642 = vpop.f32.mrb[0].mxu0
      %v643 = vadd.f32 %v431, %v642
      %v644 = vpop.f32.mrb[0].mxu0
      %v645 = vpop.f32.mrb[0].mxu0
      %v646 = vadd.f32 %v434, %v645
      %v647 = vpop.f32.mrb[0].mxu0
      %648 = vmatprep.mubr.bf16.mxu0 0
      %649 = vmatmul.mubr.bf16.gmra.mrb[0].mxu0 %v516
      %v650 = vpop.f32.mrb[0].mxu0
      %v651 = vadd.f32 %v439, %v650
      %v652 = vpop.f32.mrb[0].mxu0
      %v653 = vpop.f32.mrb[0].mxu0
      %v654 = vadd.f32 %v442, %v653
      %v655 = vpop.f32.mrb[0].mxu0
      %656 = vmatprep.mubr.bf16.mxu0 0
      %657 = vmatmul.mubr.bf16.gmra.mrb[0].mxu0 %v519
      %v658 = vpop.f32.mrb[0].mxu0
      %v659 = vadd.f32 %v447, %v658
      %v660 = vpop.f32.mrb[0].mxu0
      %v661 = vpop.f32.mrb[0].mxu0
      %v662 = vadd.f32 %v450, %v661
      %v663 = vpop.f32.mrb[0].mxu0
      %664 = vmatprep.mubr.bf16.mxu0 0
      %665 = vmatmul.mubr.bf16.gmra.mrb[0].mxu0 %v522
      %v666 = vpop.f32.mrb[0].mxu0
      %v667 = vadd.f32 %v455, %v666
      %v668 = vpop.f32.mrb[0].mxu0
      %v669 = vpop.f32.mrb[0].mxu0
      %v670 = vadd.f32 %v458, %v669
      %v671 = vpop.f32.mrb[0].mxu0
      %672 = vmatprep.mubr.bf16.mxu0 0
      %673 = vmatmul.mubr.bf16.gmra.mrb[0].mxu0 %v525
      %v674 = vpop.f32.mrb[0].mxu0
      %v675 = vadd.f32 %v463, %v674
      %v676 = vpop.f32.mrb[0].mxu0
      %v677 = vpop.f32.mrb[0].mxu0
      %v678 = vadd.f32 %v466, %v677
      %v679 = vpop.f32.mrb[0].mxu0
      %680 = vmatprep.mubr.bf16.mxu0 0
      %681 = vmatmul.mubr.bf16.gmra.mrb[0].mxu0 %v528
      %v682 = vpop.f32.mrb[0].mxu0
      %v683 = vadd.f32 %v471, %v682
      %v684 = vpop.f32.mrb[0].mxu0
      %v685 = vpop.f32.mrb[0].mxu0
      %v686 = vadd.f32 %v474, %v685
      %v687 = vpop.f32.mrb[0].mxu0
      %688 = vmatprep.mubr.bf16.mxu0 0
      %689 = vmatmul.mubr.bf16.gmra.mrb[0].mxu0 %v531
      %v690 = vpop.f32.mrb[0].mxu0
      %v691 = vadd.f32 %v479, %v690
      %v692 = vpop.f32.mrb[0].mxu0
      %v693 = vpop.f32.mrb[0].mxu0
      %v694 = vadd.f32 %v482, %v693
      %v695 = vpop.f32.mrb[0].mxu0
      %696 = vdwg.mxu0
      %v697 = vld [vmem:[%s165 + $0x2] sm:$0xff]
      %v698 = vld [vmem:[%s165 + $0xa] sm:$0xff]
      %v699 = vld [vmem:[%s165 + $0x1a] sm:$0xff]
      %v700 = vld [vmem:[%s165 + $0x22] sm:$0xff]
      %v701 = vld [vmem:[%s165 + $0x32] sm:$0xff]
      %v702 = vld [vmem:[%s165 + $0x3a] sm:$0xff]
      %v703 = vld [vmem:[%s165 + $0x4a] sm:$0xff]
      %v704 = vld [vmem:[%s165 + $0x52] sm:$0xff]
      %v705 = vld [vmem:[%s165 + $0x62] sm:$0xff]
      %v706 = vld [vmem:[%s165 + $0x6a] sm:$0xff]
      %v707 = vld [vmem:[%s165 + $0x7a] sm:$0xff]
      %v708 = vld [vmem:[%s165 + $0x82] sm:$0xff]
      %v709 = vld [vmem:[%s165 + $0x92] sm:$0xff]
      %v710 = vld [vmem:[%s165 + $0x9a] sm:$0xff]
      %v711 = vld [vmem:[%s165 + $0xaa] sm:$0xff]
      %v712 = vld [vmem:[%s165 + $0xb2] sm:$0xff]
      %v713 = vld [vmem:[%s165 + $0xc2] sm:$0xff]
      %v714 = vld [vmem:[%s165 + $0xca] sm:$0xff]
      %v715 = vld [vmem:[%s165 + $0xda] sm:$0xff]
      %v716 = vld [vmem:[%s165 + $0xe2] sm:$0xff]
      %v717 = vld [vmem:[%s165 + $0xf2] sm:$0xff]
      %v718 = vld [vmem:[%s165 + $0xfa] sm:$0xff]
      %v719 = vld [vmem:[%s165 + $0x10a] sm:$0xff]
      %v720 = vld [vmem:[%s165 + $0x112] sm:$0xff]
      %v721 = vld [vmem:[%s165 + $0x122] sm:$0xff]
      %v722 = vld [vmem:[%s165 + $0x12a] sm:$0xff]
      %v723 = vld [vmem:[%s165 + $0x13a] sm:$0xff]
      %v724 = vld [vmem:[%s165 + $0x142] sm:$0xff]
      %v725 = vld [vmem:[%s165 + $0x152] sm:$0xff]
      %v726 = vld [vmem:[%s165 + $0x15a] sm:$0xff]
      %v727 = vld [vmem:[%s165 + $0x16a] sm:$0xff]
      %v728 = vld [vmem:[%s165 + $0x172] sm:$0xff]
      %v729 = vpack.c.bf16 %v698, %v697
      %v730 = vpack.c.bf16 %v700, %v699
      %v731 = vpack.c.bf16 %v702, %v701
      %v732 = vpack.c.bf16 %v704, %v703
      %v733 = vpack.c.bf16 %v706, %v705
      %v734 = vpack.c.bf16 %v708, %v707
      %v735 = vpack.c.bf16 %v710, %v709
      %v736 = vpack.c.bf16 %v712, %v711
      %v737 = vpack.c.bf16 %v714, %v713
      %v738 = vpack.c.bf16 %v716, %v715
      %v739 = vpack.c.bf16 %v718, %v717
      %v740 = vpack.c.bf16 %v720, %v719
      %v741 = vpack.c.bf16 %v722, %v721
      %v742 = vpack.c.bf16 %v724, %v723
      %v743 = vpack.c.bf16 %v726, %v725
      %v744 = vpack.c.bf16 %v728, %v727
      %s745 = scalar_lea.vmem %s1, 8
      %v746 = vld [vmem:[%s745] sm:$0xf]
      %v748 = vsel %vm271, %v729, 0
      %v751 = vsel %vm271, %v730, 0
      %v754 = vsel %vm271, %v731, 0
      %v757 = vsel %vm271, %v732, 0
      %v760 = vsel %vm271, %v733, 0
      %v763 = vsel %vm271, %v734, 0
      %v766 = vsel %vm271, %v735, 0
      %v769 = vsel %vm271, %v736, 0
      %v772 = vsel %vm271, %v737, 0
      %v775 = vsel %vm271, %v738, 0
      %v778 = vsel %vm271, %v739, 0
      %v781 = vsel %vm271, %v740, 0
      %v784 = vsel %vm271, %v741, 0
      %v787 = vsel %vm271, %v742, 0
      %v790 = vsel %vm271, %v743, 0
      %v793 = vsel %vm271, %v744, 0
      %v796 = vsel %vm320, %v746, 0
      %798 = vmatprep.subr.bf16.mxu0 0
      %799 = vmatpush1.bf16.msra.mxu0 %v796
      %800 = vmatprep.subr.bf16.mxu0 0
      %801 = vmatpush1.bf16.msra.mxu0 0
      %802 = vmatprep.subr.bf16.mxu0 0
      %803 = vmatpush1.bf16.msra.mxu0 0
      %804 = vmatprep.subr.bf16.mxu0 0
      %805 = vmatpush1.bf16.msra.mxu0 0
      %806 = vmatprep.subr.bf16.mxu0 0
      %807 = vmatpush1.bf16.msra.mxu0 0
      %808 = vmatprep.subr.bf16.mxu0 0
      %809 = vmatpush1.bf16.msra.mxu0 0
      %810 = vmatprep.subr.bf16.mxu0 0
      %811 = vmatpush1.bf16.msra.mxu0 0
      %812 = vmatprep.subr.bf16.mxu0 0
      %813 = vmatpush1.bf16.msra.mxu0 0
      %814 = vmatprep.subr.bf16.mxu0 0
      %815 = vmatpush1.bf16.msra.mxu0 0
      %816 = vmatprep.subr.bf16.mxu0 0
      %817 = vmatpush1.bf16.msra.mxu0 0
      %818 = vmatprep.subr.bf16.mxu0 0
      %819 = vmatpush1.bf16.msra.mxu0 0
      %820 = vmatprep.subr.bf16.mxu0 0
      %821 = vmatpush1.bf16.msra.mxu0 0
      %822 = vmatprep.subr.bf16.mxu0 0
      %823 = vmatpush1.bf16.msra.mxu0 0
      %824 = vmatprep.subr.bf16.mxu0 0
      %825 = vmatpush1.bf16.msra.mxu0 0
      %826 = vmatprep.subr.bf16.mxu0 0
      %827 = vmatpush1.bf16.msra.mxu0 0
      %828 = vmatprep.subr.bf16.mxu0 0
      %829 = vmatpush1.bf16.msra.mxu0 0
      %830 = vmatprep.mubr.bf16.mxu0 0
      %831 = vmatmul.mubr.bf16.gmra.mrb[0].mxu0 %v748
      %v832 = vpop.f32.mrb[0].mxu0
      %v833 = vadd.f32 0.0, %v832
      %v834 = vpop.f32.mrb[0].mxu0
      %v835 = vpop.f32.mrb[0].mxu0
      %v836 = vadd.f32 0.0, %v835
      %v837 = vpop.f32.mrb[0].mxu0
      %838 = vmatprep.mubr.bf16.mxu0 0
      %839 = vmatmul.mubr.bf16.gmra.mrb[0].mxu0 %v751
      %v840 = vpop.f32.mrb[0].mxu0
      %v841 = vadd.f32 0.0, %v840
      %v842 = vpop.f32.mrb[0].mxu0
      %v843 = vpop.f32.mrb[0].mxu0
      %v844 = vadd.f32 0.0, %v843
      %v845 = vpop.f32.mrb[0].mxu0
      %846 = vmatprep.mubr.bf16.mxu0 0
      %847 = vmatmul.mubr.bf16.gmra.mrb[0].mxu0 %v754
      %v848 = vpop.f32.mrb[0].mxu0
      %v849 = vadd.f32 0.0, %v848
      %v850 = vpop.f32.mrb[0].mxu0
      %v851 = vpop.f32.mrb[0].mxu0
      %v852 = vadd.f32 0.0, %v851
      %v853 = vpop.f32.mrb[0].mxu0
      %854 = vmatprep.mubr.bf16.mxu0 0
      %855 = vmatmul.mubr.bf16.gmra.mrb[0].mxu0 %v757
      %v856 = vpop.f32.mrb[0].mxu0
      %v857 = vadd.f32 0.0, %v856
      %v858 = vpop.f32.mrb[0].mxu0
      %v859 = vpop.f32.mrb[0].mxu0
      %v860 = vadd.f32 0.0, %v859
      %v861 = vpop.f32.mrb[0].mxu0
      %862 = vmatprep.mubr.bf16.mxu0 0
      %863 = vmatmul.mubr.bf16.gmra.mrb[0].mxu0 %v760
      %v864 = vpop.f32.mrb[0].mxu0
      %v865 = vadd.f32 0.0, %v864
      %v866 = vpop.f32.mrb[0].mxu0
      %v867 = vpop.f32.mrb[0].mxu0
      %v868 = vadd.f32 0.0, %v867
      %v869 = vpop.f32.mrb[0].mxu0
      %870 = vmatprep.mubr.bf16.mxu0 0
      %871 = vmatmul.mubr.bf16.gmra.mrb[0].mxu0 %v763
      %v872 = vpop.f32.mrb[0].mxu0
      %v873 = vadd.f32 0.0, %v872
      %v874 = vpop.f32.mrb[0].mxu0
      %v875 = vpop.f32.mrb[0].mxu0
      %v876 = vadd.f32 0.0, %v875
      %v877 = vpop.f32.mrb[0].mxu0
      %878 = vmatprep.mubr.bf16.mxu0 0
      %879 = vmatmul.mubr.bf16.gmra.mrb[0].mxu0 %v766
      %v880 = vpop.f32.mrb[0].mxu0
      %v881 = vadd.f32 0.0, %v880
      %v882 = vpop.f32.mrb[0].mxu0
      %v883 = vpop.f32.mrb[0].mxu0
      %v884 = vadd.f32 0.0, %v883
      %v885 = vpop.f32.mrb[0].mxu0
      %886 = vmatprep.mubr.bf16.mxu0 0
      %887 = vmatmul.mubr.bf16.gmra.mrb[0].mxu0 %v769
      %v888 = vpop.f32.mrb[0].mxu0
      %v889 = vadd.f32 0.0, %v888
      %v890 = vpop.f32.mrb[0].mxu0
      %v891 = vpop.f32.mrb[0].mxu0
      %v892 = vadd.f32 0.0, %v891
      %v893 = vpop.f32.mrb[0].mxu0
      %894 = vmatprep.mubr.bf16.mxu0 0
      %895 = vmatmul.mubr.bf16.gmra.mrb[0].mxu0 %v772
      %v896 = vpop.f32.mrb[0].mxu0
      %v897 = vadd.f32 0.0, %v896
      %v898 = vpop.f32.mrb[0].mxu0
      %v899 = vpop.f32.mrb[0].mxu0
      %v900 = vadd.f32 0.0, %v899
      %v901 = vpop.f32.mrb[0].mxu0
      %902 = vmatprep.mubr.bf16.mxu0 0
      %903 = vmatmul.mubr.bf16.gmra.mrb[0].mxu0 %v775
      %v904 = vpop.f32.mrb[0].mxu0
      %v905 = vadd.f32 0.0, %v904
      %v906 = vpop.f32.mrb[0].mxu0
      %v907 = vpop.f32.mrb[0].mxu0
      %v908 = vadd.f32 0.0, %v907
      %v909 = vpop.f32.mrb[0].mxu0
      %910 = vmatprep.mubr.bf16.mxu0 0
      %911 = vmatmul.mubr.bf16.gmra.mrb[0].mxu0 %v778
      %v912 = vpop.f32.mrb[0].mxu0
      %v913 = vadd.f32 0.0, %v912
      %v914 = vpop.f32.mrb[0].mxu0
      %v915 = vpop.f32.mrb[0].mxu0
      %v916 = vadd.f32 0.0, %v915
      %v917 = vpop.f32.mrb[0].mxu0
      %918 = vmatprep.mubr.bf16.mxu0 0
      %919 = vmatmul.mubr.bf16.gmra.mrb[0].mxu0 %v781
      %v920 = vpop.f32.mrb[0].mxu0
      %v921 = vadd.f32 0.0, %v920
      %v922 = vpop.f32.mrb[0].mxu0
      %v923 = vpop.f32.mrb[0].mxu0
      %v924 = vadd.f32 0.0, %v923
      %v925 = vpop.f32.mrb[0].mxu0
      %926 = vmatprep.mubr.bf16.mxu0 0
      %927 = vmatmul.mubr.bf16.gmra.mrb[0].mxu0 %v784
      %v928 = vpop.f32.mrb[0].mxu0
      %v929 = vadd.f32 0.0, %v928
      %v930 = vpop.f32.mrb[0].mxu0
      %v931 = vpop.f32.mrb[0].mxu0
      %v932 = vadd.f32 0.0, %v931
      %v933 = vpop.f32.mrb[0].mxu0
      %934 = vmatprep.mubr.bf16.mxu0 0
      %935 = vmatmul.mubr.bf16.gmra.mrb[0].mxu0 %v787
      %v936 = vpop.f32.mrb[0].mxu0
      %v937 = vadd.f32 0.0, %v936
      %v938 = vpop.f32.mrb[0].mxu0
      %v939 = vpop.f32.mrb[0].mxu0
      %v940 = vadd.f32 0.0, %v939
      %v941 = vpop.f32.mrb[0].mxu0
      %942 = vmatprep.mubr.bf16.mxu0 0
      %943 = vmatmul.mubr.bf16.gmra.mrb[0].mxu0 %v790
      %v944 = vpop.f32.mrb[0].mxu0
      %v945 = vadd.f32 0.0, %v944
      %v946 = vpop.f32.mrb[0].mxu0
      %v947 = vpop.f32.mrb[0].mxu0
      %v948 = vadd.f32 0.0, %v947
      %v949 = vpop.f32.mrb[0].mxu0
      %950 = vmatprep.mubr.bf16.mxu0 0
      %951 = vmatmul.mubr.bf16.gmra.mrb[0].mxu0 %v793
      %v952 = vpop.f32.mrb[0].mxu0
      %v953 = vadd.f32 0.0, %v952
      %v954 = vpop.f32.mrb[0].mxu0
      %v955 = vpop.f32.mrb[0].mxu0
      %v956 = vadd.f32 0.0, %v955
      %v957 = vpop.f32.mrb[0].mxu0
      %958 = vdwg.mxu0
      %v959 = vadd.f32 %v571, %v833
      %v960 = vadd.f32 %v574, %v836
      %v961 = vadd.f32 %v579, %v841
      %v962 = vadd.f32 %v582, %v844
      %v963 = vadd.f32 %v587, %v849
      %v964 = vadd.f32 %v590, %v852
      %v965 = vadd.f32 %v595, %v857
      %v966 = vadd.f32 %v598, %v860
      %v967 = vadd.f32 %v603, %v865
      %v968 = vadd.f32 %v606, %v868
      %v969 = vadd.f32 %v611, %v873
      %v970 = vadd.f32 %v614, %v876
      %v971 = vadd.f32 %v619, %v881
      %v972 = vadd.f32 %v622, %v884
      %v973 = vadd.f32 %v627, %v889
      %v974 = vadd.f32 %v630, %v892
      %v975 = vadd.f32 %v635, %v897
      %v976 = vadd.f32 %v638, %v900
      %v977 = vadd.f32 %v643, %v905
      %v978 = vadd.f32 %v646, %v908
      %v979 = vadd.f32 %v651, %v913
      %v980 = vadd.f32 %v654, %v916
      %v981 = vadd.f32 %v659, %v921
      %v982 = vadd.f32 %v662, %v924
      %v983 = vadd.f32 %v667, %v929
      %v984 = vadd.f32 %v670, %v932
      %v985 = vadd.f32 %v675, %v937
      %v986 = vadd.f32 %v678, %v940
      %v987 = vadd.f32 %v683, %v945
      %v988 = vadd.f32 %v686, %v948
      %v989 = vadd.f32 %v691, %v953
      %v990 = vadd.f32 %v694, %v956
      %s991 = scalar_lea.vmem %s165, 24
      %v992 = vld [vmem:[%s991] sm:$0xff]
      %v993 = vld [vmem:[%s991 + $0x8] sm:$0xff]
      %v994 = vld [vmem:[%s991 + $0x18] sm:$0xff]
      %v995 = vld [vmem:[%s991 + $0x20] sm:$0xff]
      %v996 = vld [vmem:[%s991 + $0x30] sm:$0xff]
      %v997 = vld [vmem:[%s991 + $0x38] sm:$0xff]
      %v998 = vld [vmem:[%s991 + $0x48] sm:$0xff]
      %v999 = vld [vmem:[%s991 + $0x50] sm:$0xff]
      %v1000 = vld [vmem:[%s991 + $0x60] sm:$0xff]
      %v1001 = vld [vmem:[%s991 + $0x68] sm:$0xff]
      %v1002 = vld [vmem:[%s991 + $0x78] sm:$0xff]
      %v1003 = vld [vmem:[%s991 + $0x80] sm:$0xff]
      %v1004 = vld [vmem:[%s991 + $0x90] sm:$0xff]
      %v1005 = vld [vmem:[%s991 + $0x98] sm:$0xff]
      %v1006 = vld [vmem:[%s991 + $0xa8] sm:$0xff]
      %v1007 = vld [vmem:[%s991 + $0xb0] sm:$0xff]
      %v1008 = vld [vmem:[%s991 + $0xc0] sm:$0xff]
      %v1009 = vld [vmem:[%s991 + $0xc8] sm:$0xff]
      %v1010 = vld [vmem:[%s991 + $0xd8] sm:$0xff]
      %v1011 = vld [vmem:[%s991 + $0xe0] sm:$0xff]
      %v1012 = vld [vmem:[%s991 + $0xf0] sm:$0xff]
      %v1013 = vld [vmem:[%s991 + $0xf8] sm:$0xff]
      %v1014 = vld [vmem:[%s991 + $0x108] sm:$0xff]
      %v1015 = vld [vmem:[%s991 + $0x110] sm:$0xff]
      %v1016 = vld [vmem:[%s991 + $0x120] sm:$0xff]
      %v1017 = vld [vmem:[%s991 + $0x128] sm:$0xff]
      %v1018 = vld [vmem:[%s991 + $0x138] sm:$0xff]
      %v1019 = vld [vmem:[%s991 + $0x140] sm:$0xff]
      %v1020 = vld [vmem:[%s991 + $0x150] sm:$0xff]
      %v1021 = vld [vmem:[%s991 + $0x158] sm:$0xff]
      %v1022 = vld [vmem:[%s991 + $0x168] sm:$0xff]
      %v1023 = vld [vmem:[%s991 + $0x170] sm:$0xff]
      %v1024 = vpack.c.bf16 %v993, %v992
      %v1025 = vpack.c.bf16 %v995, %v994
      %v1026 = vpack.c.bf16 %v997, %v996
      %v1027 = vpack.c.bf16 %v999, %v998
      %v1028 = vpack.c.bf16 %v1001, %v1000
      %v1029 = vpack.c.bf16 %v1003, %v1002
      %v1030 = vpack.c.bf16 %v1005, %v1004
      %v1031 = vpack.c.bf16 %v1007, %v1006
      %v1032 = vpack.c.bf16 %v1009, %v1008
      %v1033 = vpack.c.bf16 %v1011, %v1010
      %v1034 = vpack.c.bf16 %v1013, %v1012
      %v1035 = vpack.c.bf16 %v1015, %v1014
      %v1036 = vpack.c.bf16 %v1017, %v1016
      %v1037 = vpack.c.bf16 %v1019, %v1018
      %v1038 = vpack.c.bf16 %v1021, %v1020
      %v1039 = vpack.c.bf16 %v1023, %v1022
      %s1040 = scalar_lea.vmem %s1, 12
      %v1041 = vld [vmem:[%s1040] sm:$0xf]
      %v1043 = vsel %vm271, %v1024, 0
      %v1046 = vsel %vm271, %v1025, 0
      %v1049 = vsel %vm271, %v1026, 0
      %v1052 = vsel %vm271, %v1027, 0
      %v1055 = vsel %vm271, %v1028, 0
      %v1058 = vsel %vm271, %v1029, 0
      %v1061 = vsel %vm271, %v1030, 0
      %v1064 = vsel %vm271, %v1031, 0
      %v1067 = vsel %vm271, %v1032, 0
      %v1070 = vsel %vm271, %v1033, 0
      %v1073 = vsel %vm271, %v1034, 0
      %v1076 = vsel %vm271, %v1035, 0
      %v1079 = vsel %vm271, %v1036, 0
      %v1082 = vsel %vm271, %v1037, 0
      %v1085 = vsel %vm271, %v1038, 0
      %v1088 = vsel %vm271, %v1039, 0
      %v1091 = vsel %vm320, %v1041, 0
      %1093 = vmatprep.subr.bf16.mxu0 0
      %1094 = vmatpush1.bf16.msra.mxu0 %v1091
      %1095 = vmatprep.subr.bf16.mxu0 0
      %1096 = vmatpush1.bf16.msra.mxu0 0
      %1097 = vmatprep.subr.bf16.mxu0 0
      %1098 = vmatpush1.bf16.msra.mxu0 0
      %1099 = vmatprep.subr.bf16.mxu0 0
      %1100 = vmatpush1.bf16.msra.mxu0 0
      %1101 = vmatprep.subr.bf16.mxu0 0
      %1102 = vmatpush1.bf16.msra.mxu0 0
      %1103 = vmatprep.subr.bf16.mxu0 0
      %1104 = vmatpush1.bf16.msra.mxu0 0
      %1105 = vmatprep.subr.bf16.mxu0 0
      %1106 = vmatpush1.bf16.msra.mxu0 0
      %1107 = vmatprep.subr.bf16.mxu0 0
      %1108 = vmatpush1.bf16.msra.mxu0 0
      %1109 = vmatprep.subr.bf16.mxu0 0
      %1110 = vmatpush1.bf16.msra.mxu0 0
      %1111 = vmatprep.subr.bf16.mxu0 0
      %1112 = vmatpush1.bf16.msra.mxu0 0
      %1113 = vmatprep.subr.bf16.mxu0 0
      %1114 = vmatpush1.bf16.msra.mxu0 0
      %1115 = vmatprep.subr.bf16.mxu0 0
      %1116 = vmatpush1.bf16.msra.mxu0 0
      %1117 = vmatprep.subr.bf16.mxu0 0
      %1118 = vmatpush1.bf16.msra.mxu0 0
      %1119 = vmatprep.subr.bf16.mxu0 0
      %1120 = vmatpush1.bf16.msra.mxu0 0
      %1121 = vmatprep.subr.bf16.mxu0 0
      %1122 = vmatpush1.bf16.msra.mxu0 0
      %1123 = vmatprep.subr.bf16.mxu0 0
      %1124 = vmatpush1.bf16.msra.mxu0 0
      %1125 = vmatprep.mubr.bf16.mxu0 0
      %1126 = vmatmul.mubr.bf16.gmra.mrb[0].mxu0 %v1043
      %v1127 = vpop.f32.mrb[0].mxu0
      %v1128 = vadd.f32 0.0, %v1127
      %v1129 = vpop.f32.mrb[0].mxu0
      %v1130 = vpop.f32.mrb[0].mxu0
      %v1131 = vadd.f32 0.0, %v1130
      %v1132 = vpop.f32.mrb[0].mxu0
      %1133 = vmatprep.mubr.bf16.mxu0 0
      %1134 = vmatmul.mubr.bf16.gmra.mrb[0].mxu0 %v1046
      %v1135 = vpop.f32.mrb[0].mxu0
      %v1136 = vadd.f32 0.0, %v1135
      %v1137 = vpop.f32.mrb[0].mxu0
      %v1138 = vpop.f32.mrb[0].mxu0
      %v1139 = vadd.f32 0.0, %v1138
      %v1140 = vpop.f32.mrb[0].mxu0
      %1141 = vmatprep.mubr.bf16.mxu0 0
      %1142 = vmatmul.mubr.bf16.gmra.mrb[0].mxu0 %v1049
      %v1143 = vpop.f32.mrb[0].mxu0
      %v1144 = vadd.f32 0.0, %v1143
      %v1145 = vpop.f32.mrb[0].mxu0
      %v1146 = vpop.f32.mrb[0].mxu0
      %v1147 = vadd.f32 0.0, %v1146
      %v1148 = vpop.f32.mrb[0].mxu0
      %1149 = vmatprep.mubr.bf16.mxu0 0
      %1150 = vmatmul.mubr.bf16.gmra.mrb[0].mxu0 %v1052
      %v1151 = vpop.f32.mrb[0].mxu0
      %v1152 = vadd.f32 0.0, %v1151
      %v1153 = vpop.f32.mrb[0].mxu0
      %v1154 = vpop.f32.mrb[0].mxu0
      %v1155 = vadd.f32 0.0, %v1154
      %v1156 = vpop.f32.mrb[0].mxu0
      %1157 = vmatprep.mubr.bf16.mxu0 0
      %1158 = vmatmul.mubr.bf16.gmra.mrb[0].mxu0 %v1055
      %v1159 = vpop.f32.mrb[0].mxu0
      %v1160 = vadd.f32 0.0, %v1159
      %v1161 = vpop.f32.mrb[0].mxu0
      %v1162 = vpop.f32.mrb[0].mxu0
      %v1163 = vadd.f32 0.0, %v1162
      %v1164 = vpop.f32.mrb[0].mxu0
      %1165 = vmatprep.mubr.bf16.mxu0 0
      %1166 = vmatmul.mubr.bf16.gmra.mrb[0].mxu0 %v1058
      %v1167 = vpop.f32.mrb[0].mxu0
      %v1168 = vadd.f32 0.0, %v1167
      %v1169 = vpop.f32.mrb[0].mxu0
      %v1170 = vpop.f32.mrb[0].mxu0
      %v1171 = vadd.f32 0.0, %v1170
      %v1172 = vpop.f32.mrb[0].mxu0
      %1173 = vmatprep.mubr.bf16.mxu0 0
      %1174 = vmatmul.mubr.bf16.gmra.mrb[0].mxu0 %v1061
      %v1175 = vpop.f32.mrb[0].mxu0
      %v1176 = vadd.f32 0.0, %v1175
      %v1177 = vpop.f32.mrb[0].mxu0
      %v1178 = vpop.f32.mrb[0].mxu0
      %v1179 = vadd.f32 0.0, %v1178
      %v1180 = vpop.f32.mrb[0].mxu0
      %1181 = vmatprep.mubr.bf16.mxu0 0
      %1182 = vmatmul.mubr.bf16.gmra.mrb[0].mxu0 %v1064
      %v1183 = vpop.f32.mrb[0].mxu0
      %v1184 = vadd.f32 0.0, %v1183
      %v1185 = vpop.f32.mrb[0].mxu0
      %v1186 = vpop.f32.mrb[0].mxu0
      %v1187 = vadd.f32 0.0, %v1186
      %v1188 = vpop.f32.mrb[0].mxu0
      %1189 = vmatprep.mubr.bf16.mxu0 0
      %1190 = vmatmul.mubr.bf16.gmra.mrb[0].mxu0 %v1067
      %v1191 = vpop.f32.mrb[0].mxu0
      %v1192 = vadd.f32 0.0, %v1191
      %v1193 = vpop.f32.mrb[0].mxu0
      %v1194 = vpop.f32.mrb[0].mxu0
      %v1195 = vadd.f32 0.0, %v1194
      %v1196 = vpop.f32.mrb[0].mxu0
      %1197 = vmatprep.mubr.bf16.mxu0 0
      %1198 = vmatmul.mubr.bf16.gmra.mrb[0].mxu0 %v1070
      %v1199 = vpop.f32.mrb[0].mxu0
      %v1200 = vadd.f32 0.0, %v1199
      %v1201 = vpop.f32.mrb[0].mxu0
      %v1202 = vpop.f32.mrb[0].mxu0
      %v1203 = vadd.f32 0.0, %v1202
      %v1204 = vpop.f32.mrb[0].mxu0
      %1205 = vmatprep.mubr.bf16.mxu0 0
      %1206 = vmatmul.mubr.bf16.gmra.mrb[0].mxu0 %v1073
      %v1207 = vpop.f32.mrb[0].mxu0
      %v1208 = vadd.f32 0.0, %v1207
      %v1209 = vpop.f32.mrb[0].mxu0
      %v1210 = vpop.f32.mrb[0].mxu0
      %v1211 = vadd.f32 0.0, %v1210
      %v1212 = vpop.f32.mrb[0].mxu0
      %1213 = vmatprep.mubr.bf16.mxu0 0
      %1214 = vmatmul.mubr.bf16.gmra.mrb[0].mxu0 %v1076
      %v1215 = vpop.f32.mrb[0].mxu0
      %v1216 = vadd.f32 0.0, %v1215
      %v1217 = vpop.f32.mrb[0].mxu0
      %v1218 = vpop.f32.mrb[0].mxu0
      %v1219 = vadd.f32 0.0, %v1218
      %v1220 = vpop.f32.mrb[0].mxu0
      %1221 = vmatprep.mubr.bf16.mxu0 0
      %1222 = vmatmul.mubr.bf16.gmra.mrb[0].mxu0 %v1079
      %v1223 = vpop.f32.mrb[0].mxu0
      %v1224 = vadd.f32 0.0, %v1223
      %v1225 = vpop.f32.mrb[0].mxu0
      %v1226 = vpop.f32.mrb[0].mxu0
      %v1227 = vadd.f32 0.0, %v1226
      %v1228 = vpop.f32.mrb[0].mxu0
      %1229 = vmatprep.mubr.bf16.mxu0 0
      %1230 = vmatmul.mubr.bf16.gmra.mrb[0].mxu0 %v1082
      %v1231 = vpop.f32.mrb[0].mxu0
      %v1232 = vadd.f32 0.0, %v1231
      %v1233 = vpop.f32.mrb[0].mxu0
      %v1234 = vpop.f32.mrb[0].mxu0
      %v1235 = vadd.f32 0.0, %v1234
      %v1236 = vpop.f32.mrb[0].mxu0
      %1237 = vmatprep.mubr.bf16.mxu0 0
      %1238 = vmatmul.mubr.bf16.gmra.mrb[0].mxu0 %v1085
      %v1239 = vpop.f32.mrb[0].mxu0
      %v1240 = vadd.f32 0.0, %v1239
      %v1241 = vpop.f32.mrb[0].mxu0
      %v1242 = vpop.f32.mrb[0].mxu0
      %v1243 = vadd.f32 0.0, %v1242
      %v1244 = vpop.f32.mrb[0].mxu0
      %1245 = vmatprep.mubr.bf16.mxu0 0
      %1246 = vmatmul.mubr.bf16.gmra.mrb[0].mxu0 %v1088
      %v1247 = vpop.f32.mrb[0].mxu0
      %v1248 = vadd.f32 0.0, %v1247
      %v1249 = vpop.f32.mrb[0].mxu0
      %v1250 = vpop.f32.mrb[0].mxu0
      %v1251 = vadd.f32 0.0, %v1250
      %v1252 = vpop.f32.mrb[0].mxu0
      %1253 = vdwg.mxu0
      %v1254 = vadd.f32 %v959, %v1128
      %v1255 = vadd.f32 %v960, %v1131
      %v1256 = vadd.f32 %v961, %v1136
      %v1257 = vadd.f32 %v962, %v1139
      %v1258 = vadd.f32 %v963, %v1144
      %v1259 = vadd.f32 %v964, %v1147
      %v1260 = vadd.f32 %v965, %v1152
      %v1261 = vadd.f32 %v966, %v1155
      %v1262 = vadd.f32 %v967, %v1160
      %v1263 = vadd.f32 %v968, %v1163
      %v1264 = vadd.f32 %v969, %v1168
      %v1265 = vadd.f32 %v970, %v1171
      %v1266 = vadd.f32 %v971, %v1176
      %v1267 = vadd.f32 %v972, %v1179
      %v1268 = vadd.f32 %v973, %v1184
      %v1269 = vadd.f32 %v974, %v1187
      %v1270 = vadd.f32 %v975, %v1192
      %v1271 = vadd.f32 %v976, %v1195
      %v1272 = vadd.f32 %v977, %v1200
      %v1273 = vadd.f32 %v978, %v1203
      %v1274 = vadd.f32 %v979, %v1208
      %v1275 = vadd.f32 %v980, %v1211
      %v1276 = vadd.f32 %v981, %v1216
      %v1277 = vadd.f32 %v982, %v1219
      %v1278 = vadd.f32 %v983, %v1224
      %v1279 = vadd.f32 %v984, %v1227
      %v1280 = vadd.f32 %v985, %v1232
      %v1281 = vadd.f32 %v986, %v1235
      %v1282 = vadd.f32 %v987, %v1240
      %v1283 = vadd.f32 %v988, %v1243
      %v1284 = vadd.f32 %v989, %v1248
      %v1285 = vadd.f32 %v990, %v1251
      %v1286 = vld [vmem:[%s991 + $0x1] sm:$0xff]
      %v1287 = vld [vmem:[%s991 + $0x9] sm:$0xff]
      %v1288 = vld [vmem:[%s991 + $0x19] sm:$0xff]
      %v1289 = vld [vmem:[%s991 + $0x21] sm:$0xff]
      %v1290 = vld [vmem:[%s991 + $0x31] sm:$0xff]
      %v1291 = vld [vmem:[%s991 + $0x39] sm:$0xff]
      %v1292 = vld [vmem:[%s991 + $0x49] sm:$0xff]
      %v1293 = vld [vmem:[%s991 + $0x51] sm:$0xff]
      %v1294 = vld [vmem:[%s991 + $0x61] sm:$0xff]
      %v1295 = vld [vmem:[%s991 + $0x69] sm:$0xff]
      %v1296 = vld [vmem:[%s991 + $0x79] sm:$0xff]
      %v1297 = vld [vmem:[%s991 + $0x81] sm:$0xff]
      %v1298 = vld [vmem:[%s991 + $0x91] sm:$0xff]
      %v1299 = vld [vmem:[%s991 + $0x99] sm:$0xff]
      %v1300 = vld [vmem:[%s991 + $0xa9] sm:$0xff]
      %v1301 = vld [vmem:[%s991 + $0xb1] sm:$0xff]
      %v1302 = vld [vmem:[%s991 + $0xc1] sm:$0xff]
      %v1303 = vld [vmem:[%s991 + $0xc9] sm:$0xff]
      %v1304 = vld [vmem:[%s991 + $0xd9] sm:$0xff]
      %v1305 = vld [vmem:[%s991 + $0xe1] sm:$0xff]
      %v1306 = vld [vmem:[%s991 + $0xf1] sm:$0xff]
      %v1307 = vld [vmem:[%s991 + $0xf9] sm:$0xff]
      %v1308 = vld [vmem:[%s991 + $0x109] sm:$0xff]
      %v1309 = vld [vmem:[%s991 + $0x111] sm:$0xff]
      %v1310 = vld [vmem:[%s991 + $0x121] sm:$0xff]
      %v1311 = vld [vmem:[%s991 + $0x129] sm:$0xff]
      %v1312 = vld [vmem:[%s991 + $0x139] sm:$0xff]
      %v1313 = vld [vmem:[%s991 + $0x141] sm:$0xff]
      %v1314 = vld [vmem:[%s991 + $0x151] sm:$0xff]
      %v1315 = vld [vmem:[%s991 + $0x159] sm:$0xff]
      %v1316 = vld [vmem:[%s991 + $0x169] sm:$0xff]
      %v1317 = vld [vmem:[%s991 + $0x171] sm:$0xff]
      %v1318 = vpack.c.bf16 %v1287, %v1286
      %v1319 = vpack.c.bf16 %v1289, %v1288
      %v1320 = vpack.c.bf16 %v1291, %v1290
      %v1321 = vpack.c.bf16 %v1293, %v1292
      %v1322 = vpack.c.bf16 %v1295, %v1294
      %v1323 = vpack.c.bf16 %v1297, %v1296
      %v1324 = vpack.c.bf16 %v1299, %v1298
      %v1325 = vpack.c.bf16 %v1301, %v1300
      %v1326 = vpack.c.bf16 %v1303, %v1302
      %v1327 = vpack.c.bf16 %v1305, %v1304
      %v1328 = vpack.c.bf16 %v1307, %v1306
      %v1329 = vpack.c.bf16 %v1309, %v1308
      %v1330 = vpack.c.bf16 %v1311, %v1310
      %v1331 = vpack.c.bf16 %v1313, %v1312
      %v1332 = vpack.c.bf16 %v1315, %v1314
      %v1333 = vpack.c.bf16 %v1317, %v1316
      %s1334 = scalar_lea.vmem %s1, 16
      %v1335 = vld [vmem:[%s1334] sm:$0xf]
      %v1337 = vsel %vm271, %v1318, 0
      %v1340 = vsel %vm271, %v1319, 0
      %v1343 = vsel %vm271, %v1320, 0
      %v1346 = vsel %vm271, %v1321, 0
      %v1349 = vsel %vm271, %v1322, 0
      %v1352 = vsel %vm271, %v1323, 0
      %v1355 = vsel %vm271, %v1324, 0
      %v1358 = vsel %vm271, %v1325, 0
      %v1361 = vsel %vm271, %v1326, 0
      %v1364 = vsel %vm271, %v1327, 0
      %v1367 = vsel %vm271, %v1328, 0
      %v1370 = vsel %vm271, %v1329, 0
      %v1373 = vsel %vm271, %v1330, 0
      %v1376 = vsel %vm271, %v1331, 0
      %v1379 = vsel %vm271, %v1332, 0
      %v1382 = vsel %vm271, %v1333, 0
      %v1385 = vsel %vm320, %v1335, 0
      %1387 = vmatprep.subr.bf16.mxu0 0
      %1388 = vmatpush1.bf16.msra.mxu0 %v1385
      %1389 = vmatprep.subr.bf16.mxu0 0
      %1390 = vmatpush1.bf16.msra.mxu0 0
      %1391 = vmatprep.subr.bf16.mxu0 0
      %1392 = vmatpush1.bf16.msra.mxu0 0
      %1393 = vmatprep.subr.bf16.mxu0 0
      %1394 = vmatpush1.bf16.msra.mxu0 0
      %1395 = vmatprep.subr.bf16.mxu0 0
      %1396 = vmatpush1.bf16.msra.mxu0 0
      %1397 = vmatprep.subr.bf16.mxu0 0
      %1398 = vmatpush1.bf16.msra.mxu0 0
      %1399 = vmatprep.subr.bf16.mxu0 0
      %1400 = vmatpush1.bf16.msra.mxu0 0
      %1401 = vmatprep.subr.bf16.mxu0 0
      %1402 = vmatpush1.bf16.msra.mxu0 0
      %1403 = vmatprep.subr.bf16.mxu0 0
      %1404 = vmatpush1.bf16.msra.mxu0 0
      %1405 = vmatprep.subr.bf16.mxu0 0
      %1406 = vmatpush1.bf16.msra.mxu0 0
      %1407 = vmatprep.subr.bf16.mxu0 0
      %1408 = vmatpush1.bf16.msra.mxu0 0
      %1409 = vmatprep.subr.bf16.mxu0 0
      %1410 = vmatpush1.bf16.msra.mxu0 0
      %1411 = vmatprep.subr.bf16.mxu0 0
      %1412 = vmatpush1.bf16.msra.mxu0 0
      %1413 = vmatprep.subr.bf16.mxu0 0
      %1414 = vmatpush1.bf16.msra.mxu0 0
      %1415 = vmatprep.subr.bf16.mxu0 0
      %1416 = vmatpush1.bf16.msra.mxu0 0
      %1417 = vmatprep.subr.bf16.mxu0 0
      %1418 = vmatpush1.bf16.msra.mxu0 0
      %1419 = vmatprep.mubr.bf16.mxu0 0
      %1420 = vmatmul.mubr.bf16.gmra.mrb[0].mxu0 %v1337
      %v1421 = vpop.f32.mrb[0].mxu0
      %v1422 = vadd.f32 0.0, %v1421
      %v1423 = vpop.f32.mrb[0].mxu0
      %v1424 = vpop.f32.mrb[0].mxu0
      %v1425 = vadd.f32 0.0, %v1424
      %v1426 = vpop.f32.mrb[0].mxu0
      %1427 = vmatprep.mubr.bf16.mxu0 0
      %1428 = vmatmul.mubr.bf16.gmra.mrb[0].mxu0 %v1340
      %v1429 = vpop.f32.mrb[0].mxu0
      %v1430 = vadd.f32 0.0, %v1429
      %v1431 = vpop.f32.mrb[0].mxu0
      %v1432 = vpop.f32.mrb[0].mxu0
      %v1433 = vadd.f32 0.0, %v1432
      %v1434 = vpop.f32.mrb[0].mxu0
      %1435 = vmatprep.mubr.bf16.mxu0 0
      %1436 = vmatmul.mubr.bf16.gmra.mrb[0].mxu0 %v1343
      %v1437 = vpop.f32.mrb[0].mxu0
      %v1438 = vadd.f32 0.0, %v1437
      %v1439 = vpop.f32.mrb[0].mxu0
      %v1440 = vpop.f32.mrb[0].mxu0
      %v1441 = vadd.f32 0.0, %v1440
      %v1442 = vpop.f32.mrb[0].mxu0
      %1443 = vmatprep.mubr.bf16.mxu0 0
      %1444 = vmatmul.mubr.bf16.gmra.mrb[0].mxu0 %v1346
      %v1445 = vpop.f32.mrb[0].mxu0
      %v1446 = vadd.f32 0.0, %v1445
      %v1447 = vpop.f32.mrb[0].mxu0
      %v1448 = vpop.f32.mrb[0].mxu0
      %v1449 = vadd.f32 0.0, %v1448
      %v1450 = vpop.f32.mrb[0].mxu0
      %1451 = vmatprep.mubr.bf16.mxu0 0
      %1452 = vmatmul.mubr.bf16.gmra.mrb[0].mxu0 %v1349
      %v1453 = vpop.f32.mrb[0].mxu0
      %v1454 = vadd.f32 0.0, %v1453
      %v1455 = vpop.f32.mrb[0].mxu0
      %v1456 = vpop.f32.mrb[0].mxu0
      %v1457 = vadd.f32 0.0, %v1456
      %v1458 = vpop.f32.mrb[0].mxu0
      %1459 = vmatprep.mubr.bf16.mxu0 0
      %1460 = vmatmul.mubr.bf16.gmra.mrb[0].mxu0 %v1352
      %v1461 = vpop.f32.mrb[0].mxu0
      %v1462 = vadd.f32 0.0, %v1461
      %v1463 = vpop.f32.mrb[0].mxu0
      %v1464 = vpop.f32.mrb[0].mxu0
      %v1465 = vadd.f32 0.0, %v1464
      %v1466 = vpop.f32.mrb[0].mxu0
      %1467 = vmatprep.mubr.bf16.mxu0 0
      %1468 = vmatmul.mubr.bf16.gmra.mrb[0].mxu0 %v1355
      %v1469 = vpop.f32.mrb[0].mxu0
      %v1470 = vadd.f32 0.0, %v1469
      %v1471 = vpop.f32.mrb[0].mxu0
      %v1472 = vpop.f32.mrb[0].mxu0
      %v1473 = vadd.f32 0.0, %v1472
      %v1474 = vpop.f32.mrb[0].mxu0
      %1475 = vmatprep.mubr.bf16.mxu0 0
      %1476 = vmatmul.mubr.bf16.gmra.mrb[0].mxu0 %v1358
      %v1477 = vpop.f32.mrb[0].mxu0
      %v1478 = vadd.f32 0.0, %v1477
      %v1479 = vpop.f32.mrb[0].mxu0
      %v1480 = vpop.f32.mrb[0].mxu0
      %v1481 = vadd.f32 0.0, %v1480
      %v1482 = vpop.f32.mrb[0].mxu0
      %1483 = vmatprep.mubr.bf16.mxu0 0
      %1484 = vmatmul.mubr.bf16.gmra.mrb[0].mxu0 %v1361
      %v1485 = vpop.f32.mrb[0].mxu0
      %v1486 = vadd.f32 0.0, %v1485
      %v1487 = vpop.f32.mrb[0].mxu0
      %v1488 = vpop.f32.mrb[0].mxu0
      %v1489 = vadd.f32 0.0, %v1488
      %v1490 = vpop.f32.mrb[0].mxu0
      %1491 = vmatprep.mubr.bf16.mxu0 0
      %1492 = vmatmul.mubr.bf16.gmra.mrb[0].mxu0 %v1364
      %v1493 = vpop.f32.mrb[0].mxu0
      %v1494 = vadd.f32 0.0, %v1493
      %v1495 = vpop.f32.mrb[0].mxu0
      %v1496 = vpop.f32.mrb[0].mxu0
      %v1497 = vadd.f32 0.0, %v1496
      %v1498 = vpop.f32.mrb[0].mxu0
      %1499 = vmatprep.mubr.bf16.mxu0 0
      %1500 = vmatmul.mubr.bf16.gmra.mrb[0].mxu0 %v1367
      %v1501 = vpop.f32.mrb[0].mxu0
      %v1502 = vadd.f32 0.0, %v1501
      %v1503 = vpop.f32.mrb[0].mxu0
      %v1504 = vpop.f32.mrb[0].mxu0
      %v1505 = vadd.f32 0.0, %v1504
      %v1506 = vpop.f32.mrb[0].mxu0
      %1507 = vmatprep.mubr.bf16.mxu0 0
      %1508 = vmatmul.mubr.bf16.gmra.mrb[0].mxu0 %v1370
      %v1509 = vpop.f32.mrb[0].mxu0
      %v1510 = vadd.f32 0.0, %v1509
      %v1511 = vpop.f32.mrb[0].mxu0
      %v1512 = vpop.f32.mrb[0].mxu0
      %v1513 = vadd.f32 0.0, %v1512
      %v1514 = vpop.f32.mrb[0].mxu0
      %1515 = vmatprep.mubr.bf16.mxu0 0
      %1516 = vmatmul.mubr.bf16.gmra.mrb[0].mxu0 %v1373
      %v1517 = vpop.f32.mrb[0].mxu0
      %v1518 = vadd.f32 0.0, %v1517
      %v1519 = vpop.f32.mrb[0].mxu0
      %v1520 = vpop.f32.mrb[0].mxu0
      %v1521 = vadd.f32 0.0, %v1520
      %v1522 = vpop.f32.mrb[0].mxu0
      %1523 = vmatprep.mubr.bf16.mxu0 0
      %1524 = vmatmul.mubr.bf16.gmra.mrb[0].mxu0 %v1376
      %v1525 = vpop.f32.mrb[0].mxu0
      %v1526 = vadd.f32 0.0, %v1525
      %v1527 = vpop.f32.mrb[0].mxu0
      %v1528 = vpop.f32.mrb[0].mxu0
      %v1529 = vadd.f32 0.0, %v1528
      %v1530 = vpop.f32.mrb[0].mxu0
      %1531 = vmatprep.mubr.bf16.mxu0 0
      %1532 = vmatmul.mubr.bf16.gmra.mrb[0].mxu0 %v1379
      %v1533 = vpop.f32.mrb[0].mxu0
      %v1534 = vadd.f32 0.0, %v1533
      %v1535 = vpop.f32.mrb[0].mxu0
      %v1536 = vpop.f32.mrb[0].mxu0
      %v1537 = vadd.f32 0.0, %v1536
      %v1538 = vpop.f32.mrb[0].mxu0
      %1539 = vmatprep.mubr.bf16.mxu0 0
      %1540 = vmatmul.mubr.bf16.gmra.mrb[0].mxu0 %v1382
      %v1541 = vpop.f32.mrb[0].mxu0
      %v1542 = vadd.f32 0.0, %v1541
      %v1543 = vpop.f32.mrb[0].mxu0
      %v1544 = vpop.f32.mrb[0].mxu0
      %v1545 = vadd.f32 0.0, %v1544
      %v1546 = vpop.f32.mrb[0].mxu0
      %1547 = vdwg.mxu0
      %v1548 = vadd.f32 %v1254, %v1422
      %v1549 = vadd.f32 %v1255, %v1425
      %v1550 = vadd.f32 %v1256, %v1430
      %v1551 = vadd.f32 %v1257, %v1433
      %v1552 = vadd.f32 %v1258, %v1438
      %v1553 = vadd.f32 %v1259, %v1441
      %v1554 = vadd.f32 %v1260, %v1446
      %v1555 = vadd.f32 %v1261, %v1449
      %v1556 = vadd.f32 %v1262, %v1454
      %v1557 = vadd.f32 %v1263, %v1457
      %v1558 = vadd.f32 %v1264, %v1462
      %v1559 = vadd.f32 %v1265, %v1465
      %v1560 = vadd.f32 %v1266, %v1470
      %v1561 = vadd.f32 %v1267, %v1473
      %v1562 = vadd.f32 %v1268, %v1478
      %v1563 = vadd.f32 %v1269, %v1481
      %v1564 = vadd.f32 %v1270, %v1486
      %v1565 = vadd.f32 %v1271, %v1489
      %v1566 = vadd.f32 %v1272, %v1494
      %v1567 = vadd.f32 %v1273, %v1497
      %v1568 = vadd.f32 %v1274, %v1502
      %v1569 = vadd.f32 %v1275, %v1505
      %v1570 = vadd.f32 %v1276, %v1510
      %v1571 = vadd.f32 %v1277, %v1513
      %v1572 = vadd.f32 %v1278, %v1518
      %v1573 = vadd.f32 %v1279, %v1521
      %v1574 = vadd.f32 %v1280, %v1526
      %v1575 = vadd.f32 %v1281, %v1529
      %v1576 = vadd.f32 %v1282, %v1534
      %v1577 = vadd.f32 %v1283, %v1537
      %v1578 = vadd.f32 %v1284, %v1542
      %v1579 = vadd.f32 %v1285, %v1545
      %v1580 = vld [vmem:[%s991 + $0x2] sm:$0xff]
      %v1581 = vld [vmem:[%s991 + $0xa] sm:$0xff]
      %v1582 = vld [vmem:[%s991 + $0x1a] sm:$0xff]
      %v1583 = vld [vmem:[%s991 + $0x22] sm:$0xff]
      %v1584 = vld [vmem:[%s991 + $0x32] sm:$0xff]
      %v1585 = vld [vmem:[%s991 + $0x3a] sm:$0xff]
      %v1586 = vld [vmem:[%s991 + $0x4a] sm:$0xff]
      %v1587 = vld [vmem:[%s991 + $0x52] sm:$0xff]
      %v1588 = vld [vmem:[%s991 + $0x62] sm:$0xff]
      %v1589 = vld [vmem:[%s991 + $0x6a] sm:$0xff]
      %v1590 = vld [vmem:[%s991 + $0x7a] sm:$0xff]
      %v1591 = vld [vmem:[%s991 + $0x82] sm:$0xff]
      %v1592 = vld [vmem:[%s991 + $0x92] sm:$0xff]
      %v1593 = vld [vmem:[%s991 + $0x9a] sm:$0xff]
      %v1594 = vld [vmem:[%s991 + $0xaa] sm:$0xff]
      %v1595 = vld [vmem:[%s991 + $0xb2] sm:$0xff]
      %v1596 = vld [vmem:[%s991 + $0xc2] sm:$0xff]
      %v1597 = vld [vmem:[%s991 + $0xca] sm:$0xff]
      %v1598 = vld [vmem:[%s991 + $0xda] sm:$0xff]
      %v1599 = vld [vmem:[%s991 + $0xe2] sm:$0xff]
      %v1600 = vld [vmem:[%s991 + $0xf2] sm:$0xff]
      %v1601 = vld [vmem:[%s991 + $0xfa] sm:$0xff]
      %v1602 = vld [vmem:[%s991 + $0x10a] sm:$0xff]
      %v1603 = vld [vmem:[%s991 + $0x112] sm:$0xff]
      %v1604 = vld [vmem:[%s991 + $0x122] sm:$0xff]
      %v1605 = vld [vmem:[%s991 + $0x12a] sm:$0xff]
      %v1606 = vld [vmem:[%s991 + $0x13a] sm:$0xff]
      %v1607 = vld [vmem:[%s991 + $0x142] sm:$0xff]
      %v1608 = vld [vmem:[%s991 + $0x152] sm:$0xff]
      %v1609 = vld [vmem:[%s991 + $0x15a] sm:$0xff]
      %v1610 = vld [vmem:[%s991 + $0x16a] sm:$0xff]
      %v1611 = vld [vmem:[%s991 + $0x172] sm:$0xff]
      %v1612 = vpack.c.bf16 %v1581, %v1580
      %v1613 = vpack.c.bf16 %v1583, %v1582
      %v1614 = vpack.c.bf16 %v1585, %v1584
      %v1615 = vpack.c.bf16 %v1587, %v1586
      %v1616 = vpack.c.bf16 %v1589, %v1588
      %v1617 = vpack.c.bf16 %v1591, %v1590
      %v1618 = vpack.c.bf16 %v1593, %v1592
      %v1619 = vpack.c.bf16 %v1595, %v1594
      %v1620 = vpack.c.bf16 %v1597, %v1596
      %v1621 = vpack.c.bf16 %v1599, %v1598
      %v1622 = vpack.c.bf16 %v1601, %v1600
      %v1623 = vpack.c.bf16 %v1603, %v1602
      %v1624 = vpack.c.bf16 %v1605, %v1604
      %v1625 = vpack.c.bf16 %v1607, %v1606
      %v1626 = vpack.c.bf16 %v1609, %v1608
      %v1627 = vpack.c.bf16 %v1611, %v1610
      %s1628 = scalar_lea.vmem %s1, 20
      %v1629 = vld [vmem:[%s1628] sm:$0xf]
      %v1631 = vsel %vm271, %v1612, 0
      %v1634 = vsel %vm271, %v1613, 0
      %v1637 = vsel %vm271, %v1614, 0
      %v1640 = vsel %vm271, %v1615, 0
      %v1643 = vsel %vm271, %v1616, 0
      %v1646 = vsel %vm271, %v1617, 0
      %v1649 = vsel %vm271, %v1618, 0
      %v1652 = vsel %vm271, %v1619, 0
      %v1655 = vsel %vm271, %v1620, 0
      %v1658 = vsel %vm271, %v1621, 0
      %v1661 = vsel %vm271, %v1622, 0
      %v1664 = vsel %vm271, %v1623, 0
      %v1667 = vsel %vm271, %v1624, 0
      %v1670 = vsel %vm271, %v1625, 0
      %v1673 = vsel %vm271, %v1626, 0
      %v1676 = vsel %vm271, %v1627, 0
      %v1679 = vsel %vm320, %v1629, 0
      %1681 = vmatprep.subr.bf16.mxu0 0
      %1682 = vmatpush1.bf16.msra.mxu0 %v1679
      %1683 = vmatprep.subr.bf16.mxu0 0
      %1684 = vmatpush1.bf16.msra.mxu0 0
      %1685 = vmatprep.subr.bf16.mxu0 0
      %1686 = vmatpush1.bf16.msra.mxu0 0
      %1687 = vmatprep.subr.bf16.mxu0 0
      %1688 = vmatpush1.bf16.msra.mxu0 0
      %1689 = vmatprep.subr.bf16.mxu0 0
      %1690 = vmatpush1.bf16.msra.mxu0 0
      %1691 = vmatprep.subr.bf16.mxu0 0
      %1692 = vmatpush1.bf16.msra.mxu0 0
      %1693 = vmatprep.subr.bf16.mxu0 0
      %1694 = vmatpush1.bf16.msra.mxu0 0
      %1695 = vmatprep.subr.bf16.mxu0 0
      %1696 = vmatpush1.bf16.msra.mxu0 0
      %1697 = vmatprep.subr.bf16.mxu0 0
      %1698 = vmatpush1.bf16.msra.mxu0 0
      %1699 = vmatprep.subr.bf16.mxu0 0
      %1700 = vmatpush1.bf16.msra.mxu0 0
      %1701 = vmatprep.subr.bf16.mxu0 0
      %1702 = vmatpush1.bf16.msra.mxu0 0
      %1703 = vmatprep.subr.bf16.mxu0 0
      %1704 = vmatpush1.bf16.msra.mxu0 0
      %1705 = vmatprep.subr.bf16.mxu0 0
      %1706 = vmatpush1.bf16.msra.mxu0 0
      %1707 = vmatprep.subr.bf16.mxu0 0
      %1708 = vmatpush1.bf16.msra.mxu0 0
      %1709 = vmatprep.subr.bf16.mxu0 0
      %1710 = vmatpush1.bf16.msra.mxu0 0
      %1711 = vmatprep.subr.bf16.mxu0 0
      %1712 = vmatpush1.bf16.msra.mxu0 0
      %1713 = vmatprep.mubr.bf16.mxu0 0
      %1714 = vmatmul.mubr.bf16.gmra.mrb[0].mxu0 %v1631
      %v1715 = vpop.f32.mrb[0].mxu0
      %v1716 = vadd.f32 0.0, %v1715
      %v1717 = vpop.f32.mrb[0].mxu0
      %v1718 = vpop.f32.mrb[0].mxu0
      %v1719 = vadd.f32 0.0, %v1718
      %v1720 = vpop.f32.mrb[0].mxu0
      %1721 = vmatprep.mubr.bf16.mxu0 0
      %1722 = vmatmul.mubr.bf16.gmra.mrb[0].mxu0 %v1634
      %v1723 = vpop.f32.mrb[0].mxu0
      %v1724 = vadd.f32 0.0, %v1723
      %v1725 = vpop.f32.mrb[0].mxu0
      %v1726 = vpop.f32.mrb[0].mxu0
      %v1727 = vadd.f32 0.0, %v1726
      %v1728 = vpop.f32.mrb[0].mxu0
      %1729 = vmatprep.mubr.bf16.mxu0 0
      %1730 = vmatmul.mubr.bf16.gmra.mrb[0].mxu0 %v1637
      %v1731 = vpop.f32.mrb[0].mxu0
      %v1732 = vadd.f32 0.0, %v1731
      %v1733 = vpop.f32.mrb[0].mxu0
      %v1734 = vpop.f32.mrb[0].mxu0
      %v1735 = vadd.f32 0.0, %v1734
      %v1736 = vpop.f32.mrb[0].mxu0
      %1737 = vmatprep.mubr.bf16.mxu0 0
      %1738 = vmatmul.mubr.bf16.gmra.mrb[0].mxu0 %v1640
      %v1739 = vpop.f32.mrb[0].mxu0
      %v1740 = vadd.f32 0.0, %v1739
      %v1741 = vpop.f32.mrb[0].mxu0
      %v1742 = vpop.f32.mrb[0].mxu0
      %v1743 = vadd.f32 0.0, %v1742
      %v1744 = vpop.f32.mrb[0].mxu0
      %1745 = vmatprep.mubr.bf16.mxu0 0
      %1746 = vmatmul.mubr.bf16.gmra.mrb[0].mxu0 %v1643
      %v1747 = vpop.f32.mrb[0].mxu0
      %v1748 = vadd.f32 0.0, %v1747
      %v1749 = vpop.f32.mrb[0].mxu0
      %v1750 = vpop.f32.mrb[0].mxu0
      %v1751 = vadd.f32 0.0, %v1750
      %v1752 = vpop.f32.mrb[0].mxu0
      %1753 = vmatprep.mubr.bf16.mxu0 0
      %1754 = vmatmul.mubr.bf16.gmra.mrb[0].mxu0 %v1646
      %v1755 = vpop.f32.mrb[0].mxu0
      %v1756 = vadd.f32 0.0, %v1755
      %v1757 = vpop.f32.mrb[0].mxu0
      %v1758 = vpop.f32.mrb[0].mxu0
      %v1759 = vadd.f32 0.0, %v1758
      %v1760 = vpop.f32.mrb[0].mxu0
      %1761 = vmatprep.mubr.bf16.mxu0 0
      %1762 = vmatmul.mubr.bf16.gmra.mrb[0].mxu0 %v1649
      %v1763 = vpop.f32.mrb[0].mxu0
      %v1764 = vadd.f32 0.0, %v1763
      %v1765 = vpop.f32.mrb[0].mxu0
      %v1766 = vpop.f32.mrb[0].mxu0
      %v1767 = vadd.f32 0.0, %v1766
      %v1768 = vpop.f32.mrb[0].mxu0
      %1769 = vmatprep.mubr.bf16.mxu0 0
      %1770 = vmatmul.mubr.bf16.gmra.mrb[0].mxu0 %v1652
      %v1771 = vpop.f32.mrb[0].mxu0
      %v1772 = vadd.f32 0.0, %v1771
      %v1773 = vpop.f32.mrb[0].mxu0
      %v1774 = vpop.f32.mrb[0].mxu0
      %v1775 = vadd.f32 0.0, %v1774
      %v1776 = vpop.f32.mrb[0].mxu0
      %1777 = vmatprep.mubr.bf16.mxu0 0
      %1778 = vmatmul.mubr.bf16.gmra.mrb[0].mxu0 %v1655
      %v1779 = vpop.f32.mrb[0].mxu0
      %v1780 = vadd.f32 0.0, %v1779
      %v1781 = vpop.f32.mrb[0].mxu0
      %v1782 = vpop.f32.mrb[0].mxu0
      %v1783 = vadd.f32 0.0, %v1782
      %v1784 = vpop.f32.mrb[0].mxu0
      %1785 = vmatprep.mubr.bf16.mxu0 0
      %1786 = vmatmul.mubr.bf16.gmra.mrb[0].mxu0 %v1658
      %v1787 = vpop.f32.mrb[0].mxu0
      %v1788 = vadd.f32 0.0, %v1787
      %v1789 = vpop.f32.mrb[0].mxu0
      %v1790 = vpop.f32.mrb[0].mxu0
      %v1791 = vadd.f32 0.0, %v1790
      %v1792 = vpop.f32.mrb[0].mxu0
      %1793 = vmatprep.mubr.bf16.mxu0 0
      %1794 = vmatmul.mubr.bf16.gmra.mrb[0].mxu0 %v1661
      %v1795 = vpop.f32.mrb[0].mxu0
      %v1796 = vadd.f32 0.0, %v1795
      %v1797 = vpop.f32.mrb[0].mxu0
      %v1798 = vpop.f32.mrb[0].mxu0
      %v1799 = vadd.f32 0.0, %v1798
      %v1800 = vpop.f32.mrb[0].mxu0
      %1801 = vmatprep.mubr.bf16.mxu0 0
      %1802 = vmatmul.mubr.bf16.gmra.mrb[0].mxu0 %v1664
      %v1803 = vpop.f32.mrb[0].mxu0
      %v1804 = vadd.f32 0.0, %v1803
      %v1805 = vpop.f32.mrb[0].mxu0
      %v1806 = vpop.f32.mrb[0].mxu0
      %v1807 = vadd.f32 0.0, %v1806
      %v1808 = vpop.f32.mrb[0].mxu0
      %1809 = vmatprep.mubr.bf16.mxu0 0
      %1810 = vmatmul.mubr.bf16.gmra.mrb[0].mxu0 %v1667
      %v1811 = vpop.f32.mrb[0].mxu0
      %v1812 = vadd.f32 0.0, %v1811
      %v1813 = vpop.f32.mrb[0].mxu0
      %v1814 = vpop.f32.mrb[0].mxu0
      %v1815 = vadd.f32 0.0, %v1814
      %v1816 = vpop.f32.mrb[0].mxu0
      %1817 = vmatprep.mubr.bf16.mxu0 0
      %1818 = vmatmul.mubr.bf16.gmra.mrb[0].mxu0 %v1670
      %v1819 = vpop.f32.mrb[0].mxu0
      %v1820 = vadd.f32 0.0, %v1819
      %v1821 = vpop.f32.mrb[0].mxu0
      %v1822 = vpop.f32.mrb[0].mxu0
      %v1823 = vadd.f32 0.0, %v1822
      %v1824 = vpop.f32.mrb[0].mxu0
      %1825 = vmatprep.mubr.bf16.mxu0 0
      %1826 = vmatmul.mubr.bf16.gmra.mrb[0].mxu0 %v1673
      %v1827 = vpop.f32.mrb[0].mxu0
      %v1828 = vadd.f32 0.0, %v1827
      %v1829 = vpop.f32.mrb[0].mxu0
      %v1830 = vpop.f32.mrb[0].mxu0
      %v1831 = vadd.f32 0.0, %v1830
      %v1832 = vpop.f32.mrb[0].mxu0
      %1833 = vmatprep.mubr.bf16.mxu0 0
      %1834 = vmatmul.mubr.bf16.gmra.mrb[0].mxu0 %v1676
      %v1835 = vpop.f32.mrb[0].mxu0
      %v1836 = vadd.f32 0.0, %v1835
      %v1837 = vpop.f32.mrb[0].mxu0
      %v1838 = vpop.f32.mrb[0].mxu0
      %v1839 = vadd.f32 0.0, %v1838
      %v1840 = vpop.f32.mrb[0].mxu0
      %1841 = vdwg.mxu0
      %v1842 = vadd.f32 %v1548, %v1716
      %v1843 = vadd.f32 %v1549, %v1719
      %v1844 = vadd.f32 %v1550, %v1724
      %v1845 = vadd.f32 %v1551, %v1727
      %v1846 = vadd.f32 %v1552, %v1732
      %v1847 = vadd.f32 %v1553, %v1735
      %v1848 = vadd.f32 %v1554, %v1740
      %v1849 = vadd.f32 %v1555, %v1743
      %v1850 = vadd.f32 %v1556, %v1748
      %v1851 = vadd.f32 %v1557, %v1751
      %v1852 = vadd.f32 %v1558, %v1756
      %v1853 = vadd.f32 %v1559, %v1759
      %v1854 = vadd.f32 %v1560, %v1764
      %v1855 = vadd.f32 %v1561, %v1767
      %v1856 = vadd.f32 %v1562, %v1772
      %v1857 = vadd.f32 %v1563, %v1775
      %v1858 = vadd.f32 %v1564, %v1780
      %v1859 = vadd.f32 %v1565, %v1783
      %v1860 = vadd.f32 %v1566, %v1788
      %v1861 = vadd.f32 %v1567, %v1791
      %v1862 = vadd.f32 %v1568, %v1796
      %v1863 = vadd.f32 %v1569, %v1799
      %v1864 = vadd.f32 %v1570, %v1804
      %v1865 = vadd.f32 %v1571, %v1807
      %v1866 = vadd.f32 %v1572, %v1812
      %v1867 = vadd.f32 %v1573, %v1815
      %v1868 = vadd.f32 %v1574, %v1820
      %v1869 = vadd.f32 %v1575, %v1823
      %v1870 = vadd.f32 %v1576, %v1828
      %v1871 = vadd.f32 %v1577, %v1831
      %v1872 = vadd.f32 %v1578, %v1836
      %v1873 = vadd.f32 %v1579, %v1839
      %s1874 = scalar_lea.vmem %s165, 48
      %v1875 = vld [vmem:[%s1874] sm:$0xff]
      %v1876 = vld [vmem:[%s1874 + $0x8] sm:$0xff]
      %v1877 = vld [vmem:[%s1874 + $0x18] sm:$0xff]
      %v1878 = vld [vmem:[%s1874 + $0x20] sm:$0xff]
      %v1879 = vld [vmem:[%s1874 + $0x30] sm:$0xff]
      %v1880 = vld [vmem:[%s1874 + $0x38] sm:$0xff]
      %v1881 = vld [vmem:[%s1874 + $0x48] sm:$0xff]
      %v1882 = vld [vmem:[%s1874 + $0x50] sm:$0xff]
      %v1883 = vld [vmem:[%s1874 + $0x60] sm:$0xff]
      %v1884 = vld [vmem:[%s1874 + $0x68] sm:$0xff]
      %v1885 = vld [vmem:[%s1874 + $0x78] sm:$0xff]
      %v1886 = vld [vmem:[%s1874 + $0x80] sm:$0xff]
      %v1887 = vld [vmem:[%s1874 + $0x90] sm:$0xff]
      %v1888 = vld [vmem:[%s1874 + $0x98] sm:$0xff]
      %v1889 = vld [vmem:[%s1874 + $0xa8] sm:$0xff]
      %v1890 = vld [vmem:[%s1874 + $0xb0] sm:$0xff]
      %v1891 = vld [vmem:[%s1874 + $0xc0] sm:$0xff]
      %v1892 = vld [vmem:[%s1874 + $0xc8] sm:$0xff]
      %v1893 = vld [vmem:[%s1874 + $0xd8] sm:$0xff]
      %v1894 = vld [vmem:[%s1874 + $0xe0] sm:$0xff]
      %v1895 = vld [vmem:[%s1874 + $0xf0] sm:$0xff]
      %v1896 = vld [vmem:[%s1874 + $0xf8] sm:$0xff]
      %v1897 = vld [vmem:[%s1874 + $0x108] sm:$0xff]
      %v1898 = vld [vmem:[%s1874 + $0x110] sm:$0xff]
      %v1899 = vld [vmem:[%s1874 + $0x120] sm:$0xff]
      %v1900 = vld [vmem:[%s1874 + $0x128] sm:$0xff]
      %v1901 = vld [vmem:[%s1874 + $0x138] sm:$0xff]
      %v1902 = vld [vmem:[%s1874 + $0x140] sm:$0xff]
      %v1903 = vld [vmem:[%s1874 + $0x150] sm:$0xff]
      %v1904 = vld [vmem:[%s1874 + $0x158] sm:$0xff]
      %v1905 = vld [vmem:[%s1874 + $0x168] sm:$0xff]
      %v1906 = vld [vmem:[%s1874 + $0x170] sm:$0xff]
      %v1907 = vpack.c.bf16 %v1876, %v1875
      %v1908 = vpack.c.bf16 %v1878, %v1877
      %v1909 = vpack.c.bf16 %v1880, %v1879
      %v1910 = vpack.c.bf16 %v1882, %v1881
      %v1911 = vpack.c.bf16 %v1884, %v1883
      %v1912 = vpack.c.bf16 %v1886, %v1885
      %v1913 = vpack.c.bf16 %v1888, %v1887
      %v1914 = vpack.c.bf16 %v1890, %v1889
      %v1915 = vpack.c.bf16 %v1892, %v1891
      %v1916 = vpack.c.bf16 %v1894, %v1893
      %v1917 = vpack.c.bf16 %v1896, %v1895
      %v1918 = vpack.c.bf16 %v1898, %v1897
      %v1919 = vpack.c.bf16 %v1900, %v1899
      %v1920 = vpack.c.bf16 %v1902, %v1901
      %v1921 = vpack.c.bf16 %v1904, %v1903
      %v1922 = vpack.c.bf16 %v1906, %v1905
      %s1923 = scalar_lea.vmem %s1, 24
      %v1924 = vld [vmem:[%s1923] sm:$0xf]
      %v1926 = vsel %vm271, %v1907, 0
      %v1929 = vsel %vm271, %v1908, 0
      %v1932 = vsel %vm271, %v1909, 0
      %v1935 = vsel %vm271, %v1910, 0
      %v1938 = vsel %vm271, %v1911, 0
      %v1941 = vsel %vm271, %v1912, 0
      %v1944 = vsel %vm271, %v1913, 0
      %v1947 = vsel %vm271, %v1914, 0
      %v1950 = vsel %vm271, %v1915, 0
      %v1953 = vsel %vm271, %v1916, 0
      %v1956 = vsel %vm271, %v1917, 0
      %v1959 = vsel %vm271, %v1918, 0
      %v1962 = vsel %vm271, %v1919, 0
      %v1965 = vsel %vm271, %v1920, 0
      %v1968 = vsel %vm271, %v1921, 0
      %v1971 = vsel %vm271, %v1922, 0
      %v1974 = vsel %vm320, %v1924, 0
      %1976 = vmatprep.subr.bf16.mxu0 0
      %1977 = vmatpush1.bf16.msra.mxu0 %v1974
      %1978 = vmatprep.subr.bf16.mxu0 0
      %1979 = vmatpush1.bf16.msra.mxu0 0
      %1980 = vmatprep.subr.bf16.mxu0 0
      %1981 = vmatpush1.bf16.msra.mxu0 0
      %1982 = vmatprep.subr.bf16.mxu0 0
      %1983 = vmatpush1.bf16.msra.mxu0 0
      %1984 = vmatprep.subr.bf16.mxu0 0
      %1985 = vmatpush1.bf16.msra.mxu0 0
      %1986 = vmatprep.subr.bf16.mxu0 0
      %1987 = vmatpush1.bf16.msra.mxu0 0
      %1988 = vmatprep.subr.bf16.mxu0 0
      %1989 = vmatpush1.bf16.msra.mxu0 0
      %1990 = vmatprep.subr.bf16.mxu0 0
      %1991 = vmatpush1.bf16.msra.mxu0 0
      %1992 = vmatprep.subr.bf16.mxu0 0
      %1993 = vmatpush1.bf16.msra.mxu0 0
      %1994 = vmatprep.subr.bf16.mxu0 0
      %1995 = vmatpush1.bf16.msra.mxu0 0
      %1996 = vmatprep.subr.bf16.mxu0 0
      %1997 = vmatpush1.bf16.msra.mxu0 0
      %1998 = vmatprep.subr.bf16.mxu0 0
      %1999 = vmatpush1.bf16.msra.mxu0 0
      %2000 = vmatprep.subr.bf16.mxu0 0
      %2001 = vmatpush1.bf16.msra.mxu0 0
      %2002 = vmatprep.subr.bf16.mxu0 0
      %2003 = vmatpush1.bf16.msra.mxu0 0
      %2004 = vmatprep.subr.bf16.mxu0 0
      %2005 = vmatpush1.bf16.msra.mxu0 0
      %2006 = vmatprep.subr.bf16.mxu0 0
      %2007 = vmatpush1.bf16.msra.mxu0 0
      %2008 = vmatprep.mubr.bf16.mxu0 0
      %2009 = vmatmul.mubr.bf16.gmra.mrb[0].mxu0 %v1926
      %v2010 = vpop.f32.mrb[0].mxu0
      %v2011 = vadd.f32 0.0, %v2010
      %v2012 = vpop.f32.mrb[0].mxu0
      %v2013 = vpop.f32.mrb[0].mxu0
      %v2014 = vadd.f32 0.0, %v2013
      %v2015 = vpop.f32.mrb[0].mxu0
      %2016 = vmatprep.mubr.bf16.mxu0 0
      %2017 = vmatmul.mubr.bf16.gmra.mrb[0].mxu0 %v1929
      %v2018 = vpop.f32.mrb[0].mxu0
      %v2019 = vadd.f32 0.0, %v2018
      %v2020 = vpop.f32.mrb[0].mxu0
      %v2021 = vpop.f32.mrb[0].mxu0
      %v2022 = vadd.f32 0.0, %v2021
      %v2023 = vpop.f32.mrb[0].mxu0
      %2024 = vmatprep.mubr.bf16.mxu0 0
      %2025 = vmatmul.mubr.bf16.gmra.mrb[0].mxu0 %v1932
      %v2026 = vpop.f32.mrb[0].mxu0
      %v2027 = vadd.f32 0.0, %v2026
      %v2028 = vpop.f32.mrb[0].mxu0
      %v2029 = vpop.f32.mrb[0].mxu0
      %v2030 = vadd.f32 0.0, %v2029
      %v2031 = vpop.f32.mrb[0].mxu0
      %2032 = vmatprep.mubr.bf16.mxu0 0
      %2033 = vmatmul.mubr.bf16.gmra.mrb[0].mxu0 %v1935
      %v2034 = vpop.f32.mrb[0].mxu0
      %v2035 = vadd.f32 0.0, %v2034
      %v2036 = vpop.f32.mrb[0].mxu0
      %v2037 = vpop.f32.mrb[0].mxu0
      %v2038 = vadd.f32 0.0, %v2037
      %v2039 = vpop.f32.mrb[0].mxu0
      %2040 = vmatprep.mubr.bf16.mxu0 0
      %2041 = vmatmul.mubr.bf16.gmra.mrb[0].mxu0 %v1938
      %v2042 = vpop.f32.mrb[0].mxu0
      %v2043 = vadd.f32 0.0, %v2042
      %v2044 = vpop.f32.mrb[0].mxu0
      %v2045 = vpop.f32.mrb[0].mxu0
      %v2046 = vadd.f32 0.0, %v2045
      %v2047 = vpop.f32.mrb[0].mxu0
      %2048 = vmatprep.mubr.bf16.mxu0 0
      %2049 = vmatmul.mubr.bf16.gmra.mrb[0].mxu0 %v1941
      %v2050 = vpop.f32.mrb[0].mxu0
      %v2051 = vadd.f32 0.0, %v2050
      %v2052 = vpop.f32.mrb[0].mxu0
      %v2053 = vpop.f32.mrb[0].mxu0
      %v2054 = vadd.f32 0.0, %v2053
      %v2055 = vpop.f32.mrb[0].mxu0
      %2056 = vmatprep.mubr.bf16.mxu0 0
      %2057 = vmatmul.mubr.bf16.gmra.mrb[0].mxu0 %v1944
      %v2058 = vpop.f32.mrb[0].mxu0
      %v2059 = vadd.f32 0.0, %v2058
      %v2060 = vpop.f32.mrb[0].mxu0
      %v2061 = vpop.f32.mrb[0].mxu0
      %v2062 = vadd.f32 0.0, %v2061
      %v2063 = vpop.f32.mrb[0].mxu0
      %2064 = vmatprep.mubr.bf16.mxu0 0
      %2065 = vmatmul.mubr.bf16.gmra.mrb[0].mxu0 %v1947
      %v2066 = vpop.f32.mrb[0].mxu0
      %v2067 = vadd.f32 0.0, %v2066
      %v2068 = vpop.f32.mrb[0].mxu0
      %v2069 = vpop.f32.mrb[0].mxu0
      %v2070 = vadd.f32 0.0, %v2069
      %v2071 = vpop.f32.mrb[0].mxu0
      %2072 = vmatprep.mubr.bf16.mxu0 0
      %2073 = vmatmul.mubr.bf16.gmra.mrb[0].mxu0 %v1950
      %v2074 = vpop.f32.mrb[0].mxu0
      %v2075 = vadd.f32 0.0, %v2074
      %v2076 = vpop.f32.mrb[0].mxu0
      %v2077 = vpop.f32.mrb[0].mxu0
      %v2078 = vadd.f32 0.0, %v2077
      %v2079 = vpop.f32.mrb[0].mxu0
      %2080 = vmatprep.mubr.bf16.mxu0 0
      %2081 = vmatmul.mubr.bf16.gmra.mrb[0].mxu0 %v1953
      %v2082 = vpop.f32.mrb[0].mxu0
      %v2083 = vadd.f32 0.0, %v2082
      %v2084 = vpop.f32.mrb[0].mxu0
      %v2085 = vpop.f32.mrb[0].mxu0
      %v2086 = vadd.f32 0.0, %v2085
      %v2087 = vpop.f32.mrb[0].mxu0
      %2088 = vmatprep.mubr.bf16.mxu0 0
      %2089 = vmatmul.mubr.bf16.gmra.mrb[0].mxu0 %v1956
      %v2090 = vpop.f32.mrb[0].mxu0
      %v2091 = vadd.f32 0.0, %v2090
      %v2092 = vpop.f32.mrb[0].mxu0
      %v2093 = vpop.f32.mrb[0].mxu0
      %v2094 = vadd.f32 0.0, %v2093
      %v2095 = vpop.f32.mrb[0].mxu0
      %2096 = vmatprep.mubr.bf16.mxu0 0
      %2097 = vmatmul.mubr.bf16.gmra.mrb[0].mxu0 %v1959
      %v2098 = vpop.f32.mrb[0].mxu0
      %v2099 = vadd.f32 0.0, %v2098
      %v2100 = vpop.f32.mrb[0].mxu0
      %v2101 = vpop.f32.mrb[0].mxu0
      %v2102 = vadd.f32 0.0, %v2101
      %v2103 = vpop.f32.mrb[0].mxu0
      %2104 = vmatprep.mubr.bf16.mxu0 0
      %2105 = vmatmul.mubr.bf16.gmra.mrb[0].mxu0 %v1962
      %v2106 = vpop.f32.mrb[0].mxu0
      %v2107 = vadd.f32 0.0, %v2106
      %v2108 = vpop.f32.mrb[0].mxu0
      %v2109 = vpop.f32.mrb[0].mxu0
      %v2110 = vadd.f32 0.0, %v2109
      %v2111 = vpop.f32.mrb[0].mxu0
      %2112 = vmatprep.mubr.bf16.mxu0 0
      %2113 = vmatmul.mubr.bf16.gmra.mrb[0].mxu0 %v1965
      %v2114 = vpop.f32.mrb[0].mxu0
      %v2115 = vadd.f32 0.0, %v2114
      %v2116 = vpop.f32.mrb[0].mxu0
      %v2117 = vpop.f32.mrb[0].mxu0
      %v2118 = vadd.f32 0.0, %v2117
      %v2119 = vpop.f32.mrb[0].mxu0
      %2120 = vmatprep.mubr.bf16.mxu0 0
      %2121 = vmatmul.mubr.bf16.gmra.mrb[0].mxu0 %v1968
      %v2122 = vpop.f32.mrb[0].mxu0
      %v2123 = vadd.f32 0.0, %v2122
      %v2124 = vpop.f32.mrb[0].mxu0
      %v2125 = vpop.f32.mrb[0].mxu0
      %v2126 = vadd.f32 0.0, %v2125
      %v2127 = vpop.f32.mrb[0].mxu0
      %2128 = vmatprep.mubr.bf16.mxu0 0
      %2129 = vmatmul.mubr.bf16.gmra.mrb[0].mxu0 %v1971
      %v2130 = vpop.f32.mrb[0].mxu0
      %v2131 = vadd.f32 0.0, %v2130
      %v2132 = vpop.f32.mrb[0].mxu0
      %v2133 = vpop.f32.mrb[0].mxu0
      %v2134 = vadd.f32 0.0, %v2133
      %v2135 = vpop.f32.mrb[0].mxu0
      %2136 = vdwg.mxu0
      %v2137 = vadd.f32 %v1842, %v2011
      %v2138 = vadd.f32 %v1843, %v2014
      %v2139 = vadd.f32 %v1844, %v2019
      %v2140 = vadd.f32 %v1845, %v2022
      %v2141 = vadd.f32 %v1846, %v2027
      %v2142 = vadd.f32 %v1847, %v2030
      %v2143 = vadd.f32 %v1848, %v2035
      %v2144 = vadd.f32 %v1849, %v2038
      %v2145 = vadd.f32 %v1850, %v2043
      %v2146 = vadd.f32 %v1851, %v2046
      %v2147 = vadd.f32 %v1852, %v2051
      %v2148 = vadd.f32 %v1853, %v2054
      %v2149 = vadd.f32 %v1854, %v2059
      %v2150 = vadd.f32 %v1855, %v2062
      %v2151 = vadd.f32 %v1856, %v2067
      %v2152 = vadd.f32 %v1857, %v2070
      %v2153 = vadd.f32 %v1858, %v2075
      %v2154 = vadd.f32 %v1859, %v2078
      %v2155 = vadd.f32 %v1860, %v2083
      %v2156 = vadd.f32 %v1861, %v2086
      %v2157 = vadd.f32 %v1862, %v2091
      %v2158 = vadd.f32 %v1863, %v2094
      %v2159 = vadd.f32 %v1864, %v2099
      %v2160 = vadd.f32 %v1865, %v2102
      %v2161 = vadd.f32 %v1866, %v2107
      %v2162 = vadd.f32 %v1867, %v2110
      %v2163 = vadd.f32 %v1868, %v2115
      %v2164 = vadd.f32 %v1869, %v2118
      %v2165 = vadd.f32 %v1870, %v2123
      %v2166 = vadd.f32 %v1871, %v2126
      %v2167 = vadd.f32 %v1872, %v2131
      %v2168 = vadd.f32 %v1873, %v2134
      %v2169 = vld [vmem:[%s1874 + $0x1] sm:$0xff]
      %v2170 = vld [vmem:[%s1874 + $0x9] sm:$0xff]
      %v2171 = vld [vmem:[%s1874 + $0x19] sm:$0xff]
      %v2172 = vld [vmem:[%s1874 + $0x21] sm:$0xff]
      %v2173 = vld [vmem:[%s1874 + $0x31] sm:$0xff]
      %v2174 = vld [vmem:[%s1874 + $0x39] sm:$0xff]
      %v2175 = vld [vmem:[%s1874 + $0x49] sm:$0xff]
      %v2176 = vld [vmem:[%s1874 + $0x51] sm:$0xff]
      %v2177 = vld [vmem:[%s1874 + $0x61] sm:$0xff]
      %v2178 = vld [vmem:[%s1874 + $0x69] sm:$0xff]
      %v2179 = vld [vmem:[%s1874 + $0x79] sm:$0xff]
      %v2180 = vld [vmem:[%s1874 + $0x81] sm:$0xff]
      %v2181 = vld [vmem:[%s1874 + $0x91] sm:$0xff]
      %v2182 = vld [vmem:[%s1874 + $0x99] sm:$0xff]
      %v2183 = vld [vmem:[%s1874 + $0xa9] sm:$0xff]
      %v2184 = vld [vmem:[%s1874 + $0xb1] sm:$0xff]
      %v2185 = vld [vmem:[%s1874 + $0xc1] sm:$0xff]
      %v2186 = vld [vmem:[%s1874 + $0xc9] sm:$0xff]
      %v2187 = vld [vmem:[%s1874 + $0xd9] sm:$0xff]
      %v2188 = vld [vmem:[%s1874 + $0xe1] sm:$0xff]
      %v2189 = vld [vmem:[%s1874 + $0xf1] sm:$0xff]
      %v2190 = vld [vmem:[%s1874 + $0xf9] sm:$0xff]
      %v2191 = vld [vmem:[%s1874 + $0x109] sm:$0xff]
      %v2192 = vld [vmem:[%s1874 + $0x111] sm:$0xff]
      %v2193 = vld [vmem:[%s1874 + $0x121] sm:$0xff]
      %v2194 = vld [vmem:[%s1874 + $0x129] sm:$0xff]
      %v2195 = vld [vmem:[%s1874 + $0x139] sm:$0xff]
      %v2196 = vld [vmem:[%s1874 + $0x141] sm:$0xff]
      %v2197 = vld [vmem:[%s1874 + $0x151] sm:$0xff]
      %v2198 = vld [vmem:[%s1874 + $0x159] sm:$0xff]
      %v2199 = vld [vmem:[%s1874 + $0x169] sm:$0xff]
      %v2200 = vld [vmem:[%s1874 + $0x171] sm:$0xff]
      %v2201 = vpack.c.bf16 %v2170, %v2169
      %v2202 = vpack.c.bf16 %v2172, %v2171
      %v2203 = vpack.c.bf16 %v2174, %v2173
      %v2204 = vpack.c.bf16 %v2176, %v2175
      %v2205 = vpack.c.bf16 %v2178, %v2177
      %v2206 = vpack.c.bf16 %v2180, %v2179
      %v2207 = vpack.c.bf16 %v2182, %v2181
      %v2208 = vpack.c.bf16 %v2184, %v2183
      %v2209 = vpack.c.bf16 %v2186, %v2185
      %v2210 = vpack.c.bf16 %v2188, %v2187
      %v2211 = vpack.c.bf16 %v2190, %v2189
      %v2212 = vpack.c.bf16 %v2192, %v2191
      %v2213 = vpack.c.bf16 %v2194, %v2193
      %v2214 = vpack.c.bf16 %v2196, %v2195
      %v2215 = vpack.c.bf16 %v2198, %v2197
      %v2216 = vpack.c.bf16 %v2200, %v2199
      %s2217 = scalar_lea.vmem %s1, 28
      %v2218 = vld [vmem:[%s2217] sm:$0xf]
      %v2220 = vsel %vm271, %v2201, 0
      %v2223 = vsel %vm271, %v2202, 0
      %v2226 = vsel %vm271, %v2203, 0
      %v2229 = vsel %vm271, %v2204, 0
      %v2232 = vsel %vm271, %v2205, 0
      %v2235 = vsel %vm271, %v2206, 0
      %v2238 = vsel %vm271, %v2207, 0
      %v2241 = vsel %vm271, %v2208, 0
      %v2244 = vsel %vm271, %v2209, 0
      %v2247 = vsel %vm271, %v2210, 0
      %v2250 = vsel %vm271, %v2211, 0
      %v2253 = vsel %vm271, %v2212, 0
      %v2256 = vsel %vm271, %v2213, 0
      %v2259 = vsel %vm271, %v2214, 0
      %v2262 = vsel %vm271, %v2215, 0
      %v2265 = vsel %vm271, %v2216, 0
      %v2268 = vsel %vm320, %v2218, 0
      %2270 = vmatprep.subr.bf16.mxu0 0
      %2271 = vmatpush1.bf16.msra.mxu0 %v2268
      %2272 = vmatprep.subr.bf16.mxu0 0
      %2273 = vmatpush1.bf16.msra.mxu0 0
      %2274 = vmatprep.subr.bf16.mxu0 0
      %2275 = vmatpush1.bf16.msra.mxu0 0
      %2276 = vmatprep.subr.bf16.mxu0 0
      %2277 = vmatpush1.bf16.msra.mxu0 0
      %2278 = vmatprep.subr.bf16.mxu0 0
      %2279 = vmatpush1.bf16.msra.mxu0 0
      %2280 = vmatprep.subr.bf16.mxu0 0
      %2281 = vmatpush1.bf16.msra.mxu0 0
      %2282 = vmatprep.subr.bf16.mxu0 0
      %2283 = vmatpush1.bf16.msra.mxu0 0
      %2284 = vmatprep.subr.bf16.mxu0 0
      %2285 = vmatpush1.bf16.msra.mxu0 0
      %2286 = vmatprep.subr.bf16.mxu0 0
      %2287 = vmatpush1.bf16.msra.mxu0 0
      %2288 = vmatprep.subr.bf16.mxu0 0
      %2289 = vmatpush1.bf16.msra.mxu0 0
      %2290 = vmatprep.subr.bf16.mxu0 0
      %2291 = vmatpush1.bf16.msra.mxu0 0
      %2292 = vmatprep.subr.bf16.mxu0 0
      %2293 = vmatpush1.bf16.msra.mxu0 0
      %2294 = vmatprep.subr.bf16.mxu0 0
      %2295 = vmatpush1.bf16.msra.mxu0 0
      %2296 = vmatprep.subr.bf16.mxu0 0
      %2297 = vmatpush1.bf16.msra.mxu0 0
      %2298 = vmatprep.subr.bf16.mxu0 0
      %2299 = vmatpush1.bf16.msra.mxu0 0
      %2300 = vmatprep.subr.bf16.mxu0 0
      %2301 = vmatpush1.bf16.msra.mxu0 0
      %2302 = vmatprep.mubr.bf16.mxu0 0
      %2303 = vmatmul.mubr.bf16.gmra.mrb[0].mxu0 %v2220
      %v2304 = vpop.f32.mrb[0].mxu0
      %v2305 = vadd.f32 0.0, %v2304
      %v2306 = vpop.f32.mrb[0].mxu0
      %v2307 = vpop.f32.mrb[0].mxu0
      %v2308 = vadd.f32 0.0, %v2307
      %v2309 = vpop.f32.mrb[0].mxu0
      %2310 = vmatprep.mubr.bf16.mxu0 0
      %2311 = vmatmul.mubr.bf16.gmra.mrb[0].mxu0 %v2223
      %v2312 = vpop.f32.mrb[0].mxu0
      %v2313 = vadd.f32 0.0, %v2312
      %v2314 = vpop.f32.mrb[0].mxu0
      %v2315 = vpop.f32.mrb[0].mxu0
      %v2316 = vadd.f32 0.0, %v2315
      %v2317 = vpop.f32.mrb[0].mxu0
      %2318 = vmatprep.mubr.bf16.mxu0 0
      %2319 = vmatmul.mubr.bf16.gmra.mrb[0].mxu0 %v2226
      %v2320 = vpop.f32.mrb[0].mxu0
      %v2321 = vadd.f32 0.0, %v2320
      %v2322 = vpop.f32.mrb[0].mxu0
      %v2323 = vpop.f32.mrb[0].mxu0
      %v2324 = vadd.f32 0.0, %v2323
      %v2325 = vpop.f32.mrb[0].mxu0
      %2326 = vmatprep.mubr.bf16.mxu0 0
      %2327 = vmatmul.mubr.bf16.gmra.mrb[0].mxu0 %v2229
      %v2328 = vpop.f32.mrb[0].mxu0
      %v2329 = vadd.f32 0.0, %v2328
      %v2330 = vpop.f32.mrb[0].mxu0
      %v2331 = vpop.f32.mrb[0].mxu0
      %v2332 = vadd.f32 0.0, %v2331
      %v2333 = vpop.f32.mrb[0].mxu0
      %2334 = vmatprep.mubr.bf16.mxu0 0
      %2335 = vmatmul.mubr.bf16.gmra.mrb[0].mxu0 %v2232
      %v2336 = vpop.f32.mrb[0].mxu0
      %v2337 = vadd.f32 0.0, %v2336
      %v2338 = vpop.f32.mrb[0].mxu0
      %v2339 = vpop.f32.mrb[0].mxu0
      %v2340 = vadd.f32 0.0, %v2339
      %v2341 = vpop.f32.mrb[0].mxu0
      %2342 = vmatprep.mubr.bf16.mxu0 0
      %2343 = vmatmul.mubr.bf16.gmra.mrb[0].mxu0 %v2235
      %v2344 = vpop.f32.mrb[0].mxu0
      %v2345 = vadd.f32 0.0, %v2344
      %v2346 = vpop.f32.mrb[0].mxu0
      %v2347 = vpop.f32.mrb[0].mxu0
      %v2348 = vadd.f32 0.0, %v2347
      %v2349 = vpop.f32.mrb[0].mxu0
      %2350 = vmatprep.mubr.bf16.mxu0 0
      %2351 = vmatmul.mubr.bf16.gmra.mrb[0].mxu0 %v2238
      %v2352 = vpop.f32.mrb[0].mxu0
      %v2353 = vadd.f32 0.0, %v2352
      %v2354 = vpop.f32.mrb[0].mxu0
      %v2355 = vpop.f32.mrb[0].mxu0
      %v2356 = vadd.f32 0.0, %v2355
      %v2357 = vpop.f32.mrb[0].mxu0
      %2358 = vmatprep.mubr.bf16.mxu0 0
      %2359 = vmatmul.mubr.bf16.gmra.mrb[0].mxu0 %v2241
      %v2360 = vpop.f32.mrb[0].mxu0
      %v2361 = vadd.f32 0.0, %v2360
      %v2362 = vpop.f32.mrb[0].mxu0
      %v2363 = vpop.f32.mrb[0].mxu0
      %v2364 = vadd.f32 0.0, %v2363
      %v2365 = vpop.f32.mrb[0].mxu0
      %2366 = vmatprep.mubr.bf16.mxu0 0
      %2367 = vmatmul.mubr.bf16.gmra.mrb[0].mxu0 %v2244
      %v2368 = vpop.f32.mrb[0].mxu0
      %v2369 = vadd.f32 0.0, %v2368
      %v2370 = vpop.f32.mrb[0].mxu0
      %v2371 = vpop.f32.mrb[0].mxu0
      %v2372 = vadd.f32 0.0, %v2371
      %v2373 = vpop.f32.mrb[0].mxu0
      %2374 = vmatprep.mubr.bf16.mxu0 0
      %2375 = vmatmul.mubr.bf16.gmra.mrb[0].mxu0 %v2247
      %v2376 = vpop.f32.mrb[0].mxu0
      %v2377 = vadd.f32 0.0, %v2376
      %v2378 = vpop.f32.mrb[0].mxu0
      %v2379 = vpop.f32.mrb[0].mxu0
      %v2380 = vadd.f32 0.0, %v2379
      %v2381 = vpop.f32.mrb[0].mxu0
      %2382 = vmatprep.mubr.bf16.mxu0 0
      %2383 = vmatmul.mubr.bf16.gmra.mrb[0].mxu0 %v2250
      %v2384 = vpop.f32.mrb[0].mxu0
      %v2385 = vadd.f32 0.0, %v2384
      %v2386 = vpop.f32.mrb[0].mxu0
      %v2387 = vpop.f32.mrb[0].mxu0
      %v2388 = vadd.f32 0.0, %v2387
      %v2389 = vpop.f32.mrb[0].mxu0
      %2390 = vmatprep.mubr.bf16.mxu0 0
      %2391 = vmatmul.mubr.bf16.gmra.mrb[0].mxu0 %v2253
      %v2392 = vpop.f32.mrb[0].mxu0
      %v2393 = vadd.f32 0.0, %v2392
      %v2394 = vpop.f32.mrb[0].mxu0
      %v2395 = vpop.f32.mrb[0].mxu0
      %v2396 = vadd.f32 0.0, %v2395
      %v2397 = vpop.f32.mrb[0].mxu0
      %2398 = vmatprep.mubr.bf16.mxu0 0
      %2399 = vmatmul.mubr.bf16.gmra.mrb[0].mxu0 %v2256
      %v2400 = vpop.f32.mrb[0].mxu0
      %v2401 = vadd.f32 0.0, %v2400
      %v2402 = vpop.f32.mrb[0].mxu0
      %v2403 = vpop.f32.mrb[0].mxu0
      %v2404 = vadd.f32 0.0, %v2403
      %v2405 = vpop.f32.mrb[0].mxu0
      %2406 = vmatprep.mubr.bf16.mxu0 0
      %2407 = vmatmul.mubr.bf16.gmra.mrb[0].mxu0 %v2259
      %v2408 = vpop.f32.mrb[0].mxu0
      %v2409 = vadd.f32 0.0, %v2408
      %v2410 = vpop.f32.mrb[0].mxu0
      %v2411 = vpop.f32.mrb[0].mxu0
      %v2412 = vadd.f32 0.0, %v2411
      %v2413 = vpop.f32.mrb[0].mxu0
      %2414 = vmatprep.mubr.bf16.mxu0 0
      %2415 = vmatmul.mubr.bf16.gmra.mrb[0].mxu0 %v2262
      %v2416 = vpop.f32.mrb[0].mxu0
      %v2417 = vadd.f32 0.0, %v2416
      %v2418 = vpop.f32.mrb[0].mxu0
      %v2419 = vpop.f32.mrb[0].mxu0
      %v2420 = vadd.f32 0.0, %v2419
      %v2421 = vpop.f32.mrb[0].mxu0
      %2422 = vmatprep.mubr.bf16.mxu0 0
      %2423 = vmatmul.mubr.bf16.gmra.mrb[0].mxu0 %v2265
      %v2424 = vpop.f32.mrb[0].mxu0
      %v2425 = vadd.f32 0.0, %v2424
      %v2426 = vpop.f32.mrb[0].mxu0
      %v2427 = vpop.f32.mrb[0].mxu0
      %v2428 = vadd.f32 0.0, %v2427
      %v2429 = vpop.f32.mrb[0].mxu0
      %2430 = vdwg.mxu0
      %v2431 = vadd.f32 %v2137, %v2305
      %v2432 = vadd.f32 %v2138, %v2308
      %v2433 = vadd.f32 %v2139, %v2313
      %v2434 = vadd.f32 %v2140, %v2316
      %v2435 = vadd.f32 %v2141, %v2321
      %v2436 = vadd.f32 %v2142, %v2324
      %v2437 = vadd.f32 %v2143, %v2329
      %v2438 = vadd.f32 %v2144, %v2332
      %v2439 = vadd.f32 %v2145, %v2337
      %v2440 = vadd.f32 %v2146, %v2340
      %v2441 = vadd.f32 %v2147, %v2345
      %v2442 = vadd.f32 %v2148, %v2348
      %v2443 = vadd.f32 %v2149, %v2353
      %v2444 = vadd.f32 %v2150, %v2356
      %v2445 = vadd.f32 %v2151, %v2361
      %v2446 = vadd.f32 %v2152, %v2364
      %v2447 = vadd.f32 %v2153, %v2369
      %v2448 = vadd.f32 %v2154, %v2372
      %v2449 = vadd.f32 %v2155, %v2377
      %v2450 = vadd.f32 %v2156, %v2380
      %v2451 = vadd.f32 %v2157, %v2385
      %v2452 = vadd.f32 %v2158, %v2388
      %v2453 = vadd.f32 %v2159, %v2393
      %v2454 = vadd.f32 %v2160, %v2396
      %v2455 = vadd.f32 %v2161, %v2401
      %v2456 = vadd.f32 %v2162, %v2404
      %v2457 = vadd.f32 %v2163, %v2409
      %v2458 = vadd.f32 %v2164, %v2412
      %v2459 = vadd.f32 %v2165, %v2417
      %v2460 = vadd.f32 %v2166, %v2420
      %v2461 = vadd.f32 %v2167, %v2425
      %v2462 = vadd.f32 %v2168, %v2428
      %v2463 = vld [vmem:[%s1874 + $0x2] sm:$0xff]
      %v2464 = vld [vmem:[%s1874 + $0xa] sm:$0xff]
      %v2465 = vld [vmem:[%s1874 + $0x1a] sm:$0xff]
      %v2466 = vld [vmem:[%s1874 + $0x22] sm:$0xff]
      %v2467 = vld [vmem:[%s1874 + $0x32] sm:$0xff]
      %v2468 = vld [vmem:[%s1874 + $0x3a] sm:$0xff]
      %v2469 = vld [vmem:[%s1874 + $0x4a] sm:$0xff]
      %v2470 = vld [vmem:[%s1874 + $0x52] sm:$0xff]
      %v2471 = vld [vmem:[%s1874 + $0x62] sm:$0xff]
      %v2472 = vld [vmem:[%s1874 + $0x6a] sm:$0xff]
      %v2473 = vld [vmem:[%s1874 + $0x7a] sm:$0xff]
      %v2474 = vld [vmem:[%s1874 + $0x82] sm:$0xff]
      %v2475 = vld [vmem:[%s1874 + $0x92] sm:$0xff]
      %v2476 = vld [vmem:[%s1874 + $0x9a] sm:$0xff]
      %v2477 = vld [vmem:[%s1874 + $0xaa] sm:$0xff]
      %v2478 = vld [vmem:[%s1874 + $0xb2] sm:$0xff]
      %v2479 = vld [vmem:[%s1874 + $0xc2] sm:$0xff]
      %v2480 = vld [vmem:[%s1874 + $0xca] sm:$0xff]
      %v2481 = vld [vmem:[%s1874 + $0xda] sm:$0xff]
      %v2482 = vld [vmem:[%s1874 + $0xe2] sm:$0xff]
      %v2483 = vld [vmem:[%s1874 + $0xf2] sm:$0xff]
      %v2484 = vld [vmem:[%s1874 + $0xfa] sm:$0xff]
      %v2485 = vld [vmem:[%s1874 + $0x10a] sm:$0xff]
      %v2486 = vld [vmem:[%s1874 + $0x112] sm:$0xff]
      %v2487 = vld [vmem:[%s1874 + $0x122] sm:$0xff]
      %v2488 = vld [vmem:[%s1874 + $0x12a] sm:$0xff]
      %v2489 = vld [vmem:[%s1874 + $0x13a] sm:$0xff]
      %v2490 = vld [vmem:[%s1874 + $0x142] sm:$0xff]
      %v2491 = vld [vmem:[%s1874 + $0x152] sm:$0xff]
      %v2492 = vld [vmem:[%s1874 + $0x15a] sm:$0xff]
      %v2493 = vld [vmem:[%s1874 + $0x16a] sm:$0xff]
      %v2494 = vld [vmem:[%s1874 + $0x172] sm:$0xff]
      %v2495 = vpack.c.bf16 %v2464, %v2463
      %v2496 = vpack.c.bf16 %v2466, %v2465
      %v2497 = vpack.c.bf16 %v2468, %v2467
      %v2498 = vpack.c.bf16 %v2470, %v2469
      %v2499 = vpack.c.bf16 %v2472, %v2471
      %v2500 = vpack.c.bf16 %v2474, %v2473
      %v2501 = vpack.c.bf16 %v2476, %v2475
      %v2502 = vpack.c.bf16 %v2478, %v2477
      %v2503 = vpack.c.bf16 %v2480, %v2479
      %v2504 = vpack.c.bf16 %v2482, %v2481
      %v2505 = vpack.c.bf16 %v2484, %v2483
      %v2506 = vpack.c.bf16 %v2486, %v2485
      %v2507 = vpack.c.bf16 %v2488, %v2487
      %v2508 = vpack.c.bf16 %v2490, %v2489
      %v2509 = vpack.c.bf16 %v2492, %v2491
      %v2510 = vpack.c.bf16 %v2494, %v2493
      %s2511 = scalar_lea.vmem %s1, 32
      %v2512 = vld [vmem:[%s2511] sm:$0xf]
      %v2514 = vsel %vm271, %v2495, 0
      %v2517 = vsel %vm271, %v2496, 0
      %v2520 = vsel %vm271, %v2497, 0
      %v2523 = vsel %vm271, %v2498, 0
      %v2526 = vsel %vm271, %v2499, 0
      %v2529 = vsel %vm271, %v2500, 0
      %v2532 = vsel %vm271, %v2501, 0
      %v2535 = vsel %vm271, %v2502, 0
      %v2538 = vsel %vm271, %v2503, 0
      %v2541 = vsel %vm271, %v2504, 0
      %v2544 = vsel %vm271, %v2505, 0
      %v2547 = vsel %vm271, %v2506, 0
      %v2550 = vsel %vm271, %v2507, 0
      %v2553 = vsel %vm271, %v2508, 0
      %v2556 = vsel %vm271, %v2509, 0
      %v2559 = vsel %vm271, %v2510, 0
      %v2562 = vsel %vm320, %v2512, 0
      %2564 = vmatprep.subr.bf16.mxu0 0
      %2565 = vmatpush1.bf16.msra.mxu0 %v2562
      %2566 = vmatprep.subr.bf16.mxu0 0
      %2567 = vmatpush1.bf16.msra.mxu0 0
      %2568 = vmatprep.subr.bf16.mxu0 0
      %2569 = vmatpush1.bf16.msra.mxu0 0
      %2570 = vmatprep.subr.bf16.mxu0 0
      %2571 = vmatpush1.bf16.msra.mxu0 0
      %2572 = vmatprep.subr.bf16.mxu0 0
      %2573 = vmatpush1.bf16.msra.mxu0 0
      %2574 = vmatprep.subr.bf16.mxu0 0
      %2575 = vmatpush1.bf16.msra.mxu0 0
      %2576 = vmatprep.subr.bf16.mxu0 0
      %2577 = vmatpush1.bf16.msra.mxu0 0
      %2578 = vmatprep.subr.bf16.mxu0 0
      %2579 = vmatpush1.bf16.msra.mxu0 0
      %2580 = vmatprep.subr.bf16.mxu0 0
      %2581 = vmatpush1.bf16.msra.mxu0 0
      %2582 = vmatprep.subr.bf16.mxu0 0
      %2583 = vmatpush1.bf16.msra.mxu0 0
      %2584 = vmatprep.subr.bf16.mxu0 0
      %2585 = vmatpush1.bf16.msra.mxu0 0
      %2586 = vmatprep.subr.bf16.mxu0 0
      %2587 = vmatpush1.bf16.msra.mxu0 0
      %2588 = vmatprep.subr.bf16.mxu0 0
      %2589 = vmatpush1.bf16.msra.mxu0 0
      %2590 = vmatprep.subr.bf16.mxu0 0
      %2591 = vmatpush1.bf16.msra.mxu0 0
      %2592 = vmatprep.subr.bf16.mxu0 0
      %2593 = vmatpush1.bf16.msra.mxu0 0
      %2594 = vmatprep.subr.bf16.mxu0 0
      %2595 = vmatpush1.bf16.msra.mxu0 0
      %2596 = vmatprep.mubr.bf16.mxu0 0
      %2597 = vmatmul.mubr.bf16.gmra.mrb[0].mxu0 %v2514
      %v2598 = vpop.f32.mrb[0].mxu0
      %v2599 = vadd.f32 0.0, %v2598
      %v2600 = vpop.f32.mrb[0].mxu0
      %v2601 = vpop.f32.mrb[0].mxu0
      %v2602 = vadd.f32 0.0, %v2601
      %v2603 = vpop.f32.mrb[0].mxu0
      %2604 = vmatprep.mubr.bf16.mxu0 0
      %2605 = vmatmul.mubr.bf16.gmra.mrb[0].mxu0 %v2517
      %v2606 = vpop.f32.mrb[0].mxu0
      %v2607 = vadd.f32 0.0, %v2606
      %v2608 = vpop.f32.mrb[0].mxu0
      %v2609 = vpop.f32.mrb[0].mxu0
      %v2610 = vadd.f32 0.0, %v2609
      %v2611 = vpop.f32.mrb[0].mxu0
      %2612 = vmatprep.mubr.bf16.mxu0 0
      %2613 = vmatmul.mubr.bf16.gmra.mrb[0].mxu0 %v2520
      %v2614 = vpop.f32.mrb[0].mxu0
      %v2615 = vadd.f32 0.0, %v2614
      %v2616 = vpop.f32.mrb[0].mxu0
      %v2617 = vpop.f32.mrb[0].mxu0
      %v2618 = vadd.f32 0.0, %v2617
      %v2619 = vpop.f32.mrb[0].mxu0
      %2620 = vmatprep.mubr.bf16.mxu0 0
      %2621 = vmatmul.mubr.bf16.gmra.mrb[0].mxu0 %v2523
      %v2622 = vpop.f32.mrb[0].mxu0
      %v2623 = vadd.f32 0.0, %v2622
      %v2624 = vpop.f32.mrb[0].mxu0
      %v2625 = vpop.f32.mrb[0].mxu0
      %v2626 = vadd.f32 0.0, %v2625
      %v2627 = vpop.f32.mrb[0].mxu0
      %2628 = vmatprep.mubr.bf16.mxu0 0
      %2629 = vmatmul.mubr.bf16.gmra.mrb[0].mxu0 %v2526
      %v2630 = vpop.f32.mrb[0].mxu0
      %v2631 = vadd.f32 0.0, %v2630
      %v2632 = vpop.f32.mrb[0].mxu0
      %v2633 = vpop.f32.mrb[0].mxu0
      %v2634 = vadd.f32 0.0, %v2633
      %v2635 = vpop.f32.mrb[0].mxu0
      %2636 = vmatprep.mubr.bf16.mxu0 0
      %2637 = vmatmul.mubr.bf16.gmra.mrb[0].mxu0 %v2529
      %v2638 = vpop.f32.mrb[0].mxu0
      %v2639 = vadd.f32 0.0, %v2638
      %v2640 = vpop.f32.mrb[0].mxu0
      %v2641 = vpop.f32.mrb[0].mxu0
      %v2642 = vadd.f32 0.0, %v2641
      %v2643 = vpop.f32.mrb[0].mxu0
      %2644 = vmatprep.mubr.bf16.mxu0 0
      %2645 = vmatmul.mubr.bf16.gmra.mrb[0].mxu0 %v2532
      %v2646 = vpop.f32.mrb[0].mxu0
      %v2647 = vadd.f32 0.0, %v2646
      %v2648 = vpop.f32.mrb[0].mxu0
      %v2649 = vpop.f32.mrb[0].mxu0
      %v2650 = vadd.f32 0.0, %v2649
      %v2651 = vpop.f32.mrb[0].mxu0
      %2652 = vmatprep.mubr.bf16.mxu0 0
      %2653 = vmatmul.mubr.bf16.gmra.mrb[0].mxu0 %v2535
      %v2654 = vpop.f32.mrb[0].mxu0
      %v2655 = vadd.f32 0.0, %v2654
      %v2656 = vpop.f32.mrb[0].mxu0
      %v2657 = vpop.f32.mrb[0].mxu0
      %v2658 = vadd.f32 0.0, %v2657
      %v2659 = vpop.f32.mrb[0].mxu0
      %2660 = vmatprep.mubr.bf16.mxu0 0
      %2661 = vmatmul.mubr.bf16.gmra.mrb[0].mxu0 %v2538
      %v2662 = vpop.f32.mrb[0].mxu0
      %v2663 = vadd.f32 0.0, %v2662
      %v2664 = vpop.f32.mrb[0].mxu0
      %v2665 = vpop.f32.mrb[0].mxu0
      %v2666 = vadd.f32 0.0, %v2665
      %v2667 = vpop.f32.mrb[0].mxu0
      %2668 = vmatprep.mubr.bf16.mxu0 0
      %2669 = vmatmul.mubr.bf16.gmra.mrb[0].mxu0 %v2541
      %v2670 = vpop.f32.mrb[0].mxu0
      %v2671 = vadd.f32 0.0, %v2670
      %v2672 = vpop.f32.mrb[0].mxu0
      %v2673 = vpop.f32.mrb[0].mxu0
      %v2674 = vadd.f32 0.0, %v2673
      %v2675 = vpop.f32.mrb[0].mxu0
      %2676 = vmatprep.mubr.bf16.mxu0 0
      %2677 = vmatmul.mubr.bf16.gmra.mrb[0].mxu0 %v2544
      %v2678 = vpop.f32.mrb[0].mxu0
      %v2679 = vadd.f32 0.0, %v2678
      %v2680 = vpop.f32.mrb[0].mxu0
      %v2681 = vpop.f32.mrb[0].mxu0
      %v2682 = vadd.f32 0.0, %v2681
      %v2683 = vpop.f32.mrb[0].mxu0
      %2684 = vmatprep.mubr.bf16.mxu0 0
      %2685 = vmatmul.mubr.bf16.gmra.mrb[0].mxu0 %v2547
      %v2686 = vpop.f32.mrb[0].mxu0
      %v2687 = vadd.f32 0.0, %v2686
      %v2688 = vpop.f32.mrb[0].mxu0
      %v2689 = vpop.f32.mrb[0].mxu0
      %v2690 = vadd.f32 0.0, %v2689
      %v2691 = vpop.f32.mrb[0].mxu0
      %2692 = vmatprep.mubr.bf16.mxu0 0
      %2693 = vmatmul.mubr.bf16.gmra.mrb[0].mxu0 %v2550
      %v2694 = vpop.f32.mrb[0].mxu0
      %v2695 = vadd.f32 0.0, %v2694
      %v2696 = vpop.f32.mrb[0].mxu0
      %v2697 = vpop.f32.mrb[0].mxu0
      %v2698 = vadd.f32 0.0, %v2697
      %v2699 = vpop.f32.mrb[0].mxu0
      %2700 = vmatprep.mubr.bf16.mxu0 0
      %2701 = vmatmul.mubr.bf16.gmra.mrb[0].mxu0 %v2553
      %v2702 = vpop.f32.mrb[0].mxu0
      %v2703 = vadd.f32 0.0, %v2702
      %v2704 = vpop.f32.mrb[0].mxu0
      %v2705 = vpop.f32.mrb[0].mxu0
      %v2706 = vadd.f32 0.0, %v2705
      %v2707 = vpop.f32.mrb[0].mxu0
      %2708 = vmatprep.mubr.bf16.mxu0 0
      %2709 = vmatmul.mubr.bf16.gmra.mrb[0].mxu0 %v2556
      %v2710 = vpop.f32.mrb[0].mxu0
      %v2711 = vadd.f32 0.0, %v2710
      %v2712 = vpop.f32.mrb[0].mxu0
      %v2713 = vpop.f32.mrb[0].mxu0
      %v2714 = vadd.f32 0.0, %v2713
      %v2715 = vpop.f32.mrb[0].mxu0
      %2716 = vmatprep.mubr.bf16.mxu0 0
      %2717 = vmatmul.mubr.bf16.gmra.mrb[0].mxu0 %v2559
      %v2718 = vpop.f32.mrb[0].mxu0
      %v2719 = vadd.f32 0.0, %v2718
      %v2720 = vpop.f32.mrb[0].mxu0
      %v2721 = vpop.f32.mrb[0].mxu0
      %v2722 = vadd.f32 0.0, %v2721
      %v2723 = vpop.f32.mrb[0].mxu0
      %2724 = vdwg.mxu0
      %v2725 = vadd.f32 %v2431, %v2599
      %v2726 = vadd.f32 %v2432, %v2602
      %v2727 = vadd.f32 %v2433, %v2607
      %v2728 = vadd.f32 %v2434, %v2610
      %v2729 = vadd.f32 %v2435, %v2615
      %v2730 = vadd.f32 %v2436, %v2618
      %v2731 = vadd.f32 %v2437, %v2623
      %v2732 = vadd.f32 %v2438, %v2626
      %v2733 = vadd.f32 %v2439, %v2631
      %v2734 = vadd.f32 %v2440, %v2634
      %v2735 = vadd.f32 %v2441, %v2639
      %v2736 = vadd.f32 %v2442, %v2642
      %v2737 = vadd.f32 %v2443, %v2647
      %v2738 = vadd.f32 %v2444, %v2650
      %v2739 = vadd.f32 %v2445, %v2655
      %v2740 = vadd.f32 %v2446, %v2658
      %v2741 = vadd.f32 %v2447, %v2663
      %v2742 = vadd.f32 %v2448, %v2666
      %v2743 = vadd.f32 %v2449, %v2671
      %v2744 = vadd.f32 %v2450, %v2674
      %v2745 = vadd.f32 %v2451, %v2679
      %v2746 = vadd.f32 %v2452, %v2682
      %v2747 = vadd.f32 %v2453, %v2687
      %v2748 = vadd.f32 %v2454, %v2690
      %v2749 = vadd.f32 %v2455, %v2695
      %v2750 = vadd.f32 %v2456, %v2698
      %v2751 = vadd.f32 %v2457, %v2703
      %v2752 = vadd.f32 %v2458, %v2706
      %v2753 = vadd.f32 %v2459, %v2711
      %v2754 = vadd.f32 %v2460, %v2714
      %v2755 = vadd.f32 %v2461, %v2719
      %v2756 = vadd.f32 %v2462, %v2722
      %v2757 = vld [vmem:[%s2] sm:$0x1]
      %v2759 = vlaneseq
      %v2760 = vshrl.u32 %v2759, 7
      %v2761 = vsub.s32 0, %v2760
      %v2762 = vrot.slane %v2757, %v2761
      %v2764 = vadd.f32 %v2725, %v2762
      %v2765 = vadd.f32 %v2726, %v2762
      %v2766 = vadd.f32 %v2727, %v2762
      %v2767 = vadd.f32 %v2728, %v2762
      %v2768 = vadd.f32 %v2729, %v2762
      %v2769 = vadd.f32 %v2730, %v2762
      %v2770 = vadd.f32 %v2731, %v2762
      %v2771 = vadd.f32 %v2732, %v2762
      %v2772 = vadd.f32 %v2733, %v2762
      %v2773 = vadd.f32 %v2734, %v2762
      %v2774 = vadd.f32 %v2735, %v2762
      %v2775 = vadd.f32 %v2736, %v2762
      %v2776 = vadd.f32 %v2737, %v2762
      %v2777 = vadd.f32 %v2738, %v2762
      %v2778 = vadd.f32 %v2739, %v2762
      %v2779 = vadd.f32 %v2740, %v2762
      %v2780 = vadd.f32 %v2741, %v2762
      %v2781 = vadd.f32 %v2742, %v2762
      %v2782 = vadd.f32 %v2743, %v2762
      %v2783 = vadd.f32 %v2744, %v2762
      %v2784 = vadd.f32 %v2745, %v2762
      %v2785 = vadd.f32 %v2746, %v2762
      %v2786 = vadd.f32 %v2747, %v2762
      %v2787 = vadd.f32 %v2748, %v2762
      %v2788 = vadd.f32 %v2749, %v2762
      %v2789 = vadd.f32 %v2750, %v2762
      %v2790 = vadd.f32 %v2751, %v2762
      %v2791 = vadd.f32 %v2752, %v2762
      %v2792 = vadd.f32 %v2753, %v2762
      %v2793 = vadd.f32 %v2754, %v2762
      %v2794 = vadd.f32 %v2755, %v2762
      %v2795 = vadd.f32 %v2756, %v2762
      %v2796 = vmax.f32 %v2764, 0.0
      %v2797 = vmax.f32 %v2765, 0.0
      %v2798 = vmax.f32 %v2766, 0.0
      %v2799 = vmax.f32 %v2767, 0.0
      %v2800 = vmax.f32 %v2768, 0.0
      %v2801 = vmax.f32 %v2769, 0.0
      %v2802 = vmax.f32 %v2770, 0.0
      %v2803 = vmax.f32 %v2771, 0.0
      %v2804 = vmax.f32 %v2772, 0.0
      %v2805 = vmax.f32 %v2773, 0.0
      %v2806 = vmax.f32 %v2774, 0.0
      %v2807 = vmax.f32 %v2775, 0.0
      %v2808 = vmax.f32 %v2776, 0.0
      %v2809 = vmax.f32 %v2777, 0.0
      %v2810 = vmax.f32 %v2778, 0.0
      %v2811 = vmax.f32 %v2779, 0.0
      %v2812 = vmax.f32 %v2780, 0.0
      %v2813 = vmax.f32 %v2781, 0.0
      %v2814 = vmax.f32 %v2782, 0.0
      %v2815 = vmax.f32 %v2783, 0.0
      %v2816 = vmax.f32 %v2784, 0.0
      %v2817 = vmax.f32 %v2785, 0.0
      %v2818 = vmax.f32 %v2786, 0.0
      %v2819 = vmax.f32 %v2787, 0.0
      %v2820 = vmax.f32 %v2788, 0.0
      %v2821 = vmax.f32 %v2789, 0.0
      %v2822 = vmax.f32 %v2790, 0.0
      %v2823 = vmax.f32 %v2791, 0.0
      %v2824 = vmax.f32 %v2792, 0.0
      %v2825 = vmax.f32 %v2793, 0.0
      %v2826 = vmax.f32 %v2794, 0.0
      %v2827 = vmax.f32 %v2795, 0.0
      %v2828 = vmax.f32 %v2796, %v2798
      %v2829 = vmax.f32 %v2797, %v2799
      %v2830 = vmax.f32 %v2800, %v2802
      %v2831 = vmax.f32 %v2801, %v2803
      %v2832 = vmax.f32 %v2804, %v2806
      %v2833 = vmax.f32 %v2805, %v2807
      %v2834 = vmax.f32 %v2808, %v2810
      %v2835 = vmax.f32 %v2809, %v2811
      %v2836 = vmax.f32 %v2812, %v2814
      %v2837 = vmax.f32 %v2813, %v2815
      %v2838 = vmax.f32 %v2816, %v2818
      %v2839 = vmax.f32 %v2817, %v2819
      %v2840 = vmax.f32 %v2820, %v2822
      %v2841 = vmax.f32 %v2821, %v2823
      %v2842 = vmax.f32 %v2824, %v2826
      %v2843 = vmax.f32 %v2825, %v2827
      %2844 = vst.msk [vmem:[#allocation2] sm:$0xff] %vm271, %v2828
      %2845 = vst.msk [vmem:[#allocation2 + $0x8] sm:$0xff] %vm271, %v2829
      %2846 = vst.msk [vmem:[#allocation2 + $0x10] sm:$0xff] %vm271, %v2830
      %2847 = vst.msk [vmem:[#allocation2 + $0x18] sm:$0xff] %vm271, %v2831
      %2848 = vst.msk [vmem:[#allocation2 + $0x20] sm:$0xff] %vm271, %v2832
      %2849 = vst.msk [vmem:[#allocation2 + $0x28] sm:$0xff] %vm271, %v2833
      %2850 = vst.msk [vmem:[#allocation2 + $0x30] sm:$0xff] %vm271, %v2834
      %2851 = vst.msk [vmem:[#allocation2 + $0x38] sm:$0xff] %vm271, %v2835
      %2852 = vst.msk [vmem:[#allocation2 + $0x40] sm:$0xff] %vm271, %v2836
      %2853 = vst.msk [vmem:[#allocation2 + $0x48] sm:$0xff] %vm271, %v2837
      %2854 = vst.msk [vmem:[#allocation2 + $0x50] sm:$0xff] %vm271, %v2838
      %2855 = vst.msk [vmem:[#allocation2 + $0x58] sm:$0xff] %vm271, %v2839
      %2856 = vst.msk [vmem:[#allocation2 + $0x60] sm:$0xff] %vm271, %v2840
      %2857 = vst.msk [vmem:[#allocation2 + $0x68] sm:$0xff] %vm271, %v2841
      %2858 = vst.msk [vmem:[#allocation2 + $0x70] sm:$0xff] %vm271, %v2842
      %2859 = vst.msk [vmem:[#allocation2 + $0x78] sm:$0xff] %vm271, %v2843
      %v2860 = vld [vmem:[#allocation2] ss:$2 sm:$0xff]
      %s2861 = scalar_lea.vmem [#allocation2], 16
      %v2862 = vld [vmem:[%s2861] ss:$2 sm:$0xff]
      %s2863 = scalar_lea.vmem [#allocation2], 32
      %v2864 = vld [vmem:[%s2863] ss:$2 sm:$0xff]
      %s2865 = scalar_lea.vmem [#allocation2], 48
      %v2866 = vld [vmem:[%s2865] ss:$2 sm:$0xff]
      %s2867 = scalar_lea.vmem [#allocation2], 64
      %v2868 = vld [vmem:[%s2867] ss:$2 sm:$0xff]
      %s2869 = scalar_lea.vmem [#allocation2], 80
      %v2870 = vld [vmem:[%s2869] ss:$2 sm:$0xff]
      %s2871 = scalar_lea.vmem [#allocation2], 96
      %v2872 = vld [vmem:[%s2871] ss:$2 sm:$0xff]
      %s2873 = scalar_lea.vmem [#allocation2], 112
      %v2874 = vld [vmem:[%s2873] ss:$2 sm:$0xff]
      %s2875 = scalar_lea.vmem [#allocation2], 1
      %v2876 = vld [vmem:[%s2875] ss:$2 sm:$0xff]
      %s2877 = scalar_lea.vmem [#allocation2], 17
      %v2878 = vld [vmem:[%s2877] ss:$2 sm:$0xff]
      %s2879 = scalar_lea.vmem [#allocation2], 33
      %v2880 = vld [vmem:[%s2879] ss:$2 sm:$0xff]
      %s2881 = scalar_lea.vmem [#allocation2], 49
      %v2882 = vld [vmem:[%s2881] ss:$2 sm:$0xff]
      %s2883 = scalar_lea.vmem [#allocation2], 65
      %v2884 = vld [vmem:[%s2883] ss:$2 sm:$0xff]
      %s2885 = scalar_lea.vmem [#allocation2], 81
      %v2886 = vld [vmem:[%s2885] ss:$2 sm:$0xff]
      %s2887 = scalar_lea.vmem [#allocation2], 97
      %v2888 = vld [vmem:[%s2887] ss:$2 sm:$0xff]
      %s2889 = scalar_lea.vmem [#allocation2], 113
      %v2890 = vld [vmem:[%s2889] ss:$2 sm:$0xff]
      %v2891 = vmax.f32 %v2860, %v2876
      %v2892 = vmax.f32 %v2862, %v2878
      %v2893 = vmax.f32 %v2864, %v2880
      %v2894 = vmax.f32 %v2866, %v2882
      %v2895 = vmax.f32 %v2868, %v2884
      %v2896 = vmax.f32 %v2870, %v2886
      %v2897 = vmax.f32 %v2872, %v2888
      %v2898 = vmax.f32 %v2874, %v2890
      %2899 = vst.msk [vmem:[%s170] sm:$0xff] %vm271, %v2891
      %2900 = vst.msk [vmem:[%s170 + $0x8] sm:$0xff] %vm271, %v2892
      %2901 = vst.msk [vmem:[%s170 + $0x10] sm:$0xff] %vm271, %v2893
      %2902 = vst.msk [vmem:[%s170 + $0x18] sm:$0xff] %vm271, %v2894
      %2903 = vst.msk [vmem:[%s170 + $0x20] sm:$0xff] %vm271, %v2895
      %2904 = vst.msk [vmem:[%s170 + $0x28] sm:$0xff] %vm271, %v2896
      %2905 = vst.msk [vmem:[%s170 + $0x30] sm:$0xff] %vm271, %v2897
      %2906 = vst.msk [vmem:[%s170 + $0x38] sm:$0xff] %vm271, %v2898
      %p2907 = scmp.lt.s32.totalorder %s14, 3
      %s2908 = scalar_select %p2907, %s14, 3
      %s2909 = smul.addr %s2908, 8
      %s2910 = smul.addr %s2909, 8
      %s2911 = scalar_lea.vmem %s3, %s2910
      // Predicated region
      $region33: #{perceptual_loss.6} parent=31 // pred_check
        %p2912 = pneg %p100
      $region34: #{perceptual_loss.6} parent=31 // pred_check_branch
        %2914 = sbr.rel (%p2912) target = $region36
      $region35: #{perceptual_loss.6} parent=31 // pred_region
        _
      $region36: #{perceptual_loss.6} parent=31 // pred_fallthru
        _
    $region32: #{perceptual_loss.6} parent=5 // pred_fallthru
      _
    %p2915 = scmp.le.s32.totalorder 2, %s9
    // Predicated region
    $region37: #{perceptual_loss.6} parent=5 // pred_check
      %p2916 = pneg %p2915
    $region38: #{perceptual_loss.6} parent=5 // pred_check_branch
      %2918 = sbr.rel (%p2916) target = $region40
    $region39: #{perceptual_loss.6} parent=5 // pred_region
      %s2919 = ssub.s32 %s9, 2
      // Predicated region
      $region41: #{perceptual_loss.6} parent=39 // pred_check
        %p2920 = pneg %p106
      $region42: #{perceptual_loss.6} parent=39 // pred_check_branch
        %2922 = sbr.rel (%p2920) target = $region44
      $region43: #{perceptual_loss.6} parent=39 // pred_region
        %p2923 = scmp.lt.s32.totalorder %s15, 3
        %s2924 = scalar_select %p2923, %s15, 3
        %s2925 = smul.addr %s2924, 8
        %s2926 = smul.addr %s2925, 8
        %s2927 = scalar_lea.vmem %s3, %s2926
      $region44: #{perceptual_loss.6} parent=39 // pred_fallthru
        _
    $region40: #{perceptual_loss.6} parent=5 // pred_fallthru
      _
  $region6: #{perceptual_loss.6} parent=0 // loop_footer
    %s13 = sadd.s32 1, %s9
  $region7: #{perceptual_loss.6} parent=0 // loop_footer_branch
    %8 = sbr.rel target = $region3
  $region8: #{perceptual_loss.6} parent=0 // loop_exit
    _

// kernel: perceptual_loss.5
$region0: #{perceptual_loss.5}
  #allocation0 [shape = 'u32[]', space=smem, size = 0x4, offset = 0x4, fixed_abs, tag = 'smem constant byte address 0x4 - core index']
  #allocation1 [shape = 'u32[144,128]{1,0:T(1,128)}', space=vmem, size = 0x12000, scoped, tag = 'internal scratch']
  %s0 = inlined_call_operand.vmem [shape: f32[4,18,18,4], index: 0, kind: input, shape index: {}]
  %s1 = inlined_call_operand.vmem [shape: bf16[9,4,8], index: 1, kind: input, shape index: {}]
  %s2 = inlined_call_operand.vmem [shape: f32[1,8], index: 2, kind: input, shape index: {}]
  %s3 = inlined_call_operand.vmem [shape: f32[4,256,8], index: 3, kind: output, shape index: {}]
  %s4 = sld [smem:[#allocation0]]
  $region45: #{perceptual_loss.5} parent=0
    _
  %s6 = ssub.s32 1, %s4
  %s7 = scalar_select 0, %s6, %s4
  loop: start=0, step=1, limit=6
  $region2: #{perceptual_loss.5} parent=0 // loop_pre_header
    _
  $region3: #{perceptual_loss.5} parent=0 // loop_header
    %s9 = sphi 0, %s13
    %p10 = scmp.ge.s32.totalorder %s9, 6
    %s19 = sphi 0, %s21
    %s22 = sphi 0, %s19
    %s23 = sphi 0, %s22
    %s39 = sphi 0, %s23
    %s43 = sphi 0, %s43
    %s45 = sphi 0, %s43
    %s46 = sphi 0, %s45
    %s60 = sphi 0, %s46
    %s64 = sphi 0, %s64
    %s66 = sphi 0, %s64
    %s67 = sphi 0, %s66
    %s81 = sphi 0, %s67
    %s87 = sphi 0, %s89
    %s90 = sphi 0, %s87
    %s91 = sphi 0, %s90
    %s107 = sphi 0, %s91
  $region4: #{perceptual_loss.5} parent=0 // loop_header_branch
    %12 = sbr.rel (%p10) target = $region8
  $region5: #{perceptual_loss.5} parent=0 // loop_body
    %s14 = ssub.s32 %s9, 1
    %s15 = ssub.s32 %s9, 2
    %s16 = sadd.s32 %s9, 1
    %s17 = ssub.s32 %s9, %s16
    %p18 = scmp.eq.s32.totalorder %s17, 0
    %s20 = sadd.s32 %s19, 1
    %s21 = scalar_select %p18, %s19, %s20
    %p24 = pneg %p18
    %p25 = scmp.eq.s32.totalorder %s9, 3
    %p26 = por %p24, %p25
    %p27 = scmp.ne.s32.totalorder %s19, %s22
    %p28 = scmp.eq.s32.totalorder %s9, 0
    %p29 = por %p27, %p28
    %p30 = scmp.ne.s32.totalorder %s19, %s22
    %p31 = scmp.eq.s32.totalorder %s14, 3
    %p32 = por %p30, %p31
    %p33 = scmp.ne.s32.totalorder %s22, %s23
    %p34 = scmp.eq.s32.totalorder %s14, 0
    %p35 = por %p33, %p34
    %p36 = scmp.ne.s32.totalorder %s22, %s23
    %p37 = scmp.eq.s32.totalorder %s15, 3
    %p38 = por %p36, %p37
    %p40 = scmp.ne.s32.totalorder %s23, %s39
    %p41 = scmp.eq.s32.totalorder %s15, 0
    %p42 = por %p40, %p41
    %s44 = sadd.s32 %s43, 1
    %p47 = scmp.eq.s32.totalorder %s9, 3
    %p48 = scmp.ne.s32.totalorder %s43, %s45
    %p49 = scmp.eq.s32.totalorder %s9, 0
    %p50 = por %p48, %p49
    %p51 = scmp.ne.s32.totalorder %s43, %s45
    %p52 = scmp.eq.s32.totalorder %s14, 3
    %p53 = por %p51, %p52
    %p54 = scmp.ne.s32.totalorder %s45, %s46
    %p55 = scmp.eq.s32.totalorder %s14, 0
    %p56 = por %p54, %p55
    %p57 = scmp.ne.s32.totalorder %s45, %s46
    %p58 = scmp.eq.s32.totalorder %s15, 3
    %p59 = por %p57, %p58
    %p61 = scmp.ne.s32.totalorder %s46, %s60
    %p62 = scmp.eq.s32.totalorder %s15, 0
    %p63 = por %p61, %p62
    %s65 = sadd.s32 %s64, 1
    %p68 = scmp.eq.s32.totalorder %s9, 3
    %p69 = scmp.ne.s32.totalorder %s64, %s66
    %p70 = scmp.eq.s32.totalorder %s9, 0
    %p71 = por %p69, %p70
    %p72 = scmp.ne.s32.totalorder %s64, %s66
    %p73 = scmp.eq.s32.totalorder %s14, 3
    %p74 = por %p72, %p73
    %p75 = scmp.ne.s32.totalorder %s66, %s67
    %p76 = scmp.eq.s32.totalorder %s14, 0
    %p77 = por %p75, %p76
    %p78 = scmp.ne.s32.totalorder %s66, %s67
    %p79 = scmp.eq.s32.totalorder %s15, 3
    %p80 = por %p78, %p79
    %p82 = scmp.ne.s32.totalorder %s67, %s81
    %p83 = scmp.eq.s32.totalorder %s15, 0
    %p84 = por %p82, %p83
    %s85 = ssub.s32 %s9, %s16
    %p86 = scmp.eq.s32.totalorder %s85, 0
    %s88 = sadd.s32 %s87, 1
    %s89 = scalar_select %p86, %s87, %s88
    %p92 = pneg %p86
    %p93 = scmp.eq.s32.totalorder %s9, 3
    %p94 = por %p92, %p93
    %p95 = scmp.ne.s32.totalorder %s87, %s90
    %p96 = scmp.eq.s32.totalorder %s9, 0
    %p97 = por %p95, %p96
    %p98 = scmp.ne.s32.totalorder %s87, %s90
    %p99 = scmp.eq.s32.totalorder %s14, 3
    %p100 = por %p98, %p99
    %p101 = scmp.ne.s32.totalorder %s90, %s91
    %p102 = scmp.eq.s32.totalorder %s14, 0
    %p103 = por %p101, %p102
    %p104 = scmp.ne.s32.totalorder %s90, %s91
    %p105 = scmp.eq.s32.totalorder %s15, 3
    %p106 = por %p104, %p105
    %p108 = scmp.ne.s32.totalorder %s91, %s107
    %p109 = scmp.eq.s32.totalorder %s15, 0
    %p110 = por %p108, %p109
    %p111 = scmp.le.s32.totalorder 1, %s9
    %p112 = scmp.lt.s32.totalorder %s9, 5
    %p113 = pnand %p111, %p112
    %p114 = pneg %p113
    // Predicated region
    $region9: #{perceptual_loss.5} parent=5 // pred_check
      _
    $region10: #{perceptual_loss.5} parent=5 // pred_check_branch
      %116 = sbr.rel (%p113) target = $region12
    $region11: #{perceptual_loss.5} parent=5 // pred_region
      %s117 = ssub.s32 %s9, 1
      // Predicated region
      $region13: #{perceptual_loss.5} parent=11 // pred_check
        %p118 = pneg %p56
      $region14: #{perceptual_loss.5} parent=11 // pred_check_branch
        %120 = sbr.rel (%p118) target = $region16
      $region15: #{perceptual_loss.5} parent=11 // pred_region
        _
      $region16: #{perceptual_loss.5} parent=11 // pred_fallthru
        _
      // Predicated region
      $region17: #{perceptual_loss.5} parent=11 // pred_check
        %p121 = pneg %p77
      $region18: #{perceptual_loss.5} parent=11 // pred_check_branch
        %123 = sbr.rel (%p121) target = $region20
      $region19: #{perceptual_loss.5} parent=11 // pred_region
        _
      $region20: #{perceptual_loss.5} parent=11 // pred_fallthru
        _
    $region12: #{perceptual_loss.5} parent=5 // pred_fallthru
      _
    %p124 = scmp.lt.s32.totalorder %s9, 4
    // Predicated region
    $region21: #{perceptual_loss.5} parent=5 // pred_check
      %p125 = pneg %p124
    $region22: #{perceptual_loss.5} parent=5 // pred_check_branch
      %127 = sbr.rel (%p125) target = $region24
    $region23: #{perceptual_loss.5} parent=5 // pred_region
      // Predicated region
      $region25: #{perceptual_loss.5} parent=23 // pred_check
        %p128 = pneg %p29
      $region26: #{perceptual_loss.5} parent=23 // pred_check_branch
        %130 = sbr.rel (%p128) target = $region28
      $region27: #{perceptual_loss.5} parent=23 // pred_region
        %p131 = scmp.lt.s32.totalorder %s9, 3
        %s132 = scalar_select %p131, %s9, 3
        %s133 = smul.addr %s132, 54
        %s134 = smul.addr %s133, 8
        %s135 = scalar_lea.vmem %s0, %s134
      $region28: #{perceptual_loss.5} parent=23 // pred_fallthru
        _
    $region24: #{perceptual_loss.5} parent=5 // pred_fallthru
      _
    %p136 = scmp.le.s32.totalorder 1, %s9
    %p137 = scmp.lt.s32.totalorder %s9, 5
    %p138 = pnand %p136, %p137
    %p139 = pneg %p138
    // Predicated region
    $region29: #{perceptual_loss.5} parent=5 // pred_check
      _
    $region30: #{perceptual_loss.5} parent=5 // pred_check_branch
      %141 = sbr.rel (%p138) target = $region32
    $region31: #{perceptual_loss.5} parent=5 // pred_region
      %s142 = ssub.s32 %s9, 1
      %p143 = scmp.lt.s32.totalorder %s14, 3
      %s144 = scalar_select %p143, %s14, 3
      %s145 = smul.addr %s144, 54
      %s146 = smul.addr %s145, 8
      %s147 = scalar_lea.vmem %s0, %s146
      %p148 = pneg %p35
      %p149 = pneg %p32
      %p150 = pneg %p56
      %p151 = pneg %p53
      %p152 = pneg %p77
      %p153 = pneg %p74
      %p154 = pneg %p103
      %p155 = pneg %p100
      %p156 = scmp.lt.s32.totalorder %s14, 3
      %s157 = scalar_select %p156, %s14, 3
      %s158 = smul.addr %s157, 32
      %s159 = smul.addr %s158, 8
      %s160 = scalar_lea.vmem %s3, %s159
      %p161 = scmp.lt.s32.totalorder %s14, 3
      %s162 = scalar_select %p161, %s14, 3
      %s163 = smul.addr %s162, 54
      %s164 = smul.addr %s163, 8
      %s165 = scalar_lea.vmem %s0, %s164
      %p166 = scmp.lt.s32.totalorder %s14, 3
      %s167 = scalar_select %p166, %s14, 3
      %s168 = smul.addr %s167, 32
      %s169 = smul.addr %s168, 8
      %s170 = scalar_lea.vmem %s3, %s169
      %v172 = vld [vmem:[%s165] sm:$0xff]
      %v173 = vld [vmem:[%s165 + $0x8] sm:$0xff]
      %v174 = vld [vmem:[%s165 + $0x18] sm:$0xff]
      %v175 = vld [vmem:[%s165 + $0x20] sm:$0xff]
      %v176 = vld [vmem:[%s165 + $0x30] sm:$0xff]
      %v177 = vld [vmem:[%s165 + $0x38] sm:$0xff]
      %v178 = vld [vmem:[%s165 + $0x48] sm:$0xff]
      %v179 = vld [vmem:[%s165 + $0x50] sm:$0xff]
      %v180 = vld [vmem:[%s165 + $0x60] sm:$0xff]
      %v181 = vld [vmem:[%s165 + $0x68] sm:$0xff]
      %v182 = vld [vmem:[%s165 + $0x78] sm:$0xff]
      %v183 = vld [vmem:[%s165 + $0x80] sm:$0xff]
      %v184 = vld [vmem:[%s165 + $0x90] sm:$0xff]
      %v185 = vld [vmem:[%s165 + $0x98] sm:$0xff]
      %v186 = vld [vmem:[%s165 + $0xa8] sm:$0xff]
      %v187 = vld [vmem:[%s165 + $0xb0] sm:$0xff]
      %v188 = vld [vmem:[%s165 + $0xc0] sm:$0xff]
      %v189 = vld [vmem:[%s165 + $0xc8] sm:$0xff]
      %v190 = vld [vmem:[%s165 + $0xd8] sm:$0xff]
      %v191 = vld [vmem:[%s165 + $0xe0] sm:$0xff]
      %v192 = vld [vmem:[%s165 + $0xf0] sm:$0xff]
      %v193 = vld [vmem:[%s165 + $0xf8] sm:$0xff]
      %v194 = vld [vmem:[%s165 + $0x108] sm:$0xff]
      %v195 = vld [vmem:[%s165 + $0x110] sm:$0xff]
      %v196 = vld [vmem:[%s165 + $0x120] sm:$0xff]
      %v197 = vld [vmem:[%s165 + $0x128] sm:$0xff]
      %v198 = vld [vmem:[%s165 + $0x138] sm:$0xff]
      %v199 = vld [vmem:[%s165 + $0x140] sm:$0xff]
      %v200 = vld [vmem:[%s165 + $0x150] sm:$0xff]
      %v201 = vld [vmem:[%s165 + $0x158] sm:$0xff]
      %v202 = vld [vmem:[%s165 + $0x168] sm:$0xff]
      %v203 = vld [vmem:[%s165 + $0x170] sm:$0xff]
      %v204 = vpack.c.bf16 %v173, %v172
      %v205 = vpack.c.bf16 %v175, %v174
      %v206 = vpack.c.bf16 %v177, %v176
      %v207 = vpack.c.bf16 %v179, %v178
      %v208 = vpack.c.bf16 %v181, %v180
      %v209 = vpack.c.bf16 %v183, %v182
      %v210 = vpack.c.bf16 %v185, %v184
      %v211 = vpack.c.bf16 %v187, %v186
      %v212 = vpack.c.bf16 %v189, %v188
      %v213 = vpack.c.bf16 %v191, %v190
      %v214 = vpack.c.bf16 %v193, %v192
      %v215 = vpack.c.bf16 %v195, %v194
      %v216 = vpack.c.bf16 %v197, %v196
      %v217 = vpack.c.bf16 %v199, %v198
      %v218 = vpack.c.bf16 %v201, %v200
      %v219 = vpack.c.bf16 %v203, %v202
      %v220 = vld [vmem:[%s1] sm:$0x3]
      %v221 = vld [vmem:[%s165 + $0x1] sm:$0xff]
      %v222 = vld [vmem:[%s165 + $0x9] sm:$0xff]
      %v223 = vld [vmem:[%s165 + $0x19] sm:$0xff]
      %v224 = vld [vmem:[%s165 + $0x21] sm:$0xff]
      %v225 = vld [vmem:[%s165 + $0x31] sm:$0xff]
      %v226 = vld [vmem:[%s165 + $0x39] sm:$0xff]
      %v227 = vld [vmem:[%s165 + $0x49] sm:$0xff]
      %v228 = vld [vmem:[%s165 + $0x51] sm:$0xff]
      %v229 = vld [vmem:[%s165 + $0x61] sm:$0xff]
      %v230 = vld [vmem:[%s165 + $0x69] sm:$0xff]
      %v231 = vld [vmem:[%s165 + $0x79] sm:$0xff]
      %v232 = vld [vmem:[%s165 + $0x81] sm:$0xff]
      %v233 = vld [vmem:[%s165 + $0x91] sm:$0xff]
      %v234 = vld [vmem:[%s165 + $0x99] sm:$0xff]
      %v235 = vld [vmem:[%s165 + $0xa9] sm:$0xff]
      %v236 = vld [vmem:[%s165 + $0xb1] sm:$0xff]
      %v237 = vld [vmem:[%s165 + $0xc1] sm:$0xff]
      %v238 = vld [vmem:[%s165 + $0xc9] sm:$0xff]
      %v239 = vld [vmem:[%s165 + $0xd9] sm:$0xff]
      %v240 = vld [vmem:[%s165 + $0xe1] sm:$0xff]
      %v241 = vld [vmem:[%s165 + $0xf1] sm:$0xff]
      %v242 = vld [vmem:[%s165 + $0xf9] sm:$0xff]
      %v243 = vld [vmem:[%s165 + $0x109] sm:$0xff]
      %v244 = vld [vmem:[%s165 + $0x111] sm:$0xff]
      %v245 = vld [vmem:[%s165 + $0x121] sm:$0xff]
      %v246 = vld [vmem:[%s165 + $0x129] sm:$0xff]
      %v247 = vld [vmem:[%s165 + $0x139] sm:$0xff]
      %v248 = vld [vmem:[%s165 + $0x141] sm:$0xff]
      %v249 = vld [vmem:[%s165 + $0x151] sm:$0xff]
      %v250 = vld [vmem:[%s165 + $0x159] sm:$0xff]
      %v251 = vld [vmem:[%s165 + $0x169] sm:$0xff]
      %v252 = vld [vmem:[%s165 + $0x171] sm:$0xff]
      %v253 = vpack.c.bf16 %v222, %v221
      %v254 = vpack.c.bf16 %v224, %v223
      %v255 = vpack.c.bf16 %v226, %v225
      %v256 = vpack.c.bf16 %v228, %v227
      %v257 = vpack.c.bf16 %v230, %v229
      %v258 = vpack.c.bf16 %v232, %v231
      %v259 = vpack.c.bf16 %v234, %v233
      %v260 = vpack.c.bf16 %v236, %v235
      %v261 = vpack.c.bf16 %v238, %v237
      %v262 = vpack.c.bf16 %v240, %v239
      %v263 = vpack.c.bf16 %v242, %v241
      %v264 = vpack.c.bf16 %v244, %v243
      %v265 = vpack.c.bf16 %v246, %v245
      %v266 = vpack.c.bf16 %v248, %v247
      %v267 = vpack.c.bf16 %v250, %v249
      %v268 = vpack.c.bf16 %v252, %v251
      %s269 = scalar_lea.vmem %s1, 2
      %v270 = vld [vmem:[%s269] sm:$0x3]
      %vm271 = vcmask 31744
      %v273 = vsel %vm271, %v253, 0
      %v276 = vsel %vm271, %v254, 0
      %v279 = vsel %vm271, %v255, 0
      %v282 = vsel %vm271, %v256, 0
      %v285 = vsel %vm271, %v257, 0
      %v288 = vsel %vm271, %v258, 0
      %v291 = vsel %vm271, %v259, 0
      %v294 = vsel %vm271, %v260, 0
      %v297 = vsel %vm271, %v261, 0
      %v300 = vsel %vm271, %v262, 0
      %v303 = vsel %vm271, %v263, 0
      %v306 = vsel %vm271, %v264, 0
      %v309 = vsel %vm271, %v265, 0
      %v312 = vsel %vm271, %v266, 0
      %v315 = vsel %vm271, %v267, 0
      %v318 = vsel %vm271, %v268, 0
      %vm320 = vcmask 1041408
      %v322 = vsel %vm320, %v270, 0
      %324 = vmatprep.subr.bf16.mxu0 0
      %325 = vmatpush1.bf16.msra.mxu0 %v322
      %326 = vmatprep.subr.bf16.mxu0 0
      %327 = vmatpush1.bf16.msra.mxu0 0
      %328 = vmatprep.subr.bf16.mxu0 0
      %329 = vmatpush1.bf16.msra.mxu0 0
      %330 = vmatprep.subr.bf16.mxu0 0
      %331 = vmatpush1.bf16.msra.mxu0 0
      %332 = vmatprep.subr.bf16.mxu0 0
      %333 = vmatpush1.bf16.msra.mxu0 0
      %334 = vmatprep.subr.bf16.mxu0 0
      %335 = vmatpush1.bf16.msra.mxu0 0
      %336 = vmatprep.subr.bf16.mxu0 0
      %337 = vmatpush1.bf16.msra.mxu0 0
      %338 = vmatprep.subr.bf16.mxu0 0
      %339 = vmatpush1.bf16.msra.mxu0 0
      %340 = vmatprep.subr.bf16.mxu0 0
      %341 = vmatpush1.bf16.msra.mxu0 0
      %342 = vmatprep.subr.bf16.mxu0 0
      %343 = vmatpush1.bf16.msra.mxu0 0
      %344 = vmatprep.subr.bf16.mxu0 0
      %345 = vmatpush1.bf16.msra.mxu0 0
      %346 = vmatprep.subr.bf16.mxu0 0
      %347 = vmatpush1.bf16.msra.mxu0 0
      %348 = vmatprep.subr.bf16.mxu0 0
      %349 = vmatpush1.bf16.msra.mxu0 0
      %350 = vmatprep.subr.bf16.mxu0 0
      %351 = vmatpush1.bf16.msra.mxu0 0
      %352 = vmatprep.subr.bf16.mxu0 0
      %353 = vmatpush1.bf16.msra.mxu0 0
      %354 = vmatprep.subr.bf16.mxu0 0
      %355 = vmatpush1.bf16.msra.mxu0 0
      %356 = vmatprep.mubr.bf16.mxu0 0
      %357 = vmatmul.mubr.bf16.gmra.mrb[0].mxu0 %v273
      %v358 = vpop.f32.mrb[0].mxu0
      %v359 = vadd.f32 0.0, %v358
      %v360 = vpop.f32.mrb[0].mxu0
      %v361 = vpop.f32.mrb[0].mxu0
      %v362 = vadd.f32 0.0, %v361
      %v363 = vpop.f32.mrb[0].mxu0
      %364 = vmatprep.mubr.bf16.mxu0 0
      %365 = vmatmul.mubr.bf16.gmra.mrb[0].mxu0 %v276
      %v366 = vpop.f32.mrb[0].mxu0
      %v367 = vadd.f32 0.0, %v366
      %v368 = vpop.f32.mrb[0].mxu0
      %v369 = vpop.f32.mrb[0].mxu0
      %v370 = vadd.f32 0.0, %v369
      %v371 = vpop.f32.mrb[0].mxu0
      %372 = vmatprep.mubr.bf16.mxu0 0
      %373 = vmatmul.mubr.bf16.gmra.mrb[0].mxu0 %v279
      %v374 = vpop.f32.mrb[0].mxu0
      %v375 = vadd.f32 0.0, %v374
      %v376 = vpop.f32.mrb[0].mxu0
      %v377 = vpop.f32.mrb[0].mxu0
      %v378 = vadd.f32 0.0, %v377
      %v379 = vpop.f32.mrb[0].mxu0
      %380 = vmatprep.mubr.bf16.mxu0 0
      %381 = vmatmul.mubr.bf16.gmra.mrb[0].mxu0 %v282
      %v382 = vpop.f32.mrb[0].mxu0
      %v383 = vadd.f32 0.0, %v382
      %v384 = vpop.f32.mrb[0].mxu0
      %v385 = vpop.f32.mrb[0].mxu0
      %v386 = vadd.f32 0.0, %v385
      %v387 = vpop.f32.mrb[0].mxu0
      %388 = vmatprep.mubr.bf16.mxu0 0
      %389 = vmatmul.mubr.bf16.gmra.mrb[0].mxu0 %v285
      %v390 = vpop.f32.mrb[0].mxu0
      %v391 = vadd.f32 0.0, %v390
      %v392 = vpop.f32.mrb[0].mxu0
      %v393 = vpop.f32.mrb[0].mxu0
      %v394 = vadd.f32 0.0, %v393
      %v395 = vpop.f32.mrb[0].mxu0
      %396 = vmatprep.mubr.bf16.mxu0 0
      %397 = vmatmul.mubr.bf16.gmra.mrb[0].mxu0 %v288
      %v398 = vpop.f32.mrb[0].mxu0
      %v399 = vadd.f32 0.0, %v398
      %v400 = vpop.f32.mrb[0].mxu0
      %v401 = vpop.f32.mrb[0].mxu0
      %v402 = vadd.f32 0.0, %v401
      %v403 = vpop.f32.mrb[0].mxu0
      %404 = vmatprep.mubr.bf16.mxu0 0
      %405 = vmatmul.mubr.bf16.gmra.mrb[0].mxu0 %v291
      %v406 = vpop.f32.mrb[0].mxu0
      %v407 = vadd.f32 0.0, %v406
      %v408 = vpop.f32.mrb[0].mxu0
      %v409 = vpop.f32.mrb[0].mxu0
      %v410 = vadd.f32 0.0, %v409
      %v411 = vpop.f32.mrb[0].mxu0
      %412 = vmatprep.mubr.bf16.mxu0 0
      %413 = vmatmul.mubr.bf16.gmra.mrb[0].mxu0 %v294
      %v414 = vpop.f32.mrb[0].mxu0
      %v415 = vadd.f32 0.0, %v414
      %v416 = vpop.f32.mrb[0].mxu0
      %v417 = vpop.f32.mrb[0].mxu0
      %v418 = vadd.f32 0.0, %v417
      %v419 = vpop.f32.mrb[0].mxu0
      %420 = vmatprep.mubr.bf16.mxu0 0
      %421 = vmatmul.mubr.bf16.gmra.mrb[0].mxu0 %v297
      %v422 = vpop.f32.mrb[0].mxu0
      %v423 = vadd.f32 0.0, %v422
      %v424 = vpop.f32.mrb[0].mxu0
      %v425 = vpop.f32.mrb[0].mxu0
      %v426 = vadd.f32 0.0, %v425
      %v427 = vpop.f32.mrb[0].mxu0
      %428 = vmatprep.mubr.bf16.mxu0 0
      %429 = vmatmul.mubr.bf16.gmra.mrb[0].mxu0 %v300
      %v430 = vpop.f32.mrb[0].mxu0
      %v431 = vadd.f32 0.0, %v430
      %v432 = vpop.f32.mrb[0].mxu0
      %v433 = vpop.f32.mrb[0].mxu0
      %v434 = vadd.f32 0.0, %v433
      %v435 = vpop.f32.mrb[0].mxu0
      %436 = vmatprep.mubr.bf16.mxu0 0
      %437 = vmatmul.mubr.bf16.gmra.mrb[0].mxu0 %v303
      %v438 = vpop.f32.mrb[0].mxu0
      %v439 = vadd.f32 0.0, %v438
      %v440 = vpop.f32.mrb[0].mxu0
      %v441 = vpop.f32.mrb[0].mxu0
      %v442 = vadd.f32 0.0, %v441
      %v443 = vpop.f32.mrb[0].mxu0
      %444 = vmatprep.mubr.bf16.mxu0 0
      %445 = vmatmul.mubr.bf16.gmra.mrb[0].mxu0 %v306
      %v446 = vpop.f32.mrb[0].mxu0
      %v447 = vadd.f32 0.0, %v446
      %v448 = vpop.f32.mrb[0].mxu0
      %v449 = vpop.f32.mrb[0].mxu0
      %v450 = vadd.f32 0.0, %v449
      %v451 = vpop.f32.mrb[0].mxu0
      %452 = vmatprep.mubr.bf16.mxu0 0
      %453 = vmatmul.mubr.bf16.gmra.mrb[0].mxu0 %v309
      %v454 = vpop.f32.mrb[0].mxu0
      %v455 = vadd.f32 0.0, %v454
      %v456 = vpop.f32.mrb[0].mxu0
      %v457 = vpop.f32.mrb[0].mxu0
      %v458 = vadd.f32 0.0, %v457
      %v459 = vpop.f32.mrb[0].mxu0
      %460 = vmatprep.mubr.bf16.mxu0 0
      %461 = vmatmul.mubr.bf16.gmra.mrb[0].mxu0 %v312
      %v462 = vpop.f32.mrb[0].mxu0
      %v463 = vadd.f32 0.0, %v462
      %v464 = vpop.f32.mrb[0].mxu0
      %v465 = vpop.f32.mrb[0].mxu0
      %v466 = vadd.f32 0.0, %v465
      %v467 = vpop.f32.mrb[0].mxu0
      %468 = vmatprep.mubr.bf16.mxu0 0
      %469 = vmatmul.mubr.bf16.gmra.mrb[0].mxu0 %v315
      %v470 = vpop.f32.mrb[0].mxu0
      %v471 = vadd.f32 0.0, %v470
      %v472 = vpop.f32.mrb[0].mxu0
      %v473 = vpop.f32.mrb[0].mxu0
      %v474 = vadd.f32 0.0, %v473
      %v475 = vpop.f32.mrb[0].mxu0
      %476 = vmatprep.mubr.bf16.mxu0 0
      %477 = vmatmul.mubr.bf16.gmra.mrb[0].mxu0 %v318
      %v478 = vpop.f32.mrb[0].mxu0
      %v479 = vadd.f32 0.0, %v478
      %v480 = vpop.f32.mrb[0].mxu0
      %v481 = vpop.f32.mrb[0].mxu0
      %v482 = vadd.f32 0.0, %v481
      %v483 = vpop.f32.mrb[0].mxu0
      %484 = vdwg.mxu0
      %v486 = vsel %vm271, %v204, 0
      %v489 = vsel %vm271, %v205, 0
      %v492 = vsel %vm271, %v206, 0
      %v495 = vsel %vm271, %v207, 0
      %v498 = vsel %vm271, %v208, 0
      %v501 = vsel %vm271, %v209, 0
      %v504 = vsel %vm271, %v210, 0
      %v507 = vsel %vm271, %v211, 0
      %v510 = vsel %vm271, %v212, 0
      %v513 = vsel %vm271, %v213, 0
      %v516 = vsel %vm271, %v214, 0
      %v519 = vsel %vm271, %v215, 0
      %v522 = vsel %vm271, %v216, 0
      %v525 = vsel %vm271, %v217, 0
      %v528 = vsel %vm271, %v218, 0
      %v531 = vsel %vm271, %v219, 0
      %v534 = vsel %vm320, %v220, 0
      %536 = vmatprep.subr.bf16.mxu0 0
      %537 = vmatpush1.bf16.msra.mxu0 %v534
      %538 = vmatprep.subr.bf16.mxu0 0
      %539 = vmatpush1.bf16.msra.mxu0 0
      %540 = vmatprep.subr.bf16.mxu0 0
      %541 = vmatpush1.bf16.msra.mxu0 0
      %542 = vmatprep.subr.bf16.mxu0 0
      %543 = vmatpush1.bf16.msra.mxu0 0
      %544 = vmatprep.subr.bf16.mxu0 0
      %545 = vmatpush1.bf16.msra.mxu0 0
      %546 = vmatprep.subr.bf16.mxu0 0
      %547 = vmatpush1.bf16.msra.mxu0 0
      %548 = vmatprep.subr.bf16.mxu0 0
      %549 = vmatpush1.bf16.msra.mxu0 0
      %550 = vmatprep.subr.bf16.mxu0 0
      %551 = vmatpush1.bf16.msra.mxu0 0
      %552 = vmatprep.subr.bf16.mxu0 0
      %553 = vmatpush1.bf16.msra.mxu0 0
      %554 = vmatprep.subr.bf16.mxu0 0
      %555 = vmatpush1.bf16.msra.mxu0 0
      %556 = vmatprep.subr.bf16.mxu0 0
      %557 = vmatpush1.bf16.msra.mxu0 0
      %558 = vmatprep.subr.bf16.mxu0 0
      %559 = vmatpush1.bf16.msra.mxu0 0
      %560 = vmatprep.subr.bf16.mxu0 0
      %561 = vmatpush1.bf16.msra.mxu0 0
      %562 = vmatprep.subr.bf16.mxu0 0
      %563 = vmatpush1.bf16.msra.mxu0 0
      %564 = vmatprep.subr.bf16.mxu0 0
      %565 = vmatpush1.bf16.msra.mxu0 0
      %566 = vmatprep.subr.bf16.mxu0 0
      %567 = vmatpush1.bf16.msra.mxu0 0
      %568 = vmatprep.mubr.bf16.mxu0 0
      %569 = vmatmul.mubr.bf16.gmra.mrb[0].mxu0 %v486
      %v570 = vpop.f32.mrb[0].mxu0
      %v571 = vadd.f32 %v359, %v570
      %v572 = vpop.f32.mrb[0].mxu0
      %v573 = vpop.f32.mrb[0].mxu0
      %v574 = vadd.f32 %v362, %v573
      %v575 = vpop.f32.mrb[0].mxu0
      %576 = vmatprep.mubr.bf16.mxu0 0
      %577 = vmatmul.mubr.bf16.gmra.mrb[0].mxu0 %v489
      %v578 = vpop.f32.mrb[0].mxu0
      %v579 = vadd.f32 %v367, %v578
      %v580 = vpop.f32.mrb[0].mxu0
      %v581 = vpop.f32.mrb[0].mxu0
      %v582 = vadd.f32 %v370, %v581
      %v583 = vpop.f32.mrb[0].mxu0
      %584 = vmatprep.mubr.bf16.mxu0 0
      %585 = vmatmul.mubr.bf16.gmra.mrb[0].mxu0 %v492
      %v586 = vpop.f32.mrb[0].mxu0
      %v587 = vadd.f32 %v375, %v586
      %v588 = vpop.f32.mrb[0].mxu0
      %v589 = vpop.f32.mrb[0].mxu0
      %v590 = vadd.f32 %v378, %v589
      %v591 = vpop.f32.mrb[0].mxu0
      %592 = vmatprep.mubr.bf16.mxu0 0
      %593 = vmatmul.mubr.bf16.gmra.mrb[0].mxu0 %v495
      %v594 = vpop.f32.mrb[0].mxu0
      %v595 = vadd.f32 %v383, %v594
      %v596 = vpop.f32.mrb[0].mxu0
      %v597 = vpop.f32.mrb[0].mxu0
      %v598 = vadd.f32 %v386, %v597
      %v599 = vpop.f32.mrb[0].mxu0
      %600 = vmatprep.mubr.bf16.mxu0 0
      %601 = vmatmul.mubr.bf16.gmra.mrb[0].mxu0 %v498
      %v602 = vpop.f32.mrb[0].mxu0
      %v603 = vadd.f32 %v391, %v602
      %v604 = vpop.f32.mrb[0].mxu0
      %v605 = vpop.f32.mrb[0].mxu0
      %v606 = vadd.f32 %v394, %v605
      %v607 = vpop.f32.mrb[0].mxu0
      %608 = vmatprep.mubr.bf16.mxu0 0
      %609 = vmatmul.mubr.bf16.gmra.mrb[0].mxu0 %v501
      %v610 = vpop.f32.mrb[0].mxu0
      %v611 = vadd.f32 %v399, %v610
      %v612 = vpop.f32.mrb[0].mxu0
      %v613 = vpop.f32.mrb[0].mxu0
      %v614 = vadd.f32 %v402, %v613
      %v615 = vpop.f32.mrb[0].mxu0
      %616 = vmatprep.mubr.bf16.mxu0 0
      %617 = vmatmul.mubr.bf16.gmra.mrb[0].mxu0 %v504
      %v618 = vpop.f32.mrb[0].mxu0
      %v619 = vadd.f32 %v407, %v618
      %v620 = vpop.f32.mrb[0].mxu0
      %v621 = vpop.f32.mrb[0].mxu0
      %v622 = vadd.f32 %v410, %v621
      %v623 = vpop.f32.mrb[0].mxu0
      %624 = vmatprep.mubr.bf16.mxu0 0
      %625 = vmatmul.mubr.bf16.gmra.mrb[0].mxu0 %v507
      %v626 = vpop.f32.mrb[0].mxu0
      %v627 = vadd.f32 %v415, %v626
      %v628 = vpop.f32.mrb[0].mxu0
      %v629 = vpop.f32.mrb[0].mxu0
      %v630 = vadd.f32 %v418, %v629
      %v631 = vpop.f32.mrb[0].mxu0
      %632 = vmatprep.mubr.bf16.mxu0 0
      %633 = vmatmul.mubr.bf16.gmra.mrb[0].mxu0 %v510
      %v634 = vpop.f32.mrb[0].mxu0
      %v635 = vadd.f32 %v423, %v634
      %v636 = vpop.f32.mrb[0].mxu0
      %v637 = vpop.f32.mrb[0].mxu0
      %v638 = vadd.f32 %v426, %v637
      %v639 = vpop.f32.mrb[0].mxu0
      %640 = vmatprep.mubr.bf16.mxu0 0
      %641 = vmatmul.mubr.bf16.gmra.mrb[0].mxu0 %v513
      %v642 = vpop.f32.mrb[0].mxu0
      %v643 = vadd.f32 %v431, %v642
      %v644 = vpop.f32.mrb[0].mxu0
      %v645 = vpop.f32.mrb[0].mxu0
      %v646 = vadd.f32 %v434, %v645
      %v647 = vpop.f32.mrb[0].mxu0
      %648 = vmatprep.mubr.bf16.mxu0 0
      %649 = vmatmul.mubr.bf16.gmra.mrb[0].mxu0 %v516
      %v650 = vpop.f32.mrb[0].mxu0
      %v651 = vadd.f32 %v439, %v650
      %v652 = vpop.f32.mrb[0].mxu0
      %v653 = vpop.f32.mrb[0].mxu0
      %v654 = vadd.f32 %v442, %v653
      %v655 = vpop.f32.mrb[0].mxu0
      %656 = vmatprep.mubr.bf16.mxu0 0
      %657 = vmatmul.mubr.bf16.gmra.mrb[0].mxu0 %v519
      %v658 = vpop.f32.mrb[0].mxu0
      %v659 = vadd.f32 %v447, %v658
      %v660 = vpop.f32.mrb[0].mxu0
      %v661 = vpop.f32.mrb[0].mxu0
      %v662 = vadd.f32 %v450, %v661
      %v663 = vpop.f32.mrb[0].mxu0
      %664 = vmatprep.mubr.bf16.mxu0 0
      %665 = vmatmul.mubr.bf16.gmra.mrb[0].mxu0 %v522
      %v666 = vpop.f32.mrb[0].mxu0
      %v667 = vadd.f32 %v455, %v666
      %v668 = vpop.f32.mrb[0].mxu0
      %v669 = vpop.f32.mrb[0].mxu0
      %v670 = vadd.f32 %v458, %v669
      %v671 = vpop.f32.mrb[0].mxu0
      %672 = vmatprep.mubr.bf16.mxu0 0
      %673 = vmatmul.mubr.bf16.gmra.mrb[0].mxu0 %v525
      %v674 = vpop.f32.mrb[0].mxu0
      %v675 = vadd.f32 %v463, %v674
      %v676 = vpop.f32.mrb[0].mxu0
      %v677 = vpop.f32.mrb[0].mxu0
      %v678 = vadd.f32 %v466, %v677
      %v679 = vpop.f32.mrb[0].mxu0
      %680 = vmatprep.mubr.bf16.mxu0 0
      %681 = vmatmul.mubr.bf16.gmra.mrb[0].mxu0 %v528
      %v682 = vpop.f32.mrb[0].mxu0
      %v683 = vadd.f32 %v471, %v682
      %v684 = vpop.f32.mrb[0].mxu0
      %v685 = vpop.f32.mrb[0].mxu0
      %v686 = vadd.f32 %v474, %v685
      %v687 = vpop.f32.mrb[0].mxu0
      %688 = vmatprep.mubr.bf16.mxu0 0
      %689 = vmatmul.mubr.bf16.gmra.mrb[0].mxu0 %v531
      %v690 = vpop.f32.mrb[0].mxu0
      %v691 = vadd.f32 %v479, %v690
      %v692 = vpop.f32.mrb[0].mxu0
      %v693 = vpop.f32.mrb[0].mxu0
      %v694 = vadd.f32 %v482, %v693
      %v695 = vpop.f32.mrb[0].mxu0
      %696 = vdwg.mxu0
      %v697 = vld [vmem:[%s165 + $0x2] sm:$0xff]
      %v698 = vld [vmem:[%s165 + $0xa] sm:$0xff]
      %v699 = vld [vmem:[%s165 + $0x1a] sm:$0xff]
      %v700 = vld [vmem:[%s165 + $0x22] sm:$0xff]
      %v701 = vld [vmem:[%s165 + $0x32] sm:$0xff]
      %v702 = vld [vmem:[%s165 + $0x3a] sm:$0xff]
      %v703 = vld [vmem:[%s165 + $0x4a] sm:$0xff]
      %v704 = vld [vmem:[%s165 + $0x52] sm:$0xff]
      %v705 = vld [vmem:[%s165 + $0x62] sm:$0xff]
      %v706 = vld [vmem:[%s165 + $0x6a] sm:$0xff]
      %v707 = vld [vmem:[%s165 + $0x7a] sm:$0xff]
      %v708 = vld [vmem:[%s165 + $0x82] sm:$0xff]
      %v709 = vld [vmem:[%s165 + $0x92] sm:$0xff]
      %v710 = vld [vmem:[%s165 + $0x9a] sm:$0xff]
      %v711 = vld [vmem:[%s165 + $0xaa] sm:$0xff]
      %v712 = vld [vmem:[%s165 + $0xb2] sm:$0xff]
      %v713 = vld [vmem:[%s165 + $0xc2] sm:$0xff]
      %v714 = vld [vmem:[%s165 + $0xca] sm:$0xff]
      %v715 = vld [vmem:[%s165 + $0xda] sm:$0xff]
      %v716 = vld [vmem:[%s165 + $0xe2] sm:$0xff]
      %v717 = vld [vmem:[%s165 + $0xf2] sm:$0xff]
      %v718 = vld [vmem:[%s165 + $0xfa] sm:$0xff]
      %v719 = vld [vmem:[%s165 + $0x10a] sm:$0xff]
      %v720 = vld [vmem:[%s165 + $0x112] sm:$0xff]
      %v721 = vld [vmem:[%s165 + $0x122] sm:$0xff]
      %v722 = vld [vmem:[%s165 + $0x12a] sm:$0xff]
      %v723 = vld [vmem:[%s165 + $0x13a] sm:$0xff]
      %v724 = vld [vmem:[%s165 + $0x142] sm:$0xff]
      %v725 = vld [vmem:[%s165 + $0x152] sm:$0xff]
      %v726 = vld [vmem:[%s165 + $0x15a] sm:$0xff]
      %v727 = vld [vmem:[%s165 + $0x16a] sm:$0xff]
      %v728 = vld [vmem:[%s165 + $0x172] sm:$0xff]
      %v729 = vpack.c.bf16 %v698, %v697
      %v730 = vpack.c.bf16 %v700, %v699
      %v731 = vpack.c.bf16 %v702, %v701
      %v732 = vpack.c.bf16 %v704, %v703
      %v733 = vpack.c.bf16 %v706, %v705
      %v734 = vpack.c.bf16 %v708, %v707
      %v735 = vpack.c.bf16 %v710, %v709
      %v736 = vpack.c.bf16 %v712, %v711
      %v737 = vpack.c.bf16 %v714, %v713
      %v738 = vpack.c.bf16 %v716, %v715
      %v739 = vpack.c.bf16 %v718, %v717
      %v740 = vpack.c.bf16 %v720, %v719
      %v741 = vpack.c.bf16 %v722, %v721
      %v742 = vpack.c.bf16 %v724, %v723
      %v743 = vpack.c.bf16 %v726, %v725
      %v744 = vpack.c.bf16 %v728, %v727
      %s745 = scalar_lea.vmem %s1, 4
      %v746 = vld [vmem:[%s745] sm:$0x3]
      %v748 = vsel %vm271, %v729, 0
      %v751 = vsel %vm271, %v730, 0
      %v754 = vsel %vm271, %v731, 0
      %v757 = vsel %vm271, %v732, 0
      %v760 = vsel %vm271, %v733, 0
      %v763 = vsel %vm271, %v734, 0
      %v766 = vsel %vm271, %v735, 0
      %v769 = vsel %vm271, %v736, 0
      %v772 = vsel %vm271, %v737, 0
      %v775 = vsel %vm271, %v738, 0
      %v778 = vsel %vm271, %v739, 0
      %v781 = vsel %vm271, %v740, 0
      %v784 = vsel %vm271, %v741, 0
      %v787 = vsel %vm271, %v742, 0
      %v790 = vsel %vm271, %v743, 0
      %v793 = vsel %vm271, %v744, 0
      %v796 = vsel %vm320, %v746, 0
      %798 = vmatprep.subr.bf16.mxu0 0
      %799 = vmatpush1.bf16.msra.mxu0 %v796
      %800 = vmatprep.subr.bf16.mxu0 0
      %801 = vmatpush1.bf16.msra.mxu0 0
      %802 = vmatprep.subr.bf16.mxu0 0
      %803 = vmatpush1.bf16.msra.mxu0 0
      %804 = vmatprep.subr.bf16.mxu0 0
      %805 = vmatpush1.bf16.msra.mxu0 0
      %806 = vmatprep.subr.bf16.mxu0 0
      %807 = vmatpush1.bf16.msra.mxu0 0
      %808 = vmatprep.subr.bf16.mxu0 0
      %809 = vmatpush1.bf16.msra.mxu0 0
      %810 = vmatprep.subr.bf16.mxu0 0
      %811 = vmatpush1.bf16.msra.mxu0 0
      %812 = vmatprep.subr.bf16.mxu0 0
      %813 = vmatpush1.bf16.msra.mxu0 0
      %814 = vmatprep.subr.bf16.mxu0 0
      %815 = vmatpush1.bf16.msra.mxu0 0
      %816 = vmatprep.subr.bf16.mxu0 0
      %817 = vmatpush1.bf16.msra.mxu0 0
      %818 = vmatprep.subr.bf16.mxu0 0
      %819 = vmatpush1.bf16.msra.mxu0 0
      %820 = vmatprep.subr.bf16.mxu0 0
      %821 = vmatpush1.bf16.msra.mxu0 0
      %822 = vmatprep.subr.bf16.mxu0 0
      %823 = vmatpush1.bf16.msra.mxu0 0
      %824 = vmatprep.subr.bf16.mxu0 0
      %825 = vmatpush1.bf16.msra.mxu0 0
      %826 = vmatprep.subr.bf16.mxu0 0
      %827 = vmatpush1.bf16.msra.mxu0 0
      %828 = vmatprep.subr.bf16.mxu0 0
      %829 = vmatpush1.bf16.msra.mxu0 0
      %830 = vmatprep.mubr.bf16.mxu0 0
      %831 = vmatmul.mubr.bf16.gmra.mrb[0].mxu0 %v748
      %v832 = vpop.f32.mrb[0].mxu0
      %v833 = vadd.f32 0.0, %v832
      %v834 = vpop.f32.mrb[0].mxu0
      %v835 = vpop.f32.mrb[0].mxu0
      %v836 = vadd.f32 0.0, %v835
      %v837 = vpop.f32.mrb[0].mxu0
      %838 = vmatprep.mubr.bf16.mxu0 0
      %839 = vmatmul.mubr.bf16.gmra.mrb[0].mxu0 %v751
      %v840 = vpop.f32.mrb[0].mxu0
      %v841 = vadd.f32 0.0, %v840
      %v842 = vpop.f32.mrb[0].mxu0
      %v843 = vpop.f32.mrb[0].mxu0
      %v844 = vadd.f32 0.0, %v843
      %v845 = vpop.f32.mrb[0].mxu0
      %846 = vmatprep.mubr.bf16.mxu0 0
      %847 = vmatmul.mubr.bf16.gmra.mrb[0].mxu0 %v754
      %v848 = vpop.f32.mrb[0].mxu0
      %v849 = vadd.f32 0.0, %v848
      %v850 = vpop.f32.mrb[0].mxu0
      %v851 = vpop.f32.mrb[0].mxu0
      %v852 = vadd.f32 0.0, %v851
      %v853 = vpop.f32.mrb[0].mxu0
      %854 = vmatprep.mubr.bf16.mxu0 0
      %855 = vmatmul.mubr.bf16.gmra.mrb[0].mxu0 %v757
      %v856 = vpop.f32.mrb[0].mxu0
      %v857 = vadd.f32 0.0, %v856
      %v858 = vpop.f32.mrb[0].mxu0
      %v859 = vpop.f32.mrb[0].mxu0
      %v860 = vadd.f32 0.0, %v859
      %v861 = vpop.f32.mrb[0].mxu0
      %862 = vmatprep.mubr.bf16.mxu0 0
      %863 = vmatmul.mubr.bf16.gmra.mrb[0].mxu0 %v760
      %v864 = vpop.f32.mrb[0].mxu0
      %v865 = vadd.f32 0.0, %v864
      %v866 = vpop.f32.mrb[0].mxu0
      %v867 = vpop.f32.mrb[0].mxu0
      %v868 = vadd.f32 0.0, %v867
      %v869 = vpop.f32.mrb[0].mxu0
      %870 = vmatprep.mubr.bf16.mxu0 0
      %871 = vmatmul.mubr.bf16.gmra.mrb[0].mxu0 %v763
      %v872 = vpop.f32.mrb[0].mxu0
      %v873 = vadd.f32 0.0, %v872
      %v874 = vpop.f32.mrb[0].mxu0
      %v875 = vpop.f32.mrb[0].mxu0
      %v876 = vadd.f32 0.0, %v875
      %v877 = vpop.f32.mrb[0].mxu0
      %878 = vmatprep.mubr.bf16.mxu0 0
      %879 = vmatmul.mubr.bf16.gmra.mrb[0].mxu0 %v766
      %v880 = vpop.f32.mrb[0].mxu0
      %v881 = vadd.f32 0.0, %v880
      %v882 = vpop.f32.mrb[0].mxu0
      %v883 = vpop.f32.mrb[0].mxu0
      %v884 = vadd.f32 0.0, %v883
      %v885 = vpop.f32.mrb[0].mxu0
      %886 = vmatprep.mubr.bf16.mxu0 0
      %887 = vmatmul.mubr.bf16.gmra.mrb[0].mxu0 %v769
      %v888 = vpop.f32.mrb[0].mxu0
      %v889 = vadd.f32 0.0, %v888
      %v890 = vpop.f32.mrb[0].mxu0
      %v891 = vpop.f32.mrb[0].mxu0
      %v892 = vadd.f32 0.0, %v891
      %v893 = vpop.f32.mrb[0].mxu0
      %894 = vmatprep.mubr.bf16.mxu0 0
      %895 = vmatmul.mubr.bf16.gmra.mrb[0].mxu0 %v772
      %v896 = vpop.f32.mrb[0].mxu0
      %v897 = vadd.f32 0.0, %v896
      %v898 = vpop.f32.mrb[0].mxu0
      %v899 = vpop.f32.mrb[0].mxu0
      %v900 = vadd.f32 0.0, %v899
      %v901 = vpop.f32.mrb[0].mxu0
      %902 = vmatprep.mubr.bf16.mxu0 0
      %903 = vmatmul.mubr.bf16.gmra.mrb[0].mxu0 %v775
      %v904 = vpop.f32.mrb[0].mxu0
      %v905 = vadd.f32 0.0, %v904
      %v906 = vpop.f32.mrb[0].mxu0
      %v907 = vpop.f32.mrb[0].mxu0
      %v908 = vadd.f32 0.0, %v907
      %v909 = vpop.f32.mrb[0].mxu0
      %910 = vmatprep.mubr.bf16.mxu0 0
      %911 = vmatmul.mubr.bf16.gmra.mrb[0].mxu0 %v778
      %v912 = vpop.f32.mrb[0].mxu0
      %v913 = vadd.f32 0.0, %v912
      %v914 = vpop.f32.mrb[0].mxu0
      %v915 = vpop.f32.mrb[0].mxu0
      %v916 = vadd.f32 0.0, %v915
      %v917 = vpop.f32.mrb[0].mxu0
      %918 = vmatprep.mubr.bf16.mxu0 0
      %919 = vmatmul.mubr.bf16.gmra.mrb[0].mxu0 %v781
      %v920 = vpop.f32.mrb[0].mxu0
      %v921 = vadd.f32 0.0, %v920
      %v922 = vpop.f32.mrb[0].mxu0
      %v923 = vpop.f32.mrb[0].mxu0
      %v924 = vadd.f32 0.0, %v923
      %v925 = vpop.f32.mrb[0].mxu0
      %926 = vmatprep.mubr.bf16.mxu0 0
      %927 = vmatmul.mubr.bf16.gmra.mrb[0].mxu0 %v784
      %v928 = vpop.f32.mrb[0].mxu0
      %v929 = vadd.f32 0.0, %v928
      %v930 = vpop.f32.mrb[0].mxu0
      %v931 = vpop.f32.mrb[0].mxu0
      %v932 = vadd.f32 0.0, %v931
      %v933 = vpop.f32.mrb[0].mxu0
      %934 = vmatprep.mubr.bf16.mxu0 0
      %935 = vmatmul.mubr.bf16.gmra.mrb[0].mxu0 %v787
      %v936 = vpop.f32.mrb[0].mxu0
      %v937 = vadd.f32 0.0, %v936
      %v938 = vpop.f32.mrb[0].mxu0
      %v939 = vpop.f32.mrb[0].mxu0
      %v940 = vadd.f32 0.0, %v939
      %v941 = vpop.f32.mrb[0].mxu0
      %942 = vmatprep.mubr.bf16.mxu0 0
      %943 = vmatmul.mubr.bf16.gmra.mrb[0].mxu0 %v790
      %v944 = vpop.f32.mrb[0].mxu0
      %v945 = vadd.f32 0.0, %v944
      %v946 = vpop.f32.mrb[0].mxu0
      %v947 = vpop.f32.mrb[0].mxu0
      %v948 = vadd.f32 0.0, %v947
      %v949 = vpop.f32.mrb[0].mxu0
      %950 = vmatprep.mubr.bf16.mxu0 0
      %951 = vmatmul.mubr.bf16.gmra.mrb[0].mxu0 %v793
      %v952 = vpop.f32.mrb[0].mxu0
      %v953 = vadd.f32 0.0, %v952
      %v954 = vpop.f32.mrb[0].mxu0
      %v955 = vpop.f32.mrb[0].mxu0
      %v956 = vadd.f32 0.0, %v955
      %v957 = vpop.f32.mrb[0].mxu0
      %958 = vdwg.mxu0
      %v959 = vadd.f32 %v571, %v833
      %v960 = vadd.f32 %v574, %v836
      %v961 = vadd.f32 %v579, %v841
      %v962 = vadd.f32 %v582, %v844
      %v963 = vadd.f32 %v587, %v849
      %v964 = vadd.f32 %v590, %v852
      %v965 = vadd.f32 %v595, %v857
      %v966 = vadd.f32 %v598, %v860
      %v967 = vadd.f32 %v603, %v865
      %v968 = vadd.f32 %v606, %v868
      %v969 = vadd.f32 %v611, %v873
      %v970 = vadd.f32 %v614, %v876
      %v971 = vadd.f32 %v619, %v881
      %v972 = vadd.f32 %v622, %v884
      %v973 = vadd.f32 %v627, %v889
      %v974 = vadd.f32 %v630, %v892
      %v975 = vadd.f32 %v635, %v897
      %v976 = vadd.f32 %v638, %v900
      %v977 = vadd.f32 %v643, %v905
      %v978 = vadd.f32 %v646, %v908
      %v979 = vadd.f32 %v651, %v913
      %v980 = vadd.f32 %v654, %v916
      %v981 = vadd.f32 %v659, %v921
      %v982 = vadd.f32 %v662, %v924
      %v983 = vadd.f32 %v667, %v929
      %v984 = vadd.f32 %v670, %v932
      %v985 = vadd.f32 %v675, %v937
      %v986 = vadd.f32 %v678, %v940
      %v987 = vadd.f32 %v683, %v945
      %v988 = vadd.f32 %v686, %v948
      %v989 = vadd.f32 %v691, %v953
      %v990 = vadd.f32 %v694, %v956
      %s991 = scalar_lea.vmem %s165, 24
      %v992 = vld [vmem:[%s991] sm:$0xff]
      %v993 = vld [vmem:[%s991 + $0x8] sm:$0xff]
      %v994 = vld [vmem:[%s991 + $0x18] sm:$0xff]
      %v995 = vld [vmem:[%s991 + $0x20] sm:$0xff]
      %v996 = vld [vmem:[%s991 + $0x30] sm:$0xff]
      %v997 = vld [vmem:[%s991 + $0x38] sm:$0xff]
      %v998 = vld [vmem:[%s991 + $0x48] sm:$0xff]
      %v999 = vld [vmem:[%s991 + $0x50] sm:$0xff]
      %v1000 = vld [vmem:[%s991 + $0x60] sm:$0xff]
      %v1001 = vld [vmem:[%s991 + $0x68] sm:$0xff]
      %v1002 = vld [vmem:[%s991 + $0x78] sm:$0xff]
      %v1003 = vld [vmem:[%s991 + $0x80] sm:$0xff]
      %v1004 = vld [vmem:[%s991 + $0x90] sm:$0xff]
      %v1005 = vld [vmem:[%s991 + $0x98] sm:$0xff]
      %v1006 = vld [vmem:[%s991 + $0xa8] sm:$0xff]
      %v1007 = vld [vmem:[%s991 + $0xb0] sm:$0xff]
      %v1008 = vld [vmem:[%s991 + $0xc0] sm:$0xff]
      %v1009 = vld [vmem:[%s991 + $0xc8] sm:$0xff]
      %v1010 = vld [vmem:[%s991 + $0xd8] sm:$0xff]
      %v1011 = vld [vmem:[%s991 + $0xe0] sm:$0xff]
      %v1012 = vld [vmem:[%s991 + $0xf0] sm:$0xff]
      %v1013 = vld [vmem:[%s991 + $0xf8] sm:$0xff]
      %v1014 = vld [vmem:[%s991 + $0x108] sm:$0xff]
      %v1015 = vld [vmem:[%s991 + $0x110] sm:$0xff]
      %v1016 = vld [vmem:[%s991 + $0x120] sm:$0xff]
      %v1017 = vld [vmem:[%s991 + $0x128] sm:$0xff]
      %v1018 = vld [vmem:[%s991 + $0x138] sm:$0xff]
      %v1019 = vld [vmem:[%s991 + $0x140] sm:$0xff]
      %v1020 = vld [vmem:[%s991 + $0x150] sm:$0xff]
      %v1021 = vld [vmem:[%s991 + $0x158] sm:$0xff]
      %v1022 = vld [vmem:[%s991 + $0x168] sm:$0xff]
      %v1023 = vld [vmem:[%s991 + $0x170] sm:$0xff]
      %v1024 = vpack.c.bf16 %v993, %v992
      %v1025 = vpack.c.bf16 %v995, %v994
      %v1026 = vpack.c.bf16 %v997, %v996
      %v1027 = vpack.c.bf16 %v999, %v998
      %v1028 = vpack.c.bf16 %v1001, %v1000
      %v1029 = vpack.c.bf16 %v1003, %v1002
      %v1030 = vpack.c.bf16 %v1005, %v1004
      %v1031 = vpack.c.bf16 %v1007, %v1006
      %v1032 = vpack.c.bf16 %v1009, %v1008
      %v1033 = vpack.c.bf16 %v1011, %v1010
      %v1034 = vpack.c.bf16 %v1013, %v1012
      %v1035 = vpack.c.bf16 %v1015, %v1014
      %v1036 = vpack.c.bf16 %v1017, %v1016
      %v1037 = vpack.c.bf16 %v1019, %v1018
      %v1038 = vpack.c.bf16 %v1021, %v1020
      %v1039 = vpack.c.bf16 %v1023, %v1022
      %s1040 = scalar_lea.vmem %s1, 6
      %v1041 = vld [vmem:[%s1040] sm:$0x3]
      %v1043 = vsel %vm271, %v1024, 0
      %v1046 = vsel %vm271, %v1025, 0
      %v1049 = vsel %vm271, %v1026, 0
      %v1052 = vsel %vm271, %v1027, 0
      %v1055 = vsel %vm271, %v1028, 0
      %v1058 = vsel %vm271, %v1029, 0
      %v1061 = vsel %vm271, %v1030, 0
      %v1064 = vsel %vm271, %v1031, 0
      %v1067 = vsel %vm271, %v1032, 0
      %v1070 = vsel %vm271, %v1033, 0
      %v1073 = vsel %vm271, %v1034, 0
      %v1076 = vsel %vm271, %v1035, 0
      %v1079 = vsel %vm271, %v1036, 0
      %v1082 = vsel %vm271, %v1037, 0
      %v1085 = vsel %vm271, %v1038, 0
      %v1088 = vsel %vm271, %v1039, 0
      %v1091 = vsel %vm320, %v1041, 0
      %1093 = vmatprep.subr.bf16.mxu0 0
      %1094 = vmatpush1.bf16.msra.mxu0 %v1091
      %1095 = vmatprep.subr.bf16.mxu0 0
      %1096 = vmatpush1.bf16.msra.mxu0 0
      %1097 = vmatprep.subr.bf16.mxu0 0
      %1098 = vmatpush1.bf16.msra.mxu0 0
      %1099 = vmatprep.subr.bf16.mxu0 0
      %1100 = vmatpush1.bf16.msra.mxu0 0
      %1101 = vmatprep.subr.bf16.mxu0 0
      %1102 = vmatpush1.bf16.msra.mxu0 0
      %1103 = vmatprep.subr.bf16.mxu0 0
      %1104 = vmatpush1.bf16.msra.mxu0 0
      %1105 = vmatprep.subr.bf16.mxu0 0
      %1106 = vmatpush1.bf16.msra.mxu0 0
      %1107 = vmatprep.subr.bf16.mxu0 0
      %1108 = vmatpush1.bf16.msra.mxu0 0
      %1109 = vmatprep.subr.bf16.mxu0 0
      %1110 = vmatpush1.bf16.msra.mxu0 0
      %1111 = vmatprep.subr.bf16.mxu0 0
      %1112 = vmatpush1.bf16.msra.mxu0 0
      %1113 = vmatprep.subr.bf16.mxu0 0
      %1114 = vmatpush1.bf16.msra.mxu0 0
      %1115 = vmatprep.subr.bf16.mxu0 0
      %1116 = vmatpush1.bf16.msra.mxu0 0
      %1117 = vmatprep.subr.bf16.mxu0 0
      %1118 = vmatpush1.bf16.msra.mxu0 0
      %1119 = vmatprep.subr.bf16.mxu0 0
      %1120 = vmatpush1.bf16.msra.mxu0 0
      %1121 = vmatprep.subr.bf16.mxu0 0
      %1122 = vmatpush1.bf16.msra.mxu0 0
      %1123 = vmatprep.subr.bf16.mxu0 0
      %1124 = vmatpush1.bf16.msra.mxu0 0
      %1125 = vmatprep.mubr.bf16.mxu0 0
      %1126 = vmatmul.mubr.bf16.gmra.mrb[0].mxu0 %v1043
      %v1127 = vpop.f32.mrb[0].mxu0
      %v1128 = vadd.f32 0.0, %v1127
      %v1129 = vpop.f32.mrb[0].mxu0
      %v1130 = vpop.f32.mrb[0].mxu0
      %v1131 = vadd.f32 0.0, %v1130
      %v1132 = vpop.f32.mrb[0].mxu0
      %1133 = vmatprep.mubr.bf16.mxu0 0
      %1134 = vmatmul.mubr.bf16.gmra.mrb[0].mxu0 %v1046
      %v1135 = vpop.f32.mrb[0].mxu0
      %v1136 = vadd.f32 0.0, %v1135
      %v1137 = vpop.f32.mrb[0].mxu0
      %v1138 = vpop.f32.mrb[0].mxu0
      %v1139 = vadd.f32 0.0, %v1138
      %v1140 = vpop.f32.mrb[0].mxu0
      %1141 = vmatprep.mubr.bf16.mxu0 0
      %1142 = vmatmul.mubr.bf16.gmra.mrb[0].mxu0 %v1049
      %v1143 = vpop.f32.mrb[0].mxu0
      %v1144 = vadd.f32 0.0, %v1143
      %v1145 = vpop.f32.mrb[0].mxu0
      %v1146 = vpop.f32.mrb[0].mxu0
      %v1147 = vadd.f32 0.0, %v1146
      %v1148 = vpop.f32.mrb[0].mxu0
      %1149 = vmatprep.mubr.bf16.mxu0 0
      %1150 = vmatmul.mubr.bf16.gmra.mrb[0].mxu0 %v1052
      %v1151 = vpop.f32.mrb[0].mxu0
      %v1152 = vadd.f32 0.0, %v1151
      %v1153 = vpop.f32.mrb[0].mxu0
      %v1154 = vpop.f32.mrb[0].mxu0
      %v1155 = vadd.f32 0.0, %v1154
      %v1156 = vpop.f32.mrb[0].mxu0
      %1157 = vmatprep.mubr.bf16.mxu0 0
      %1158 = vmatmul.mubr.bf16.gmra.mrb[0].mxu0 %v1055
      %v1159 = vpop.f32.mrb[0].mxu0
      %v1160 = vadd.f32 0.0, %v1159
      %v1161 = vpop.f32.mrb[0].mxu0
      %v1162 = vpop.f32.mrb[0].mxu0
      %v1163 = vadd.f32 0.0, %v1162
      %v1164 = vpop.f32.mrb[0].mxu0
      %1165 = vmatprep.mubr.bf16.mxu0 0
      %1166 = vmatmul.mubr.bf16.gmra.mrb[0].mxu0 %v1058
      %v1167 = vpop.f32.mrb[0].mxu0
      %v1168 = vadd.f32 0.0, %v1167
      %v1169 = vpop.f32.mrb[0].mxu0
      %v1170 = vpop.f32.mrb[0].mxu0
      %v1171 = vadd.f32 0.0, %v1170
      %v1172 = vpop.f32.mrb[0].mxu0
      %1173 = vmatprep.mubr.bf16.mxu0 0
      %1174 = vmatmul.mubr.bf16.gmra.mrb[0].mxu0 %v1061
      %v1175 = vpop.f32.mrb[0].mxu0
      %v1176 = vadd.f32 0.0, %v1175
      %v1177 = vpop.f32.mrb[0].mxu0
      %v1178 = vpop.f32.mrb[0].mxu0
      %v1179 = vadd.f32 0.0, %v1178
      %v1180 = vpop.f32.mrb[0].mxu0
      %1181 = vmatprep.mubr.bf16.mxu0 0
      %1182 = vmatmul.mubr.bf16.gmra.mrb[0].mxu0 %v1064
      %v1183 = vpop.f32.mrb[0].mxu0
      %v1184 = vadd.f32 0.0, %v1183
      %v1185 = vpop.f32.mrb[0].mxu0
      %v1186 = vpop.f32.mrb[0].mxu0
      %v1187 = vadd.f32 0.0, %v1186
      %v1188 = vpop.f32.mrb[0].mxu0
      %1189 = vmatprep.mubr.bf16.mxu0 0
      %1190 = vmatmul.mubr.bf16.gmra.mrb[0].mxu0 %v1067
      %v1191 = vpop.f32.mrb[0].mxu0
      %v1192 = vadd.f32 0.0, %v1191
      %v1193 = vpop.f32.mrb[0].mxu0
      %v1194 = vpop.f32.mrb[0].mxu0
      %v1195 = vadd.f32 0.0, %v1194
      %v1196 = vpop.f32.mrb[0].mxu0
      %1197 = vmatprep.mubr.bf16.mxu0 0
      %1198 = vmatmul.mubr.bf16.gmra.mrb[0].mxu0 %v1070
      %v1199 = vpop.f32.mrb[0].mxu0
      %v1200 = vadd.f32 0.0, %v1199
      %v1201 = vpop.f32.mrb[0].mxu0
      %v1202 = vpop.f32.mrb[0].mxu0
      %v1203 = vadd.f32 0.0, %v1202
      %v1204 = vpop.f32.mrb[0].mxu0
      %1205 = vmatprep.mubr.bf16.mxu0 0
      %1206 = vmatmul.mubr.bf16.gmra.mrb[0].mxu0 %v1073
      %v1207 = vpop.f32.mrb[0].mxu0
      %v1208 = vadd.f32 0.0, %v1207
      %v1209 = vpop.f32.mrb[0].mxu0
      %v1210 = vpop.f32.mrb[0].mxu0
      %v1211 = vadd.f32 0.0, %v1210
      %v1212 = vpop.f32.mrb[0].mxu0
      %1213 = vmatprep.mubr.bf16.mxu0 0
      %1214 = vmatmul.mubr.bf16.gmra.mrb[0].mxu0 %v1076
      %v1215 = vpop.f32.mrb[0].mxu0
      %v1216 = vadd.f32 0.0, %v1215
      %v1217 = vpop.f32.mrb[0].mxu0
      %v1218 = vpop.f32.mrb[0].mxu0
      %v1219 = vadd.f32 0.0, %v1218
      %v1220 = vpop.f32.mrb[0].mxu0
      %1221 = vmatprep.mubr.bf16.mxu0 0
      %1222 = vmatmul.mubr.bf16.gmra.mrb[0].mxu0 %v1079
      %v1223 = vpop.f32.mrb[0].mxu0
      %v1224 = vadd.f32 0.0, %v1223
      %v1225 = vpop.f32.mrb[0].mxu0
      %v1226 = vpop.f32.mrb[0].mxu0
      %v1227 = vadd.f32 0.0, %v1226
      %v1228 = vpop.f32.mrb[0].mxu0
      %1229 = vmatprep.mubr.bf16.mxu0 0
      %1230 = vmatmul.mubr.bf16.gmra.mrb[0].mxu0 %v1082
      %v1231 = vpop.f32.mrb[0].mxu0
      %v1232 = vadd.f32 0.0, %v1231
      %v1233 = vpop.f32.mrb[0].mxu0
      %v1234 = vpop.f32.mrb[0].mxu0
      %v1235 = vadd.f32 0.0, %v1234
      %v1236 = vpop.f32.mrb[0].mxu0
      %1237 = vmatprep.mubr.bf16.mxu0 0
      %1238 = vmatmul.mubr.bf16.gmra.mrb[0].mxu0 %v1085
      %v1239 = vpop.f32.mrb[0].mxu0
      %v1240 = vadd.f32 0.0, %v1239
      %v1241 = vpop.f32.mrb[0].mxu0
      %v1242 = vpop.f32.mrb[0].mxu0
      %v1243 = vadd.f32 0.0, %v1242
      %v1244 = vpop.f32.mrb[0].mxu0
      %1245 = vmatprep.mubr.bf16.mxu0 0
      %1246 = vmatmul.mubr.bf16.gmra.mrb[0].mxu0 %v1088
      %v1247 = vpop.f32.mrb[0].mxu0
      %v1248 = vadd.f32 0.0, %v1247
      %v1249 = vpop.f32.mrb[0].mxu0
      %v1250 = vpop.f32.mrb[0].mxu0
      %v1251 = vadd.f32 0.0, %v1250
      %v1252 = vpop.f32.mrb[0].mxu0
      %1253 = vdwg.mxu0
      %v1254 = vadd.f32 %v959, %v1128
      %v1255 = vadd.f32 %v960, %v1131
      %v1256 = vadd.f32 %v961, %v1136
      %v1257 = vadd.f32 %v962, %v1139
      %v1258 = vadd.f32 %v963, %v1144
      %v1259 = vadd.f32 %v964, %v1147
      %v1260 = vadd.f32 %v965, %v1152
      %v1261 = vadd.f32 %v966, %v1155
      %v1262 = vadd.f32 %v967, %v1160
      %v1263 = vadd.f32 %v968, %v1163
      %v1264 = vadd.f32 %v969, %v1168
      %v1265 = vadd.f32 %v970, %v1171
      %v1266 = vadd.f32 %v971, %v1176
      %v1267 = vadd.f32 %v972, %v1179
      %v1268 = vadd.f32 %v973, %v1184
      %v1269 = vadd.f32 %v974, %v1187
      %v1270 = vadd.f32 %v975, %v1192
      %v1271 = vadd.f32 %v976, %v1195
      %v1272 = vadd.f32 %v977, %v1200
      %v1273 = vadd.f32 %v978, %v1203
      %v1274 = vadd.f32 %v979, %v1208
      %v1275 = vadd.f32 %v980, %v1211
      %v1276 = vadd.f32 %v981, %v1216
      %v1277 = vadd.f32 %v982, %v1219
      %v1278 = vadd.f32 %v983, %v1224
      %v1279 = vadd.f32 %v984, %v1227
      %v1280 = vadd.f32 %v985, %v1232
      %v1281 = vadd.f32 %v986, %v1235
      %v1282 = vadd.f32 %v987, %v1240
      %v1283 = vadd.f32 %v988, %v1243
      %v1284 = vadd.f32 %v989, %v1248
      %v1285 = vadd.f32 %v990, %v1251
      %v1286 = vld [vmem:[%s991 + $0x1] sm:$0xff]
      %v1287 = vld [vmem:[%s991 + $0x9] sm:$0xff]
      %v1288 = vld [vmem:[%s991 + $0x19] sm:$0xff]
      %v1289 = vld [vmem:[%s991 + $0x21] sm:$0xff]
      %v1290 = vld [vmem:[%s991 + $0x31] sm:$0xff]
      %v1291 = vld [vmem:[%s991 + $0x39] sm:$0xff]
      %v1292 = vld [vmem:[%s991 + $0x49] sm:$0xff]
      %v1293 = vld [vmem:[%s991 + $0x51] sm:$0xff]
      %v1294 = vld [vmem:[%s991 + $0x61] sm:$0xff]
      %v1295 = vld [vmem:[%s991 + $0x69] sm:$0xff]
      %v1296 = vld [vmem:[%s991 + $0x79] sm:$0xff]
      %v1297 = vld [vmem:[%s991 + $0x81] sm:$0xff]
      %v1298 = vld [vmem:[%s991 + $0x91] sm:$0xff]
      %v1299 = vld [vmem:[%s991 + $0x99] sm:$0xff]
      %v1300 = vld [vmem:[%s991 + $0xa9] sm:$0xff]
      %v1301 = vld [vmem:[%s991 + $0xb1] sm:$0xff]
      %v1302 = vld [vmem:[%s991 + $0xc1] sm:$0xff]
      %v1303 = vld [vmem:[%s991 + $0xc9] sm:$0xff]
      %v1304 = vld [vmem:[%s991 + $0xd9] sm:$0xff]
      %v1305 = vld [vmem:[%s991 + $0xe1] sm:$0xff]
      %v1306 = vld [vmem:[%s991 + $0xf1] sm:$0xff]
      %v1307 = vld [vmem:[%s991 + $0xf9] sm:$0xff]
      %v1308 = vld [vmem:[%s991 + $0x109] sm:$0xff]
      %v1309 = vld [vmem:[%s991 + $0x111] sm:$0xff]
      %v1310 = vld [vmem:[%s991 + $0x121] sm:$0xff]
      %v1311 = vld [vmem:[%s991 + $0x129] sm:$0xff]
      %v1312 = vld [vmem:[%s991 + $0x139] sm:$0xff]
      %v1313 = vld [vmem:[%s991 + $0x141] sm:$0xff]
      %v1314 = vld [vmem:[%s991 + $0x151] sm:$0xff]
      %v1315 = vld [vmem:[%s991 + $0x159] sm:$0xff]
      %v1316 = vld [vmem:[%s991 + $0x169] sm:$0xff]
      %v1317 = vld [vmem:[%s991 + $0x171] sm:$0xff]
      %v1318 = vpack.c.bf16 %v1287, %v1286
      %v1319 = vpack.c.bf16 %v1289, %v1288
      %v1320 = vpack.c.bf16 %v1291, %v1290
      %v1321 = vpack.c.bf16 %v1293, %v1292
      %v1322 = vpack.c.bf16 %v1295, %v1294
      %v1323 = vpack.c.bf16 %v1297, %v1296
      %v1324 = vpack.c.bf16 %v1299, %v1298
      %v1325 = vpack.c.bf16 %v1301, %v1300
      %v1326 = vpack.c.bf16 %v1303, %v1302
      %v1327 = vpack.c.bf16 %v1305, %v1304
      %v1328 = vpack.c.bf16 %v1307, %v1306
      %v1329 = vpack.c.bf16 %v1309, %v1308
      %v1330 = vpack.c.bf16 %v1311, %v1310
      %v1331 = vpack.c.bf16 %v1313, %v1312
      %v1332 = vpack.c.bf16 %v1315, %v1314
      %v1333 = vpack.c.bf16 %v1317, %v1316
      %s1334 = scalar_lea.vmem %s1, 8
      %v1335 = vld [vmem:[%s1334] sm:$0x3]
      %v1337 = vsel %vm271, %v1318, 0
      %v1340 = vsel %vm271, %v1319, 0
      %v1343 = vsel %vm271, %v1320, 0
      %v1346 = vsel %vm271, %v1321, 0
      %v1349 = vsel %vm271, %v1322, 0
      %v1352 = vsel %vm271, %v1323, 0
      %v1355 = vsel %vm271, %v1324, 0
      %v1358 = vsel %vm271, %v1325, 0
      %v1361 = vsel %vm271, %v1326, 0
      %v1364 = vsel %vm271, %v1327, 0
      %v1367 = vsel %vm271, %v1328, 0
      %v1370 = vsel %vm271, %v1329, 0
      %v1373 = vsel %vm271, %v1330, 0
      %v1376 = vsel %vm271, %v1331, 0
      %v1379 = vsel %vm271, %v1332, 0
      %v1382 = vsel %vm271, %v1333, 0
      %v1385 = vsel %vm320, %v1335, 0
      %1387 = vmatprep.subr.bf16.mxu0 0
      %1388 = vmatpush1.bf16.msra.mxu0 %v1385
      %1389 = vmatprep.subr.bf16.mxu0 0
      %1390 = vmatpush1.bf16.msra.mxu0 0
      %1391 = vmatprep.subr.bf16.mxu0 0
      %1392 = vmatpush1.bf16.msra.mxu0 0
      %1393 = vmatprep.subr.bf16.mxu0 0
      %1394 = vmatpush1.bf16.msra.mxu0 0
      %1395 = vmatprep.subr.bf16.mxu0 0
      %1396 = vmatpush1.bf16.msra.mxu0 0
      %1397 = vmatprep.subr.bf16.mxu0 0
      %1398 = vmatpush1.bf16.msra.mxu0 0
      %1399 = vmatprep.subr.bf16.mxu0 0
      %1400 = vmatpush1.bf16.msra.mxu0 0
      %1401 = vmatprep.subr.bf16.mxu0 0
      %1402 = vmatpush1.bf16.msra.mxu0 0
      %1403 = vmatprep.subr.bf16.mxu0 0
      %1404 = vmatpush1.bf16.msra.mxu0 0
      %1405 = vmatprep.subr.bf16.mxu0 0
      %1406 = vmatpush1.bf16.msra.mxu0 0
      %1407 = vmatprep.subr.bf16.mxu0 0
      %1408 = vmatpush1.bf16.msra.mxu0 0
      %1409 = vmatprep.subr.bf16.mxu0 0
      %1410 = vmatpush1.bf16.msra.mxu0 0
      %1411 = vmatprep.subr.bf16.mxu0 0
      %1412 = vmatpush1.bf16.msra.mxu0 0
      %1413 = vmatprep.subr.bf16.mxu0 0
      %1414 = vmatpush1.bf16.msra.mxu0 0
      %1415 = vmatprep.subr.bf16.mxu0 0
      %1416 = vmatpush1.bf16.msra.mxu0 0
      %1417 = vmatprep.subr.bf16.mxu0 0
      %1418 = vmatpush1.bf16.msra.mxu0 0
      %1419 = vmatprep.mubr.bf16.mxu0 0
      %1420 = vmatmul.mubr.bf16.gmra.mrb[0].mxu0 %v1337
      %v1421 = vpop.f32.mrb[0].mxu0
      %v1422 = vadd.f32 0.0, %v1421
      %v1423 = vpop.f32.mrb[0].mxu0
      %v1424 = vpop.f32.mrb[0].mxu0
      %v1425 = vadd.f32 0.0, %v1424
      %v1426 = vpop.f32.mrb[0].mxu0
      %1427 = vmatprep.mubr.bf16.mxu0 0
      %1428 = vmatmul.mubr.bf16.gmra.mrb[0].mxu0 %v1340
      %v1429 = vpop.f32.mrb[0].mxu0
      %v1430 = vadd.f32 0.0, %v1429
      %v1431 = vpop.f32.mrb[0].mxu0
      %v1432 = vpop.f32.mrb[0].mxu0
      %v1433 = vadd.f32 0.0, %v1432
      %v1434 = vpop.f32.mrb[0].mxu0
      %1435 = vmatprep.mubr.bf16.mxu0 0
      %1436 = vmatmul.mubr.bf16.gmra.mrb[0].mxu0 %v1343
      %v1437 = vpop.f32.mrb[0].mxu0
      %v1438 = vadd.f32 0.0, %v1437
      %v1439 = vpop.f32.mrb[0].mxu0
      %v1440 = vpop.f32.mrb[0].mxu0
      %v1441 = vadd.f32 0.0, %v1440
      %v1442 = vpop.f32.mrb[0].mxu0
      %1443 = vmatprep.mubr.bf16.mxu0 0
      %1444 = vmatmul.mubr.bf16.gmra.mrb[0].mxu0 %v1346
      %v1445 = vpop.f32.mrb[0].mxu0
      %v1446 = vadd.f32 0.0, %v1445
      %v1447 = vpop.f32.mrb[0].mxu0
      %v1448 = vpop.f32.mrb[0].mxu0
      %v1449 = vadd.f32 0.0, %v1448
      %v1450 = vpop.f32.mrb[0].mxu0
      %1451 = vmatprep.mubr.bf16.mxu0 0
      %1452 = vmatmul.mubr.bf16.gmra.mrb[0].mxu0 %v1349
      %v1453 = vpop.f32.mrb[0].mxu0
      %v1454 = vadd.f32 0.0, %v1453
      %v1455 = vpop.f32.mrb[0].mxu0
      %v1456 = vpop.f32.mrb[0].mxu0
      %v1457 = vadd.f32 0.0, %v1456
      %v1458 = vpop.f32.mrb[0].mxu0
      %1459 = vmatprep.mubr.bf16.mxu0 0
      %1460 = vmatmul.mubr.bf16.gmra.mrb[0].mxu0 %v1352
      %v1461 = vpop.f32.mrb[0].mxu0
      %v1462 = vadd.f32 0.0, %v1461
      %v1463 = vpop.f32.mrb[0].mxu0
      %v1464 = vpop.f32.mrb[0].mxu0
      %v1465 = vadd.f32 0.0, %v1464
      %v1466 = vpop.f32.mrb[0].mxu0
      %1467 = vmatprep.mubr.bf16.mxu0 0
      %1468 = vmatmul.mubr.bf16.gmra.mrb[0].mxu0 %v1355
      %v1469 = vpop.f32.mrb[0].mxu0
      %v1470 = vadd.f32 0.0, %v1469
      %v1471 = vpop.f32.mrb[0].mxu0
      %v1472 = vpop.f32.mrb[0].mxu0
      %v1473 = vadd.f32 0.0, %v1472
      %v1474 = vpop.f32.mrb[0].mxu0
      %1475 = vmatprep.mubr.bf16.mxu0 0
      %1476 = vmatmul.mubr.bf16.gmra.mrb[0].mxu0 %v1358
      %v1477 = vpop.f32.mrb[0].mxu0
      %v1478 = vadd.f32 0.0, %v1477
      %v1479 = vpop.f32.mrb[0].mxu0
      %v1480 = vpop.f32.mrb[0].mxu0
      %v1481 = vadd.f32 0.0, %v1480
      %v1482 = vpop.f32.mrb[0].mxu0
      %1483 = vmatprep.mubr.bf16.mxu0 0
      %1484 = vmatmul.mubr.bf16.gmra.mrb[0].mxu0 %v1361
      %v1485 = vpop.f32.mrb[0].mxu0
      %v1486 = vadd.f32 0.0, %v1485
      %v1487 = vpop.f32.mrb[0].mxu0
      %v1488 = vpop.f32.mrb[0].mxu0
      %v1489 = vadd.f32 0.0, %v1488
      %v1490 = vpop.f32.mrb[0].mxu0
      %1491 = vmatprep.mubr.bf16.mxu0 0
      %1492 = vmatmul.mubr.bf16.gmra.mrb[0].mxu0 %v1364
      %v1493 = vpop.f32.mrb[0].mxu0
      %v1494 = vadd.f32 0.0, %v1493
      %v1495 = vpop.f32.mrb[0].mxu0
      %v1496 = vpop.f32.mrb[0].mxu0
      %v1497 = vadd.f32 0.0, %v1496
      %v1498 = vpop.f32.mrb[0].mxu0
      %1499 = vmatprep.mubr.bf16.mxu0 0
      %1500 = vmatmul.mubr.bf16.gmra.mrb[0].mxu0 %v1367
      %v1501 = vpop.f32.mrb[0].mxu0
      %v1502 = vadd.f32 0.0, %v1501
      %v1503 = vpop.f32.mrb[0].mxu0
      %v1504 = vpop.f32.mrb[0].mxu0
      %v1505 = vadd.f32 0.0, %v1504
      %v1506 = vpop.f32.mrb[0].mxu0
      %1507 = vmatprep.mubr.bf16.mxu0 0
      %1508 = vmatmul.mubr.bf16.gmra.mrb[0].mxu0 %v1370
      %v1509 = vpop.f32.mrb[0].mxu0
      %v1510 = vadd.f32 0.0, %v1509
      %v1511 = vpop.f32.mrb[0].mxu0
      %v1512 = vpop.f32.mrb[0].mxu0
      %v1513 = vadd.f32 0.0, %v1512
      %v1514 = vpop.f32.mrb[0].mxu0
      %1515 = vmatprep.mubr.bf16.mxu0 0
      %1516 = vmatmul.mubr.bf16.gmra.mrb[0].mxu0 %v1373
      %v1517 = vpop.f32.mrb[0].mxu0
      %v1518 = vadd.f32 0.0, %v1517
      %v1519 = vpop.f32.mrb[0].mxu0
      %v1520 = vpop.f32.mrb[0].mxu0
      %v1521 = vadd.f32 0.0, %v1520
      %v1522 = vpop.f32.mrb[0].mxu0
      %1523 = vmatprep.mubr.bf16.mxu0 0
      %1524 = vmatmul.mubr.bf16.gmra.mrb[0].mxu0 %v1376
      %v1525 = vpop.f32.mrb[0].mxu0
      %v1526 = vadd.f32 0.0, %v1525
      %v1527 = vpop.f32.mrb[0].mxu0
      %v1528 = vpop.f32.mrb[0].mxu0
      %v1529 = vadd.f32 0.0, %v1528
      %v1530 = vpop.f32.mrb[0].mxu0
      %1531 = vmatprep.mubr.bf16.mxu0 0
      %1532 = vmatmul.mubr.bf16.gmra.mrb[0].mxu0 %v1379
      %v1533 = vpop.f32.mrb[0].mxu0
      %v1534 = vadd.f32 0.0, %v1533
      %v1535 = vpop.f32.mrb[0].mxu0
      %v1536 = vpop.f32.mrb[0].mxu0
      %v1537 = vadd.f32 0.0, %v1536
      %v1538 = vpop.f32.mrb[0].mxu0
      %1539 = vmatprep.mubr.bf16.mxu0 0
      %1540 = vmatmul.mubr.bf16.gmra.mrb[0].mxu0 %v1382
      %v1541 = vpop.f32.mrb[0].mxu0
      %v1542 = vadd.f32 0.0, %v1541
      %v1543 = vpop.f32.mrb[0].mxu0
      %v1544 = vpop.f32.mrb[0].mxu0
      %v1545 = vadd.f32 0.0, %v1544
      %v1546 = vpop.f32.mrb[0].mxu0
      %1547 = vdwg.mxu0
      %v1548 = vadd.f32 %v1254, %v1422
      %v1549 = vadd.f32 %v1255, %v1425
      %v1550 = vadd.f32 %v1256, %v1430
      %v1551 = vadd.f32 %v1257, %v1433
      %v1552 = vadd.f32 %v1258, %v1438
      %v1553 = vadd.f32 %v1259, %v1441
      %v1554 = vadd.f32 %v1260, %v1446
      %v1555 = vadd.f32 %v1261, %v1449
      %v1556 = vadd.f32 %v1262, %v1454
      %v1557 = vadd.f32 %v1263, %v1457
      %v1558 = vadd.f32 %v1264, %v1462
      %v1559 = vadd.f32 %v1265, %v1465
      %v1560 = vadd.f32 %v1266, %v1470
      %v1561 = vadd.f32 %v1267, %v1473
      %v1562 = vadd.f32 %v1268, %v1478
      %v1563 = vadd.f32 %v1269, %v1481
      %v1564 = vadd.f32 %v1270, %v1486
      %v1565 = vadd.f32 %v1271, %v1489
      %v1566 = vadd.f32 %v1272, %v1494
      %v1567 = vadd.f32 %v1273, %v1497
      %v1568 = vadd.f32 %v1274, %v1502
      %v1569 = vadd.f32 %v1275, %v1505
      %v1570 = vadd.f32 %v1276, %v1510
      %v1571 = vadd.f32 %v1277, %v1513
      %v1572 = vadd.f32 %v1278, %v1518
      %v1573 = vadd.f32 %v1279, %v1521
      %v1574 = vadd.f32 %v1280, %v1526
      %v1575 = vadd.f32 %v1281, %v1529
      %v1576 = vadd.f32 %v1282, %v1534
      %v1577 = vadd.f32 %v1283, %v1537
      %v1578 = vadd.f32 %v1284, %v1542
      %v1579 = vadd.f32 %v1285, %v1545
      %v1580 = vld [vmem:[%s991 + $0x2] sm:$0xff]
      %v1581 = vld [vmem:[%s991 + $0xa] sm:$0xff]
      %v1582 = vld [vmem:[%s991 + $0x1a] sm:$0xff]
      %v1583 = vld [vmem:[%s991 + $0x22] sm:$0xff]
      %v1584 = vld [vmem:[%s991 + $0x32] sm:$0xff]
      %v1585 = vld [vmem:[%s991 + $0x3a] sm:$0xff]
      %v1586 = vld [vmem:[%s991 + $0x4a] sm:$0xff]
      %v1587 = vld [vmem:[%s991 + $0x52] sm:$0xff]
      %v1588 = vld [vmem:[%s991 + $0x62] sm:$0xff]
      %v1589 = vld [vmem:[%s991 + $0x6a] sm:$0xff]
      %v1590 = vld [vmem:[%s991 + $0x7a] sm:$0xff]
      %v1591 = vld [vmem:[%s991 + $0x82] sm:$0xff]
      %v1592 = vld [vmem:[%s991 + $0x92] sm:$0xff]
      %v1593 = vld [vmem:[%s991 + $0x9a] sm:$0xff]
      %v1594 = vld [vmem:[%s991 + $0xaa] sm:$0xff]
      %v1595 = vld [vmem:[%s991 + $0xb2] sm:$0xff]
      %v1596 = vld [vmem:[%s991 + $0xc2] sm:$0xff]
      %v1597 = vld [vmem:[%s991 + $0xca] sm:$0xff]
      %v1598 = vld [vmem:[%s991 + $0xda] sm:$0xff]
      %v1599 = vld [vmem:[%s991 + $0xe2] sm:$0xff]
      %v1600 = vld [vmem:[%s991 + $0xf2] sm:$0xff]
      %v1601 = vld [vmem:[%s991 + $0xfa] sm:$0xff]
      %v1602 = vld [vmem:[%s991 + $0x10a] sm:$0xff]
      %v1603 = vld [vmem:[%s991 + $0x112] sm:$0xff]
      %v1604 = vld [vmem:[%s991 + $0x122] sm:$0xff]
      %v1605 = vld [vmem:[%s991 + $0x12a] sm:$0xff]
      %v1606 = vld [vmem:[%s991 + $0x13a] sm:$0xff]
      %v1607 = vld [vmem:[%s991 + $0x142] sm:$0xff]
      %v1608 = vld [vmem:[%s991 + $0x152] sm:$0xff]
      %v1609 = vld [vmem:[%s991 + $0x15a] sm:$0xff]
      %v1610 = vld [vmem:[%s991 + $0x16a] sm:$0xff]
      %v1611 = vld [vmem:[%s991 + $0x172] sm:$0xff]
      %v1612 = vpack.c.bf16 %v1581, %v1580
      %v1613 = vpack.c.bf16 %v1583, %v1582
      %v1614 = vpack.c.bf16 %v1585, %v1584
      %v1615 = vpack.c.bf16 %v1587, %v1586
      %v1616 = vpack.c.bf16 %v1589, %v1588
      %v1617 = vpack.c.bf16 %v1591, %v1590
      %v1618 = vpack.c.bf16 %v1593, %v1592
      %v1619 = vpack.c.bf16 %v1595, %v1594
      %v1620 = vpack.c.bf16 %v1597, %v1596
      %v1621 = vpack.c.bf16 %v1599, %v1598
      %v1622 = vpack.c.bf16 %v1601, %v1600
      %v1623 = vpack.c.bf16 %v1603, %v1602
      %v1624 = vpack.c.bf16 %v1605, %v1604
      %v1625 = vpack.c.bf16 %v1607, %v1606
      %v1626 = vpack.c.bf16 %v1609, %v1608
      %v1627 = vpack.c.bf16 %v1611, %v1610
      %s1628 = scalar_lea.vmem %s1, 10
      %v1629 = vld [vmem:[%s1628] sm:$0x3]
      %v1631 = vsel %vm271, %v1612, 0
      %v1634 = vsel %vm271, %v1613, 0
      %v1637 = vsel %vm271, %v1614, 0
      %v1640 = vsel %vm271, %v1615, 0
      %v1643 = vsel %vm271, %v1616, 0
      %v1646 = vsel %vm271, %v1617, 0
      %v1649 = vsel %vm271, %v1618, 0
      %v1652 = vsel %vm271, %v1619, 0
      %v1655 = vsel %vm271, %v1620, 0
      %v1658 = vsel %vm271, %v1621, 0
      %v1661 = vsel %vm271, %v1622, 0
      %v1664 = vsel %vm271, %v1623, 0
      %v1667 = vsel %vm271, %v1624, 0
      %v1670 = vsel %vm271, %v1625, 0
      %v1673 = vsel %vm271, %v1626, 0
      %v1676 = vsel %vm271, %v1627, 0
      %v1679 = vsel %vm320, %v1629, 0
      %1681 = vmatprep.subr.bf16.mxu0 0
      %1682 = vmatpush1.bf16.msra.mxu0 %v1679
      %1683 = vmatprep.subr.bf16.mxu0 0
      %1684 = vmatpush1.bf16.msra.mxu0 0
      %1685 = vmatprep.subr.bf16.mxu0 0
      %1686 = vmatpush1.bf16.msra.mxu0 0
      %1687 = vmatprep.subr.bf16.mxu0 0
      %1688 = vmatpush1.bf16.msra.mxu0 0
      %1689 = vmatprep.subr.bf16.mxu0 0
      %1690 = vmatpush1.bf16.msra.mxu0 0
      %1691 = vmatprep.subr.bf16.mxu0 0
      %1692 = vmatpush1.bf16.msra.mxu0 0
      %1693 = vmatprep.subr.bf16.mxu0 0
      %1694 = vmatpush1.bf16.msra.mxu0 0
      %1695 = vmatprep.subr.bf16.mxu0 0
      %1696 = vmatpush1.bf16.msra.mxu0 0
      %1697 = vmatprep.subr.bf16.mxu0 0
      %1698 = vmatpush1.bf16.msra.mxu0 0
      %1699 = vmatprep.subr.bf16.mxu0 0
      %1700 = vmatpush1.bf16.msra.mxu0 0
      %1701 = vmatprep.subr.bf16.mxu0 0
      %1702 = vmatpush1.bf16.msra.mxu0 0
      %1703 = vmatprep.subr.bf16.mxu0 0
      %1704 = vmatpush1.bf16.msra.mxu0 0
      %1705 = vmatprep.subr.bf16.mxu0 0
      %1706 = vmatpush1.bf16.msra.mxu0 0
      %1707 = vmatprep.subr.bf16.mxu0 0
      %1708 = vmatpush1.bf16.msra.mxu0 0
      %1709 = vmatprep.subr.bf16.mxu0 0
      %1710 = vmatpush1.bf16.msra.mxu0 0
      %1711 = vmatprep.subr.bf16.mxu0 0
      %1712 = vmatpush1.bf16.msra.mxu0 0
      %1713 = vmatprep.mubr.bf16.mxu0 0
      %1714 = vmatmul.mubr.bf16.gmra.mrb[0].mxu0 %v1631
      %v1715 = vpop.f32.mrb[0].mxu0
      %v1716 = vadd.f32 0.0, %v1715
      %v1717 = vpop.f32.mrb[0].mxu0
      %v1718 = vpop.f32.mrb[0].mxu0
      %v1719 = vadd.f32 0.0, %v1718
      %v1720 = vpop.f32.mrb[0].mxu0
      %1721 = vmatprep.mubr.bf16.mxu0 0
      %1722 = vmatmul.mubr.bf16.gmra.mrb[0].mxu0 %v1634
      %v1723 = vpop.f32.mrb[0].mxu0
      %v1724 = vadd.f32 0.0, %v1723
      %v1725 = vpop.f32.mrb[0].mxu0
      %v1726 = vpop.f32.mrb[0].mxu0
      %v1727 = vadd.f32 0.0, %v1726
      %v1728 = vpop.f32.mrb[0].mxu0
      %1729 = vmatprep.mubr.bf16.mxu0 0
      %1730 = vmatmul.mubr.bf16.gmra.mrb[0].mxu0 %v1637
      %v1731 = vpop.f32.mrb[0].mxu0
      %v1732 = vadd.f32 0.0, %v1731
      %v1733 = vpop.f32.mrb[0].mxu0
      %v1734 = vpop.f32.mrb[0].mxu0
      %v1735 = vadd.f32 0.0, %v1734
      %v1736 = vpop.f32.mrb[0].mxu0
      %1737 = vmatprep.mubr.bf16.mxu0 0
      %1738 = vmatmul.mubr.bf16.gmra.mrb[0].mxu0 %v1640
      %v1739 = vpop.f32.mrb[0].mxu0
      %v1740 = vadd.f32 0.0, %v1739
      %v1741 = vpop.f32.mrb[0].mxu0
      %v1742 = vpop.f32.mrb[0].mxu0
      %v1743 = vadd.f32 0.0, %v1742
      %v1744 = vpop.f32.mrb[0].mxu0
      %1745 = vmatprep.mubr.bf16.mxu0 0
      %1746 = vmatmul.mubr.bf16.gmra.mrb[0].mxu0 %v1643
      %v1747 = vpop.f32.mrb[0].mxu0
      %v1748 = vadd.f32 0.0, %v1747
      %v1749 = vpop.f32.mrb[0].mxu0
      %v1750 = vpop.f32.mrb[0].mxu0
      %v1751 = vadd.f32 0.0, %v1750
      %v1752 = vpop.f32.mrb[0].mxu0
      %1753 = vmatprep.mubr.bf16.mxu0 0
      %1754 = vmatmul.mubr.bf16.gmra.mrb[0].mxu0 %v1646
      %v1755 = vpop.f32.mrb[0].mxu0
      %v1756 = vadd.f32 0.0, %v1755
      %v1757 = vpop.f32.mrb[0].mxu0
      %v1758 = vpop.f32.mrb[0].mxu0
      %v1759 = vadd.f32 0.0, %v1758
      %v1760 = vpop.f32.mrb[0].mxu0
      %1761 = vmatprep.mubr.bf16.mxu0 0
      %1762 = vmatmul.mubr.bf16.gmra.mrb[0].mxu0 %v1649
      %v1763 = vpop.f32.mrb[0].mxu0
      %v1764 = vadd.f32 0.0, %v1763
      %v1765 = vpop.f32.mrb[0].mxu0
      %v1766 = vpop.f32.mrb[0].mxu0
      %v1767 = vadd.f32 0.0, %v1766
      %v1768 = vpop.f32.mrb[0].mxu0
      %1769 = vmatprep.mubr.bf16.mxu0 0
      %1770 = vmatmul.mubr.bf16.gmra.mrb[0].mxu0 %v1652
      %v1771 = vpop.f32.mrb[0].mxu0
      %v1772 = vadd.f32 0.0, %v1771
      %v1773 = vpop.f32.mrb[0].mxu0
      %v1774 = vpop.f32.mrb[0].mxu0
      %v1775 = vadd.f32 0.0, %v1774
      %v1776 = vpop.f32.mrb[0].mxu0
      %1777 = vmatprep.mubr.bf16.mxu0 0
      %1778 = vmatmul.mubr.bf16.gmra.mrb[0].mxu0 %v1655
      %v1779 = vpop.f32.mrb[0].mxu0
      %v1780 = vadd.f32 0.0, %v1779
      %v1781 = vpop.f32.mrb[0].mxu0
      %v1782 = vpop.f32.mrb[0].mxu0
      %v1783 = vadd.f32 0.0, %v1782
      %v1784 = vpop.f32.mrb[0].mxu0
      %1785 = vmatprep.mubr.bf16.mxu0 0
      %1786 = vmatmul.mubr.bf16.gmra.mrb[0].mxu0 %v1658
      %v1787 = vpop.f32.mrb[0].mxu0
      %v1788 = vadd.f32 0.0, %v1787
      %v1789 = vpop.f32.mrb[0].mxu0
      %v1790 = vpop.f32.mrb[0].mxu0
      %v1791 = vadd.f32 0.0, %v1790
      %v1792 = vpop.f32.mrb[0].mxu0
      %1793 = vmatprep.mubr.bf16.mxu0 0
      %1794 = vmatmul.mubr.bf16.gmra.mrb[0].mxu0 %v1661
      %v1795 = vpop.f32.mrb[0].mxu0
      %v1796 = vadd.f32 0.0, %v1795
      %v1797 = vpop.f32.mrb[0].mxu0
      %v1798 = vpop.f32.mrb[0].mxu0
      %v1799 = vadd.f32 0.0, %v1798
      %v1800 = vpop.f32.mrb[0].mxu0
      %1801 = vmatprep.mubr.bf16.mxu0 0
      %1802 = vmatmul.mubr.bf16.gmra.mrb[0].mxu0 %v1664
      %v1803 = vpop.f32.mrb[0].mxu0
      %v1804 = vadd.f32 0.0, %v1803
      %v1805 = vpop.f32.mrb[0].mxu0
      %v1806 = vpop.f32.mrb[0].mxu0
      %v1807 = vadd.f32 0.0, %v1806
      %v1808 = vpop.f32.mrb[0].mxu0
      %1809 = vmatprep.mubr.bf16.mxu0 0
      %1810 = vmatmul.mubr.bf16.gmra.mrb[0].mxu0 %v1667
      %v1811 = vpop.f32.mrb[0].mxu0
      %v1812 = vadd.f32 0.0, %v1811
      %v1813 = vpop.f32.mrb[0].mxu0
      %v1814 = vpop.f32.mrb[0].mxu0
      %v1815 = vadd.f32 0.0, %v1814
      %v1816 = vpop.f32.mrb[0].mxu0
      %1817 = vmatprep.mubr.bf16.mxu0 0
      %1818 = vmatmul.mubr.bf16.gmra.mrb[0].mxu0 %v1670
      %v1819 = vpop.f32.mrb[0].mxu0
      %v1820 = vadd.f32 0.0, %v1819
      %v1821 = vpop.f32.mrb[0].mxu0
      %v1822 = vpop.f32.mrb[0].mxu0
      %v1823 = vadd.f32 0.0, %v1822
      %v1824 = vpop.f32.mrb[0].mxu0
      %1825 = vmatprep.mubr.bf16.mxu0 0
      %1826 = vmatmul.mubr.bf16.gmra.mrb[0].mxu0 %v1673
      %v1827 = vpop.f32.mrb[0].mxu0
      %v1828 = vadd.f32 0.0, %v1827
      %v1829 = vpop.f32.mrb[0].mxu0
      %v1830 = vpop.f32.mrb[0].mxu0
      %v1831 = vadd.f32 0.0, %v1830
      %v1832 = vpop.f32.mrb[0].mxu0
      %1833 = vmatprep.mubr.bf16.mxu0 0
      %1834 = vmatmul.mubr.bf16.gmra.mrb[0].mxu0 %v1676
      %v1835 = vpop.f32.mrb[0].mxu0
      %v1836 = vadd.f32 0.0, %v1835
      %v1837 = vpop.f32.mrb[0].mxu0
      %v1838 = vpop.f32.mrb[0].mxu0
      %v1839 = vadd.f32 0.0, %v1838
      %v1840 = vpop.f32.mrb[0].mxu0
      %1841 = vdwg.mxu0
      %v1842 = vadd.f32 %v1548, %v1716
      %v1843 = vadd.f32 %v1549, %v1719
      %v1844 = vadd.f32 %v1550, %v1724
      %v1845 = vadd.f32 %v1551, %v1727
      %v1846 = vadd.f32 %v1552, %v1732
      %v1847 = vadd.f32 %v1553, %v1735
      %v1848 = vadd.f32 %v1554, %v1740
      %v1849 = vadd.f32 %v1555, %v1743
      %v1850 = vadd.f32 %v1556, %v1748
      %v1851 = vadd.f32 %v1557, %v1751
      %v1852 = vadd.f32 %v1558, %v1756
      %v1853 = vadd.f32 %v1559, %v1759
      %v1854 = vadd.f32 %v1560, %v1764
      %v1855 = vadd.f32 %v1561, %v1767
      %v1856 = vadd.f32 %v1562, %v1772
      %v1857 = vadd.f32 %v1563, %v1775
      %v1858 = vadd.f32 %v1564, %v1780
      %v1859 = vadd.f32 %v1565, %v1783
      %v1860 = vadd.f32 %v1566, %v1788
      %v1861 = vadd.f32 %v1567, %v1791
      %v1862 = vadd.f32 %v1568, %v1796
      %v1863 = vadd.f32 %v1569, %v1799
      %v1864 = vadd.f32 %v1570, %v1804
      %v1865 = vadd.f32 %v1571, %v1807
      %v1866 = vadd.f32 %v1572, %v1812
      %v1867 = vadd.f32 %v1573, %v1815
      %v1868 = vadd.f32 %v1574, %v1820
      %v1869 = vadd.f32 %v1575, %v1823
      %v1870 = vadd.f32 %v1576, %v1828
      %v1871 = vadd.f32 %v1577, %v1831
      %v1872 = vadd.f32 %v1578, %v1836
      %v1873 = vadd.f32 %v1579, %v1839
      %s1874 = scalar_lea.vmem %s165, 48
      %v1875 = vld [vmem:[%s1874] sm:$0xff]
      %v1876 = vld [vmem:[%s1874 + $0x8] sm:$0xff]
      %v1877 = vld [vmem:[%s1874 + $0x18] sm:$0xff]
      %v1878 = vld [vmem:[%s1874 + $0x20] sm:$0xff]
      %v1879 = vld [vmem:[%s1874 + $0x30] sm:$0xff]
      %v1880 = vld [vmem:[%s1874 + $0x38] sm:$0xff]
      %v1881 = vld [vmem:[%s1874 + $0x48] sm:$0xff]
      %v1882 = vld [vmem:[%s1874 + $0x50] sm:$0xff]
      %v1883 = vld [vmem:[%s1874 + $0x60] sm:$0xff]
      %v1884 = vld [vmem:[%s1874 + $0x68] sm:$0xff]
      %v1885 = vld [vmem:[%s1874 + $0x78] sm:$0xff]
      %v1886 = vld [vmem:[%s1874 + $0x80] sm:$0xff]
      %v1887 = vld [vmem:[%s1874 + $0x90] sm:$0xff]
      %v1888 = vld [vmem:[%s1874 + $0x98] sm:$0xff]
      %v1889 = vld [vmem:[%s1874 + $0xa8] sm:$0xff]
      %v1890 = vld [vmem:[%s1874 + $0xb0] sm:$0xff]
      %v1891 = vld [vmem:[%s1874 + $0xc0] sm:$0xff]
      %v1892 = vld [vmem:[%s1874 + $0xc8] sm:$0xff]
      %v1893 = vld [vmem:[%s1874 + $0xd8] sm:$0xff]
      %v1894 = vld [vmem:[%s1874 + $0xe0] sm:$0xff]
      %v1895 = vld [vmem:[%s1874 + $0xf0] sm:$0xff]
      %v1896 = vld [vmem:[%s1874 + $0xf8] sm:$0xff]
      %v1897 = vld [vmem:[%s1874 + $0x108] sm:$0xff]
      %v1898 = vld [vmem:[%s1874 + $0x110] sm:$0xff]
      %v1899 = vld [vmem:[%s1874 + $0x120] sm:$0xff]
      %v1900 = vld [vmem:[%s1874 + $0x128] sm:$0xff]
      %v1901 = vld [vmem:[%s1874 + $0x138] sm:$0xff]
      %v1902 = vld [vmem:[%s1874 + $0x140] sm:$0xff]
      %v1903 = vld [vmem:[%s1874 + $0x150] sm:$0xff]
      %v1904 = vld [vmem:[%s1874 + $0x158] sm:$0xff]
      %v1905 = vld [vmem:[%s1874 + $0x168] sm:$0xff]
      %v1906 = vld [vmem:[%s1874 + $0x170] sm:$0xff]
      %v1907 = vpack.c.bf16 %v1876, %v1875
      %v1908 = vpack.c.bf16 %v1878, %v1877
      %v1909 = vpack.c.bf16 %v1880, %v1879
      %v1910 = vpack.c.bf16 %v1882, %v1881
      %v1911 = vpack.c.bf16 %v1884, %v1883
      %v1912 = vpack.c.bf16 %v1886, %v1885
      %v1913 = vpack.c.bf16 %v1888, %v1887
      %v1914 = vpack.c.bf16 %v1890, %v1889
      %v1915 = vpack.c.bf16 %v1892, %v1891
      %v1916 = vpack.c.bf16 %v1894, %v1893
      %v1917 = vpack.c.bf16 %v1896, %v1895
      %v1918 = vpack.c.bf16 %v1898, %v1897
      %v1919 = vpack.c.bf16 %v1900, %v1899
      %v1920 = vpack.c.bf16 %v1902, %v1901
      %v1921 = vpack.c.bf16 %v1904, %v1903
      %v1922 = vpack.c.bf16 %v1906, %v1905
      %s1923 = scalar_lea.vmem %s1, 12
      %v1924 = vld [vmem:[%s1923] sm:$0x3]
      %v1926 = vsel %vm271, %v1907, 0
      %v1929 = vsel %vm271, %v1908, 0
      %v1932 = vsel %vm271, %v1909, 0
      %v1935 = vsel %vm271, %v1910, 0
      %v1938 = vsel %vm271, %v1911, 0
      %v1941 = vsel %vm271, %v1912, 0
      %v1944 = vsel %vm271, %v1913, 0
      %v1947 = vsel %vm271, %v1914, 0
      %v1950 = vsel %vm271, %v1915, 0
      %v1953 = vsel %vm271, %v1916, 0
      %v1956 = vsel %vm271, %v1917, 0
      %v1959 = vsel %vm271, %v1918, 0
      %v1962 = vsel %vm271, %v1919, 0
      %v1965 = vsel %vm271, %v1920, 0
      %v1968 = vsel %vm271, %v1921, 0
      %v1971 = vsel %vm271, %v1922, 0
      %v1974 = vsel %vm320, %v1924, 0
      %1976 = vmatprep.subr.bf16.mxu0 0
      %1977 = vmatpush1.bf16.msra.mxu0 %v1974
      %1978 = vmatprep.subr.bf16.mxu0 0
      %1979 = vmatpush1.bf16.msra.mxu0 0
      %1980 = vmatprep.subr.bf16.mxu0 0
      %1981 = vmatpush1.bf16.msra.mxu0 0
      %1982 = vmatprep.subr.bf16.mxu0 0
      %1983 = vmatpush1.bf16.msra.mxu0 0
      %1984 = vmatprep.subr.bf16.mxu0 0
      %1985 = vmatpush1.bf16.msra.mxu0 0
      %1986 = vmatprep.subr.bf16.mxu0 0
      %1987 = vmatpush1.bf16.msra.mxu0 0
      %1988 = vmatprep.subr.bf16.mxu0 0
      %1989 = vmatpush1.bf16.msra.mxu0 0
      %1990 = vmatprep.subr.bf16.mxu0 0
      %1991 = vmatpush1.bf16.msra.mxu0 0
      %1992 = vmatprep.subr.bf16.mxu0 0
      %1993 = vmatpush1.bf16.msra.mxu0 0
      %1994 = vmatprep.subr.bf16.mxu0 0
      %1995 = vmatpush1.bf16.msra.mxu0 0
      %1996 = vmatprep.subr.bf16.mxu0 0
      %1997 = vmatpush1.bf16.msra.mxu0 0
      %1998 = vmatprep.subr.bf16.mxu0 0
      %1999 = vmatpush1.bf16.msra.mxu0 0
      %2000 = vmatprep.subr.bf16.mxu0 0
      %2001 = vmatpush1.bf16.msra.mxu0 0
      %2002 = vmatprep.subr.bf16.mxu0 0
      %2003 = vmatpush1.bf16.msra.mxu0 0
      %2004 = vmatprep.subr.bf16.mxu0 0
      %2005 = vmatpush1.bf16.msra.mxu0 0
      %2006 = vmatprep.subr.bf16.mxu0 0
      %2007 = vmatpush1.bf16.msra.mxu0 0
      %2008 = vmatprep.mubr.bf16.mxu0 0
      %2009 = vmatmul.mubr.bf16.gmra.mrb[0].mxu0 %v1926
      %v2010 = vpop.f32.mrb[0].mxu0
      %v2011 = vadd.f32 0.0, %v2010
      %v2012 = vpop.f32.mrb[0].mxu0
      %v2013 = vpop.f32.mrb[0].mxu0
      %v2014 = vadd.f32 0.0, %v2013
      %v2015 = vpop.f32.mrb[0].mxu0
      %2016 = vmatprep.mubr.bf16.mxu0 0
      %2017 = vmatmul.mubr.bf16.gmra.mrb[0].mxu0 %v1929
      %v2018 = vpop.f32.mrb[0].mxu0
      %v2019 = vadd.f32 0.0, %v2018
      %v2020 = vpop.f32.mrb[0].mxu0
      %v2021 = vpop.f32.mrb[0].mxu0
      %v2022 = vadd.f32 0.0, %v2021
      %v2023 = vpop.f32.mrb[0].mxu0
      %2024 = vmatprep.mubr.bf16.mxu0 0
      %2025 = vmatmul.mubr.bf16.gmra.mrb[0].mxu0 %v1932
      %v2026 = vpop.f32.mrb[0].mxu0
      %v2027 = vadd.f32 0.0, %v2026
      %v2028 = vpop.f32.mrb[0].mxu0
      %v2029 = vpop.f32.mrb[0].mxu0
      %v2030 = vadd.f32 0.0, %v2029
      %v2031 = vpop.f32.mrb[0].mxu0
      %2032 = vmatprep.mubr.bf16.mxu0 0
      %2033 = vmatmul.mubr.bf16.gmra.mrb[0].mxu0 %v1935
      %v2034 = vpop.f32.mrb[0].mxu0
      %v2035 = vadd.f32 0.0, %v2034
      %v2036 = vpop.f32.mrb[0].mxu0
      %v2037 = vpop.f32.mrb[0].mxu0
      %v2038 = vadd.f32 0.0, %v2037
      %v2039 = vpop.f32.mrb[0].mxu0
      %2040 = vmatprep.mubr.bf16.mxu0 0
      %2041 = vmatmul.mubr.bf16.gmra.mrb[0].mxu0 %v1938
      %v2042 = vpop.f32.mrb[0].mxu0
      %v2043 = vadd.f32 0.0, %v2042
      %v2044 = vpop.f32.mrb[0].mxu0
      %v2045 = vpop.f32.mrb[0].mxu0
      %v2046 = vadd.f32 0.0, %v2045
      %v2047 = vpop.f32.mrb[0].mxu0
      %2048 = vmatprep.mubr.bf16.mxu0 0
      %2049 = vmatmul.mubr.bf16.gmra.mrb[0].mxu0 %v1941
      %v2050 = vpop.f32.mrb[0].mxu0
      %v2051 = vadd.f32 0.0, %v2050
      %v2052 = vpop.f32.mrb[0].mxu0
      %v2053 = vpop.f32.mrb[0].mxu0
      %v2054 = vadd.f32 0.0, %v2053
      %v2055 = vpop.f32.mrb[0].mxu0
      %2056 = vmatprep.mubr.bf16.mxu0 0
      %2057 = vmatmul.mubr.bf16.gmra.mrb[0].mxu0 %v1944
      %v2058 = vpop.f32.mrb[0].mxu0
      %v2059 = vadd.f32 0.0, %v2058
      %v2060 = vpop.f32.mrb[0].mxu0
      %v2061 = vpop.f32.mrb[0].mxu0
      %v2062 = vadd.f32 0.0, %v2061
      %v2063 = vpop.f32.mrb[0].mxu0
      %2064 = vmatprep.mubr.bf16.mxu0 0
      %2065 = vmatmul.mubr.bf16.gmra.mrb[0].mxu0 %v1947
      %v2066 = vpop.f32.mrb[0].mxu0
      %v2067 = vadd.f32 0.0, %v2066
      %v2068 = vpop.f32.mrb[0].mxu0
      %v2069 = vpop.f32.mrb[0].mxu0
      %v2070 = vadd.f32 0.0, %v2069
      %v2071 = vpop.f32.mrb[0].mxu0
      %2072 = vmatprep.mubr.bf16.mxu0 0
      %2073 = vmatmul.mubr.bf16.gmra.mrb[0].mxu0 %v1950
      %v2074 = vpop.f32.mrb[0].mxu0
      %v2075 = vadd.f32 0.0, %v2074
      %v2076 = vpop.f32.mrb[0].mxu0
      %v2077 = vpop.f32.mrb[0].mxu0
      %v2078 = vadd.f32 0.0, %v2077
      %v2079 = vpop.f32.mrb[0].mxu0
      %2080 = vmatprep.mubr.bf16.mxu0 0
      %2081 = vmatmul.mubr.bf16.gmra.mrb[0].mxu0 %v1953
      %v2082 = vpop.f32.mrb[0].mxu0
      %v2083 = vadd.f32 0.0, %v2082
      %v2084 = vpop.f32.mrb[0].mxu0
      %v2085 = vpop.f32.mrb[0].mxu0
      %v2086 = vadd.f32 0.0, %v2085
      %v2087 = vpop.f32.mrb[0].mxu0
      %2088 = vmatprep.mubr.bf16.mxu0 0
      %2089 = vmatmul.mubr.bf16.gmra.mrb[0].mxu0 %v1956
      %v2090 = vpop.f32.mrb[0].mxu0
      %v2091 = vadd.f32 0.0, %v2090
      %v2092 = vpop.f32.mrb[0].mxu0
      %v2093 = vpop.f32.mrb[0].mxu0
      %v2094 = vadd.f32 0.0, %v2093
      %v2095 = vpop.f32.mrb[0].mxu0
      %2096 = vmatprep.mubr.bf16.mxu0 0
      %2097 = vmatmul.mubr.bf16.gmra.mrb[0].mxu0 %v1959
      %v2098 = vpop.f32.mrb[0].mxu0
      %v2099 = vadd.f32 0.0, %v2098
      %v2100 = vpop.f32.mrb[0].mxu0
      %v2101 = vpop.f32.mrb[0].mxu0
      %v2102 = vadd.f32 0.0, %v2101
      %v2103 = vpop.f32.mrb[0].mxu0
      %2104 = vmatprep.mubr.bf16.mxu0 0
      %2105 = vmatmul.mubr.bf16.gmra.mrb[0].mxu0 %v1962
      %v2106 = vpop.f32.mrb[0].mxu0
      %v2107 = vadd.f32 0.0, %v2106
      %v2108 = vpop.f32.mrb[0].mxu0
      %v2109 = vpop.f32.mrb[0].mxu0
      %v2110 = vadd.f32 0.0, %v2109
      %v2111 = vpop.f32.mrb[0].mxu0
      %2112 = vmatprep.mubr.bf16.mxu0 0
      %2113 = vmatmul.mubr.bf16.gmra.mrb[0].mxu0 %v1965
      %v2114 = vpop.f32.mrb[0].mxu0
      %v2115 = vadd.f32 0.0, %v2114
      %v2116 = vpop.f32.mrb[0].mxu0
      %v2117 = vpop.f32.mrb[0].mxu0
      %v2118 = vadd.f32 0.0, %v2117
      %v2119 = vpop.f32.mrb[0].mxu0
      %2120 = vmatprep.mubr.bf16.mxu0 0
      %2121 = vmatmul.mubr.bf16.gmra.mrb[0].mxu0 %v1968
      %v2122 = vpop.f32.mrb[0].mxu0
      %v2123 = vadd.f32 0.0, %v2122
      %v2124 = vpop.f32.mrb[0].mxu0
      %v2125 = vpop.f32.mrb[0].mxu0
      %v2126 = vadd.f32 0.0, %v2125
      %v2127 = vpop.f32.mrb[0].mxu0
      %2128 = vmatprep.mubr.bf16.mxu0 0
      %2129 = vmatmul.mubr.bf16.gmra.mrb[0].mxu0 %v1971
      %v2130 = vpop.f32.mrb[0].mxu0
      %v2131 = vadd.f32 0.0, %v2130
      %v2132 = vpop.f32.mrb[0].mxu0
      %v2133 = vpop.f32.mrb[0].mxu0
      %v2134 = vadd.f32 0.0, %v2133
      %v2135 = vpop.f32.mrb[0].mxu0
      %2136 = vdwg.mxu0
      %v2137 = vadd.f32 %v1842, %v2011
      %v2138 = vadd.f32 %v1843, %v2014
      %v2139 = vadd.f32 %v1844, %v2019
      %v2140 = vadd.f32 %v1845, %v2022
      %v2141 = vadd.f32 %v1846, %v2027
      %v2142 = vadd.f32 %v1847, %v2030
      %v2143 = vadd.f32 %v1848, %v2035
      %v2144 = vadd.f32 %v1849, %v2038
      %v2145 = vadd.f32 %v1850, %v2043
      %v2146 = vadd.f32 %v1851, %v2046
      %v2147 = vadd.f32 %v1852, %v2051
      %v2148 = vadd.f32 %v1853, %v2054
      %v2149 = vadd.f32 %v1854, %v2059
      %v2150 = vadd.f32 %v1855, %v2062
      %v2151 = vadd.f32 %v1856, %v2067
      %v2152 = vadd.f32 %v1857, %v2070
      %v2153 = vadd.f32 %v1858, %v2075
      %v2154 = vadd.f32 %v1859, %v2078
      %v2155 = vadd.f32 %v1860, %v2083
      %v2156 = vadd.f32 %v1861, %v2086
      %v2157 = vadd.f32 %v1862, %v2091
      %v2158 = vadd.f32 %v1863, %v2094
      %v2159 = vadd.f32 %v1864, %v2099
      %v2160 = vadd.f32 %v1865, %v2102
      %v2161 = vadd.f32 %v1866, %v2107
      %v2162 = vadd.f32 %v1867, %v2110
      %v2163 = vadd.f32 %v1868, %v2115
      %v2164 = vadd.f32 %v1869, %v2118
      %v2165 = vadd.f32 %v1870, %v2123
      %v2166 = vadd.f32 %v1871, %v2126
      %v2167 = vadd.f32 %v1872, %v2131
      %v2168 = vadd.f32 %v1873, %v2134
      %v2169 = vld [vmem:[%s1874 + $0x1] sm:$0xff]
      %v2170 = vld [vmem:[%s1874 + $0x9] sm:$0xff]
      %v2171 = vld [vmem:[%s1874 + $0x19] sm:$0xff]
      %v2172 = vld [vmem:[%s1874 + $0x21] sm:$0xff]
      %v2173 = vld [vmem:[%s1874 + $0x31] sm:$0xff]
      %v2174 = vld [vmem:[%s1874 + $0x39] sm:$0xff]
      %v2175 = vld [vmem:[%s1874 + $0x49] sm:$0xff]
      %v2176 = vld [vmem:[%s1874 + $0x51] sm:$0xff]
      %v2177 = vld [vmem:[%s1874 + $0x61] sm:$0xff]
      %v2178 = vld [vmem:[%s1874 + $0x69] sm:$0xff]
      %v2179 = vld [vmem:[%s1874 + $0x79] sm:$0xff]
      %v2180 = vld [vmem:[%s1874 + $0x81] sm:$0xff]
      %v2181 = vld [vmem:[%s1874 + $0x91] sm:$0xff]
      %v2182 = vld [vmem:[%s1874 + $0x99] sm:$0xff]
      %v2183 = vld [vmem:[%s1874 + $0xa9] sm:$0xff]
      %v2184 = vld [vmem:[%s1874 + $0xb1] sm:$0xff]
      %v2185 = vld [vmem:[%s1874 + $0xc1] sm:$0xff]
      %v2186 = vld [vmem:[%s1874 + $0xc9] sm:$0xff]
      %v2187 = vld [vmem:[%s1874 + $0xd9] sm:$0xff]
      %v2188 = vld [vmem:[%s1874 + $0xe1] sm:$0xff]
      %v2189 = vld [vmem:[%s1874 + $0xf1] sm:$0xff]
      %v2190 = vld [vmem:[%s1874 + $0xf9] sm:$0xff]
      %v2191 = vld [vmem:[%s1874 + $0x109] sm:$0xff]
      %v2192 = vld [vmem:[%s1874 + $0x111] sm:$0xff]
      %v2193 = vld [vmem:[%s1874 + $0x121] sm:$0xff]
      %v2194 = vld [vmem:[%s1874 + $0x129] sm:$0xff]
      %v2195 = vld [vmem:[%s1874 + $0x139] sm:$0xff]
      %v2196 = vld [vmem:[%s1874 + $0x141] sm:$0xff]
      %v2197 = vld [vmem:[%s1874 + $0x151] sm:$0xff]
      %v2198 = vld [vmem:[%s1874 + $0x159] sm:$0xff]
      %v2199 = vld [vmem:[%s1874 + $0x169] sm:$0xff]
      %v2200 = vld [vmem:[%s1874 + $0x171] sm:$0xff]
      %v2201 = vpack.c.bf16 %v2170, %v2169
      %v2202 = vpack.c.bf16 %v2172, %v2171
      %v2203 = vpack.c.bf16 %v2174, %v2173
      %v2204 = vpack.c.bf16 %v2176, %v2175
      %v2205 = vpack.c.bf16 %v2178, %v2177
      %v2206 = vpack.c.bf16 %v2180, %v2179
      %v2207 = vpack.c.bf16 %v2182, %v2181
      %v2208 = vpack.c.bf16 %v2184, %v2183
      %v2209 = vpack.c.bf16 %v2186, %v2185
      %v2210 = vpack.c.bf16 %v2188, %v2187
      %v2211 = vpack.c.bf16 %v2190, %v2189
      %v2212 = vpack.c.bf16 %v2192, %v2191
      %v2213 = vpack.c.bf16 %v2194, %v2193
      %v2214 = vpack.c.bf16 %v2196, %v2195
      %v2215 = vpack.c.bf16 %v2198, %v2197
      %v2216 = vpack.c.bf16 %v2200, %v2199
      %s2217 = scalar_lea.vmem %s1, 14
      %v2218 = vld [vmem:[%s2217] sm:$0x3]
      %v2220 = vsel %vm271, %v2201, 0
      %v2223 = vsel %vm271, %v2202, 0
      %v2226 = vsel %vm271, %v2203, 0
      %v2229 = vsel %vm271, %v2204, 0
      %v2232 = vsel %vm271, %v2205, 0
      %v2235 = vsel %vm271, %v2206, 0
      %v2238 = vsel %vm271, %v2207, 0
      %v2241 = vsel %vm271, %v2208, 0
      %v2244 = vsel %vm271, %v2209, 0
      %v2247 = vsel %vm271, %v2210, 0
      %v2250 = vsel %vm271, %v2211, 0
      %v2253 = vsel %vm271, %v2212, 0
      %v2256 = vsel %vm271, %v2213, 0
      %v2259 = vsel %vm271, %v2214, 0
      %v2262 = vsel %vm271, %v2215, 0
      %v2265 = vsel %vm271, %v2216, 0
      %v2268 = vsel %vm320, %v2218, 0
      %2270 = vmatprep.subr.bf16.mxu0 0
      %2271 = vmatpush1.bf16.msra.mxu0 %v2268
      %2272 = vmatprep.subr.bf16.mxu0 0
      %2273 = vmatpush1.bf16.msra.mxu0 0
      %2274 = vmatprep.subr.bf16.mxu0 0
      %2275 = vmatpush1.bf16.msra.mxu0 0
      %2276 = vmatprep.subr.bf16.mxu0 0
      %2277 = vmatpush1.bf16.msra.mxu0 0
      %2278 = vmatprep.subr.bf16.mxu0 0
      %2279 = vmatpush1.bf16.msra.mxu0 0
      %2280 = vmatprep.subr.bf16.mxu0 0
      %2281 = vmatpush1.bf16.msra.mxu0 0
      %2282 = vmatprep.subr.bf16.mxu0 0
      %2283 = vmatpush1.bf16.msra.mxu0 0
      %2284 = vmatprep.subr.bf16.mxu0 0
      %2285 = vmatpush1.bf16.msra.mxu0 0
      %2286 = vmatprep.subr.bf16.mxu0 0
      %2287 = vmatpush1.bf16.msra.mxu0 0
      %2288 = vmatprep.subr.bf16.mxu0 0
      %2289 = vmatpush1.bf16.msra.mxu0 0
      %2290 = vmatprep.subr.bf16.mxu0 0
      %2291 = vmatpush1.bf16.msra.mxu0 0
      %2292 = vmatprep.subr.bf16.mxu0 0
      %2293 = vmatpush1.bf16.msra.mxu0 0
      %2294 = vmatprep.subr.bf16.mxu0 0
      %2295 = vmatpush1.bf16.msra.mxu0 0
      %2296 = vmatprep.subr.bf16.mxu0 0
      %2297 = vmatpush1.bf16.msra.mxu0 0
      %2298 = vmatprep.subr.bf16.mxu0 0
      %2299 = vmatpush1.bf16.msra.mxu0 0
      %2300 = vmatprep.subr.bf16.mxu0 0
      %2301 = vmatpush1.bf16.msra.mxu0 0
      %2302 = vmatprep.mubr.bf16.mxu0 0
      %2303 = vmatmul.mubr.bf16.gmra.mrb[0].mxu0 %v2220
      %v2304 = vpop.f32.mrb[0].mxu0
      %v2305 = vadd.f32 0.0, %v2304
      %v2306 = vpop.f32.mrb[0].mxu0
      %v2307 = vpop.f32.mrb[0].mxu0
      %v2308 = vadd.f32 0.0, %v2307
      %v2309 = vpop.f32.mrb[0].mxu0
      %2310 = vmatprep.mubr.bf16.mxu0 0
      %2311 = vmatmul.mubr.bf16.gmra.mrb[0].mxu0 %v2223
      %v2312 = vpop.f32.mrb[0].mxu0
      %v2313 = vadd.f32 0.0, %v2312
      %v2314 = vpop.f32.mrb[0].mxu0
      %v2315 = vpop.f32.mrb[0].mxu0
      %v2316 = vadd.f32 0.0, %v2315
      %v2317 = vpop.f32.mrb[0].mxu0
      %2318 = vmatprep.mubr.bf16.mxu0 0
      %2319 = vmatmul.mubr.bf16.gmra.mrb[0].mxu0 %v2226
      %v2320 = vpop.f32.mrb[0].mxu0
      %v2321 = vadd.f32 0.0, %v2320
      %v2322 = vpop.f32.mrb[0].mxu0
      %v2323 = vpop.f32.mrb[0].mxu0
      %v2324 = vadd.f32 0.0, %v2323
      %v2325 = vpop.f32.mrb[0].mxu0
      %2326 = vmatprep.mubr.bf16.mxu0 0
      %2327 = vmatmul.mubr.bf16.gmra.mrb[0].mxu0 %v2229
      %v2328 = vpop.f32.mrb[0].mxu0
      %v2329 = vadd.f32 0.0, %v2328
      %v2330 = vpop.f32.mrb[0].mxu0
      %v2331 = vpop.f32.mrb[0].mxu0
      %v2332 = vadd.f32 0.0, %v2331
      %v2333 = vpop.f32.mrb[0].mxu0
      %2334 = vmatprep.mubr.bf16.mxu0 0
      %2335 = vmatmul.mubr.bf16.gmra.mrb[0].mxu0 %v2232
      %v2336 = vpop.f32.mrb[0].mxu0
      %v2337 = vadd.f32 0.0, %v2336
      %v2338 = vpop.f32.mrb[0].mxu0
      %v2339 = vpop.f32.mrb[0].mxu0
      %v2340 = vadd.f32 0.0, %v2339
      %v2341 = vpop.f32.mrb[0].mxu0
      %2342 = vmatprep.mubr.bf16.mxu0 0
      %2343 = vmatmul.mubr.bf16.gmra.mrb[0].mxu0 %v2235
      %v2344 = vpop.f32.mrb[0].mxu0
      %v2345 = vadd.f32 0.0, %v2344
      %v2346 = vpop.f32.mrb[0].mxu0
      %v2347 = vpop.f32.mrb[0].mxu0
      %v2348 = vadd.f32 0.0, %v2347
      %v2349 = vpop.f32.mrb[0].mxu0
      %2350 = vmatprep.mubr.bf16.mxu0 0
      %2351 = vmatmul.mubr.bf16.gmra.mrb[0].mxu0 %v2238
      %v2352 = vpop.f32.mrb[0].mxu0
      %v2353 = vadd.f32 0.0, %v2352
      %v2354 = vpop.f32.mrb[0].mxu0
      %v2355 = vpop.f32.mrb[0].mxu0
      %v2356 = vadd.f32 0.0, %v2355
      %v2357 = vpop.f32.mrb[0].mxu0
      %2358 = vmatprep.mubr.bf16.mxu0 0
      %2359 = vmatmul.mubr.bf16.gmra.mrb[0].mxu0 %v2241
      %v2360 = vpop.f32.mrb[0].mxu0
      %v2361 = vadd.f32 0.0, %v2360
      %v2362 = vpop.f32.mrb[0].mxu0
      %v2363 = vpop.f32.mrb[0].mxu0
      %v2364 = vadd.f32 0.0, %v2363
      %v2365 = vpop.f32.mrb[0].mxu0
      %2366 = vmatprep.mubr.bf16.mxu0 0
      %2367 = vmatmul.mubr.bf16.gmra.mrb[0].mxu0 %v2244
      %v2368 = vpop.f32.mrb[0].mxu0
      %v2369 = vadd.f32 0.0, %v2368
      %v2370 = vpop.f32.mrb[0].mxu0
      %v2371 = vpop.f32.mrb[0].mxu0
      %v2372 = vadd.f32 0.0, %v2371
      %v2373 = vpop.f32.mrb[0].mxu0
      %2374 = vmatprep.mubr.bf16.mxu0 0
      %2375 = vmatmul.mubr.bf16.gmra.mrb[0].mxu0 %v2247
      %v2376 = vpop.f32.mrb[0].mxu0
      %v2377 = vadd.f32 0.0, %v2376
      %v2378 = vpop.f32.mrb[0].mxu0
      %v2379 = vpop.f32.mrb[0].mxu0
      %v2380 = vadd.f32 0.0, %v2379
      %v2381 = vpop.f32.mrb[0].mxu0
      %2382 = vmatprep.mubr.bf16.mxu0 0
      %2383 = vmatmul.mubr.bf16.gmra.mrb[0].mxu0 %v2250
      %v2384 = vpop.f32.mrb[0].mxu0
      %v2385 = vadd.f32 0.0, %v2384
      %v2386 = vpop.f32.mrb[0].mxu0
      %v2387 = vpop.f32.mrb[0].mxu0
      %v2388 = vadd.f32 0.0, %v2387
      %v2389 = vpop.f32.mrb[0].mxu0
      %2390 = vmatprep.mubr.bf16.mxu0 0
      %2391 = vmatmul.mubr.bf16.gmra.mrb[0].mxu0 %v2253
      %v2392 = vpop.f32.mrb[0].mxu0
      %v2393 = vadd.f32 0.0, %v2392
      %v2394 = vpop.f32.mrb[0].mxu0
      %v2395 = vpop.f32.mrb[0].mxu0
      %v2396 = vadd.f32 0.0, %v2395
      %v2397 = vpop.f32.mrb[0].mxu0
      %2398 = vmatprep.mubr.bf16.mxu0 0
      %2399 = vmatmul.mubr.bf16.gmra.mrb[0].mxu0 %v2256
      %v2400 = vpop.f32.mrb[0].mxu0
      %v2401 = vadd.f32 0.0, %v2400
      %v2402 = vpop.f32.mrb[0].mxu0
      %v2403 = vpop.f32.mrb[0].mxu0
      %v2404 = vadd.f32 0.0, %v2403
      %v2405 = vpop.f32.mrb[0].mxu0
      %2406 = vmatprep.mubr.bf16.mxu0 0
      %2407 = vmatmul.mubr.bf16.gmra.mrb[0].mxu0 %v2259
      %v2408 = vpop.f32.mrb[0].mxu0
      %v2409 = vadd.f32 0.0, %v2408
      %v2410 = vpop.f32.mrb[0].mxu0
      %v2411 = vpop.f32.mrb[0].mxu0
      %v2412 = vadd.f32 0.0, %v2411
      %v2413 = vpop.f32.mrb[0].mxu0
      %2414 = vmatprep.mubr.bf16.mxu0 0
      %2415 = vmatmul.mubr.bf16.gmra.mrb[0].mxu0 %v2262
      %v2416 = vpop.f32.mrb[0].mxu0
      %v2417 = vadd.f32 0.0, %v2416
      %v2418 = vpop.f32.mrb[0].mxu0
      %v2419 = vpop.f32.mrb[0].mxu0
      %v2420 = vadd.f32 0.0, %v2419
      %v2421 = vpop.f32.mrb[0].mxu0
      %2422 = vmatprep.mubr.bf16.mxu0 0
      %2423 = vmatmul.mubr.bf16.gmra.mrb[0].mxu0 %v2265
      %v2424 = vpop.f32.mrb[0].mxu0
      %v2425 = vadd.f32 0.0, %v2424
      %v2426 = vpop.f32.mrb[0].mxu0
      %v2427 = vpop.f32.mrb[0].mxu0
      %v2428 = vadd.f32 0.0, %v2427
      %v2429 = vpop.f32.mrb[0].mxu0
      %2430 = vdwg.mxu0
      %v2431 = vadd.f32 %v2137, %v2305
      %v2432 = vadd.f32 %v2138, %v2308
      %v2433 = vadd.f32 %v2139, %v2313
      %v2434 = vadd.f32 %v2140, %v2316
      %v2435 = vadd.f32 %v2141, %v2321
      %v2436 = vadd.f32 %v2142, %v2324
      %v2437 = vadd.f32 %v2143, %v2329
      %v2438 = vadd.f32 %v2144, %v2332
      %v2439 = vadd.f32 %v2145, %v2337
      %v2440 = vadd.f32 %v2146, %v2340
      %v2441 = vadd.f32 %v2147, %v2345
      %v2442 = vadd.f32 %v2148, %v2348
      %v2443 = vadd.f32 %v2149, %v2353
      %v2444 = vadd.f32 %v2150, %v2356
      %v2445 = vadd.f32 %v2151, %v2361
      %v2446 = vadd.f32 %v2152, %v2364
      %v2447 = vadd.f32 %v2153, %v2369
      %v2448 = vadd.f32 %v2154, %v2372
      %v2449 = vadd.f32 %v2155, %v2377
      %v2450 = vadd.f32 %v2156, %v2380
      %v2451 = vadd.f32 %v2157, %v2385
      %v2452 = vadd.f32 %v2158, %v2388
      %v2453 = vadd.f32 %v2159, %v2393
      %v2454 = vadd.f32 %v2160, %v2396
      %v2455 = vadd.f32 %v2161, %v2401
      %v2456 = vadd.f32 %v2162, %v2404
      %v2457 = vadd.f32 %v2163, %v2409
      %v2458 = vadd.f32 %v2164, %v2412
      %v2459 = vadd.f32 %v2165, %v2417
      %v2460 = vadd.f32 %v2166, %v2420
      %v2461 = vadd.f32 %v2167, %v2425
      %v2462 = vadd.f32 %v2168, %v2428
      %v2463 = vld [vmem:[%s1874 + $0x2] sm:$0xff]
      %v2464 = vld [vmem:[%s1874 + $0xa] sm:$0xff]
      %v2465 = vld [vmem:[%s1874 + $0x1a] sm:$0xff]
      %v2466 = vld [vmem:[%s1874 + $0x22] sm:$0xff]
      %v2467 = vld [vmem:[%s1874 + $0x32] sm:$0xff]
      %v2468 = vld [vmem:[%s1874 + $0x3a] sm:$0xff]
      %v2469 = vld [vmem:[%s1874 + $0x4a] sm:$0xff]
      %v2470 = vld [vmem:[%s1874 + $0x52] sm:$0xff]
      %v2471 = vld [vmem:[%s1874 + $0x62] sm:$0xff]
      %v2472 = vld [vmem:[%s1874 + $0x6a] sm:$0xff]
      %v2473 = vld [vmem:[%s1874 + $0x7a] sm:$0xff]
      %v2474 = vld [vmem:[%s1874 + $0x82] sm:$0xff]
      %v2475 = vld [vmem:[%s1874 + $0x92] sm:$0xff]
      %v2476 = vld [vmem:[%s1874 + $0x9a] sm:$0xff]
      %v2477 = vld [vmem:[%s1874 + $0xaa] sm:$0xff]
      %v2478 = vld [vmem:[%s1874 + $0xb2] sm:$0xff]
      %v2479 = vld [vmem:[%s1874 + $0xc2] sm:$0xff]
      %v2480 = vld [vmem:[%s1874 + $0xca] sm:$0xff]
      %v2481 = vld [vmem:[%s1874 + $0xda] sm:$0xff]
      %v2482 = vld [vmem:[%s1874 + $0xe2] sm:$0xff]
      %v2483 = vld [vmem:[%s1874 + $0xf2] sm:$0xff]
      %v2484 = vld [vmem:[%s1874 + $0xfa] sm:$0xff]
      %v2485 = vld [vmem:[%s1874 + $0x10a] sm:$0xff]
      %v2486 = vld [vmem:[%s1874 + $0x112] sm:$0xff]
      %v2487 = vld [vmem:[%s1874 + $0x122] sm:$0xff]
      %v2488 = vld [vmem:[%s1874 + $0x12a] sm:$0xff]
      %v2489 = vld [vmem:[%s1874 + $0x13a] sm:$0xff]
      %v2490 = vld [vmem:[%s1874 + $0x142] sm:$0xff]
      %v2491 = vld [vmem:[%s1874 + $0x152] sm:$0xff]
      %v2492 = vld [vmem:[%s1874 + $0x15a] sm:$0xff]
      %v2493 = vld [vmem:[%s1874 + $0x16a] sm:$0xff]
      %v2494 = vld [vmem:[%s1874 + $0x172] sm:$0xff]
      %v2495 = vpack.c.bf16 %v2464, %v2463
      %v2496 = vpack.c.bf16 %v2466, %v2465
      %v2497 = vpack.c.bf16 %v2468, %v2467
      %v2498 = vpack.c.bf16 %v2470, %v2469
      %v2499 = vpack.c.bf16 %v2472, %v2471
      %v2500 = vpack.c.bf16 %v2474, %v2473
      %v2501 = vpack.c.bf16 %v2476, %v2475
      %v2502 = vpack.c.bf16 %v2478, %v2477
      %v2503 = vpack.c.bf16 %v2480, %v2479
      %v2504 = vpack.c.bf16 %v2482, %v2481
      %v2505 = vpack.c.bf16 %v2484, %v2483
      %v2506 = vpack.c.bf16 %v2486, %v2485
      %v2507 = vpack.c.bf16 %v2488, %v2487
      %v2508 = vpack.c.bf16 %v2490, %v2489
      %v2509 = vpack.c.bf16 %v2492, %v2491
      %v2510 = vpack.c.bf16 %v2494, %v2493
      %s2511 = scalar_lea.vmem %s1, 16
      %v2512 = vld [vmem:[%s2511] sm:$0x3]
      %v2514 = vsel %vm271, %v2495, 0
      %v2517 = vsel %vm271, %v2496, 0
      %v2520 = vsel %vm271, %v2497, 0
      %v2523 = vsel %vm271, %v2498, 0
      %v2526 = vsel %vm271, %v2499, 0
      %v2529 = vsel %vm271, %v2500, 0
      %v2532 = vsel %vm271, %v2501, 0
      %v2535 = vsel %vm271, %v2502, 0
      %v2538 = vsel %vm271, %v2503, 0
      %v2541 = vsel %vm271, %v2504, 0
      %v2544 = vsel %vm271, %v2505, 0
      %v2547 = vsel %vm271, %v2506, 0
      %v2550 = vsel %vm271, %v2507, 0
      %v2553 = vsel %vm271, %v2508, 0
      %v2556 = vsel %vm271, %v2509, 0
      %v2559 = vsel %vm271, %v2510, 0
      %v2562 = vsel %vm320, %v2512, 0
      %2564 = vmatprep.subr.bf16.mxu0 0
      %2565 = vmatpush1.bf16.msra.mxu0 %v2562
      %2566 = vmatprep.subr.bf16.mxu0 0
      %2567 = vmatpush1.bf16.msra.mxu0 0
      %2568 = vmatprep.subr.bf16.mxu0 0
      %2569 = vmatpush1.bf16.msra.mxu0 0
      %2570 = vmatprep.subr.bf16.mxu0 0
      %2571 = vmatpush1.bf16.msra.mxu0 0
      %2572 = vmatprep.subr.bf16.mxu0 0
      %2573 = vmatpush1.bf16.msra.mxu0 0
      %2574 = vmatprep.subr.bf16.mxu0 0
      %2575 = vmatpush1.bf16.msra.mxu0 0
      %2576 = vmatprep.subr.bf16.mxu0 0
      %2577 = vmatpush1.bf16.msra.mxu0 0
      %2578 = vmatprep.subr.bf16.mxu0 0
      %2579 = vmatpush1.bf16.msra.mxu0 0
      %2580 = vmatprep.subr.bf16.mxu0 0
      %2581 = vmatpush1.bf16.msra.mxu0 0
      %2582 = vmatprep.subr.bf16.mxu0 0
      %2583 = vmatpush1.bf16.msra.mxu0 0
      %2584 = vmatprep.subr.bf16.mxu0 0
      %2585 = vmatpush1.bf16.msra.mxu0 0
      %2586 = vmatprep.subr.bf16.mxu0 0
      %2587 = vmatpush1.bf16.msra.mxu0 0
      %2588 = vmatprep.subr.bf16.mxu0 0
      %2589 = vmatpush1.bf16.msra.mxu0 0
      %2590 = vmatprep.subr.bf16.mxu0 0
      %2591 = vmatpush1.bf16.msra.mxu0 0
      %2592 = vmatprep.subr.bf16.mxu0 0
      %2593 = vmatpush1.bf16.msra.mxu0 0
      %2594 = vmatprep.subr.bf16.mxu0 0
      %2595 = vmatpush1.bf16.msra.mxu0 0
      %2596 = vmatprep.mubr.bf16.mxu0 0
      %2597 = vmatmul.mubr.bf16.gmra.mrb[0].mxu0 %v2514
      %v2598 = vpop.f32.mrb[0].mxu0
      %v2599 = vadd.f32 0.0, %v2598
      %v2600 = vpop.f32.mrb[0].mxu0
      %v2601 = vpop.f32.mrb[0].mxu0
      %v2602 = vadd.f32 0.0, %v2601
      %v2603 = vpop.f32.mrb[0].mxu0
      %2604 = vmatprep.mubr.bf16.mxu0 0
      %2605 = vmatmul.mubr.bf16.gmra.mrb[0].mxu0 %v2517
      %v2606 = vpop.f32.mrb[0].mxu0
      %v2607 = vadd.f32 0.0, %v2606
      %v2608 = vpop.f32.mrb[0].mxu0
      %v2609 = vpop.f32.mrb[0].mxu0
      %v2610 = vadd.f32 0.0, %v2609
      %v2611 = vpop.f32.mrb[0].mxu0
      %2612 = vmatprep.mubr.bf16.mxu0 0
      %2613 = vmatmul.mubr.bf16.gmra.mrb[0].mxu0 %v2520
      %v2614 = vpop.f32.mrb[0].mxu0
      %v2615 = vadd.f32 0.0, %v2614
      %v2616 = vpop.f32.mrb[0].mxu0
      %v2617 = vpop.f32.mrb[0].mxu0
      %v2618 = vadd.f32 0.0, %v2617
      %v2619 = vpop.f32.mrb[0].mxu0
      %2620 = vmatprep.mubr.bf16.mxu0 0
      %2621 = vmatmul.mubr.bf16.gmra.mrb[0].mxu0 %v2523
      %v2622 = vpop.f32.mrb[0].mxu0
      %v2623 = vadd.f32 0.0, %v2622
      %v2624 = vpop.f32.mrb[0].mxu0
      %v2625 = vpop.f32.mrb[0].mxu0
      %v2626 = vadd.f32 0.0, %v2625
      %v2627 = vpop.f32.mrb[0].mxu0
      %2628 = vmatprep.mubr.bf16.mxu0 0
      %2629 = vmatmul.mubr.bf16.gmra.mrb[0].mxu0 %v2526
      %v2630 = vpop.f32.mrb[0].mxu0
      %v2631 = vadd.f32 0.0, %v2630
      %v2632 = vpop.f32.mrb[0].mxu0
      %v2633 = vpop.f32.mrb[0].mxu0
      %v2634 = vadd.f32 0.0, %v2633
      %v2635 = vpop.f32.mrb[0].mxu0
      %2636 = vmatprep.mubr.bf16.mxu0 0
      %2637 = vmatmul.mubr.bf16.gmra.mrb[0].mxu0 %v2529
      %v2638 = vpop.f32.mrb[0].mxu0
      %v2639 = vadd.f32 0.0, %v2638
      %v2640 = vpop.f32.mrb[0].mxu0
      %v2641 = vpop.f32.mrb[0].mxu0
      %v2642 = vadd.f32 0.0, %v2641
      %v2643 = vpop.f32.mrb[0].mxu0
      %2644 = vmatprep.mubr.bf16.mxu0 0
      %2645 = vmatmul.mubr.bf16.gmra.mrb[0].mxu0 %v2532
      %v2646 = vpop.f32.mrb[0].mxu0
      %v2647 = vadd.f32 0.0, %v2646
      %v2648 = vpop.f32.mrb[0].mxu0
      %v2649 = vpop.f32.mrb[0].mxu0
      %v2650 = vadd.f32 0.0, %v2649
      %v2651 = vpop.f32.mrb[0].mxu0
      %2652 = vmatprep.mubr.bf16.mxu0 0
      %2653 = vmatmul.mubr.bf16.gmra.mrb[0].mxu0 %v2535
      %v2654 = vpop.f32.mrb[0].mxu0
      %v2655 = vadd.f32 0.0, %v2654
      %v2656 = vpop.f32.mrb[0].mxu0
      %v2657 = vpop.f32.mrb[0].mxu0
      %v2658 = vadd.f32 0.0, %v2657
      %v2659 = vpop.f32.mrb[0].mxu0
      %2660 = vmatprep.mubr.bf16.mxu0 0
      %2661 = vmatmul.mubr.bf16.gmra.mrb[0].mxu0 %v2538
      %v2662 = vpop.f32.mrb[0].mxu0
      %v2663 = vadd.f32 0.0, %v2662
      %v2664 = vpop.f32.mrb[0].mxu0
      %v2665 = vpop.f32.mrb[0].mxu0
      %v2666 = vadd.f32 0.0, %v2665
      %v2667 = vpop.f32.mrb[0].mxu0
      %2668 = vmatprep.mubr.bf16.mxu0 0
      %2669 = vmatmul.mubr.bf16.gmra.mrb[0].mxu0 %v2541
      %v2670 = vpop.f32.mrb[0].mxu0
      %v2671 = vadd.f32 0.0, %v2670
      %v2672 = vpop.f32.mrb[0].mxu0
      %v2673 = vpop.f32.mrb[0].mxu0
      %v2674 = vadd.f32 0.0, %v2673
      %v2675 = vpop.f32.mrb[0].mxu0
      %2676 = vmatprep.mubr.bf16.mxu0 0
      %2677 = vmatmul.mubr.bf16.gmra.mrb[0].mxu0 %v2544
      %v2678 = vpop.f32.mrb[0].mxu0
      %v2679 = vadd.f32 0.0, %v2678
      %v2680 = vpop.f32.mrb[0].mxu0
      %v2681 = vpop.f32.mrb[0].mxu0
      %v2682 = vadd.f32 0.0, %v2681
      %v2683 = vpop.f32.mrb[0].mxu0
      %2684 = vmatprep.mubr.bf16.mxu0 0
      %2685 = vmatmul.mubr.bf16.gmra.mrb[0].mxu0 %v2547
      %v2686 = vpop.f32.mrb[0].mxu0
      %v2687 = vadd.f32 0.0, %v2686
      %v2688 = vpop.f32.mrb[0].mxu0
      %v2689 = vpop.f32.mrb[0].mxu0
      %v2690 = vadd.f32 0.0, %v2689
      %v2691 = vpop.f32.mrb[0].mxu0
      %2692 = vmatprep.mubr.bf16.mxu0 0
      %2693 = vmatmul.mubr.bf16.gmra.mrb[0].mxu0 %v2550
      %v2694 = vpop.f32.mrb[0].mxu0
      %v2695 = vadd.f32 0.0, %v2694
      %v2696 = vpop.f32.mrb[0].mxu0
      %v2697 = vpop.f32.mrb[0].mxu0
      %v2698 = vadd.f32 0.0, %v2697
      %v2699 = vpop.f32.mrb[0].mxu0
      %2700 = vmatprep.mubr.bf16.mxu0 0
      %2701 = vmatmul.mubr.bf16.gmra.mrb[0].mxu0 %v2553
      %v2702 = vpop.f32.mrb[0].mxu0
      %v2703 = vadd.f32 0.0, %v2702
      %v2704 = vpop.f32.mrb[0].mxu0
      %v2705 = vpop.f32.mrb[0].mxu0
      %v2706 = vadd.f32 0.0, %v2705
      %v2707 = vpop.f32.mrb[0].mxu0
      %2708 = vmatprep.mubr.bf16.mxu0 0
      %2709 = vmatmul.mubr.bf16.gmra.mrb[0].mxu0 %v2556
      %v2710 = vpop.f32.mrb[0].mxu0
      %v2711 = vadd.f32 0.0, %v2710
      %v2712 = vpop.f32.mrb[0].mxu0
      %v2713 = vpop.f32.mrb[0].mxu0
      %v2714 = vadd.f32 0.0, %v2713
      %v2715 = vpop.f32.mrb[0].mxu0
      %2716 = vmatprep.mubr.bf16.mxu0 0
      %2717 = vmatmul.mubr.bf16.gmra.mrb[0].mxu0 %v2559
      %v2718 = vpop.f32.mrb[0].mxu0
      %v2719 = vadd.f32 0.0, %v2718
      %v2720 = vpop.f32.mrb[0].mxu0
      %v2721 = vpop.f32.mrb[0].mxu0
      %v2722 = vadd.f32 0.0, %v2721
      %v2723 = vpop.f32.mrb[0].mxu0
      %2724 = vdwg.mxu0
      %v2725 = vadd.f32 %v2431, %v2599
      %v2726 = vadd.f32 %v2432, %v2602
      %v2727 = vadd.f32 %v2433, %v2607
      %v2728 = vadd.f32 %v2434, %v2610
      %v2729 = vadd.f32 %v2435, %v2615
      %v2730 = vadd.f32 %v2436, %v2618
      %v2731 = vadd.f32 %v2437, %v2623
      %v2732 = vadd.f32 %v2438, %v2626
      %v2733 = vadd.f32 %v2439, %v2631
      %v2734 = vadd.f32 %v2440, %v2634
      %v2735 = vadd.f32 %v2441, %v2639
      %v2736 = vadd.f32 %v2442, %v2642
      %v2737 = vadd.f32 %v2443, %v2647
      %v2738 = vadd.f32 %v2444, %v2650
      %v2739 = vadd.f32 %v2445, %v2655
      %v2740 = vadd.f32 %v2446, %v2658
      %v2741 = vadd.f32 %v2447, %v2663
      %v2742 = vadd.f32 %v2448, %v2666
      %v2743 = vadd.f32 %v2449, %v2671
      %v2744 = vadd.f32 %v2450, %v2674
      %v2745 = vadd.f32 %v2451, %v2679
      %v2746 = vadd.f32 %v2452, %v2682
      %v2747 = vadd.f32 %v2453, %v2687
      %v2748 = vadd.f32 %v2454, %v2690
      %v2749 = vadd.f32 %v2455, %v2695
      %v2750 = vadd.f32 %v2456, %v2698
      %v2751 = vadd.f32 %v2457, %v2703
      %v2752 = vadd.f32 %v2458, %v2706
      %v2753 = vadd.f32 %v2459, %v2711
      %v2754 = vadd.f32 %v2460, %v2714
      %v2755 = vadd.f32 %v2461, %v2719
      %v2756 = vadd.f32 %v2462, %v2722
      %v2757 = vld [vmem:[%s2] sm:$0x1]
      %v2759 = vlaneseq
      %v2760 = vshrl.u32 %v2759, 7
      %v2761 = vsub.s32 0, %v2760
      %v2762 = vrot.slane %v2757, %v2761
      %v2764 = vadd.f32 %v2725, %v2762
      %v2765 = vadd.f32 %v2726, %v2762
      %v2766 = vadd.f32 %v2727, %v2762
      %v2767 = vadd.f32 %v2728, %v2762
      %v2768 = vadd.f32 %v2729, %v2762
      %v2769 = vadd.f32 %v2730, %v2762
      %v2770 = vadd.f32 %v2731, %v2762
      %v2771 = vadd.f32 %v2732, %v2762
      %v2772 = vadd.f32 %v2733, %v2762
      %v2773 = vadd.f32 %v2734, %v2762
      %v2774 = vadd.f32 %v2735, %v2762
      %v2775 = vadd.f32 %v2736, %v2762
      %v2776 = vadd.f32 %v2737, %v2762
      %v2777 = vadd.f32 %v2738, %v2762
      %v2778 = vadd.f32 %v2739, %v2762
      %v2779 = vadd.f32 %v2740, %v2762
      %v2780 = vadd.f32 %v2741, %v2762
      %v2781 = vadd.f32 %v2742, %v2762
      %v2782 = vadd.f32 %v2743, %v2762
      %v2783 = vadd.f32 %v2744, %v2762
      %v2784 = vadd.f32 %v2745, %v2762
      %v2785 = vadd.f32 %v2746, %v2762
      %v2786 = vadd.f32 %v2747, %v2762
      %v2787 = vadd.f32 %v2748, %v2762
      %v2788 = vadd.f32 %v2749, %v2762
      %v2789 = vadd.f32 %v2750, %v2762
      %v2790 = vadd.f32 %v2751, %v2762
      %v2791 = vadd.f32 %v2752, %v2762
      %v2792 = vadd.f32 %v2753, %v2762
      %v2793 = vadd.f32 %v2754, %v2762
      %v2794 = vadd.f32 %v2755, %v2762
      %v2795 = vadd.f32 %v2756, %v2762
      %v2796 = vmax.f32 %v2764, 0.0
      %v2797 = vmax.f32 %v2765, 0.0
      %v2798 = vmax.f32 %v2766, 0.0
      %v2799 = vmax.f32 %v2767, 0.0
      %v2800 = vmax.f32 %v2768, 0.0
      %v2801 = vmax.f32 %v2769, 0.0
      %v2802 = vmax.f32 %v2770, 0.0
      %v2803 = vmax.f32 %v2771, 0.0
      %v2804 = vmax.f32 %v2772, 0.0
      %v2805 = vmax.f32 %v2773, 0.0
      %v2806 = vmax.f32 %v2774, 0.0
      %v2807 = vmax.f32 %v2775, 0.0
      %v2808 = vmax.f32 %v2776, 0.0
      %v2809 = vmax.f32 %v2777, 0.0
      %v2810 = vmax.f32 %v2778, 0.0
      %v2811 = vmax.f32 %v2779, 0.0
      %v2812 = vmax.f32 %v2780, 0.0
      %v2813 = vmax.f32 %v2781, 0.0
      %v2814 = vmax.f32 %v2782, 0.0
      %v2815 = vmax.f32 %v2783, 0.0
      %v2816 = vmax.f32 %v2784, 0.0
      %v2817 = vmax.f32 %v2785, 0.0
      %v2818 = vmax.f32 %v2786, 0.0
      %v2819 = vmax.f32 %v2787, 0.0
      %v2820 = vmax.f32 %v2788, 0.0
      %v2821 = vmax.f32 %v2789, 0.0
      %v2822 = vmax.f32 %v2790, 0.0
      %v2823 = vmax.f32 %v2791, 0.0
      %v2824 = vmax.f32 %v2792, 0.0
      %v2825 = vmax.f32 %v2793, 0.0
      %v2826 = vmax.f32 %v2794, 0.0
      %v2827 = vmax.f32 %v2795, 0.0
      %vm2828 = vcmask 64512
      %2829 = vst.msk [vmem:[%s170] sm:$0xff] %vm2828, %v2796
      %2830 = vst.msk [vmem:[%s170 + $0x8] sm:$0xff] %vm2828, %v2797
      %2831 = vst.msk [vmem:[%s170 + $0x10] sm:$0xff] %vm2828, %v2798
      %2832 = vst.msk [vmem:[%s170 + $0x18] sm:$0xff] %vm2828, %v2799
      %2833 = vst.msk [vmem:[%s170 + $0x20] sm:$0xff] %vm2828, %v2800
      %2834 = vst.msk [vmem:[%s170 + $0x28] sm:$0xff] %vm2828, %v2801
      %2835 = vst.msk [vmem:[%s170 + $0x30] sm:$0xff] %vm2828, %v2802
      %2836 = vst.msk [vmem:[%s170 + $0x38] sm:$0xff] %vm2828, %v2803
      %2837 = vst.msk [vmem:[%s170 + $0x40] sm:$0xff] %vm2828, %v2804
      %2838 = vst.msk [vmem:[%s170 + $0x48] sm:$0xff] %vm2828, %v2805
      %2839 = vst.msk [vmem:[%s170 + $0x50] sm:$0xff] %vm2828, %v2806
      %2840 = vst.msk [vmem:[%s170 + $0x58] sm:$0xff] %vm2828, %v2807
      %2841 = vst.msk [vmem:[%s170 + $0x60] sm:$0xff] %vm2828, %v2808
      %2842 = vst.msk [vmem:[%s170 + $0x68] sm:$0xff] %vm2828, %v2809
      %2843 = vst.msk [vmem:[%s170 + $0x70] sm:$0xff] %vm2828, %v2810
      %2844 = vst.msk [vmem:[%s170 + $0x78] sm:$0xff] %vm2828, %v2811
      %2845 = vst.msk [vmem:[%s170 + $0x80] sm:$0xff] %vm2828, %v2812
      %2846 = vst.msk [vmem:[%s170 + $0x88] sm:$0xff] %vm2828, %v2813
      %2847 = vst.msk [vmem:[%s170 + $0x90] sm:$0xff] %vm2828, %v2814
      %2848 = vst.msk [vmem:[%s170 + $0x98] sm:$0xff] %vm2828, %v2815
      %2849 = vst.msk [vmem:[%s170 + $0xa0] sm:$0xff] %vm2828, %v2816
      %2850 = vst.msk [vmem:[%s170 + $0xa8] sm:$0xff] %vm2828, %v2817
      %2851 = vst.msk [vmem:[%s170 + $0xb0] sm:$0xff] %vm2828, %v2818
      %2852 = vst.msk [vmem:[%s170 + $0xb8] sm:$0xff] %vm2828, %v2819
      %2853 = vst.msk [vmem:[%s170 + $0xc0] sm:$0xff] %vm2828, %v2820
      %2854 = vst.msk [vmem:[%s170 + $0xc8] sm:$0xff] %vm2828, %v2821
      %2855 = vst.msk [vmem:[%s170 + $0xd0] sm:$0xff] %vm2828, %v2822
      %2856 = vst.msk [vmem:[%s170 + $0xd8] sm:$0xff] %vm2828, %v2823
      %2857 = vst.msk [vmem:[%s170 + $0xe0] sm:$0xff] %vm2828, %v2824
      %2858 = vst.msk [vmem:[%s170 + $0xe8] sm:$0xff] %vm2828, %v2825
      %2859 = vst.msk [vmem:[%s170 + $0xf0] sm:$0xff] %vm2828, %v2826
      %2860 = vst.msk [vmem:[%s170 + $0xf8] sm:$0xff] %vm2828, %v2827
      %p2861 = scmp.lt.s32.totalorder %s14, 3
      %s2862 = scalar_select %p2861, %s14, 3
      %s2863 = smul.addr %s2862, 32
      %s2864 = smul.addr %s2863, 8
      %s2865 = scalar_lea.vmem %s3, %s2864
      // Predicated region
      $region33: #{perceptual_loss.5} parent=31 // pred_check
        %p2866 = pneg %p100
      $region34: #{perceptual_loss.5} parent=31 // pred_check_branch
        %2868 = sbr.rel (%p2866) target = $region36
      $region35: #{perceptual_loss.5} parent=31 // pred_region
        _
      $region36: #{perceptual_loss.5} parent=31 // pred_fallthru
        _
    $region32: #{perceptual_loss.5} parent=5 // pred_fallthru
      _
    %p2869 = scmp.le.s32.totalorder 2, %s9
    // Predicated region
    $region37: #{perceptual_loss.5} parent=5 // pred_check
      %p2870 = pneg %p2869
    $region38: #{perceptual_loss.5} parent=5 // pred_check_branch
      %2872 = sbr.rel (%p2870) target = $region40
    $region39: #{perceptual_loss.5} parent=5 // pred_region
      %s2873 = ssub.s32 %s9, 2
      // Predicated region
      $region41: #{perceptual_loss.5} parent=39 // pred_check
        %p2874 = pneg %p106
      $region42: #{perceptual_loss.5} parent=39 // pred_check_branch
        %2876 = sbr.rel (%p2874) target = $region44
      $region43: #{perceptual_loss.5} parent=39 // pred_region
        %p2877 = scmp.lt.s32.totalorder %s15, 3
        %s2878 = scalar_select %p2877, %s15, 3
        %s2879 = smul.addr %s2878, 32
        %s2880 = smul.addr %s2879, 8
        %s2881 = scalar_lea.vmem %s3, %s2880
      $region44: #{perceptual_loss.5} parent=39 // pred_fallthru
        _
    $region40: #{perceptual_loss.5} parent=5 // pred_fallthru
      _
  $region6: #{perceptual_loss.5} parent=0 // loop_footer
    %s13 = sadd.s32 1, %s9
  $region7: #{perceptual_loss.5} parent=0 // loop_footer_branch
    %8 = sbr.rel target = $region3
  $region8: #{perceptual_loss.5} parent=0 // loop_exit
    _

// kernel: perceptual_loss.9
$region0: #{perceptual_loss.9}
  #allocation0 [shape = 'u32[]', space=smem, size = 0x4, offset = 0x4, fixed_abs, tag = 'smem constant byte address 0x4 - core index']
  #allocation1 [shape = 'u32[144,128]{1,0:T(1,128)}', space=vmem, size = 0x12000, scoped, tag = 'internal scratch']
  %s0 = inlined_call_operand.vmem [shape: f32[4,128], index: 0, kind: input, shape index: {}]
  %s1 = inlined_call_operand.vmem [shape: f32[4,128], index: 1, kind: input, shape index: {}]
  %s2 = inlined_call_operand.hbm [shape: f32[1,1], index: 2, kind: output, shape index: {}]
  %s3 = sld [smem:[#allocation0]]
  $region26: #{perceptual_loss.9} parent=0
    _
  %s5 = ssub.s32 1, %s3
  %s6 = scalar_select 0, %s5, %s3
  $region1: #{perceptual_loss.9} parent=0
    #allocation2 [shape = 'u8[512]{0}', space=smem, size = 0x200, scoped, tag = 'output window, operand 0, single buffered']
    #allocation3 [shape = 's32[1]{0}', space=sflag, size = 0x4, scoped, tag = 'scoped memory for perceptual_loss.9']
    %7 = vsyncpa [#allocation3], 0
    // Predicated region
    $region2: #{perceptual_loss.9} parent=1 // pred_check
      _
    $region3: #{perceptual_loss.9} parent=1 // pred_check_branch
      %9 = sbr.rel (0) target = $region5
    $region4: #{perceptual_loss.9} parent=1 // pred_region
      _
    $region5: #{perceptual_loss.9} parent=1 // pred_fallthru
      _
    // Predicated region
    $region6: #{perceptual_loss.9} parent=1 // pred_check
      _
    $region7: #{perceptual_loss.9} parent=1 // pred_check_branch
      %11 = sbr.rel (0) target = $region9
    $region8: #{perceptual_loss.9} parent=1 // pred_region
      _
    $region9: #{perceptual_loss.9} parent=1 // pred_fallthru
      _
    %p12 = scmp.eq.s32.totalorder 0, 0
    // Predicated region
    $region10: #{perceptual_loss.9} parent=1 // pred_check
      %p13 = pneg %p12
    $region11: #{perceptual_loss.9} parent=1 // pred_check_branch
      %15 = sbr.rel (%p13) target = $region13
    $region12: #{perceptual_loss.9} parent=1 // pred_region
      %s16 = scalar_lea.smem [#allocation2], 0
      %17 = sst [smem:[%s16]] 0.0
    $region13: #{perceptual_loss.9} parent=1 // pred_fallthru
      _
    %v18 = vld [vmem:[%s0] sm:$0xf]
    %v19 = vld [vmem:[%s1] sm:$0xf]
    %v20 = vsub.f32 %v18, %v19
    %s21 = sld [smem:[#allocation2]]
    %v22 = vmul.f32 %v20, %v20
    %vm23 = vcmask 1043456
    %v24 = vsel %vm23, %v22, 0.0
    %25 = vadd.xlane.f32.xlu0 %v24
    %v26 = vpop.xlane.xlu0 %25
    %v27 = vrot.slane %v26, 4
    %v28 = vadd.f32 %v26, %v27
    %v29 = vrot.slane %v28, 2
    %v30 = vadd.f32 %v28, %v29
    %v31 = vrot.slane %v30, 1
    %v32 = vadd.f32 %v30, %v31
    %s33 = vtos %v32
    %s34 = sadd.f32 %s21, %s33
    %s35 = scalar_lea.smem [#allocation2], 0
    %36 = sst [smem:[%s35]] %s34
    // Predicated region
    $region14: #{perceptual_loss.9} parent=1 // pred_check
      %p37 = pneg %p12
    $region15: #{perceptual_loss.9} parent=1 // pred_check_branch
      %39 = sbr.rel (%p37) target = $region17
    $region16: #{perceptual_loss.9} parent=1 // pred_region
      %s40 = sld [smem:[#allocation2]]
      %s41 = smul.f32 %s40, 0.001953125
      %42 = sst [smem:[%s35]] %s41
    $region17: #{perceptual_loss.9} parent=1 // pred_fallthru
      _
    // Predicated region
    $region18: #{perceptual_loss.9} parent=1 // pred_check
      _
    $region19: #{perceptual_loss.9} parent=1 // pred_check_branch
      %44 = sbr.rel (0) target = $region21
    $region20: #{perceptual_loss.9} parent=1 // pred_region
      %s46 = ssub.s32 16, 16
      %47 = vsyncadd [#allocation3], %s46
      %50 = dma.smem_to_hbm [#allocation2], 16, %s2, [#allocation3]
    $region21: #{perceptual_loss.9} parent=1 // pred_fallthru
      _
    // Predicated region
    $region22: #{perceptual_loss.9} parent=1 // pred_check
      _
    $region23: #{perceptual_loss.9} parent=1 // pred_check_branch
      %52 = sbr.rel (0) target = $region25
    $region24: #{perceptual_loss.9} parent=1 // pred_region
      %53 = dma.done [#allocation3], 16
    $region25: #{perceptual_loss.9} parent=1 // pred_fallthru
      _
    %54 = sfence
    %55 = vsyncpa [#allocation3], 1

</llo_original>
